<compile_context>
chip_gen: v5e
topology: v5e:2x2
jax: 0.10.0
libtpu: 0.0.40
codegen_flags: <defaults>
</compile_context>

<pallas_src>
import functools
import math

import jax
import jax.numpy as jnp
from jax import lax
from jax.experimental import pallas as pl
from jax.experimental.pallas import tpu as pltpu

_LN_EPS = 1e-5  # PyTorch nn.LayerNorm / TransformerEncoderLayer default.


# ----------------------------------------------------------------------------
# Shared math helpers (used both inside kernels and in the plain-JAX reference)
# ----------------------------------------------------------------------------
def _ln(x, g, b):
    mu = jnp.mean(x, axis=-1, keepdims=True)
    var = jnp.mean((x - mu) * (x - mu), axis=-1, keepdims=True)
    return (x - mu) * lax.rsqrt(var + _LN_EPS) * g + b


# ----------------------------------------------------------------------------
# Parameter construction (host-side init; stays in plain JAX).
# ----------------------------------------------------------------------------
def _build_pe(d_model, max_len=200, dtype=jnp.float32):
    """Sinusoidal positional-encoding buffer, shape (max_len, d_model)."""
    position = jnp.arange(max_len, dtype=jnp.float32)[:, None]
    div_term = jnp.exp(
        jnp.arange(0, d_model, 2, dtype=jnp.float32) * (-math.log(10000.0) / d_model))
    angles = position * div_term
    pe = jnp.zeros((max_len, d_model), jnp.float32)
    pe = pe.at[:, 0::2].set(jnp.sin(angles))
    pe = pe.at[:, 1::2].set(jnp.cos(angles))
    return pe.astype(dtype)


def init_params(key, t_input_size, s_input_size, hidden, num_layer,
                max_len=200, num_joints=50):
    keys = iter(jax.random.split(key, 128))

    def dense(fan_in, fan_out):
        w = jax.random.normal(next(keys), (fan_in, fan_out), jnp.float32) / math.sqrt(fan_in)
        b = 0.01 * jax.random.normal(next(keys), (1, fan_out), jnp.float32)
        return w, b

    def ln_params(dim):
        return jnp.ones((1, dim), jnp.float32), jnp.zeros((1, dim), jnp.float32)

    def emb(fan_in):
        w1, b1 = dense(fan_in, hidden)
        g1, be1 = ln_params(hidden)
        w2, b2 = dense(hidden, hidden)
        return dict(w1=w1, b1=b1, g1=g1, be1=be1, w2=w2, b2=b2)

    def layer():
        wq, bq = dense(hidden, hidden)
        wk, bk = dense(hidden, hidden)
        wv, bv = dense(hidden, hidden)
        wo, bo = dense(hidden, hidden)
        g1, be1 = ln_params(hidden)
        wf1, bf1 = dense(hidden, hidden)   # dim_feedforward = d_model in STTR
        wf2, bf2 = dense(hidden, hidden)
        g2, be2 = ln_params(hidden)
        return dict(wq=wq, wk=wk, wv=wv, bq=bq, bk=bk, bv=bv, wo=wo, bo=bo,
                    g1=g1, be1=be1, wf1=wf1, bf1=bf1, wf2=wf2, bf2=bf2,
                    g2=g2, be2=be2)

    def layer_stack(n):
        """Stack per-layer parameter dicts into one dict of (L, ...) arrays."""
        ls = [layer() for _ in range(n)]
        return {k: jnp.stack([lyr[k] for lyr in ls]) for k in ls[0]}

    spe = 0.02 * jax.random.truncated_normal(
        next(keys), -2.0, 2.0, (num_joints, hidden), jnp.float32)  # trunc_normal_(std=0.02)

    return dict(
        t_emb=emb(t_input_size),
        s_emb=emb(s_input_size),
        pe=_build_pe(hidden, max_len=max_len),     # (max_len, hidden)
        spe=spe,                                   # (50, hidden) learned positional parameter
        t_layers=layer_stack(num_layer),           # each value has leading L axis
        s_layers=layer_stack(num_layer),
    )


# Order in which the stacked layer-parameter arrays are passed to the kernel.
_LAYER_NAMES = ("wq", "wk", "wv", "bq", "bk", "bv", "wo", "bo",
                "g1", "be1", "wf1", "bf1", "wf2", "bf2", "g2", "be2")


# ----------------------------------------------------------------------------
# Fused per-branch kernel: embedding MLP + PE add + num_layer encoder layers.
# ----------------------------------------------------------------------------
def _branch_kernel(x_ref, pe_ref,
                   w1_ref, b1_ref, g1_ref, be1_ref, w2_ref, b2_ref,
                   wq_ref, wk_ref, wv_ref, bq_ref, bk_ref, bv_ref,
                   wo_ref, bo_ref, lg1_ref, lbe1_ref,
                   wf1_ref, bf1_ref, wf2_ref, bf2_ref, lg2_ref, lbe2_ref,
                   o_ref, *, num_heads, num_layers):
    # ---- Skeleton_Emb branch: Linear -> LayerNorm -> ReLU -> Linear ----
    x = x_ref[0].astype(jnp.float32)                                    # (S, In)
    e = jnp.dot(x, w1_ref[...], preferred_element_type=jnp.float32) + b1_ref[...]
    e = _ln(e, g1_ref[...], be1_ref[...])
    e = jnp.maximum(e, 0.0)
    y = jnp.dot(e, w2_ref[...], preferred_element_type=jnp.float32) + b2_ref[...]
    # Positional-encoding add fused (dropout p=0.0 -> identity).
    # TODO(synk): nonzero-p dropout would use pltpu.prng_seed + pltpu.prng_random_bits here.
    y = y + pe_ref[...]

    S, D = y.shape
    hd = D // num_heads
    scale = 1.0 / math.sqrt(hd)

    # ---- Statically-unrolled post-norm TransformerEncoderLayer stack ----
    for l in range(num_layers):
        # Scale hoisted out of the head loop and folded into q (includes bias, as PyTorch).
        q = (jnp.dot(y, wq_ref[l], preferred_element_type=jnp.float32) + bq_ref[l]) * scale
        k = jnp.dot(y, wk_ref[l], preferred_element_type=jnp.float32) + bk_ref[l]
        v = jnp.dot(y, wv_ref[l], preferred_element_type=jnp.float32) + bv_ref[l]

        ctx_heads = []
        for hh in range(num_heads):                 # static unrolled loop over heads
            s0 = hh * hd
            qh = q[:, s0:s0 + hd]                   # (S, hd)
            kh = k[:, s0:s0 + hd]
            vh = v[:, s0:s0 + hd]
            s = lax.dot_general(qh, kh, (((1,), (1,)), ((), ())),
                                preferred_element_type=jnp.float32)     # (S, S)
            s = s - jnp.max(s, axis=-1, keepdims=True)
            p = jnp.exp(s)
            inv = pl.reciprocal(jnp.sum(p, axis=-1, keepdims=True), approx=True)
            p = p * inv
            ctx_heads.append(jnp.dot(p, vh, preferred_element_type=jnp.float32))
        ctx = jnp.concatenate(ctx_heads, axis=-1)                       # (S, D)
        # Single full-width output projection (== concat(heads) @ Wo).
        attn = jnp.dot(ctx, wo_ref[l], preferred_element_type=jnp.float32) + bo_ref[l]

        y = _ln(y + attn, lg1_ref[l], lbe1_ref[l])                      # norm1(residual)

        ff = jnp.dot(y, wf1_ref[l], preferred_element_type=jnp.float32) + bf1_ref[l]
        ff = jnp.maximum(ff, 0.0)
        ff = jnp.dot(ff, wf2_ref[l], preferred_element_type=jnp.float32) + bf2_ref[l]

        y = _ln(y + ff, lg2_ref[l], lbe2_ref[l])                        # norm2(residual)

    o_ref[0] = y.astype(o_ref.dtype)


# ----------------------------------------------------------------------------
# Wrappers
# ----------------------------------------------------------------------------
def _full_spec(shape):
    nd = len(shape)
    return pl.BlockSpec(shape, lambda b, _nd=nd: (0,) * _nd)   # resident across grid steps


def branch_forward(x, pe_win, emb, layers, num_heads):
    """One fused pallas_call: embedding + PE + full encoder stack, grid over batch."""
    B, S, In = x.shape
    H = emb["w1"].shape[1]
    L = layers["wq"].shape[0]
    if pe_win.shape != (S, H):
        raise ValueError(f"positional encoding shape {pe_win.shape} != ({S}, {H})")
    if H % num_heads != 0:
        raise ValueError("hidden size must be divisible by num_heads")

    kernel = functools.partial(_branch_kernel, num_heads=num_heads, num_layers=L)
    emb_ws = [emb[n] for n in ("w1", "b1", "g1", "be1", "w2", "b2")]
    layer_ws = [layers[n] for n in _LAYER_NAMES]

    return pl.pallas_call(
        kernel,
        out_shape=jax.ShapeDtypeStruct((B, S, H), x.dtype),
        grid=(B,),
        in_specs=[pl.BlockSpec((1, S, In), lambda b: (b, 0, 0)),
                  _full_spec(pe_win.shape)]
                 + [_full_spec(w.shape) for w in emb_ws]
                 + [_full_spec(w.shape) for w in layer_ws],
        out_specs=pl.BlockSpec((1, S, H), lambda b: (b, 0, 0)),
        compiler_params=pltpu.CompilerParams(dimension_semantics=("parallel",)),
    )(x, pe_win, *emb_ws, *layer_ws)


def sttr_forward(params, jt, js, num_head):
    """Pallas implementation of STTR.forward(jt, js): one fused kernel per branch."""
    T = jt.shape[1]
    if T > params["pe"].shape[0]:
        raise ValueError("temporal sequence length exceeds positional buffer length")
    if js.shape[1] != params["spe"].shape[0]:
        raise ValueError("spatial sequence length must match spe length (50)")
    pe_t = params["pe"][:T, :]               # host/trace-side slice; no %8 restriction
    y_t = branch_forward(jt, pe_t, params["t_emb"], params["t_layers"], num_head)
    y_s = branch_forward(js, params["spe"], params["s_emb"], params["s_layers"], num_head)
    return y_t, y_s


# ----------------------------------------------------------------------------
# Plain-JAX reference (for correctness checking)
# ----------------------------------------------------------------------------
def _emb_pe_ref(x, p, pe_win):
    h = x @ p["w1"] + p["b1"]
    h = _ln(h, p["g1"], p["be1"])
    h = jnp.maximum(h, 0.0)
    return h @ p["w2"] + p["b2"] + pe_win[None, :, :]


def _encoder_layer_ref(x, p, num_heads):
    B, S, D = x.shape
    hd = D // num_heads
    q = (x @ p["wq"] + p["bq"]).reshape(B, S, num_heads, hd)
    k = (x @ p["wk"] + p["bk"]).reshape(B, S, num_heads, hd)
    v = (x @ p["wv"] + p["bv"]).reshape(B, S, num_heads, hd)
    s = jnp.einsum("bqhd,bkhd->bhqk", q, k) / math.sqrt(hd)
    a = jax.nn.softmax(s, axis=-1)
    ctx = jnp.einsum("bhqk,bkhd->bqhd", a, v).reshape(B, S, D)
    y = _ln(x + ctx @ p["wo"] + p["bo"], p["g1"], p["be1"])
    ff = jnp.maximum(y @ p["wf1"] + p["bf1"], 0.0) @ p["wf2"] + p["bf2"]
    return _ln(y + ff, p["g2"], p["be2"])


def sttr_ref(params, jt, js, num_head):
    T = jt.shape[1]
    y_t = _emb_pe_ref(jt, params["t_emb"], params["pe"][:T, :])
    y_s = _emb_pe_ref(js, params["s_emb"], params["spe"])
    L = params["t_layers"]["wq"].shape[0]
    for l in range(L):
        lp = {k: v[l] for k, v in params["t_layers"].items()}
        y_t = _encoder_layer_ref(y_t, lp, num_head)
    for l in range(L):
        lp = {k: v[l] for k, v in params["s_layers"].items()}
        y_s = _encoder_layer_ref(y_s, lp, num_head)
    return y_t, y_s


# ----------------------------------------------------------------------------
# Demo / self-check
# ----------------------------------------------------------------------------
if __name__ == "__main__":
    B = 2
    T_SEQ, S_SEQ = 8, 50          # temporal frames; spatial seq must be 50 (spe is (1,50,H))
    T_IN, S_IN = 16, 24
    HIDDEN, NUM_HEAD, NUM_LAYER = 32, 4, 2
    assert HIDDEN % NUM_HEAD == 0

    key = jax.random.PRNGKey(0)
    k_jt, k_js, k_par = jax.random.split(key, 3)
    jt = jax.random.normal(k_jt, (B, T_SEQ, T_IN), jnp.float32)
    js = jax.random.normal(k_js, (B, S_SEQ, S_IN), jnp.float32)

    params = init_params(k_par, T_IN, S_IN, HIDDEN, NUM_LAYER,
                         max_len=200, num_joints=S_SEQ)

    fwd = jax.jit(functools.partial(sttr_forward, num_head=NUM_HEAD))
    y_t, y_s = fwd(params, jt, js)
    y_t, y_s = jax.block_until_ready((y_t, y_s))

    with jax.default_matmul_precision("float32"):
        r_t, r_s = sttr_ref(params, jt, js, num_head=NUM_HEAD)

    assert y_t.shape == (B, T_SEQ, HIDDEN)
    assert y_s.shape == (B, S_SEQ, HIDDEN)
    # Loose-ish tolerance absorbs MXU-vs-XLA f32 matmul precision differences and the
    # approx softmax reciprocal; real implementation bugs produce O(1) errors.
    assert jnp.allclose(y_t, r_t, atol=2e-2, rtol=2e-2), "temporal branch mismatch vs reference"
    assert jnp.allclose(y_s, r_s, atol=2e-2, rtol=2e-2), "spatial branch mismatch vs reference"

    print("KERNEL_OK")
</pallas_src>

<mosaic_0001>
module attributes {stable_mosaic.version = 11 : i64} {
  func.func @_branch_kernel(%arg0: i32, %arg1: memref<1x50x24xf32, #tpu.memory_space<vmem>>, %arg2: memref<50x32xf32, #tpu.memory_space<vmem>>, %arg3: memref<24x32xf32, #tpu.memory_space<vmem>>, %arg4: memref<1x32xf32, #tpu.memory_space<vmem>>, %arg5: memref<1x32xf32, #tpu.memory_space<vmem>>, %arg6: memref<1x32xf32, #tpu.memory_space<vmem>>, %arg7: memref<32x32xf32, #tpu.memory_space<vmem>>, %arg8: memref<1x32xf32, #tpu.memory_space<vmem>>, %arg9: memref<2x32x32xf32, #tpu.memory_space<vmem>>, %arg10: memref<2x32x32xf32, #tpu.memory_space<vmem>>, %arg11: memref<2x32x32xf32, #tpu.memory_space<vmem>>, %arg12: memref<2x1x32xf32, #tpu.memory_space<vmem>>, %arg13: memref<2x1x32xf32, #tpu.memory_space<vmem>>, %arg14: memref<2x1x32xf32, #tpu.memory_space<vmem>>, %arg15: memref<2x32x32xf32, #tpu.memory_space<vmem>>, %arg16: memref<2x1x32xf32, #tpu.memory_space<vmem>>, %arg17: memref<2x1x32xf32, #tpu.memory_space<vmem>>, %arg18: memref<2x1x32xf32, #tpu.memory_space<vmem>>, %arg19: memref<2x32x32xf32, #tpu.memory_space<vmem>>, %arg20: memref<2x1x32xf32, #tpu.memory_space<vmem>>, %arg21: memref<2x32x32xf32, #tpu.memory_space<vmem>>, %arg22: memref<2x1x32xf32, #tpu.memory_space<vmem>>, %arg23: memref<2x1x32xf32, #tpu.memory_space<vmem>>, %arg24: memref<2x1x32xf32, #tpu.memory_space<vmem>>, %arg25: memref<1x50x32xf32, #tpu.memory_space<vmem>>) attributes {dimension_semantics = [#tpu.dimension_semantics<parallel>], iteration_bounds = array<i64: 2>, scalar_prefetch = 0 : i64, scratch_operands = 0 : i64, tpu.core_type = #tpu.core_type<tc>, window_params = [{transform_indices = @transform_0, window_bounds = array<i64: 1, 50, 24>}, {pipeline_mode = #tpu.pipeline_mode<synchronous>, transform_indices = @transform_1, window_bounds = array<i64: 50, 32>}, {pipeline_mode = #tpu.pipeline_mode<synchronous>, transform_indices = @transform_2, window_bounds = array<i64: 24, 32>}, {pipeline_mode = #tpu.pipeline_mode<synchronous>, transform_indices = @transform_3, window_bounds = array<i64: 1, 32>}, {pipeline_mode = #tpu.pipeline_mode<synchronous>, transform_indices = @transform_4, window_bounds = array<i64: 1, 32>}, {pipeline_mode = #tpu.pipeline_mode<synchronous>, transform_indices = @transform_5, window_bounds = array<i64: 1, 32>}, {pipeline_mode = #tpu.pipeline_mode<synchronous>, transform_indices = @transform_6, window_bounds = array<i64: 32, 32>}, {pipeline_mode = #tpu.pipeline_mode<synchronous>, transform_indices = @transform_7, window_bounds = array<i64: 1, 32>}, {pipeline_mode = #tpu.pipeline_mode<synchronous>, transform_indices = @transform_8, window_bounds = array<i64: 2, 32, 32>}, {pipeline_mode = #tpu.pipeline_mode<synchronous>, transform_indices = @transform_9, window_bounds = array<i64: 2, 32, 32>}, {pipeline_mode = #tpu.pipeline_mode<synchronous>, transform_indices = @transform_10, window_bounds = array<i64: 2, 32, 32>}, {pipeline_mode = #tpu.pipeline_mode<synchronous>, transform_indices = @transform_11, window_bounds = array<i64: 2, 1, 32>}, {pipeline_mode = #tpu.pipeline_mode<synchronous>, transform_indices = @transform_12, window_bounds = array<i64: 2, 1, 32>}, {pipeline_mode = #tpu.pipeline_mode<synchronous>, transform_indices = @transform_13, window_bounds = array<i64: 2, 1, 32>}, {pipeline_mode = #tpu.pipeline_mode<synchronous>, transform_indices = @transform_14, window_bounds = array<i64: 2, 32, 32>}, {pipeline_mode = #tpu.pipeline_mode<synchronous>, transform_indices = @transform_15, window_bounds = array<i64: 2, 1, 32>}, {pipeline_mode = #tpu.pipeline_mode<synchronous>, transform_indices = @transform_16, window_bounds = array<i64: 2, 1, 32>}, {pipeline_mode = #tpu.pipeline_mode<synchronous>, transform_indices = @transform_17, window_bounds = array<i64: 2, 1, 32>}, {pipeline_mode = #tpu.pipeline_mode<synchronous>, transform_indices = @transform_18, window_bounds = array<i64: 2, 32, 32>}, {pipeline_mode = #tpu.pipeline_mode<synchronous>, transform_indices = @transform_19, window_bounds = array<i64: 2, 1, 32>}, {pipeline_mode = #tpu.pipeline_mode<synchronous>, transform_indices = @transform_20, window_bounds = array<i64: 2, 32, 32>}, {pipeline_mode = #tpu.pipeline_mode<synchronous>, transform_indices = @transform_21, window_bounds = array<i64: 2, 1, 32>}, {pipeline_mode = #tpu.pipeline_mode<synchronous>, transform_indices = @transform_22, window_bounds = array<i64: 2, 1, 32>}, {pipeline_mode = #tpu.pipeline_mode<synchronous>, transform_indices = @transform_23, window_bounds = array<i64: 2, 1, 32>}, {transform_indices = @transform_24, window_bounds = array<i64: 1, 50, 32>}]} {
    %c0 = arith.constant 0 : index
    %c0_0 = arith.constant 0 : index
    %c0_1 = arith.constant 0 : index
    %0 = vector.load %arg1[%c0, %c0_0, %c0_1] : memref<1x50x24xf32, #tpu.memory_space<vmem>>, vector<1x50x24xf32>
    %1 = vector.shape_cast %0 : vector<1x50x24xf32> to vector<50x24xf32>
    %c0_2 = arith.constant 0 : index
    %c0_3 = arith.constant 0 : index
    %2 = vector.load %arg3[%c0_2, %c0_3] : memref<24x32xf32, #tpu.memory_space<vmem>>, vector<24x32xf32>
    %cst = arith.constant dense<0.000000e+00> : vector<50x32xf32>
    %3 = tpu.matmul %1, %2, %cst {dimension_numbers = #tpu.dot_dimension_numbers<[1], [0], [0], [1], [0, 0, 1, 1], [], []>} : vector<50x24xf32>, vector<24x32xf32>, vector<50x32xf32> -> vector<50x32xf32>
    %c0_4 = arith.constant 0 : index
    %c0_5 = arith.constant 0 : index
    %4 = vector.load %arg4[%c0_4, %c0_5] : memref<1x32xf32, #tpu.memory_space<vmem>>, vector<1x32xf32>
    %5 = vector.broadcast %4 : vector<1x32xf32> to vector<50x32xf32>
    %6 = arith.addf %3, %5 : vector<50x32xf32>
    %c0_6 = arith.constant 0 : index
    %c0_7 = arith.constant 0 : index
    %7 = vector.load %arg5[%c0_6, %c0_7] : memref<1x32xf32, #tpu.memory_space<vmem>>, vector<1x32xf32>
    %c0_8 = arith.constant 0 : index
    %c0_9 = arith.constant 0 : index
    %8 = vector.load %arg6[%c0_8, %c0_9] : memref<1x32xf32, #tpu.memory_space<vmem>>, vector<1x32xf32>
    %cst_10 = arith.constant dense<0.000000e+00> : vector<50xf32>
    %9 = vector.multi_reduction <add>, %6, %cst_10 [1] : vector<50x32xf32> to vector<50xf32>
    %10 = vector.shape_cast %9 : vector<50xf32> to vector<50x1xf32>
    %cst_11 = arith.constant 3.200000e+01 : f32
    %11 = vector.broadcast %cst_11 : f32 to vector<50x1xf32>
    %12 = arith.divf %10, %11 : vector<50x1xf32>
    %13 = vector.broadcast %12 : vector<50x1xf32> to vector<50x32xf32>
    %14 = arith.subf %6, %13 : vector<50x32xf32>
    %15 = vector.broadcast %12 : vector<50x1xf32> to vector<50x32xf32>
    %16 = arith.subf %6, %15 : vector<50x32xf32>
    %17 = arith.mulf %14, %16 : vector<50x32xf32>
    %cst_12 = arith.constant dense<0.000000e+00> : vector<50xf32>
    %18 = vector.multi_reduction <add>, %17, %cst_12 [1] : vector<50x32xf32> to vector<50xf32>
    %19 = vector.shape_cast %18 : vector<50xf32> to vector<50x1xf32>
    %cst_13 = arith.constant 3.200000e+01 : f32
    %20 = vector.broadcast %cst_13 : f32 to vector<50x1xf32>
    %21 = arith.divf %19, %20 : vector<50x1xf32>
    %22 = vector.broadcast %12 : vector<50x1xf32> to vector<50x32xf32>
    %23 = arith.subf %6, %22 : vector<50x32xf32>
    %cst_14 = arith.constant 9.99999974E-6 : f32
    %24 = vector.broadcast %cst_14 : f32 to vector<50x1xf32>
    %25 = arith.addf %21, %24 : vector<50x1xf32>
    %26 = math.rsqrt %25 : vector<50x1xf32>
    %27 = vector.broadcast %26 : vector<50x1xf32> to vector<50x32xf32>
    %28 = arith.mulf %23, %27 : vector<50x32xf32>
    %29 = vector.broadcast %7 : vector<1x32xf32> to vector<50x32xf32>
    %30 = arith.mulf %28, %29 : vector<50x32xf32>
    %31 = vector.broadcast %8 : vector<1x32xf32> to vector<50x32xf32>
    %32 = arith.addf %30, %31 : vector<50x32xf32>
    %cst_15 = arith.constant 0.000000e+00 : f32
    %33 = vector.broadcast %cst_15 : f32 to vector<50x32xf32>
    %34 = arith.maximumf %32, %33 : vector<50x32xf32>
    %c0_16 = arith.constant 0 : index
    %c0_17 = arith.constant 0 : index
    %35 = vector.load %arg7[%c0_16, %c0_17] : memref<32x32xf32, #tpu.memory_space<vmem>>, vector<32x32xf32>
    %cst_18 = arith.constant dense<0.000000e+00> : vector<50x32xf32>
    %36 = tpu.matmul %34, %35, %cst_18 {dimension_numbers = #tpu.dot_dimension_numbers<[1], [0], [0], [1], [0, 0, 1, 1], [], []>} : vector<50x32xf32>, vector<32x32xf32>, vector<50x32xf32> -> vector<50x32xf32>
    %c0_19 = arith.constant 0 : index
    %c0_20 = arith.constant 0 : index
    %37 = vector.load %arg8[%c0_19, %c0_20] : memref<1x32xf32, #tpu.memory_space<vmem>>, vector<1x32xf32>
    %38 = vector.broadcast %37 : vector<1x32xf32> to vector<50x32xf32>
    %39 = arith.addf %36, %38 : vector<50x32xf32>
    %c0_21 = arith.constant 0 : index
    %c0_22 = arith.constant 0 : index
    %40 = vector.load %arg2[%c0_21, %c0_22] : memref<50x32xf32, #tpu.memory_space<vmem>>, vector<50x32xf32>
    %41 = arith.addf %39, %40 : vector<50x32xf32>
    %c0_23 = arith.constant 0 : index
    %c0_24 = arith.constant 0 : index
    %c0_25 = arith.constant 0 : index
    %42 = vector.load %arg9[%c0_23, %c0_24, %c0_25] : memref<2x32x32xf32, #tpu.memory_space<vmem>>, vector<1x32x32xf32>
    %43 = vector.shape_cast %42 : vector<1x32x32xf32> to vector<32x32xf32>
    %cst_26 = arith.constant dense<0.000000e+00> : vector<50x32xf32>
    %44 = tpu.matmul %41, %43, %cst_26 {dimension_numbers = #tpu.dot_dimension_numbers<[1], [0], [0], [1], [0, 0, 1, 1], [], []>} : vector<50x32xf32>, vector<32x32xf32>, vector<50x32xf32> -> vector<50x32xf32>
    %c0_27 = arith.constant 0 : index
    %c0_28 = arith.constant 0 : index
    %c0_29 = arith.constant 0 : index
    %45 = vector.load %arg12[%c0_27, %c0_28, %c0_29] : memref<2x1x32xf32, #tpu.memory_space<vmem>>, vector<1x1x32xf32>
    %46 = vector.shape_cast %45 : vector<1x1x32xf32> to vector<1x32xf32>
    %47 = vector.broadcast %46 : vector<1x32xf32> to vector<50x32xf32>
    %48 = arith.addf %44, %47 : vector<50x32xf32>
    %cst_30 = arith.constant 0.353553385 : f32
    %49 = vector.broadcast %cst_30 : f32 to vector<50x32xf32>
    %50 = arith.mulf %48, %49 : vector<50x32xf32>
    %c0_31 = arith.constant 0 : index
    %c0_32 = arith.constant 0 : index
    %c0_33 = arith.constant 0 : index
    %51 = vector.load %arg10[%c0_31, %c0_32, %c0_33] : memref<2x32x32xf32, #tpu.memory_space<vmem>>, vector<1x32x32xf32>
    %52 = vector.shape_cast %51 : vector<1x32x32xf32> to vector<32x32xf32>
    %cst_34 = arith.constant dense<0.000000e+00> : vector<50x32xf32>
    %53 = tpu.matmul %41, %52, %cst_34 {dimension_numbers = #tpu.dot_dimension_numbers<[1], [0], [0], [1], [0, 0, 1, 1], [], []>} : vector<50x32xf32>, vector<32x32xf32>, vector<50x32xf32> -> vector<50x32xf32>
    %c0_35 = arith.constant 0 : index
    %c0_36 = arith.constant 0 : index
    %c0_37 = arith.constant 0 : index
    %54 = vector.load %arg13[%c0_35, %c0_36, %c0_37] : memref<2x1x32xf32, #tpu.memory_space<vmem>>, vector<1x1x32xf32>
    %55 = vector.shape_cast %54 : vector<1x1x32xf32> to vector<1x32xf32>
    %56 = vector.broadcast %55 : vector<1x32xf32> to vector<50x32xf32>
    %57 = arith.addf %53, %56 : vector<50x32xf32>
    %c0_38 = arith.constant 0 : index
    %c0_39 = arith.constant 0 : index
    %c0_40 = arith.constant 0 : index
    %58 = vector.load %arg11[%c0_38, %c0_39, %c0_40] : memref<2x32x32xf32, #tpu.memory_space<vmem>>, vector<1x32x32xf32>
    %59 = vector.shape_cast %58 : vector<1x32x32xf32> to vector<32x32xf32>
    %cst_41 = arith.constant dense<0.000000e+00> : vector<50x32xf32>
    %60 = tpu.matmul %41, %59, %cst_41 {dimension_numbers = #tpu.dot_dimension_numbers<[1], [0], [0], [1], [0, 0, 1, 1], [], []>} : vector<50x32xf32>, vector<32x32xf32>, vector<50x32xf32> -> vector<50x32xf32>
    %c0_42 = arith.constant 0 : index
    %c0_43 = arith.constant 0 : index
    %c0_44 = arith.constant 0 : index
    %61 = vector.load %arg14[%c0_42, %c0_43, %c0_44] : memref<2x1x32xf32, #tpu.memory_space<vmem>>, vector<1x1x32xf32>
    %62 = vector.shape_cast %61 : vector<1x1x32xf32> to vector<1x32xf32>
    %63 = vector.broadcast %62 : vector<1x32xf32> to vector<50x32xf32>
    %64 = arith.addf %60, %63 : vector<50x32xf32>
    %65 = vector.extract_strided_slice %50 {offsets = [0, 0], sizes = [50, 8], strides = [1, 1]} : vector<50x32xf32> to vector<50x8xf32>
    %66 = vector.extract_strided_slice %57 {offsets = [0, 0], sizes = [50, 8], strides = [1, 1]} : vector<50x32xf32> to vector<50x8xf32>
    %67 = vector.extract_strided_slice %64 {offsets = [0, 0], sizes = [50, 8], strides = [1, 1]} : vector<50x32xf32> to vector<50x8xf32>
    %cst_45 = arith.constant dense<0.000000e+00> : vector<50x50xf32>
    %68 = tpu.matmul %65, %66, %cst_45 {dimension_numbers = #tpu.dot_dimension_numbers<[1], [1], [0], [0], [0, 0, 1, 0], [], []>} : vector<50x8xf32>, vector<50x8xf32>, vector<50x50xf32> -> vector<50x50xf32>
    %cst_46 = arith.constant dense<0xFF800000> : vector<50xf32>
    %69 = vector.multi_reduction <maximumf>, %68, %cst_46 [1] : vector<50x50xf32> to vector<50xf32>
    %70 = vector.shape_cast %69 : vector<50xf32> to vector<50x1xf32>
    %71 = vector.broadcast %70 : vector<50x1xf32> to vector<50x50xf32>
    %72 = arith.subf %68, %71 : vector<50x50xf32>
    %73 = math.exp %72 : vector<50x50xf32>
    %cst_47 = arith.constant dense<0.000000e+00> : vector<50xf32>
    %74 = vector.multi_reduction <add>, %73, %cst_47 [1] : vector<50x50xf32> to vector<50xf32>
    %75 = vector.shape_cast %74 : vector<50xf32> to vector<50x1xf32>
    %76 = tpu.reciprocal %75 {approx = true} : vector<50x1xf32> -> vector<50x1xf32>
    %77 = vector.broadcast %76 : vector<50x1xf32> to vector<50x50xf32>
    %78 = arith.mulf %73, %77 : vector<50x50xf32>
    %cst_48 = arith.constant dense<0.000000e+00> : vector<50x8xf32>
    %79 = tpu.matmul %78, %67, %cst_48 {dimension_numbers = #tpu.dot_dimension_numbers<[1], [0], [0], [1], [0, 0, 1, 1], [], []>} : vector<50x50xf32>, vector<50x8xf32>, vector<50x8xf32> -> vector<50x8xf32>
    %80 = vector.extract_strided_slice %50 {offsets = [0, 8], sizes = [50, 8], strides = [1, 1]} : vector<50x32xf32> to vector<50x8xf32>
    %81 = vector.extract_strided_slice %57 {offsets = [0, 8], sizes = [50, 8], strides = [1, 1]} : vector<50x32xf32> to vector<50x8xf32>
    %82 = vector.extract_strided_slice %64 {offsets = [0, 8], sizes = [50, 8], strides = [1, 1]} : vector<50x32xf32> to vector<50x8xf32>
    %cst_49 = arith.constant dense<0.000000e+00> : vector<50x50xf32>
    %83 = tpu.matmul %80, %81, %cst_49 {dimension_numbers = #tpu.dot_dimension_numbers<[1], [1], [0], [0], [0, 0, 1, 0], [], []>} : vector<50x8xf32>, vector<50x8xf32>, vector<50x50xf32> -> vector<50x50xf32>
    %cst_50 = arith.constant dense<0xFF800000> : vector<50xf32>
    %84 = vector.multi_reduction <maximumf>, %83, %cst_50 [1] : vector<50x50xf32> to vector<50xf32>
    %85 = vector.shape_cast %84 : vector<50xf32> to vector<50x1xf32>
    %86 = vector.broadcast %85 : vector<50x1xf32> to vector<50x50xf32>
    %87 = arith.subf %83, %86 : vector<50x50xf32>
    %88 = math.exp %87 : vector<50x50xf32>
    %cst_51 = arith.constant dense<0.000000e+00> : vector<50xf32>
    %89 = vector.multi_reduction <add>, %88, %cst_51 [1] : vector<50x50xf32> to vector<50xf32>
    %90 = vector.shape_cast %89 : vector<50xf32> to vector<50x1xf32>
    %91 = tpu.reciprocal %90 {approx = true} : vector<50x1xf32> -> vector<50x1xf32>
    %92 = vector.broadcast %91 : vector<50x1xf32> to vector<50x50xf32>
    %93 = arith.mulf %88, %92 : vector<50x50xf32>
    %cst_52 = arith.constant dense<0.000000e+00> : vector<50x8xf32>
    %94 = tpu.matmul %93, %82, %cst_52 {dimension_numbers = #tpu.dot_dimension_numbers<[1], [0], [0], [1], [0, 0, 1, 1], [], []>} : vector<50x50xf32>, vector<50x8xf32>, vector<50x8xf32> -> vector<50x8xf32>
    %95 = vector.extract_strided_slice %50 {offsets = [0, 16], sizes = [50, 8], strides = [1, 1]} : vector<50x32xf32> to vector<50x8xf32>
    %96 = vector.extract_strided_slice %57 {offsets = [0, 16], sizes = [50, 8], strides = [1, 1]} : vector<50x32xf32> to vector<50x8xf32>
    %97 = vector.extract_strided_slice %64 {offsets = [0, 16], sizes = [50, 8], strides = [1, 1]} : vector<50x32xf32> to vector<50x8xf32>
    %cst_53 = arith.constant dense<0.000000e+00> : vector<50x50xf32>
    %98 = tpu.matmul %95, %96, %cst_53 {dimension_numbers = #tpu.dot_dimension_numbers<[1], [1], [0], [0], [0, 0, 1, 0], [], []>} : vector<50x8xf32>, vector<50x8xf32>, vector<50x50xf32> -> vector<50x50xf32>
    %cst_54 = arith.constant dense<0xFF800000> : vector<50xf32>
    %99 = vector.multi_reduction <maximumf>, %98, %cst_54 [1] : vector<50x50xf32> to vector<50xf32>
    %100 = vector.shape_cast %99 : vector<50xf32> to vector<50x1xf32>
    %101 = vector.broadcast %100 : vector<50x1xf32> to vector<50x50xf32>
    %102 = arith.subf %98, %101 : vector<50x50xf32>
    %103 = math.exp %102 : vector<50x50xf32>
    %cst_55 = arith.constant dense<0.000000e+00> : vector<50xf32>
    %104 = vector.multi_reduction <add>, %103, %cst_55 [1] : vector<50x50xf32> to vector<50xf32>
    %105 = vector.shape_cast %104 : vector<50xf32> to vector<50x1xf32>
    %106 = tpu.reciprocal %105 {approx = true} : vector<50x1xf32> -> vector<50x1xf32>
    %107 = vector.broadcast %106 : vector<50x1xf32> to vector<50x50xf32>
    %108 = arith.mulf %103, %107 : vector<50x50xf32>
    %cst_56 = arith.constant dense<0.000000e+00> : vector<50x8xf32>
    %109 = tpu.matmul %108, %97, %cst_56 {dimension_numbers = #tpu.dot_dimension_numbers<[1], [0], [0], [1], [0, 0, 1, 1], [], []>} : vector<50x50xf32>, vector<50x8xf32>, vector<50x8xf32> -> vector<50x8xf32>
    %110 = vector.extract_strided_slice %50 {offsets = [0, 24], sizes = [50, 8], strides = [1, 1]} : vector<50x32xf32> to vector<50x8xf32>
    %111 = vector.extract_strided_slice %57 {offsets = [0, 24], sizes = [50, 8], strides = [1, 1]} : vector<50x32xf32> to vector<50x8xf32>
    %112 = vector.extract_strided_slice %64 {offsets = [0, 24], sizes = [50, 8], strides = [1, 1]} : vector<50x32xf32> to vector<50x8xf32>
    %cst_57 = arith.constant dense<0.000000e+00> : vector<50x50xf32>
    %113 = tpu.matmul %110, %111, %cst_57 {dimension_numbers = #tpu.dot_dimension_numbers<[1], [1], [0], [0], [0, 0, 1, 0], [], []>} : vector<50x8xf32>, vector<50x8xf32>, vector<50x50xf32> -> vector<50x50xf32>
    %cst_58 = arith.constant dense<0xFF800000> : vector<50xf32>
    %114 = vector.multi_reduction <maximumf>, %113, %cst_58 [1] : vector<50x50xf32> to vector<50xf32>
    %115 = vector.shape_cast %114 : vector<50xf32> to vector<50x1xf32>
    %116 = vector.broadcast %115 : vector<50x1xf32> to vector<50x50xf32>
    %117 = arith.subf %113, %116 : vector<50x50xf32>
    %118 = math.exp %117 : vector<50x50xf32>
    %cst_59 = arith.constant dense<0.000000e+00> : vector<50xf32>
    %119 = vector.multi_reduction <add>, %118, %cst_59 [1] : vector<50x50xf32> to vector<50xf32>
    %120 = vector.shape_cast %119 : vector<50xf32> to vector<50x1xf32>
    %121 = tpu.reciprocal %120 {approx = true} : vector<50x1xf32> -> vector<50x1xf32>
    %122 = vector.broadcast %121 : vector<50x1xf32> to vector<50x50xf32>
    %123 = arith.mulf %118, %122 : vector<50x50xf32>
    %cst_60 = arith.constant dense<0.000000e+00> : vector<50x8xf32>
    %124 = tpu.matmul %123, %112, %cst_60 {dimension_numbers = #tpu.dot_dimension_numbers<[1], [0], [0], [1], [0, 0, 1, 1], [], []>} : vector<50x50xf32>, vector<50x8xf32>, vector<50x8xf32> -> vector<50x8xf32>
    %125 = tpu.concatenate %79, %94, %109, %124 in 1 : vector<50x8xf32>, vector<50x8xf32>, vector<50x8xf32>, vector<50x8xf32> -> vector<50x32xf32>
    %c0_61 = arith.constant 0 : index
    %c0_62 = arith.constant 0 : index
    %c0_63 = arith.constant 0 : index
    %126 = vector.load %arg15[%c0_61, %c0_62, %c0_63] : memref<2x32x32xf32, #tpu.memory_space<vmem>>, vector<1x32x32xf32>
    %127 = vector.shape_cast %126 : vector<1x32x32xf32> to vector<32x32xf32>
    %cst_64 = arith.constant dense<0.000000e+00> : vector<50x32xf32>
    %128 = tpu.matmul %125, %127, %cst_64 {dimension_numbers = #tpu.dot_dimension_numbers<[1], [0], [0], [1], [0, 0, 1, 1], [], []>} : vector<50x32xf32>, vector<32x32xf32>, vector<50x32xf32> -> vector<50x32xf32>
    %c0_65 = arith.constant 0 : index
    %c0_66 = arith.constant 0 : index
    %c0_67 = arith.constant 0 : index
    %129 = vector.load %arg16[%c0_65, %c0_66, %c0_67] : memref<2x1x32xf32, #tpu.memory_space<vmem>>, vector<1x1x32xf32>
    %130 = vector.shape_cast %129 : vector<1x1x32xf32> to vector<1x32xf32>
    %131 = vector.broadcast %130 : vector<1x32xf32> to vector<50x32xf32>
    %132 = arith.addf %128, %131 : vector<50x32xf32>
    %133 = arith.addf %41, %132 : vector<50x32xf32>
    %c0_68 = arith.constant 0 : index
    %c0_69 = arith.constant 0 : index
    %c0_70 = arith.constant 0 : index
    %134 = vector.load %arg17[%c0_68, %c0_69, %c0_70] : memref<2x1x32xf32, #tpu.memory_space<vmem>>, vector<1x1x32xf32>
    %135 = vector.shape_cast %134 : vector<1x1x32xf32> to vector<1x32xf32>
    %c0_71 = arith.constant 0 : index
    %c0_72 = arith.constant 0 : index
    %c0_73 = arith.constant 0 : index
    %136 = vector.load %arg18[%c0_71, %c0_72, %c0_73] : memref<2x1x32xf32, #tpu.memory_space<vmem>>, vector<1x1x32xf32>
    %137 = vector.shape_cast %136 : vector<1x1x32xf32> to vector<1x32xf32>
    %cst_74 = arith.constant dense<0.000000e+00> : vector<50xf32>
    %138 = vector.multi_reduction <add>, %133, %cst_74 [1] : vector<50x32xf32> to vector<50xf32>
    %139 = vector.shape_cast %138 : vector<50xf32> to vector<50x1xf32>
    %cst_75 = arith.constant 3.200000e+01 : f32
    %140 = vector.broadcast %cst_75 : f32 to vector<50x1xf32>
    %141 = arith.divf %139, %140 : vector<50x1xf32>
    %142 = vector.broadcast %141 : vector<50x1xf32> to vector<50x32xf32>
    %143 = arith.subf %133, %142 : vector<50x32xf32>
    %144 = vector.broadcast %141 : vector<50x1xf32> to vector<50x32xf32>
    %145 = arith.subf %133, %144 : vector<50x32xf32>
    %146 = arith.mulf %143, %145 : vector<50x32xf32>
    %cst_76 = arith.constant dense<0.000000e+00> : vector<50xf32>
    %147 = vector.multi_reduction <add>, %146, %cst_76 [1] : vector<50x32xf32> to vector<50xf32>
    %148 = vector.shape_cast %147 : vector<50xf32> to vector<50x1xf32>
    %cst_77 = arith.constant 3.200000e+01 : f32
    %149 = vector.broadcast %cst_77 : f32 to vector<50x1xf32>
    %150 = arith.divf %148, %149 : vector<50x1xf32>
    %151 = vector.broadcast %141 : vector<50x1xf32> to vector<50x32xf32>
    %152 = arith.subf %133, %151 : vector<50x32xf32>
    %cst_78 = arith.constant 9.99999974E-6 : f32
    %153 = vector.broadcast %cst_78 : f32 to vector<50x1xf32>
    %154 = arith.addf %150, %153 : vector<50x1xf32>
    %155 = math.rsqrt %154 : vector<50x1xf32>
    %156 = vector.broadcast %155 : vector<50x1xf32> to vector<50x32xf32>
    %157 = arith.mulf %152, %156 : vector<50x32xf32>
    %158 = vector.broadcast %135 : vector<1x32xf32> to vector<50x32xf32>
    %159 = arith.mulf %157, %158 : vector<50x32xf32>
    %160 = vector.broadcast %137 : vector<1x32xf32> to vector<50x32xf32>
    %161 = arith.addf %159, %160 : vector<50x32xf32>
    %c0_79 = arith.constant 0 : index
    %c0_80 = arith.constant 0 : index
    %c0_81 = arith.constant 0 : index
    %162 = vector.load %arg19[%c0_79, %c0_80, %c0_81] : memref<2x32x32xf32, #tpu.memory_space<vmem>>, vector<1x32x32xf32>
    %163 = vector.shape_cast %162 : vector<1x32x32xf32> to vector<32x32xf32>
    %cst_82 = arith.constant dense<0.000000e+00> : vector<50x32xf32>
    %164 = tpu.matmul %161, %163, %cst_82 {dimension_numbers = #tpu.dot_dimension_numbers<[1], [0], [0], [1], [0, 0, 1, 1], [], []>} : vector<50x32xf32>, vector<32x32xf32>, vector<50x32xf32> -> vector<50x32xf32>
    %c0_83 = arith.constant 0 : index
    %c0_84 = arith.constant 0 : index
    %c0_85 = arith.constant 0 : index
    %165 = vector.load %arg20[%c0_83, %c0_84, %c0_85] : memref<2x1x32xf32, #tpu.memory_space<vmem>>, vector<1x1x32xf32>
    %166 = vector.shape_cast %165 : vector<1x1x32xf32> to vector<1x32xf32>
    %167 = vector.broadcast %166 : vector<1x32xf32> to vector<50x32xf32>
    %168 = arith.addf %164, %167 : vector<50x32xf32>
    %cst_86 = arith.constant 0.000000e+00 : f32
    %169 = vector.broadcast %cst_86 : f32 to vector<50x32xf32>
    %170 = arith.maximumf %168, %169 : vector<50x32xf32>
    %c0_87 = arith.constant 0 : index
    %c0_88 = arith.constant 0 : index
    %c0_89 = arith.constant 0 : index
    %171 = vector.load %arg21[%c0_87, %c0_88, %c0_89] : memref<2x32x32xf32, #tpu.memory_space<vmem>>, vector<1x32x32xf32>
    %172 = vector.shape_cast %171 : vector<1x32x32xf32> to vector<32x32xf32>
    %cst_90 = arith.constant dense<0.000000e+00> : vector<50x32xf32>
    %173 = tpu.matmul %170, %172, %cst_90 {dimension_numbers = #tpu.dot_dimension_numbers<[1], [0], [0], [1], [0, 0, 1, 1], [], []>} : vector<50x32xf32>, vector<32x32xf32>, vector<50x32xf32> -> vector<50x32xf32>
    %c0_91 = arith.constant 0 : index
    %c0_92 = arith.constant 0 : index
    %c0_93 = arith.constant 0 : index
    %174 = vector.load %arg22[%c0_91, %c0_92, %c0_93] : memref<2x1x32xf32, #tpu.memory_space<vmem>>, vector<1x1x32xf32>
    %175 = vector.shape_cast %174 : vector<1x1x32xf32> to vector<1x32xf32>
    %176 = vector.broadcast %175 : vector<1x32xf32> to vector<50x32xf32>
    %177 = arith.addf %173, %176 : vector<50x32xf32>
    %178 = arith.addf %161, %177 : vector<50x32xf32>
    %c0_94 = arith.constant 0 : index
    %c0_95 = arith.constant 0 : index
    %c0_96 = arith.constant 0 : index
    %179 = vector.load %arg23[%c0_94, %c0_95, %c0_96] : memref<2x1x32xf32, #tpu.memory_space<vmem>>, vector<1x1x32xf32>
    %180 = vector.shape_cast %179 : vector<1x1x32xf32> to vector<1x32xf32>
    %c0_97 = arith.constant 0 : index
    %c0_98 = arith.constant 0 : index
    %c0_99 = arith.constant 0 : index
    %181 = vector.load %arg24[%c0_97, %c0_98, %c0_99] : memref<2x1x32xf32, #tpu.memory_space<vmem>>, vector<1x1x32xf32>
    %182 = vector.shape_cast %181 : vector<1x1x32xf32> to vector<1x32xf32>
    %cst_100 = arith.constant dense<0.000000e+00> : vector<50xf32>
    %183 = vector.multi_reduction <add>, %178, %cst_100 [1] : vector<50x32xf32> to vector<50xf32>
    %184 = vector.shape_cast %183 : vector<50xf32> to vector<50x1xf32>
    %cst_101 = arith.constant 3.200000e+01 : f32
    %185 = vector.broadcast %cst_101 : f32 to vector<50x1xf32>
    %186 = arith.divf %184, %185 : vector<50x1xf32>
    %187 = vector.broadcast %186 : vector<50x1xf32> to vector<50x32xf32>
    %188 = arith.subf %178, %187 : vector<50x32xf32>
    %189 = vector.broadcast %186 : vector<50x1xf32> to vector<50x32xf32>
    %190 = arith.subf %178, %189 : vector<50x32xf32>
    %191 = arith.mulf %188, %190 : vector<50x32xf32>
    %cst_102 = arith.constant dense<0.000000e+00> : vector<50xf32>
    %192 = vector.multi_reduction <add>, %191, %cst_102 [1] : vector<50x32xf32> to vector<50xf32>
    %193 = vector.shape_cast %192 : vector<50xf32> to vector<50x1xf32>
    %cst_103 = arith.constant 3.200000e+01 : f32
    %194 = vector.broadcast %cst_103 : f32 to vector<50x1xf32>
    %195 = arith.divf %193, %194 : vector<50x1xf32>
    %196 = vector.broadcast %186 : vector<50x1xf32> to vector<50x32xf32>
    %197 = arith.subf %178, %196 : vector<50x32xf32>
    %cst_104 = arith.constant 9.99999974E-6 : f32
    %198 = vector.broadcast %cst_104 : f32 to vector<50x1xf32>
    %199 = arith.addf %195, %198 : vector<50x1xf32>
    %200 = math.rsqrt %199 : vector<50x1xf32>
    %201 = vector.broadcast %200 : vector<50x1xf32> to vector<50x32xf32>
    %202 = arith.mulf %197, %201 : vector<50x32xf32>
    %203 = vector.broadcast %180 : vector<1x32xf32> to vector<50x32xf32>
    %204 = arith.mulf %202, %203 : vector<50x32xf32>
    %205 = vector.broadcast %182 : vector<1x32xf32> to vector<50x32xf32>
    %206 = arith.addf %204, %205 : vector<50x32xf32>
    %c1 = arith.constant 1 : index
    %c0_105 = arith.constant 0 : index
    %c0_106 = arith.constant 0 : index
    %207 = vector.load %arg9[%c1, %c0_105, %c0_106] : memref<2x32x32xf32, #tpu.memory_space<vmem>>, vector<1x32x32xf32>
    %208 = vector.shape_cast %207 : vector<1x32x32xf32> to vector<32x32xf32>
    %cst_107 = arith.constant dense<0.000000e+00> : vector<50x32xf32>
    %209 = tpu.matmul %206, %208, %cst_107 {dimension_numbers = #tpu.dot_dimension_numbers<[1], [0], [0], [1], [0, 0, 1, 1], [], []>} : vector<50x32xf32>, vector<32x32xf32>, vector<50x32xf32> -> vector<50x32xf32>
    %c1_108 = arith.constant 1 : index
    %c0_109 = arith.constant 0 : index
    %c0_110 = arith.constant 0 : index
    %210 = vector.load %arg12[%c1_108, %c0_109, %c0_110] : memref<2x1x32xf32, #tpu.memory_space<vmem>>, vector<1x1x32xf32>
    %211 = vector.shape_cast %210 : vector<1x1x32xf32> to vector<1x32xf32>
    %212 = vector.broadcast %211 : vector<1x32xf32> to vector<50x32xf32>
    %213 = arith.addf %209, %212 : vector<50x32xf32>
    %cst_111 = arith.constant 0.353553385 : f32
    %214 = vector.broadcast %cst_111 : f32 to vector<50x32xf32>
    %215 = arith.mulf %213, %214 : vector<50x32xf32>
    %c1_112 = arith.constant 1 : index
    %c0_113 = arith.constant 0 : index
    %c0_114 = arith.constant 0 : index
    %216 = vector.load %arg10[%c1_112, %c0_113, %c0_114] : memref<2x32x32xf32, #tpu.memory_space<vmem>>, vector<1x32x32xf32>
    %217 = vector.shape_cast %216 : vector<1x32x32xf32> to vector<32x32xf32>
    %cst_115 = arith.constant dense<0.000000e+00> : vector<50x32xf32>
    %218 = tpu.matmul %206, %217, %cst_115 {dimension_numbers = #tpu.dot_dimension_numbers<[1], [0], [0], [1], [0, 0, 1, 1], [], []>} : vector<50x32xf32>, vector<32x32xf32>, vector<50x32xf32> -> vector<50x32xf32>
    %c1_116 = arith.constant 1 : index
    %c0_117 = arith.constant 0 : index
    %c0_118 = arith.constant 0 : index
    %219 = vector.load %arg13[%c1_116, %c0_117, %c0_118] : memref<2x1x32xf32, #tpu.memory_space<vmem>>, vector<1x1x32xf32>
    %220 = vector.shape_cast %219 : vector<1x1x32xf32> to vector<1x32xf32>
    %221 = vector.broadcast %220 : vector<1x32xf32> to vector<50x32xf32>
    %222 = arith.addf %218, %221 : vector<50x32xf32>
    %c1_119 = arith.constant 1 : index
    %c0_120 = arith.constant 0 : index
    %c0_121 = arith.constant 0 : index
    %223 = vector.load %arg11[%c1_119, %c0_120, %c0_121] : memref<2x32x32xf32, #tpu.memory_space<vmem>>, vector<1x32x32xf32>
    %224 = vector.shape_cast %223 : vector<1x32x32xf32> to vector<32x32xf32>
    %cst_122 = arith.constant dense<0.000000e+00> : vector<50x32xf32>
    %225 = tpu.matmul %206, %224, %cst_122 {dimension_numbers = #tpu.dot_dimension_numbers<[1], [0], [0], [1], [0, 0, 1, 1], [], []>} : vector<50x32xf32>, vector<32x32xf32>, vector<50x32xf32> -> vector<50x32xf32>
    %c1_123 = arith.constant 1 : index
    %c0_124 = arith.constant 0 : index
    %c0_125 = arith.constant 0 : index
    %226 = vector.load %arg14[%c1_123, %c0_124, %c0_125] : memref<2x1x32xf32, #tpu.memory_space<vmem>>, vector<1x1x32xf32>
    %227 = vector.shape_cast %226 : vector<1x1x32xf32> to vector<1x32xf32>
    %228 = vector.broadcast %227 : vector<1x32xf32> to vector<50x32xf32>
    %229 = arith.addf %225, %228 : vector<50x32xf32>
    %230 = vector.extract_strided_slice %215 {offsets = [0, 0], sizes = [50, 8], strides = [1, 1]} : vector<50x32xf32> to vector<50x8xf32>
    %231 = vector.extract_strided_slice %222 {offsets = [0, 0], sizes = [50, 8], strides = [1, 1]} : vector<50x32xf32> to vector<50x8xf32>
    %232 = vector.extract_strided_slice %229 {offsets = [0, 0], sizes = [50, 8], strides = [1, 1]} : vector<50x32xf32> to vector<50x8xf32>
    %cst_126 = arith.constant dense<0.000000e+00> : vector<50x50xf32>
    %233 = tpu.matmul %230, %231, %cst_126 {dimension_numbers = #tpu.dot_dimension_numbers<[1], [1], [0], [0], [0, 0, 1, 0], [], []>} : vector<50x8xf32>, vector<50x8xf32>, vector<50x50xf32> -> vector<50x50xf32>
    %cst_127 = arith.constant dense<0xFF800000> : vector<50xf32>
    %234 = vector.multi_reduction <maximumf>, %233, %cst_127 [1] : vector<50x50xf32> to vector<50xf32>
    %235 = vector.shape_cast %234 : vector<50xf32> to vector<50x1xf32>
    %236 = vector.broadcast %235 : vector<50x1xf32> to vector<50x50xf32>
    %237 = arith.subf %233, %236 : vector<50x50xf32>
    %238 = math.exp %237 : vector<50x50xf32>
    %cst_128 = arith.constant dense<0.000000e+00> : vector<50xf32>
    %239 = vector.multi_reduction <add>, %238, %cst_128 [1] : vector<50x50xf32> to vector<50xf32>
    %240 = vector.shape_cast %239 : vector<50xf32> to vector<50x1xf32>
    %241 = tpu.reciprocal %240 {approx = true} : vector<50x1xf32> -> vector<50x1xf32>
    %242 = vector.broadcast %241 : vector<50x1xf32> to vector<50x50xf32>
    %243 = arith.mulf %238, %242 : vector<50x50xf32>
    %cst_129 = arith.constant dense<0.000000e+00> : vector<50x8xf32>
    %244 = tpu.matmul %243, %232, %cst_129 {dimension_numbers = #tpu.dot_dimension_numbers<[1], [0], [0], [1], [0, 0, 1, 1], [], []>} : vector<50x50xf32>, vector<50x8xf32>, vector<50x8xf32> -> vector<50x8xf32>
    %245 = vector.extract_strided_slice %215 {offsets = [0, 8], sizes = [50, 8], strides = [1, 1]} : vector<50x32xf32> to vector<50x8xf32>
    %246 = vector.extract_strided_slice %222 {offsets = [0, 8], sizes = [50, 8], strides = [1, 1]} : vector<50x32xf32> to vector<50x8xf32>
    %247 = vector.extract_strided_slice %229 {offsets = [0, 8], sizes = [50, 8], strides = [1, 1]} : vector<50x32xf32> to vector<50x8xf32>
    %cst_130 = arith.constant dense<0.000000e+00> : vector<50x50xf32>
    %248 = tpu.matmul %245, %246, %cst_130 {dimension_numbers = #tpu.dot_dimension_numbers<[1], [1], [0], [0], [0, 0, 1, 0], [], []>} : vector<50x8xf32>, vector<50x8xf32>, vector<50x50xf32> -> vector<50x50xf32>
    %cst_131 = arith.constant dense<0xFF800000> : vector<50xf32>
    %249 = vector.multi_reduction <maximumf>, %248, %cst_131 [1] : vector<50x50xf32> to vector<50xf32>
    %250 = vector.shape_cast %249 : vector<50xf32> to vector<50x1xf32>
    %251 = vector.broadcast %250 : vector<50x1xf32> to vector<50x50xf32>
    %252 = arith.subf %248, %251 : vector<50x50xf32>
    %253 = math.exp %252 : vector<50x50xf32>
    %cst_132 = arith.constant dense<0.000000e+00> : vector<50xf32>
    %254 = vector.multi_reduction <add>, %253, %cst_132 [1] : vector<50x50xf32> to vector<50xf32>
    %255 = vector.shape_cast %254 : vector<50xf32> to vector<50x1xf32>
    %256 = tpu.reciprocal %255 {approx = true} : vector<50x1xf32> -> vector<50x1xf32>
    %257 = vector.broadcast %256 : vector<50x1xf32> to vector<50x50xf32>
    %258 = arith.mulf %253, %257 : vector<50x50xf32>
    %cst_133 = arith.constant dense<0.000000e+00> : vector<50x8xf32>
    %259 = tpu.matmul %258, %247, %cst_133 {dimension_numbers = #tpu.dot_dimension_numbers<[1], [0], [0], [1], [0, 0, 1, 1], [], []>} : vector<50x50xf32>, vector<50x8xf32>, vector<50x8xf32> -> vector<50x8xf32>
    %260 = vector.extract_strided_slice %215 {offsets = [0, 16], sizes = [50, 8], strides = [1, 1]} : vector<50x32xf32> to vector<50x8xf32>
    %261 = vector.extract_strided_slice %222 {offsets = [0, 16], sizes = [50, 8], strides = [1, 1]} : vector<50x32xf32> to vector<50x8xf32>
    %262 = vector.extract_strided_slice %229 {offsets = [0, 16], sizes = [50, 8], strides = [1, 1]} : vector<50x32xf32> to vector<50x8xf32>
    %cst_134 = arith.constant dense<0.000000e+00> : vector<50x50xf32>
    %263 = tpu.matmul %260, %261, %cst_134 {dimension_numbers = #tpu.dot_dimension_numbers<[1], [1], [0], [0], [0, 0, 1, 0], [], []>} : vector<50x8xf32>, vector<50x8xf32>, vector<50x50xf32> -> vector<50x50xf32>
    %cst_135 = arith.constant dense<0xFF800000> : vector<50xf32>
    %264 = vector.multi_reduction <maximumf>, %263, %cst_135 [1] : vector<50x50xf32> to vector<50xf32>
    %265 = vector.shape_cast %264 : vector<50xf32> to vector<50x1xf32>
    %266 = vector.broadcast %265 : vector<50x1xf32> to vector<50x50xf32>
    %267 = arith.subf %263, %266 : vector<50x50xf32>
    %268 = math.exp %267 : vector<50x50xf32>
    %cst_136 = arith.constant dense<0.000000e+00> : vector<50xf32>
    %269 = vector.multi_reduction <add>, %268, %cst_136 [1] : vector<50x50xf32> to vector<50xf32>
    %270 = vector.shape_cast %269 : vector<50xf32> to vector<50x1xf32>
    %271 = tpu.reciprocal %270 {approx = true} : vector<50x1xf32> -> vector<50x1xf32>
    %272 = vector.broadcast %271 : vector<50x1xf32> to vector<50x50xf32>
    %273 = arith.mulf %268, %272 : vector<50x50xf32>
    %cst_137 = arith.constant dense<0.000000e+00> : vector<50x8xf32>
    %274 = tpu.matmul %273, %262, %cst_137 {dimension_numbers = #tpu.dot_dimension_numbers<[1], [0], [0], [1], [0, 0, 1, 1], [], []>} : vector<50x50xf32>, vector<50x8xf32>, vector<50x8xf32> -> vector<50x8xf32>
    %275 = vector.extract_strided_slice %215 {offsets = [0, 24], sizes = [50, 8], strides = [1, 1]} : vector<50x32xf32> to vector<50x8xf32>
    %276 = vector.extract_strided_slice %222 {offsets = [0, 24], sizes = [50, 8], strides = [1, 1]} : vector<50x32xf32> to vector<50x8xf32>
    %277 = vector.extract_strided_slice %229 {offsets = [0, 24], sizes = [50, 8], strides = [1, 1]} : vector<50x32xf32> to vector<50x8xf32>
    %cst_138 = arith.constant dense<0.000000e+00> : vector<50x50xf32>
    %278 = tpu.matmul %275, %276, %cst_138 {dimension_numbers = #tpu.dot_dimension_numbers<[1], [1], [0], [0], [0, 0, 1, 0], [], []>} : vector<50x8xf32>, vector<50x8xf32>, vector<50x50xf32> -> vector<50x50xf32>
    %cst_139 = arith.constant dense<0xFF800000> : vector<50xf32>
    %279 = vector.multi_reduction <maximumf>, %278, %cst_139 [1] : vector<50x50xf32> to vector<50xf32>
    %280 = vector.shape_cast %279 : vector<50xf32> to vector<50x1xf32>
    %281 = vector.broadcast %280 : vector<50x1xf32> to vector<50x50xf32>
    %282 = arith.subf %278, %281 : vector<50x50xf32>
    %283 = math.exp %282 : vector<50x50xf32>
    %cst_140 = arith.constant dense<0.000000e+00> : vector<50xf32>
    %284 = vector.multi_reduction <add>, %283, %cst_140 [1] : vector<50x50xf32> to vector<50xf32>
    %285 = vector.shape_cast %284 : vector<50xf32> to vector<50x1xf32>
    %286 = tpu.reciprocal %285 {approx = true} : vector<50x1xf32> -> vector<50x1xf32>
    %287 = vector.broadcast %286 : vector<50x1xf32> to vector<50x50xf32>
    %288 = arith.mulf %283, %287 : vector<50x50xf32>
    %cst_141 = arith.constant dense<0.000000e+00> : vector<50x8xf32>
    %289 = tpu.matmul %288, %277, %cst_141 {dimension_numbers = #tpu.dot_dimension_numbers<[1], [0], [0], [1], [0, 0, 1, 1], [], []>} : vector<50x50xf32>, vector<50x8xf32>, vector<50x8xf32> -> vector<50x8xf32>
    %290 = tpu.concatenate %244, %259, %274, %289 in 1 : vector<50x8xf32>, vector<50x8xf32>, vector<50x8xf32>, vector<50x8xf32> -> vector<50x32xf32>
    %c1_142 = arith.constant 1 : index
    %c0_143 = arith.constant 0 : index
    %c0_144 = arith.constant 0 : index
    %291 = vector.load %arg15[%c1_142, %c0_143, %c0_144] : memref<2x32x32xf32, #tpu.memory_space<vmem>>, vector<1x32x32xf32>
    %292 = vector.shape_cast %291 : vector<1x32x32xf32> to vector<32x32xf32>
    %cst_145 = arith.constant dense<0.000000e+00> : vector<50x32xf32>
    %293 = tpu.matmul %290, %292, %cst_145 {dimension_numbers = #tpu.dot_dimension_numbers<[1], [0], [0], [1], [0, 0, 1, 1], [], []>} : vector<50x32xf32>, vector<32x32xf32>, vector<50x32xf32> -> vector<50x32xf32>
    %c1_146 = arith.constant 1 : index
    %c0_147 = arith.constant 0 : index
    %c0_148 = arith.constant 0 : index
    %294 = vector.load %arg16[%c1_146, %c0_147, %c0_148] : memref<2x1x32xf32, #tpu.memory_space<vmem>>, vector<1x1x32xf32>
    %295 = vector.shape_cast %294 : vector<1x1x32xf32> to vector<1x32xf32>
    %296 = vector.broadcast %295 : vector<1x32xf32> to vector<50x32xf32>
    %297 = arith.addf %293, %296 : vector<50x32xf32>
    %298 = arith.addf %206, %297 : vector<50x32xf32>
    %c1_149 = arith.constant 1 : index
    %c0_150 = arith.constant 0 : index
    %c0_151 = arith.constant 0 : index
    %299 = vector.load %arg17[%c1_149, %c0_150, %c0_151] : memref<2x1x32xf32, #tpu.memory_space<vmem>>, vector<1x1x32xf32>
    %300 = vector.shape_cast %299 : vector<1x1x32xf32> to vector<1x32xf32>
    %c1_152 = arith.constant 1 : index
    %c0_153 = arith.constant 0 : index
    %c0_154 = arith.constant 0 : index
    %301 = vector.load %arg18[%c1_152, %c0_153, %c0_154] : memref<2x1x32xf32, #tpu.memory_space<vmem>>, vector<1x1x32xf32>
    %302 = vector.shape_cast %301 : vector<1x1x32xf32> to vector<1x32xf32>
    %cst_155 = arith.constant dense<0.000000e+00> : vector<50xf32>
    %303 = vector.multi_reduction <add>, %298, %cst_155 [1] : vector<50x32xf32> to vector<50xf32>
    %304 = vector.shape_cast %303 : vector<50xf32> to vector<50x1xf32>
    %cst_156 = arith.constant 3.200000e+01 : f32
    %305 = vector.broadcast %cst_156 : f32 to vector<50x1xf32>
    %306 = arith.divf %304, %305 : vector<50x1xf32>
    %307 = vector.broadcast %306 : vector<50x1xf32> to vector<50x32xf32>
    %308 = arith.subf %298, %307 : vector<50x32xf32>
    %309 = vector.broadcast %306 : vector<50x1xf32> to vector<50x32xf32>
    %310 = arith.subf %298, %309 : vector<50x32xf32>
    %311 = arith.mulf %308, %310 : vector<50x32xf32>
    %cst_157 = arith.constant dense<0.000000e+00> : vector<50xf32>
    %312 = vector.multi_reduction <add>, %311, %cst_157 [1] : vector<50x32xf32> to vector<50xf32>
    %313 = vector.shape_cast %312 : vector<50xf32> to vector<50x1xf32>
    %cst_158 = arith.constant 3.200000e+01 : f32
    %314 = vector.broadcast %cst_158 : f32 to vector<50x1xf32>
    %315 = arith.divf %313, %314 : vector<50x1xf32>
    %316 = vector.broadcast %306 : vector<50x1xf32> to vector<50x32xf32>
    %317 = arith.subf %298, %316 : vector<50x32xf32>
    %cst_159 = arith.constant 9.99999974E-6 : f32
    %318 = vector.broadcast %cst_159 : f32 to vector<50x1xf32>
    %319 = arith.addf %315, %318 : vector<50x1xf32>
    %320 = math.rsqrt %319 : vector<50x1xf32>
    %321 = vector.broadcast %320 : vector<50x1xf32> to vector<50x32xf32>
    %322 = arith.mulf %317, %321 : vector<50x32xf32>
    %323 = vector.broadcast %300 : vector<1x32xf32> to vector<50x32xf32>
    %324 = arith.mulf %322, %323 : vector<50x32xf32>
    %325 = vector.broadcast %302 : vector<1x32xf32> to vector<50x32xf32>
    %326 = arith.addf %324, %325 : vector<50x32xf32>
    %c1_160 = arith.constant 1 : index
    %c0_161 = arith.constant 0 : index
    %c0_162 = arith.constant 0 : index
    %327 = vector.load %arg19[%c1_160, %c0_161, %c0_162] : memref<2x32x32xf32, #tpu.memory_space<vmem>>, vector<1x32x32xf32>
    %328 = vector.shape_cast %327 : vector<1x32x32xf32> to vector<32x32xf32>
    %cst_163 = arith.constant dense<0.000000e+00> : vector<50x32xf32>
    %329 = tpu.matmul %326, %328, %cst_163 {dimension_numbers = #tpu.dot_dimension_numbers<[1], [0], [0], [1], [0, 0, 1, 1], [], []>} : vector<50x32xf32>, vector<32x32xf32>, vector<50x32xf32> -> vector<50x32xf32>
    %c1_164 = arith.constant 1 : index
    %c0_165 = arith.constant 0 : index
    %c0_166 = arith.constant 0 : index
    %330 = vector.load %arg20[%c1_164, %c0_165, %c0_166] : memref<2x1x32xf32, #tpu.memory_space<vmem>>, vector<1x1x32xf32>
    %331 = vector.shape_cast %330 : vector<1x1x32xf32> to vector<1x32xf32>
    %332 = vector.broadcast %331 : vector<1x32xf32> to vector<50x32xf32>
    %333 = arith.addf %329, %332 : vector<50x32xf32>
    %cst_167 = arith.constant 0.000000e+00 : f32
    %334 = vector.broadcast %cst_167 : f32 to vector<50x32xf32>
    %335 = arith.maximumf %333, %334 : vector<50x32xf32>
    %c1_168 = arith.constant 1 : index
    %c0_169 = arith.constant 0 : index
    %c0_170 = arith.constant 0 : index
    %336 = vector.load %arg21[%c1_168, %c0_169, %c0_170] : memref<2x32x32xf32, #tpu.memory_space<vmem>>, vector<1x32x32xf32>
    %337 = vector.shape_cast %336 : vector<1x32x32xf32> to vector<32x32xf32>
    %cst_171 = arith.constant dense<0.000000e+00> : vector<50x32xf32>
    %338 = tpu.matmul %335, %337, %cst_171 {dimension_numbers = #tpu.dot_dimension_numbers<[1], [0], [0], [1], [0, 0, 1, 1], [], []>} : vector<50x32xf32>, vector<32x32xf32>, vector<50x32xf32> -> vector<50x32xf32>
    %c1_172 = arith.constant 1 : index
    %c0_173 = arith.constant 0 : index
    %c0_174 = arith.constant 0 : index
    %339 = vector.load %arg22[%c1_172, %c0_173, %c0_174] : memref<2x1x32xf32, #tpu.memory_space<vmem>>, vector<1x1x32xf32>
    %340 = vector.shape_cast %339 : vector<1x1x32xf32> to vector<1x32xf32>
    %341 = vector.broadcast %340 : vector<1x32xf32> to vector<50x32xf32>
    %342 = arith.addf %338, %341 : vector<50x32xf32>
    %343 = arith.addf %326, %342 : vector<50x32xf32>
    %c1_175 = arith.constant 1 : index
    %c0_176 = arith.constant 0 : index
    %c0_177 = arith.constant 0 : index
    %344 = vector.load %arg23[%c1_175, %c0_176, %c0_177] : memref<2x1x32xf32, #tpu.memory_space<vmem>>, vector<1x1x32xf32>
    %345 = vector.shape_cast %344 : vector<1x1x32xf32> to vector<1x32xf32>
    %c1_178 = arith.constant 1 : index
    %c0_179 = arith.constant 0 : index
    %c0_180 = arith.constant 0 : index
    %346 = vector.load %arg24[%c1_178, %c0_179, %c0_180] : memref<2x1x32xf32, #tpu.memory_space<vmem>>, vector<1x1x32xf32>
    %347 = vector.shape_cast %346 : vector<1x1x32xf32> to vector<1x32xf32>
    %cst_181 = arith.constant dense<0.000000e+00> : vector<50xf32>
    %348 = vector.multi_reduction <add>, %343, %cst_181 [1] : vector<50x32xf32> to vector<50xf32>
    %349 = vector.shape_cast %348 : vector<50xf32> to vector<50x1xf32>
    %cst_182 = arith.constant 3.200000e+01 : f32
    %350 = vector.broadcast %cst_182 : f32 to vector<50x1xf32>
    %351 = arith.divf %349, %350 : vector<50x1xf32>
    %352 = vector.broadcast %351 : vector<50x1xf32> to vector<50x32xf32>
    %353 = arith.subf %343, %352 : vector<50x32xf32>
    %354 = vector.broadcast %351 : vector<50x1xf32> to vector<50x32xf32>
    %355 = arith.subf %343, %354 : vector<50x32xf32>
    %356 = arith.mulf %353, %355 : vector<50x32xf32>
    %cst_183 = arith.constant dense<0.000000e+00> : vector<50xf32>
    %357 = vector.multi_reduction <add>, %356, %cst_183 [1] : vector<50x32xf32> to vector<50xf32>
    %358 = vector.shape_cast %357 : vector<50xf32> to vector<50x1xf32>
    %cst_184 = arith.constant 3.200000e+01 : f32
    %359 = vector.broadcast %cst_184 : f32 to vector<50x1xf32>
    %360 = arith.divf %358, %359 : vector<50x1xf32>
    %361 = vector.broadcast %351 : vector<50x1xf32> to vector<50x32xf32>
    %362 = arith.subf %343, %361 : vector<50x32xf32>
    %cst_185 = arith.constant 9.99999974E-6 : f32
    %363 = vector.broadcast %cst_185 : f32 to vector<50x1xf32>
    %364 = arith.addf %360, %363 : vector<50x1xf32>
    %365 = math.rsqrt %364 : vector<50x1xf32>
    %366 = vector.broadcast %365 : vector<50x1xf32> to vector<50x32xf32>
    %367 = arith.mulf %362, %366 : vector<50x32xf32>
    %368 = vector.broadcast %345 : vector<1x32xf32> to vector<50x32xf32>
    %369 = arith.mulf %367, %368 : vector<50x32xf32>
    %370 = vector.broadcast %347 : vector<1x32xf32> to vector<50x32xf32>
    %371 = arith.addf %369, %370 : vector<50x32xf32>
    %c0_186 = arith.constant 0 : index
    %c0_187 = arith.constant 0 : index
    %c0_188 = arith.constant 0 : index
    %372 = vector.load %arg25[%c0_186, %c0_187, %c0_188] : memref<1x50x32xf32, #tpu.memory_space<vmem>>, vector<1x50x32xf32>
    %373 = vector.shape_cast %372 : vector<1x50x32xf32> to vector<50x32xf32>
    %374 = vector.shape_cast %371 : vector<50x32xf32> to vector<1x50x32xf32>
    tpu.vector_store %arg25[%c0_186, %c0_187, %c0_188], %374 {strides = array<i32>} : memref<1x50x32xf32, #tpu.memory_space<vmem>>, vector<1x50x32xf32>,
    return
  }
  func.func @transform_0(%arg0: i32) -> (i32, i32, i32) {
    %c0_i32 = arith.constant 0 : i32
    %c0_i32_0 = arith.constant 0 : i32
    %c0_i32_1 = arith.constant 0 : i32
    return %arg0, %c0_i32, %c0_i32_0 : i32, i32, i32
  }
  func.func @transform_1(%arg0: i32) -> (i32, i32) {
    %c0_i32 = arith.constant 0 : i32
    %c0_i32_0 = arith.constant 0 : i32
    %c0_i32_1 = arith.constant 0 : i32
    return %c0_i32, %c0_i32_0 : i32, i32
  }
  func.func @transform_2(%arg0: i32) -> (i32, i32) {
    %c0_i32 = arith.constant 0 : i32
    %c0_i32_0 = arith.constant 0 : i32
    %c0_i32_1 = arith.constant 0 : i32
    return %c0_i32, %c0_i32_0 : i32, i32
  }
  func.func @transform_3(%arg0: i32) -> (i32, i32) {
    %c0_i32 = arith.constant 0 : i32
    %c0_i32_0 = arith.constant 0 : i32
    %c0_i32_1 = arith.constant 0 : i32
    return %c0_i32, %c0_i32_0 : i32, i32
  }
  func.func @transform_4(%arg0: i32) -> (i32, i32) {
    %c0_i32 = arith.constant 0 : i32
    %c0_i32_0 = arith.constant 0 : i32
    %c0_i32_1 = arith.constant 0 : i32
    return %c0_i32, %c0_i32_0 : i32, i32
  }
  func.func @transform_5(%arg0: i32) -> (i32, i32) {
    %c0_i32 = arith.constant 0 : i32
    %c0_i32_0 = arith.constant 0 : i32
    %c0_i32_1 = arith.constant 0 : i32
    return %c0_i32, %c0_i32_0 : i32, i32
  }
  func.func @transform_6(%arg0: i32) -> (i32, i32) {
    %c0_i32 = arith.constant 0 : i32
    %c0_i32_0 = arith.constant 0 : i32
    %c0_i32_1 = arith.constant 0 : i32
    return %c0_i32, %c0_i32_0 : i32, i32
  }
  func.func @transform_7(%arg0: i32) -> (i32, i32) {
    %c0_i32 = arith.constant 0 : i32
    %c0_i32_0 = arith.constant 0 : i32
    %c0_i32_1 = arith.constant 0 : i32
    return %c0_i32, %c0_i32_0 : i32, i32
  }
  func.func @transform_8(%arg0: i32) -> (i32, i32, i32) {
    %c0_i32 = arith.constant 0 : i32
    %c0_i32_0 = arith.constant 0 : i32
    %c0_i32_1 = arith.constant 0 : i32
    %c0_i32_2 = arith.constant 0 : i32
    return %c0_i32, %c0_i32_0, %c0_i32_1 : i32, i32, i32
  }
  func.func @transform_9(%arg0: i32) -> (i32, i32, i32) {
    %c0_i32 = arith.constant 0 : i32
    %c0_i32_0 = arith.constant 0 : i32
    %c0_i32_1 = arith.constant 0 : i32
    %c0_i32_2 = arith.constant 0 : i32
    return %c0_i32, %c0_i32_0, %c0_i32_1 : i32, i32, i32
  }
  func.func @transform_10(%arg0: i32) -> (i32, i32, i32) {
    %c0_i32 = arith.constant 0 : i32
    %c0_i32_0 = arith.constant 0 : i32
    %c0_i32_1 = arith.constant 0 : i32
    %c0_i32_2 = arith.constant 0 : i32
    return %c0_i32, %c0_i32_0, %c0_i32_1 : i32, i32, i32
  }
  func.func @transform_11(%arg0: i32) -> (i32, i32, i32) {
    %c0_i32 = arith.constant 0 : i32
    %c0_i32_0 = arith.constant 0 : i32
    %c0_i32_1 = arith.constant 0 : i32
    %c0_i32_2 = arith.constant 0 : i32
    return %c0_i32, %c0_i32_0, %c0_i32_1 : i32, i32, i32
  }
  func.func @transform_12(%arg0: i32) -> (i32, i32, i32) {
    %c0_i32 = arith.constant 0 : i32
    %c0_i32_0 = arith.constant 0 : i32
    %c0_i32_1 = arith.constant 0 : i32
    %c0_i32_2 = arith.constant 0 : i32
    return %c0_i32, %c0_i32_0, %c0_i32_1 : i32, i32, i32
  }
  func.func @transform_13(%arg0: i32) -> (i32, i32, i32) {
    %c0_i32 = arith.constant 0 : i32
    %c0_i32_0 = arith.constant 0 : i32
    %c0_i32_1 = arith.constant 0 : i32
    %c0_i32_2 = arith.constant 0 : i32
    return %c0_i32, %c0_i32_0, %c0_i32_1 : i32, i32, i32
  }
  func.func @transform_14(%arg0: i32) -> (i32, i32, i32) {
    %c0_i32 = arith.constant 0 : i32
    %c0_i32_0 = arith.constant 0 : i32
    %c0_i32_1 = arith.constant 0 : i32
    %c0_i32_2 = arith.constant 0 : i32
    return %c0_i32, %c0_i32_0, %c0_i32_1 : i32, i32, i32
  }
  func.func @transform_15(%arg0: i32) -> (i32, i32, i32) {
    %c0_i32 = arith.constant 0 : i32
    %c0_i32_0 = arith.constant 0 : i32
    %c0_i32_1 = arith.constant 0 : i32
    %c0_i32_2 = arith.constant 0 : i32
    return %c0_i32, %c0_i32_0, %c0_i32_1 : i32, i32, i32
  }
  func.func @transform_16(%arg0: i32) -> (i32, i32, i32) {
    %c0_i32 = arith.constant 0 : i32
    %c0_i32_0 = arith.constant 0 : i32
    %c0_i32_1 = arith.constant 0 : i32
    %c0_i32_2 = arith.constant 0 : i32
    return %c0_i32, %c0_i32_0, %c0_i32_1 : i32, i32, i32
  }
  func.func @transform_17(%arg0: i32) -> (i32, i32, i32) {
    %c0_i32 = arith.constant 0 : i32
    %c0_i32_0 = arith.constant 0 : i32
    %c0_i32_1 = arith.constant 0 : i32
    %c0_i32_2 = arith.constant 0 : i32
    return %c0_i32, %c0_i32_0, %c0_i32_1 : i32, i32, i32
  }
  func.func @transform_18(%arg0: i32) -> (i32, i32, i32) {
    %c0_i32 = arith.constant 0 : i32
    %c0_i32_0 = arith.constant 0 : i32
    %c0_i32_1 = arith.constant 0 : i32
    %c0_i32_2 = arith.constant 0 : i32
    return %c0_i32, %c0_i32_0, %c0_i32_1 : i32, i32, i32
  }
  func.func @transform_19(%arg0: i32) -> (i32, i32, i32) {
    %c0_i32 = arith.constant 0 : i32
    %c0_i32_0 = arith.constant 0 : i32
    %c0_i32_1 = arith.constant 0 : i32
    %c0_i32_2 = arith.constant 0 : i32
    return %c0_i32, %c0_i32_0, %c0_i32_1 : i32, i32, i32
  }
  func.func @transform_20(%arg0: i32) -> (i32, i32, i32) {
    %c0_i32 = arith.constant 0 : i32
    %c0_i32_0 = arith.constant 0 : i32
    %c0_i32_1 = arith.constant 0 : i32
    %c0_i32_2 = arith.constant 0 : i32
    return %c0_i32, %c0_i32_0, %c0_i32_1 : i32, i32, i32
  }
  func.func @transform_21(%arg0: i32) -> (i32, i32, i32) {
    %c0_i32 = arith.constant 0 : i32
    %c0_i32_0 = arith.constant 0 : i32
    %c0_i32_1 = arith.constant 0 : i32
    %c0_i32_2 = arith.constant 0 : i32
    return %c0_i32, %c0_i32_0, %c0_i32_1 : i32, i32, i32
  }
  func.func @transform_22(%arg0: i32) -> (i32, i32, i32) {
    %c0_i32 = arith.constant 0 : i32
    %c0_i32_0 = arith.constant 0 : i32
    %c0_i32_1 = arith.constant 0 : i32
    %c0_i32_2 = arith.constant 0 : i32
    return %c0_i32, %c0_i32_0, %c0_i32_1 : i32, i32, i32
  }
  func.func @transform_23(%arg0: i32) -> (i32, i32, i32) {
    %c0_i32 = arith.constant 0 : i32
    %c0_i32_0 = arith.constant 0 : i32
    %c0_i32_1 = arith.constant 0 : i32
    %c0_i32_2 = arith.constant 0 : i32
    return %c0_i32, %c0_i32_0, %c0_i32_1 : i32, i32, i32
  }
  func.func @transform_24(%arg0: i32) -> (i32, i32, i32) {
    %c0_i32 = arith.constant 0 : i32
    %c0_i32_0 = arith.constant 0 : i32
    %c0_i32_1 = arith.constant 0 : i32
    return %arg0, %c0_i32, %c0_i32_0 : i32, i32, i32
  }
}

module attributes {stable_mosaic.version = 11 : i64} {
  func.func @_branch_kernel(%arg0: i32, %arg1: memref<1x8x16xf32, #tpu.memory_space<vmem>>, %arg2: memref<8x32xf32, #tpu.memory_space<vmem>>, %arg3: memref<16x32xf32, #tpu.memory_space<vmem>>, %arg4: memref<1x32xf32, #tpu.memory_space<vmem>>, %arg5: memref<1x32xf32, #tpu.memory_space<vmem>>, %arg6: memref<1x32xf32, #tpu.memory_space<vmem>>, %arg7: memref<32x32xf32, #tpu.memory_space<vmem>>, %arg8: memref<1x32xf32, #tpu.memory_space<vmem>>, %arg9: memref<2x32x32xf32, #tpu.memory_space<vmem>>, %arg10: memref<2x32x32xf32, #tpu.memory_space<vmem>>, %arg11: memref<2x32x32xf32, #tpu.memory_space<vmem>>, %arg12: memref<2x1x32xf32, #tpu.memory_space<vmem>>, %arg13: memref<2x1x32xf32, #tpu.memory_space<vmem>>, %arg14: memref<2x1x32xf32, #tpu.memory_space<vmem>>, %arg15: memref<2x32x32xf32, #tpu.memory_space<vmem>>, %arg16: memref<2x1x32xf32, #tpu.memory_space<vmem>>, %arg17: memref<2x1x32xf32, #tpu.memory_space<vmem>>, %arg18: memref<2x1x32xf32, #tpu.memory_space<vmem>>, %arg19: memref<2x32x32xf32, #tpu.memory_space<vmem>>, %arg20: memref<2x1x32xf32, #tpu.memory_space<vmem>>, %arg21: memref<2x32x32xf32, #tpu.memory_space<vmem>>, %arg22: memref<2x1x32xf32, #tpu.memory_space<vmem>>, %arg23: memref<2x1x32xf32, #tpu.memory_space<vmem>>, %arg24: memref<2x1x32xf32, #tpu.memory_space<vmem>>, %arg25: memref<1x8x32xf32, #tpu.memory_space<vmem>>) attributes {dimension_semantics = [#tpu.dimension_semantics<parallel>], iteration_bounds = array<i64: 2>, scalar_prefetch = 0 : i64, scratch_operands = 0 : i64, tpu.core_type = #tpu.core_type<tc>, window_params = [{transform_indices = @transform_0, window_bounds = array<i64: 1, 8, 16>}, {pipeline_mode = #tpu.pipeline_mode<synchronous>, transform_indices = @transform_1, window_bounds = array<i64: 8, 32>}, {pipeline_mode = #tpu.pipeline_mode<synchronous>, transform_indices = @transform_2, window_bounds = array<i64: 16, 32>}, {pipeline_mode = #tpu.pipeline_mode<synchronous>, transform_indices = @transform_3, window_bounds = array<i64: 1, 32>}, {pipeline_mode = #tpu.pipeline_mode<synchronous>, transform_indices = @transform_4, window_bounds = array<i64: 1, 32>}, {pipeline_mode = #tpu.pipeline_mode<synchronous>, transform_indices = @transform_5, window_bounds = array<i64: 1, 32>}, {pipeline_mode = #tpu.pipeline_mode<synchronous>, transform_indices = @transform_6, window_bounds = array<i64: 32, 32>}, {pipeline_mode = #tpu.pipeline_mode<synchronous>, transform_indices = @transform_7, window_bounds = array<i64: 1, 32>}, {pipeline_mode = #tpu.pipeline_mode<synchronous>, transform_indices = @transform_8, window_bounds = array<i64: 2, 32, 32>}, {pipeline_mode = #tpu.pipeline_mode<synchronous>, transform_indices = @transform_9, window_bounds = array<i64: 2, 32, 32>}, {pipeline_mode = #tpu.pipeline_mode<synchronous>, transform_indices = @transform_10, window_bounds = array<i64: 2, 32, 32>}, {pipeline_mode = #tpu.pipeline_mode<synchronous>, transform_indices = @transform_11, window_bounds = array<i64: 2, 1, 32>}, {pipeline_mode = #tpu.pipeline_mode<synchronous>, transform_indices = @transform_12, window_bounds = array<i64: 2, 1, 32>}, {pipeline_mode = #tpu.pipeline_mode<synchronous>, transform_indices = @transform_13, window_bounds = array<i64: 2, 1, 32>}, {pipeline_mode = #tpu.pipeline_mode<synchronous>, transform_indices = @transform_14, window_bounds = array<i64: 2, 32, 32>}, {pipeline_mode = #tpu.pipeline_mode<synchronous>, transform_indices = @transform_15, window_bounds = array<i64: 2, 1, 32>}, {pipeline_mode = #tpu.pipeline_mode<synchronous>, transform_indices = @transform_16, window_bounds = array<i64: 2, 1, 32>}, {pipeline_mode = #tpu.pipeline_mode<synchronous>, transform_indices = @transform_17, window_bounds = array<i64: 2, 1, 32>}, {pipeline_mode = #tpu.pipeline_mode<synchronous>, transform_indices = @transform_18, window_bounds = array<i64: 2, 32, 32>}, {pipeline_mode = #tpu.pipeline_mode<synchronous>, transform_indices = @transform_19, window_bounds = array<i64: 2, 1, 32>}, {pipeline_mode = #tpu.pipeline_mode<synchronous>, transform_indices = @transform_20, window_bounds = array<i64: 2, 32, 32>}, {pipeline_mode = #tpu.pipeline_mode<synchronous>, transform_indices = @transform_21, window_bounds = array<i64: 2, 1, 32>}, {pipeline_mode = #tpu.pipeline_mode<synchronous>, transform_indices = @transform_22, window_bounds = array<i64: 2, 1, 32>}, {pipeline_mode = #tpu.pipeline_mode<synchronous>, transform_indices = @transform_23, window_bounds = array<i64: 2, 1, 32>}, {transform_indices = @transform_24, window_bounds = array<i64: 1, 8, 32>}]} {
    %c0 = arith.constant 0 : index
    %c0_0 = arith.constant 0 : index
    %c0_1 = arith.constant 0 : index
    %0 = vector.load %arg1[%c0, %c0_0, %c0_1] : memref<1x8x16xf32, #tpu.memory_space<vmem>>, vector<1x8x16xf32>
    %1 = vector.shape_cast %0 : vector<1x8x16xf32> to vector<8x16xf32>
    %c0_2 = arith.constant 0 : index
    %c0_3 = arith.constant 0 : index
    %2 = vector.load %arg3[%c0_2, %c0_3] : memref<16x32xf32, #tpu.memory_space<vmem>>, vector<16x32xf32>
    %cst = arith.constant dense<0.000000e+00> : vector<8x32xf32>
    %3 = tpu.matmul %1, %2, %cst {dimension_numbers = #tpu.dot_dimension_numbers<[1], [0], [0], [1], [0, 0, 1, 1], [], []>} : vector<8x16xf32>, vector<16x32xf32>, vector<8x32xf32> -> vector<8x32xf32>
    %c0_4 = arith.constant 0 : index
    %c0_5 = arith.constant 0 : index
    %4 = vector.load %arg4[%c0_4, %c0_5] : memref<1x32xf32, #tpu.memory_space<vmem>>, vector<1x32xf32>
    %5 = vector.broadcast %4 : vector<1x32xf32> to vector<8x32xf32>
    %6 = arith.addf %3, %5 : vector<8x32xf32>
    %c0_6 = arith.constant 0 : index
    %c0_7 = arith.constant 0 : index
    %7 = vector.load %arg5[%c0_6, %c0_7] : memref<1x32xf32, #tpu.memory_space<vmem>>, vector<1x32xf32>
    %c0_8 = arith.constant 0 : index
    %c0_9 = arith.constant 0 : index
    %8 = vector.load %arg6[%c0_8, %c0_9] : memref<1x32xf32, #tpu.memory_space<vmem>>, vector<1x32xf32>
    %cst_10 = arith.constant dense<0.000000e+00> : vector<8xf32>
    %9 = vector.multi_reduction <add>, %6, %cst_10 [1] : vector<8x32xf32> to vector<8xf32>
    %10 = vector.shape_cast %9 : vector<8xf32> to vector<8x1xf32>
    %cst_11 = arith.constant 3.200000e+01 : f32
    %11 = vector.broadcast %cst_11 : f32 to vector<8x1xf32>
    %12 = arith.divf %10, %11 : vector<8x1xf32>
    %13 = vector.broadcast %12 : vector<8x1xf32> to vector<8x32xf32>
    %14 = arith.subf %6, %13 : vector<8x32xf32>
    %15 = vector.broadcast %12 : vector<8x1xf32> to vector<8x32xf32>
    %16 = arith.subf %6, %15 : vector<8x32xf32>
    %17 = arith.mulf %14, %16 : vector<8x32xf32>
    %cst_12 = arith.constant dense<0.000000e+00> : vector<8xf32>
    %18 = vector.multi_reduction <add>, %17, %cst_12 [1] : vector<8x32xf32> to vector<8xf32>
    %19 = vector.shape_cast %18 : vector<8xf32> to vector<8x1xf32>
    %cst_13 = arith.constant 3.200000e+01 : f32
    %20 = vector.broadcast %cst_13 : f32 to vector<8x1xf32>
    %21 = arith.divf %19, %20 : vector<8x1xf32>
    %22 = vector.broadcast %12 : vector<8x1xf32> to vector<8x32xf32>
    %23 = arith.subf %6, %22 : vector<8x32xf32>
    %cst_14 = arith.constant 9.99999974E-6 : f32
    %24 = vector.broadcast %cst_14 : f32 to vector<8x1xf32>
    %25 = arith.addf %21, %24 : vector<8x1xf32>
    %26 = math.rsqrt %25 : vector<8x1xf32>
    %27 = vector.broadcast %26 : vector<8x1xf32> to vector<8x32xf32>
    %28 = arith.mulf %23, %27 : vector<8x32xf32>
    %29 = vector.broadcast %7 : vector<1x32xf32> to vector<8x32xf32>
    %30 = arith.mulf %28, %29 : vector<8x32xf32>
    %31 = vector.broadcast %8 : vector<1x32xf32> to vector<8x32xf32>
    %32 = arith.addf %30, %31 : vector<8x32xf32>
    %cst_15 = arith.constant 0.000000e+00 : f32
    %33 = vector.broadcast %cst_15 : f32 to vector<8x32xf32>
    %34 = arith.maximumf %32, %33 : vector<8x32xf32>
    %c0_16 = arith.constant 0 : index
    %c0_17 = arith.constant 0 : index
    %35 = vector.load %arg7[%c0_16, %c0_17] : memref<32x32xf32, #tpu.memory_space<vmem>>, vector<32x32xf32>
    %cst_18 = arith.constant dense<0.000000e+00> : vector<8x32xf32>
    %36 = tpu.matmul %34, %35, %cst_18 {dimension_numbers = #tpu.dot_dimension_numbers<[1], [0], [0], [1], [0, 0, 1, 1], [], []>} : vector<8x32xf32>, vector<32x32xf32>, vector<8x32xf32> -> vector<8x32xf32>
    %c0_19 = arith.constant 0 : index
    %c0_20 = arith.constant 0 : index
    %37 = vector.load %arg8[%c0_19, %c0_20] : memref<1x32xf32, #tpu.memory_space<vmem>>, vector<1x32xf32>
    %38 = vector.broadcast %37 : vector<1x32xf32> to vector<8x32xf32>
    %39 = arith.addf %36, %38 : vector<8x32xf32>
    %c0_21 = arith.constant 0 : index
    %c0_22 = arith.constant 0 : index
    %40 = vector.load %arg2[%c0_21, %c0_22] : memref<8x32xf32, #tpu.memory_space<vmem>>, vector<8x32xf32>
    %41 = arith.addf %39, %40 : vector<8x32xf32>
    %c0_23 = arith.constant 0 : index
    %c0_24 = arith.constant 0 : index
    %c0_25 = arith.constant 0 : index
    %42 = vector.load %arg9[%c0_23, %c0_24, %c0_25] : memref<2x32x32xf32, #tpu.memory_space<vmem>>, vector<1x32x32xf32>
    %43 = vector.shape_cast %42 : vector<1x32x32xf32> to vector<32x32xf32>
    %cst_26 = arith.constant dense<0.000000e+00> : vector<8x32xf32>
    %44 = tpu.matmul %41, %43, %cst_26 {dimension_numbers = #tpu.dot_dimension_numbers<[1], [0], [0], [1], [0, 0, 1, 1], [], []>} : vector<8x32xf32>, vector<32x32xf32>, vector<8x32xf32> -> vector<8x32xf32>
    %c0_27 = arith.constant 0 : index
    %c0_28 = arith.constant 0 : index
    %c0_29 = arith.constant 0 : index
    %45 = vector.load %arg12[%c0_27, %c0_28, %c0_29] : memref<2x1x32xf32, #tpu.memory_space<vmem>>, vector<1x1x32xf32>
    %46 = vector.shape_cast %45 : vector<1x1x32xf32> to vector<1x32xf32>
    %47 = vector.broadcast %46 : vector<1x32xf32> to vector<8x32xf32>
    %48 = arith.addf %44, %47 : vector<8x32xf32>
    %cst_30 = arith.constant 0.353553385 : f32
    %49 = vector.broadcast %cst_30 : f32 to vector<8x32xf32>
    %50 = arith.mulf %48, %49 : vector<8x32xf32>
    %c0_31 = arith.constant 0 : index
    %c0_32 = arith.constant 0 : index
    %c0_33 = arith.constant 0 : index
    %51 = vector.load %arg10[%c0_31, %c0_32, %c0_33] : memref<2x32x32xf32, #tpu.memory_space<vmem>>, vector<1x32x32xf32>
    %52 = vector.shape_cast %51 : vector<1x32x32xf32> to vector<32x32xf32>
    %cst_34 = arith.constant dense<0.000000e+00> : vector<8x32xf32>
    %53 = tpu.matmul %41, %52, %cst_34 {dimension_numbers = #tpu.dot_dimension_numbers<[1], [0], [0], [1], [0, 0, 1, 1], [], []>} : vector<8x32xf32>, vector<32x32xf32>, vector<8x32xf32> -> vector<8x32xf32>
    %c0_35 = arith.constant 0 : index
    %c0_36 = arith.constant 0 : index
    %c0_37 = arith.constant 0 : index
    %54 = vector.load %arg13[%c0_35, %c0_36, %c0_37] : memref<2x1x32xf32, #tpu.memory_space<vmem>>, vector<1x1x32xf32>
    %55 = vector.shape_cast %54 : vector<1x1x32xf32> to vector<1x32xf32>
    %56 = vector.broadcast %55 : vector<1x32xf32> to vector<8x32xf32>
    %57 = arith.addf %53, %56 : vector<8x32xf32>
    %c0_38 = arith.constant 0 : index
    %c0_39 = arith.constant 0 : index
    %c0_40 = arith.constant 0 : index
    %58 = vector.load %arg11[%c0_38, %c0_39, %c0_40] : memref<2x32x32xf32, #tpu.memory_space<vmem>>, vector<1x32x32xf32>
    %59 = vector.shape_cast %58 : vector<1x32x32xf32> to vector<32x32xf32>
    %cst_41 = arith.constant dense<0.000000e+00> : vector<8x32xf32>
    %60 = tpu.matmul %41, %59, %cst_41 {dimension_numbers = #tpu.dot_dimension_numbers<[1], [0], [0], [1], [0, 0, 1, 1], [], []>} : vector<8x32xf32>, vector<32x32xf32>, vector<8x32xf32> -> vector<8x32xf32>
    %c0_42 = arith.constant 0 : index
    %c0_43 = arith.constant 0 : index
    %c0_44 = arith.constant 0 : index
    %61 = vector.load %arg14[%c0_42, %c0_43, %c0_44] : memref<2x1x32xf32, #tpu.memory_space<vmem>>, vector<1x1x32xf32>
    %62 = vector.shape_cast %61 : vector<1x1x32xf32> to vector<1x32xf32>
    %63 = vector.broadcast %62 : vector<1x32xf32> to vector<8x32xf32>
    %64 = arith.addf %60, %63 : vector<8x32xf32>
    %65 = vector.extract_strided_slice %50 {offsets = [0, 0], sizes = [8, 8], strides = [1, 1]} : vector<8x32xf32> to vector<8x8xf32>
    %66 = vector.extract_strided_slice %57 {offsets = [0, 0], sizes = [8, 8], strides = [1, 1]} : vector<8x32xf32> to vector<8x8xf32>
    %67 = vector.extract_strided_slice %64 {offsets = [0, 0], sizes = [8, 8], strides = [1, 1]} : vector<8x32xf32> to vector<8x8xf32>
    %cst_45 = arith.constant dense<0.000000e+00> : vector<8x8xf32>
    %68 = tpu.matmul %65, %66, %cst_45 {dimension_numbers = #tpu.dot_dimension_numbers<[1], [1], [0], [0], [0, 0, 1, 0], [], []>} : vector<8x8xf32>, vector<8x8xf32>, vector<8x8xf32> -> vector<8x8xf32>
    %cst_46 = arith.constant dense<0xFF800000> : vector<8xf32>
    %69 = vector.multi_reduction <maximumf>, %68, %cst_46 [1] : vector<8x8xf32> to vector<8xf32>
    %70 = vector.shape_cast %69 : vector<8xf32> to vector<8x1xf32>
    %71 = vector.broadcast %70 : vector<8x1xf32> to vector<8x8xf32>
    %72 = arith.subf %68, %71 : vector<8x8xf32>
    %73 = math.exp %72 : vector<8x8xf32>
    %cst_47 = arith.constant dense<0.000000e+00> : vector<8xf32>
    %74 = vector.multi_reduction <add>, %73, %cst_47 [1] : vector<8x8xf32> to vector<8xf32>
    %75 = vector.shape_cast %74 : vector<8xf32> to vector<8x1xf32>
    %76 = tpu.reciprocal %75 {approx = true} : vector<8x1xf32> -> vector<8x1xf32>
    %77 = vector.broadcast %76 : vector<8x1xf32> to vector<8x8xf32>
    %78 = arith.mulf %73, %77 : vector<8x8xf32>
    %cst_48 = arith.constant dense<0.000000e+00> : vector<8x8xf32>
    %79 = tpu.matmul %78, %67, %cst_48 {dimension_numbers = #tpu.dot_dimension_numbers<[1], [0], [0], [1], [0, 0, 1, 1], [], []>} : vector<8x8xf32>, vector<8x8xf32>, vector<8x8xf32> -> vector<8x8xf32>
    %80 = vector.extract_strided_slice %50 {offsets = [0, 8], sizes = [8, 8], strides = [1, 1]} : vector<8x32xf32> to vector<8x8xf32>
    %81 = vector.extract_strided_slice %57 {offsets = [0, 8], sizes = [8, 8], strides = [1, 1]} : vector<8x32xf32> to vector<8x8xf32>
    %82 = vector.extract_strided_slice %64 {offsets = [0, 8], sizes = [8, 8], strides = [1, 1]} : vector<8x32xf32> to vector<8x8xf32>
    %cst_49 = arith.constant dense<0.000000e+00> : vector<8x8xf32>
    %83 = tpu.matmul %80, %81, %cst_49 {dimension_numbers = #tpu.dot_dimension_numbers<[1], [1], [0], [0], [0, 0, 1, 0], [], []>} : vector<8x8xf32>, vector<8x8xf32>, vector<8x8xf32> -> vector<8x8xf32>
    %cst_50 = arith.constant dense<0xFF800000> : vector<8xf32>
    %84 = vector.multi_reduction <maximumf>, %83, %cst_50 [1] : vector<8x8xf32> to vector<8xf32>
    %85 = vector.shape_cast %84 : vector<8xf32> to vector<8x1xf32>
    %86 = vector.broadcast %85 : vector<8x1xf32> to vector<8x8xf32>
    %87 = arith.subf %83, %86 : vector<8x8xf32>
    %88 = math.exp %87 : vector<8x8xf32>
    %cst_51 = arith.constant dense<0.000000e+00> : vector<8xf32>
    %89 = vector.multi_reduction <add>, %88, %cst_51 [1] : vector<8x8xf32> to vector<8xf32>
    %90 = vector.shape_cast %89 : vector<8xf32> to vector<8x1xf32>
    %91 = tpu.reciprocal %90 {approx = true} : vector<8x1xf32> -> vector<8x1xf32>
    %92 = vector.broadcast %91 : vector<8x1xf32> to vector<8x8xf32>
    %93 = arith.mulf %88, %92 : vector<8x8xf32>
    %cst_52 = arith.constant dense<0.000000e+00> : vector<8x8xf32>
    %94 = tpu.matmul %93, %82, %cst_52 {dimension_numbers = #tpu.dot_dimension_numbers<[1], [0], [0], [1], [0, 0, 1, 1], [], []>} : vector<8x8xf32>, vector<8x8xf32>, vector<8x8xf32> -> vector<8x8xf32>
    %95 = vector.extract_strided_slice %50 {offsets = [0, 16], sizes = [8, 8], strides = [1, 1]} : vector<8x32xf32> to vector<8x8xf32>
    %96 = vector.extract_strided_slice %57 {offsets = [0, 16], sizes = [8, 8], strides = [1, 1]} : vector<8x32xf32> to vector<8x8xf32>
    %97 = vector.extract_strided_slice %64 {offsets = [0, 16], sizes = [8, 8], strides = [1, 1]} : vector<8x32xf32> to vector<8x8xf32>
    %cst_53 = arith.constant dense<0.000000e+00> : vector<8x8xf32>
    %98 = tpu.matmul %95, %96, %cst_53 {dimension_numbers = #tpu.dot_dimension_numbers<[1], [1], [0], [0], [0, 0, 1, 0], [], []>} : vector<8x8xf32>, vector<8x8xf32>, vector<8x8xf32> -> vector<8x8xf32>
    %cst_54 = arith.constant dense<0xFF800000> : vector<8xf32>
    %99 = vector.multi_reduction <maximumf>, %98, %cst_54 [1] : vector<8x8xf32> to vector<8xf32>
    %100 = vector.shape_cast %99 : vector<8xf32> to vector<8x1xf32>
    %101 = vector.broadcast %100 : vector<8x1xf32> to vector<8x8xf32>
    %102 = arith.subf %98, %101 : vector<8x8xf32>
    %103 = math.exp %102 : vector<8x8xf32>
    %cst_55 = arith.constant dense<0.000000e+00> : vector<8xf32>
    %104 = vector.multi_reduction <add>, %103, %cst_55 [1] : vector<8x8xf32> to vector<8xf32>
    %105 = vector.shape_cast %104 : vector<8xf32> to vector<8x1xf32>
    %106 = tpu.reciprocal %105 {approx = true} : vector<8x1xf32> -> vector<8x1xf32>
    %107 = vector.broadcast %106 : vector<8x1xf32> to vector<8x8xf32>
    %108 = arith.mulf %103, %107 : vector<8x8xf32>
    %cst_56 = arith.constant dense<0.000000e+00> : vector<8x8xf32>
    %109 = tpu.matmul %108, %97, %cst_56 {dimension_numbers = #tpu.dot_dimension_numbers<[1], [0], [0], [1], [0, 0, 1, 1], [], []>} : vector<8x8xf32>, vector<8x8xf32>, vector<8x8xf32> -> vector<8x8xf32>
    %110 = vector.extract_strided_slice %50 {offsets = [0, 24], sizes = [8, 8], strides = [1, 1]} : vector<8x32xf32> to vector<8x8xf32>
    %111 = vector.extract_strided_slice %57 {offsets = [0, 24], sizes = [8, 8], strides = [1, 1]} : vector<8x32xf32> to vector<8x8xf32>
    %112 = vector.extract_strided_slice %64 {offsets = [0, 24], sizes = [8, 8], strides = [1, 1]} : vector<8x32xf32> to vector<8x8xf32>
    %cst_57 = arith.constant dense<0.000000e+00> : vector<8x8xf32>
    %113 = tpu.matmul %110, %111, %cst_57 {dimension_numbers = #tpu.dot_dimension_numbers<[1], [1], [0], [0], [0, 0, 1, 0], [], []>} : vector<8x8xf32>, vector<8x8xf32>, vector<8x8xf32> -> vector<8x8xf32>
    %cst_58 = arith.constant dense<0xFF800000> : vector<8xf32>
    %114 = vector.multi_reduction <maximumf>, %113, %cst_58 [1] : vector<8x8xf32> to vector<8xf32>
    %115 = vector.shape_cast %114 : vector<8xf32> to vector<8x1xf32>
    %116 = vector.broadcast %115 : vector<8x1xf32> to vector<8x8xf32>
    %117 = arith.subf %113, %116 : vector<8x8xf32>
    %118 = math.exp %117 : vector<8x8xf32>
    %cst_59 = arith.constant dense<0.000000e+00> : vector<8xf32>
    %119 = vector.multi_reduction <add>, %118, %cst_59 [1] : vector<8x8xf32> to vector<8xf32>
    %120 = vector.shape_cast %119 : vector<8xf32> to vector<8x1xf32>
    %121 = tpu.reciprocal %120 {approx = true} : vector<8x1xf32> -> vector<8x1xf32>
    %122 = vector.broadcast %121 : vector<8x1xf32> to vector<8x8xf32>
    %123 = arith.mulf %118, %122 : vector<8x8xf32>
    %cst_60 = arith.constant dense<0.000000e+00> : vector<8x8xf32>
    %124 = tpu.matmul %123, %112, %cst_60 {dimension_numbers = #tpu.dot_dimension_numbers<[1], [0], [0], [1], [0, 0, 1, 1], [], []>} : vector<8x8xf32>, vector<8x8xf32>, vector<8x8xf32> -> vector<8x8xf32>
    %125 = tpu.concatenate %79, %94, %109, %124 in 1 : vector<8x8xf32>, vector<8x8xf32>, vector<8x8xf32>, vector<8x8xf32> -> vector<8x32xf32>
    %c0_61 = arith.constant 0 : index
    %c0_62 = arith.constant 0 : index
    %c0_63 = arith.constant 0 : index
    %126 = vector.load %arg15[%c0_61, %c0_62, %c0_63] : memref<2x32x32xf32, #tpu.memory_space<vmem>>, vector<1x32x32xf32>
    %127 = vector.shape_cast %126 : vector<1x32x32xf32> to vector<32x32xf32>
    %cst_64 = arith.constant dense<0.000000e+00> : vector<8x32xf32>
    %128 = tpu.matmul %125, %127, %cst_64 {dimension_numbers = #tpu.dot_dimension_numbers<[1], [0], [0], [1], [0, 0, 1, 1], [], []>} : vector<8x32xf32>, vector<32x32xf32>, vector<8x32xf32> -> vector<8x32xf32>
    %c0_65 = arith.constant 0 : index
    %c0_66 = arith.constant 0 : index
    %c0_67 = arith.constant 0 : index
    %129 = vector.load %arg16[%c0_65, %c0_66, %c0_67] : memref<2x1x32xf32, #tpu.memory_space<vmem>>, vector<1x1x32xf32>
    %130 = vector.shape_cast %129 : vector<1x1x32xf32> to vector<1x32xf32>
    %131 = vector.broadcast %130 : vector<1x32xf32> to vector<8x32xf32>
    %132 = arith.addf %128, %131 : vector<8x32xf32>
    %133 = arith.addf %41, %132 : vector<8x32xf32>
    %c0_68 = arith.constant 0 : index
    %c0_69 = arith.constant 0 : index
    %c0_70 = arith.constant 0 : index
    %134 = vector.load %arg17[%c0_68, %c0_69, %c0_70] : memref<2x1x32xf32, #tpu.memory_space<vmem>>, vector<1x1x32xf32>
    %135 = vector.shape_cast %134 : vector<1x1x32xf32> to vector<1x32xf32>
    %c0_71 = arith.constant 0 : index
    %c0_72 = arith.constant 0 : index
    %c0_73 = arith.constant 0 : index
    %136 = vector.load %arg18[%c0_71, %c0_72, %c0_73] : memref<2x1x32xf32, #tpu.memory_space<vmem>>, vector<1x1x32xf32>
    %137 = vector.shape_cast %136 : vector<1x1x32xf32> to vector<1x32xf32>
    %cst_74 = arith.constant dense<0.000000e+00> : vector<8xf32>
    %138 = vector.multi_reduction <add>, %133, %cst_74 [1] : vector<8x32xf32> to vector<8xf32>
    %139 = vector.shape_cast %138 : vector<8xf32> to vector<8x1xf32>
    %cst_75 = arith.constant 3.200000e+01 : f32
    %140 = vector.broadcast %cst_75 : f32 to vector<8x1xf32>
    %141 = arith.divf %139, %140 : vector<8x1xf32>
    %142 = vector.broadcast %141 : vector<8x1xf32> to vector<8x32xf32>
    %143 = arith.subf %133, %142 : vector<8x32xf32>
    %144 = vector.broadcast %141 : vector<8x1xf32> to vector<8x32xf32>
    %145 = arith.subf %133, %144 : vector<8x32xf32>
    %146 = arith.mulf %143, %145 : vector<8x32xf32>
    %cst_76 = arith.constant dense<0.000000e+00> : vector<8xf32>
    %147 = vector.multi_reduction <add>, %146, %cst_76 [1] : vector<8x32xf32> to vector<8xf32>
    %148 = vector.shape_cast %147 : vector<8xf32> to vector<8x1xf32>
    %cst_77 = arith.constant 3.200000e+01 : f32
    %149 = vector.broadcast %cst_77 : f32 to vector<8x1xf32>
    %150 = arith.divf %148, %149 : vector<8x1xf32>
    %151 = vector.broadcast %141 : vector<8x1xf32> to vector<8x32xf32>
    %152 = arith.subf %133, %151 : vector<8x32xf32>
    %cst_78 = arith.constant 9.99999974E-6 : f32
    %153 = vector.broadcast %cst_78 : f32 to vector<8x1xf32>
    %154 = arith.addf %150, %153 : vector<8x1xf32>
    %155 = math.rsqrt %154 : vector<8x1xf32>
    %156 = vector.broadcast %155 : vector<8x1xf32> to vector<8x32xf32>
    %157 = arith.mulf %152, %156 : vector<8x32xf32>
    %158 = vector.broadcast %135 : vector<1x32xf32> to vector<8x32xf32>
    %159 = arith.mulf %157, %158 : vector<8x32xf32>
    %160 = vector.broadcast %137 : vector<1x32xf32> to vector<8x32xf32>
    %161 = arith.addf %159, %160 : vector<8x32xf32>
    %c0_79 = arith.constant 0 : index
    %c0_80 = arith.constant 0 : index
    %c0_81 = arith.constant 0 : index
    %162 = vector.load %arg19[%c0_79, %c0_80, %c0_81] : memref<2x32x32xf32, #tpu.memory_space<vmem>>, vector<1x32x32xf32>
    %163 = vector.shape_cast %162 : vector<1x32x32xf32> to vector<32x32xf32>
    %cst_82 = arith.constant dense<0.000000e+00> : vector<8x32xf32>
    %164 = tpu.matmul %161, %163, %cst_82 {dimension_numbers = #tpu.dot_dimension_numbers<[1], [0], [0], [1], [0, 0, 1, 1], [], []>} : vector<8x32xf32>, vector<32x32xf32>, vector<8x32xf32> -> vector<8x32xf32>
    %c0_83 = arith.constant 0 : index
    %c0_84 = arith.constant 0 : index
    %c0_85 = arith.constant 0 : index
    %165 = vector.load %arg20[%c0_83, %c0_84, %c0_85] : memref<2x1x32xf32, #tpu.memory_space<vmem>>, vector<1x1x32xf32>
    %166 = vector.shape_cast %165 : vector<1x1x32xf32> to vector<1x32xf32>
    %167 = vector.broadcast %166 : vector<1x32xf32> to vector<8x32xf32>
    %168 = arith.addf %164, %167 : vector<8x32xf32>
    %cst_86 = arith.constant 0.000000e+00 : f32
    %169 = vector.broadcast %cst_86 : f32 to vector<8x32xf32>
    %170 = arith.maximumf %168, %169 : vector<8x32xf32>
    %c0_87 = arith.constant 0 : index
    %c0_88 = arith.constant 0 : index
    %c0_89 = arith.constant 0 : index
    %171 = vector.load %arg21[%c0_87, %c0_88, %c0_89] : memref<2x32x32xf32, #tpu.memory_space<vmem>>, vector<1x32x32xf32>
    %172 = vector.shape_cast %171 : vector<1x32x32xf32> to vector<32x32xf32>
    %cst_90 = arith.constant dense<0.000000e+00> : vector<8x32xf32>
    %173 = tpu.matmul %170, %172, %cst_90 {dimension_numbers = #tpu.dot_dimension_numbers<[1], [0], [0], [1], [0, 0, 1, 1], [], []>} : vector<8x32xf32>, vector<32x32xf32>, vector<8x32xf32> -> vector<8x32xf32>
    %c0_91 = arith.constant 0 : index
    %c0_92 = arith.constant 0 : index
    %c0_93 = arith.constant 0 : index
    %174 = vector.load %arg22[%c0_91, %c0_92, %c0_93] : memref<2x1x32xf32, #tpu.memory_space<vmem>>, vector<1x1x32xf32>
    %175 = vector.shape_cast %174 : vector<1x1x32xf32> to vector<1x32xf32>
    %176 = vector.broadcast %175 : vector<1x32xf32> to vector<8x32xf32>
    %177 = arith.addf %173, %176 : vector<8x32xf32>
    %178 = arith.addf %161, %177 : vector<8x32xf32>
    %c0_94 = arith.constant 0 : index
    %c0_95 = arith.constant 0 : index
    %c0_96 = arith.constant 0 : index
    %179 = vector.load %arg23[%c0_94, %c0_95, %c0_96] : memref<2x1x32xf32, #tpu.memory_space<vmem>>, vector<1x1x32xf32>
    %180 = vector.shape_cast %179 : vector<1x1x32xf32> to vector<1x32xf32>
    %c0_97 = arith.constant 0 : index
    %c0_98 = arith.constant 0 : index
    %c0_99 = arith.constant 0 : index
    %181 = vector.load %arg24[%c0_97, %c0_98, %c0_99] : memref<2x1x32xf32, #tpu.memory_space<vmem>>, vector<1x1x32xf32>
    %182 = vector.shape_cast %181 : vector<1x1x32xf32> to vector<1x32xf32>
    %cst_100 = arith.constant dense<0.000000e+00> : vector<8xf32>
    %183 = vector.multi_reduction <add>, %178, %cst_100 [1] : vector<8x32xf32> to vector<8xf32>
    %184 = vector.shape_cast %183 : vector<8xf32> to vector<8x1xf32>
    %cst_101 = arith.constant 3.200000e+01 : f32
    %185 = vector.broadcast %cst_101 : f32 to vector<8x1xf32>
    %186 = arith.divf %184, %185 : vector<8x1xf32>
    %187 = vector.broadcast %186 : vector<8x1xf32> to vector<8x32xf32>
    %188 = arith.subf %178, %187 : vector<8x32xf32>
    %189 = vector.broadcast %186 : vector<8x1xf32> to vector<8x32xf32>
    %190 = arith.subf %178, %189 : vector<8x32xf32>
    %191 = arith.mulf %188, %190 : vector<8x32xf32>
    %cst_102 = arith.constant dense<0.000000e+00> : vector<8xf32>
    %192 = vector.multi_reduction <add>, %191, %cst_102 [1] : vector<8x32xf32> to vector<8xf32>
    %193 = vector.shape_cast %192 : vector<8xf32> to vector<8x1xf32>
    %cst_103 = arith.constant 3.200000e+01 : f32
    %194 = vector.broadcast %cst_103 : f32 to vector<8x1xf32>
    %195 = arith.divf %193, %194 : vector<8x1xf32>
    %196 = vector.broadcast %186 : vector<8x1xf32> to vector<8x32xf32>
    %197 = arith.subf %178, %196 : vector<8x32xf32>
    %cst_104 = arith.constant 9.99999974E-6 : f32
    %198 = vector.broadcast %cst_104 : f32 to vector<8x1xf32>
    %199 = arith.addf %195, %198 : vector<8x1xf32>
    %200 = math.rsqrt %199 : vector<8x1xf32>
    %201 = vector.broadcast %200 : vector<8x1xf32> to vector<8x32xf32>
    %202 = arith.mulf %197, %201 : vector<8x32xf32>
    %203 = vector.broadcast %180 : vector<1x32xf32> to vector<8x32xf32>
    %204 = arith.mulf %202, %203 : vector<8x32xf32>
    %205 = vector.broadcast %182 : vector<1x32xf32> to vector<8x32xf32>
    %206 = arith.addf %204, %205 : vector<8x32xf32>
    %c1 = arith.constant 1 : index
    %c0_105 = arith.constant 0 : index
    %c0_106 = arith.constant 0 : index
    %207 = vector.load %arg9[%c1, %c0_105, %c0_106] : memref<2x32x32xf32, #tpu.memory_space<vmem>>, vector<1x32x32xf32>
    %208 = vector.shape_cast %207 : vector<1x32x32xf32> to vector<32x32xf32>
    %cst_107 = arith.constant dense<0.000000e+00> : vector<8x32xf32>
    %209 = tpu.matmul %206, %208, %cst_107 {dimension_numbers = #tpu.dot_dimension_numbers<[1], [0], [0], [1], [0, 0, 1, 1], [], []>} : vector<8x32xf32>, vector<32x32xf32>, vector<8x32xf32> -> vector<8x32xf32>
    %c1_108 = arith.constant 1 : index
    %c0_109 = arith.constant 0 : index
    %c0_110 = arith.constant 0 : index
    %210 = vector.load %arg12[%c1_108, %c0_109, %c0_110] : memref<2x1x32xf32, #tpu.memory_space<vmem>>, vector<1x1x32xf32>
    %211 = vector.shape_cast %210 : vector<1x1x32xf32> to vector<1x32xf32>
    %212 = vector.broadcast %211 : vector<1x32xf32> to vector<8x32xf32>
    %213 = arith.addf %209, %212 : vector<8x32xf32>
    %cst_111 = arith.constant 0.353553385 : f32
    %214 = vector.broadcast %cst_111 : f32 to vector<8x32xf32>
    %215 = arith.mulf %213, %214 : vector<8x32xf32>
    %c1_112 = arith.constant 1 : index
    %c0_113 = arith.constant 0 : index
    %c0_114 = arith.constant 0 : index
    %216 = vector.load %arg10[%c1_112, %c0_113, %c0_114] : memref<2x32x32xf32, #tpu.memory_space<vmem>>, vector<1x32x32xf32>
    %217 = vector.shape_cast %216 : vector<1x32x32xf32> to vector<32x32xf32>
    %cst_115 = arith.constant dense<0.000000e+00> : vector<8x32xf32>
    %218 = tpu.matmul %206, %217, %cst_115 {dimension_numbers = #tpu.dot_dimension_numbers<[1], [0], [0], [1], [0, 0, 1, 1], [], []>} : vector<8x32xf32>, vector<32x32xf32>, vector<8x32xf32> -> vector<8x32xf32>
    %c1_116 = arith.constant 1 : index
    %c0_117 = arith.constant 0 : index
    %c0_118 = arith.constant 0 : index
    %219 = vector.load %arg13[%c1_116, %c0_117, %c0_118] : memref<2x1x32xf32, #tpu.memory_space<vmem>>, vector<1x1x32xf32>
    %220 = vector.shape_cast %219 : vector<1x1x32xf32> to vector<1x32xf32>
    %221 = vector.broadcast %220 : vector<1x32xf32> to vector<8x32xf32>
    %222 = arith.addf %218, %221 : vector<8x32xf32>
    %c1_119 = arith.constant 1 : index
    %c0_120 = arith.constant 0 : index
    %c0_121 = arith.constant 0 : index
    %223 = vector.load %arg11[%c1_119, %c0_120, %c0_121] : memref<2x32x32xf32, #tpu.memory_space<vmem>>, vector<1x32x32xf32>
    %224 = vector.shape_cast %223 : vector<1x32x32xf32> to vector<32x32xf32>
    %cst_122 = arith.constant dense<0.000000e+00> : vector<8x32xf32>
    %225 = tpu.matmul %206, %224, %cst_122 {dimension_numbers = #tpu.dot_dimension_numbers<[1], [0], [0], [1], [0, 0, 1, 1], [], []>} : vector<8x32xf32>, vector<32x32xf32>, vector<8x32xf32> -> vector<8x32xf32>
    %c1_123 = arith.constant 1 : index
    %c0_124 = arith.constant 0 : index
    %c0_125 = arith.constant 0 : index
    %226 = vector.load %arg14[%c1_123, %c0_124, %c0_125] : memref<2x1x32xf32, #tpu.memory_space<vmem>>, vector<1x1x32xf32>
    %227 = vector.shape_cast %226 : vector<1x1x32xf32> to vector<1x32xf32>
    %228 = vector.broadcast %227 : vector<1x32xf32> to vector<8x32xf32>
    %229 = arith.addf %225, %228 : vector<8x32xf32>
    %230 = vector.extract_strided_slice %215 {offsets = [0, 0], sizes = [8, 8], strides = [1, 1]} : vector<8x32xf32> to vector<8x8xf32>
    %231 = vector.extract_strided_slice %222 {offsets = [0, 0], sizes = [8, 8], strides = [1, 1]} : vector<8x32xf32> to vector<8x8xf32>
    %232 = vector.extract_strided_slice %229 {offsets = [0, 0], sizes = [8, 8], strides = [1, 1]} : vector<8x32xf32> to vector<8x8xf32>
    %cst_126 = arith.constant dense<0.000000e+00> : vector<8x8xf32>
    %233 = tpu.matmul %230, %231, %cst_126 {dimension_numbers = #tpu.dot_dimension_numbers<[1], [1], [0], [0], [0, 0, 1, 0], [], []>} : vector<8x8xf32>, vector<8x8xf32>, vector<8x8xf32> -> vector<8x8xf32>
    %cst_127 = arith.constant dense<0xFF800000> : vector<8xf32>
    %234 = vector.multi_reduction <maximumf>, %233, %cst_127 [1] : vector<8x8xf32> to vector<8xf32>
    %235 = vector.shape_cast %234 : vector<8xf32> to vector<8x1xf32>
    %236 = vector.broadcast %235 : vector<8x1xf32> to vector<8x8xf32>
    %237 = arith.subf %233, %236 : vector<8x8xf32>
    %238 = math.exp %237 : vector<8x8xf32>
    %cst_128 = arith.constant dense<0.000000e+00> : vector<8xf32>
    %239 = vector.multi_reduction <add>, %238, %cst_128 [1] : vector<8x8xf32> to vector<8xf32>
    %240 = vector.shape_cast %239 : vector<8xf32> to vector<8x1xf32>
    %241 = tpu.reciprocal %240 {approx = true} : vector<8x1xf32> -> vector<8x1xf32>
    %242 = vector.broadcast %241 : vector<8x1xf32> to vector<8x8xf32>
    %243 = arith.mulf %238, %242 : vector<8x8xf32>
    %cst_129 = arith.constant dense<0.000000e+00> : vector<8x8xf32>
    %244 = tpu.matmul %243, %232, %cst_129 {dimension_numbers = #tpu.dot_dimension_numbers<[1], [0], [0], [1], [0, 0, 1, 1], [], []>} : vector<8x8xf32>, vector<8x8xf32>, vector<8x8xf32> -> vector<8x8xf32>
    %245 = vector.extract_strided_slice %215 {offsets = [0, 8], sizes = [8, 8], strides = [1, 1]} : vector<8x32xf32> to vector<8x8xf32>
    %246 = vector.extract_strided_slice %222 {offsets = [0, 8], sizes = [8, 8], strides = [1, 1]} : vector<8x32xf32> to vector<8x8xf32>
    %247 = vector.extract_strided_slice %229 {offsets = [0, 8], sizes = [8, 8], strides = [1, 1]} : vector<8x32xf32> to vector<8x8xf32>
    %cst_130 = arith.constant dense<0.000000e+00> : vector<8x8xf32>
    %248 = tpu.matmul %245, %246, %cst_130 {dimension_numbers = #tpu.dot_dimension_numbers<[1], [1], [0], [0], [0, 0, 1, 0], [], []>} : vector<8x8xf32>, vector<8x8xf32>, vector<8x8xf32> -> vector<8x8xf32>
    %cst_131 = arith.constant dense<0xFF800000> : vector<8xf32>
    %249 = vector.multi_reduction <maximumf>, %248, %cst_131 [1] : vector<8x8xf32> to vector<8xf32>
    %250 = vector.shape_cast %249 : vector<8xf32> to vector<8x1xf32>
    %251 = vector.broadcast %250 : vector<8x1xf32> to vector<8x8xf32>
    %252 = arith.subf %248, %251 : vector<8x8xf32>
    %253 = math.exp %252 : vector<8x8xf32>
    %cst_132 = arith.constant dense<0.000000e+00> : vector<8xf32>
    %254 = vector.multi_reduction <add>, %253, %cst_132 [1] : vector<8x8xf32> to vector<8xf32>
    %255 = vector.shape_cast %254 : vector<8xf32> to vector<8x1xf32>
    %256 = tpu.reciprocal %255 {approx = true} : vector<8x1xf32> -> vector<8x1xf32>
    %257 = vector.broadcast %256 : vector<8x1xf32> to vector<8x8xf32>
    %258 = arith.mulf %253, %257 : vector<8x8xf32>
    %cst_133 = arith.constant dense<0.000000e+00> : vector<8x8xf32>
    %259 = tpu.matmul %258, %247, %cst_133 {dimension_numbers = #tpu.dot_dimension_numbers<[1], [0], [0], [1], [0, 0, 1, 1], [], []>} : vector<8x8xf32>, vector<8x8xf32>, vector<8x8xf32> -> vector<8x8xf32>
    %260 = vector.extract_strided_slice %215 {offsets = [0, 16], sizes = [8, 8], strides = [1, 1]} : vector<8x32xf32> to vector<8x8xf32>
    %261 = vector.extract_strided_slice %222 {offsets = [0, 16], sizes = [8, 8], strides = [1, 1]} : vector<8x32xf32> to vector<8x8xf32>
    %262 = vector.extract_strided_slice %229 {offsets = [0, 16], sizes = [8, 8], strides = [1, 1]} : vector<8x32xf32> to vector<8x8xf32>
    %cst_134 = arith.constant dense<0.000000e+00> : vector<8x8xf32>
    %263 = tpu.matmul %260, %261, %cst_134 {dimension_numbers = #tpu.dot_dimension_numbers<[1], [1], [0], [0], [0, 0, 1, 0], [], []>} : vector<8x8xf32>, vector<8x8xf32>, vector<8x8xf32> -> vector<8x8xf32>
    %cst_135 = arith.constant dense<0xFF800000> : vector<8xf32>
    %264 = vector.multi_reduction <maximumf>, %263, %cst_135 [1] : vector<8x8xf32> to vector<8xf32>
    %265 = vector.shape_cast %264 : vector<8xf32> to vector<8x1xf32>
    %266 = vector.broadcast %265 : vector<8x1xf32> to vector<8x8xf32>
    %267 = arith.subf %263, %266 : vector<8x8xf32>
    %268 = math.exp %267 : vector<8x8xf32>
    %cst_136 = arith.constant dense<0.000000e+00> : vector<8xf32>
    %269 = vector.multi_reduction <add>, %268, %cst_136 [1] : vector<8x8xf32> to vector<8xf32>
    %270 = vector.shape_cast %269 : vector<8xf32> to vector<8x1xf32>
    %271 = tpu.reciprocal %270 {approx = true} : vector<8x1xf32> -> vector<8x1xf32>
    %272 = vector.broadcast %271 : vector<8x1xf32> to vector<8x8xf32>
    %273 = arith.mulf %268, %272 : vector<8x8xf32>
    %cst_137 = arith.constant dense<0.000000e+00> : vector<8x8xf32>
    %274 = tpu.matmul %273, %262, %cst_137 {dimension_numbers = #tpu.dot_dimension_numbers<[1], [0], [0], [1], [0, 0, 1, 1], [], []>} : vector<8x8xf32>, vector<8x8xf32>, vector<8x8xf32> -> vector<8x8xf32>
    %275 = vector.extract_strided_slice %215 {offsets = [0, 24], sizes = [8, 8], strides = [1, 1]} : vector<8x32xf32> to vector<8x8xf32>
    %276 = vector.extract_strided_slice %222 {offsets = [0, 24], sizes = [8, 8], strides = [1, 1]} : vector<8x32xf32> to vector<8x8xf32>
    %277 = vector.extract_strided_slice %229 {offsets = [0, 24], sizes = [8, 8], strides = [1, 1]} : vector<8x32xf32> to vector<8x8xf32>
    %cst_138 = arith.constant dense<0.000000e+00> : vector<8x8xf32>
    %278 = tpu.matmul %275, %276, %cst_138 {dimension_numbers = #tpu.dot_dimension_numbers<[1], [1], [0], [0], [0, 0, 1, 0], [], []>} : vector<8x8xf32>, vector<8x8xf32>, vector<8x8xf32> -> vector<8x8xf32>
    %cst_139 = arith.constant dense<0xFF800000> : vector<8xf32>
    %279 = vector.multi_reduction <maximumf>, %278, %cst_139 [1] : vector<8x8xf32> to vector<8xf32>
    %280 = vector.shape_cast %279 : vector<8xf32> to vector<8x1xf32>
    %281 = vector.broadcast %280 : vector<8x1xf32> to vector<8x8xf32>
    %282 = arith.subf %278, %281 : vector<8x8xf32>
    %283 = math.exp %282 : vector<8x8xf32>
    %cst_140 = arith.constant dense<0.000000e+00> : vector<8xf32>
    %284 = vector.multi_reduction <add>, %283, %cst_140 [1] : vector<8x8xf32> to vector<8xf32>
    %285 = vector.shape_cast %284 : vector<8xf32> to vector<8x1xf32>
    %286 = tpu.reciprocal %285 {approx = true} : vector<8x1xf32> -> vector<8x1xf32>
    %287 = vector.broadcast %286 : vector<8x1xf32> to vector<8x8xf32>
    %288 = arith.mulf %283, %287 : vector<8x8xf32>
    %cst_141 = arith.constant dense<0.000000e+00> : vector<8x8xf32>
    %289 = tpu.matmul %288, %277, %cst_141 {dimension_numbers = #tpu.dot_dimension_numbers<[1], [0], [0], [1], [0, 0, 1, 1], [], []>} : vector<8x8xf32>, vector<8x8xf32>, vector<8x8xf32> -> vector<8x8xf32>
    %290 = tpu.concatenate %244, %259, %274, %289 in 1 : vector<8x8xf32>, vector<8x8xf32>, vector<8x8xf32>, vector<8x8xf32> -> vector<8x32xf32>
    %c1_142 = arith.constant 1 : index
    %c0_143 = arith.constant 0 : index
    %c0_144 = arith.constant 0 : index
    %291 = vector.load %arg15[%c1_142, %c0_143, %c0_144] : memref<2x32x32xf32, #tpu.memory_space<vmem>>, vector<1x32x32xf32>
    %292 = vector.shape_cast %291 : vector<1x32x32xf32> to vector<32x32xf32>
    %cst_145 = arith.constant dense<0.000000e+00> : vector<8x32xf32>
    %293 = tpu.matmul %290, %292, %cst_145 {dimension_numbers = #tpu.dot_dimension_numbers<[1], [0], [0], [1], [0, 0, 1, 1], [], []>} : vector<8x32xf32>, vector<32x32xf32>, vector<8x32xf32> -> vector<8x32xf32>
    %c1_146 = arith.constant 1 : index
    %c0_147 = arith.constant 0 : index
    %c0_148 = arith.constant 0 : index
    %294 = vector.load %arg16[%c1_146, %c0_147, %c0_148] : memref<2x1x32xf32, #tpu.memory_space<vmem>>, vector<1x1x32xf32>
    %295 = vector.shape_cast %294 : vector<1x1x32xf32> to vector<1x32xf32>
    %296 = vector.broadcast %295 : vector<1x32xf32> to vector<8x32xf32>
    %297 = arith.addf %293, %296 : vector<8x32xf32>
    %298 = arith.addf %206, %297 : vector<8x32xf32>
    %c1_149 = arith.constant 1 : index
    %c0_150 = arith.constant 0 : index
    %c0_151 = arith.constant 0 : index
    %299 = vector.load %arg17[%c1_149, %c0_150, %c0_151] : memref<2x1x32xf32, #tpu.memory_space<vmem>>, vector<1x1x32xf32>
    %300 = vector.shape_cast %299 : vector<1x1x32xf32> to vector<1x32xf32>
    %c1_152 = arith.constant 1 : index
    %c0_153 = arith.constant 0 : index
    %c0_154 = arith.constant 0 : index
    %301 = vector.load %arg18[%c1_152, %c0_153, %c0_154] : memref<2x1x32xf32, #tpu.memory_space<vmem>>, vector<1x1x32xf32>
    %302 = vector.shape_cast %301 : vector<1x1x32xf32> to vector<1x32xf32>
    %cst_155 = arith.constant dense<0.000000e+00> : vector<8xf32>
    %303 = vector.multi_reduction <add>, %298, %cst_155 [1] : vector<8x32xf32> to vector<8xf32>
    %304 = vector.shape_cast %303 : vector<8xf32> to vector<8x1xf32>
    %cst_156 = arith.constant 3.200000e+01 : f32
    %305 = vector.broadcast %cst_156 : f32 to vector<8x1xf32>
    %306 = arith.divf %304, %305 : vector<8x1xf32>
    %307 = vector.broadcast %306 : vector<8x1xf32> to vector<8x32xf32>
    %308 = arith.subf %298, %307 : vector<8x32xf32>
    %309 = vector.broadcast %306 : vector<8x1xf32> to vector<8x32xf32>
    %310 = arith.subf %298, %309 : vector<8x32xf32>
    %311 = arith.mulf %308, %310 : vector<8x32xf32>
    %cst_157 = arith.constant dense<0.000000e+00> : vector<8xf32>
    %312 = vector.multi_reduction <add>, %311, %cst_157 [1] : vector<8x32xf32> to vector<8xf32>
    %313 = vector.shape_cast %312 : vector<8xf32> to vector<8x1xf32>
    %cst_158 = arith.constant 3.200000e+01 : f32
    %314 = vector.broadcast %cst_158 : f32 to vector<8x1xf32>
    %315 = arith.divf %313, %314 : vector<8x1xf32>
    %316 = vector.broadcast %306 : vector<8x1xf32> to vector<8x32xf32>
    %317 = arith.subf %298, %316 : vector<8x32xf32>
    %cst_159 = arith.constant 9.99999974E-6 : f32
    %318 = vector.broadcast %cst_159 : f32 to vector<8x1xf32>
    %319 = arith.addf %315, %318 : vector<8x1xf32>
    %320 = math.rsqrt %319 : vector<8x1xf32>
    %321 = vector.broadcast %320 : vector<8x1xf32> to vector<8x32xf32>
    %322 = arith.mulf %317, %321 : vector<8x32xf32>
    %323 = vector.broadcast %300 : vector<1x32xf32> to vector<8x32xf32>
    %324 = arith.mulf %322, %323 : vector<8x32xf32>
    %325 = vector.broadcast %302 : vector<1x32xf32> to vector<8x32xf32>
    %326 = arith.addf %324, %325 : vector<8x32xf32>
    %c1_160 = arith.constant 1 : index
    %c0_161 = arith.constant 0 : index
    %c0_162 = arith.constant 0 : index
    %327 = vector.load %arg19[%c1_160, %c0_161, %c0_162] : memref<2x32x32xf32, #tpu.memory_space<vmem>>, vector<1x32x32xf32>
    %328 = vector.shape_cast %327 : vector<1x32x32xf32> to vector<32x32xf32>
    %cst_163 = arith.constant dense<0.000000e+00> : vector<8x32xf32>
    %329 = tpu.matmul %326, %328, %cst_163 {dimension_numbers = #tpu.dot_dimension_numbers<[1], [0], [0], [1], [0, 0, 1, 1], [], []>} : vector<8x32xf32>, vector<32x32xf32>, vector<8x32xf32> -> vector<8x32xf32>
    %c1_164 = arith.constant 1 : index
    %c0_165 = arith.constant 0 : index
    %c0_166 = arith.constant 0 : index
    %330 = vector.load %arg20[%c1_164, %c0_165, %c0_166] : memref<2x1x32xf32, #tpu.memory_space<vmem>>, vector<1x1x32xf32>
    %331 = vector.shape_cast %330 : vector<1x1x32xf32> to vector<1x32xf32>
    %332 = vector.broadcast %331 : vector<1x32xf32> to vector<8x32xf32>
    %333 = arith.addf %329, %332 : vector<8x32xf32>
    %cst_167 = arith.constant 0.000000e+00 : f32
    %334 = vector.broadcast %cst_167 : f32 to vector<8x32xf32>
    %335 = arith.maximumf %333, %334 : vector<8x32xf32>
    %c1_168 = arith.constant 1 : index
    %c0_169 = arith.constant 0 : index
    %c0_170 = arith.constant 0 : index
    %336 = vector.load %arg21[%c1_168, %c0_169, %c0_170] : memref<2x32x32xf32, #tpu.memory_space<vmem>>, vector<1x32x32xf32>
    %337 = vector.shape_cast %336 : vector<1x32x32xf32> to vector<32x32xf32>
    %cst_171 = arith.constant dense<0.000000e+00> : vector<8x32xf32>
    %338 = tpu.matmul %335, %337, %cst_171 {dimension_numbers = #tpu.dot_dimension_numbers<[1], [0], [0], [1], [0, 0, 1, 1], [], []>} : vector<8x32xf32>, vector<32x32xf32>, vector<8x32xf32> -> vector<8x32xf32>
    %c1_172 = arith.constant 1 : index
    %c0_173 = arith.constant 0 : index
    %c0_174 = arith.constant 0 : index
    %339 = vector.load %arg22[%c1_172, %c0_173, %c0_174] : memref<2x1x32xf32, #tpu.memory_space<vmem>>, vector<1x1x32xf32>
    %340 = vector.shape_cast %339 : vector<1x1x32xf32> to vector<1x32xf32>
    %341 = vector.broadcast %340 : vector<1x32xf32> to vector<8x32xf32>
    %342 = arith.addf %338, %341 : vector<8x32xf32>
    %343 = arith.addf %326, %342 : vector<8x32xf32>
    %c1_175 = arith.constant 1 : index
    %c0_176 = arith.constant 0 : index
    %c0_177 = arith.constant 0 : index
    %344 = vector.load %arg23[%c1_175, %c0_176, %c0_177] : memref<2x1x32xf32, #tpu.memory_space<vmem>>, vector<1x1x32xf32>
    %345 = vector.shape_cast %344 : vector<1x1x32xf32> to vector<1x32xf32>
    %c1_178 = arith.constant 1 : index
    %c0_179 = arith.constant 0 : index
    %c0_180 = arith.constant 0 : index
    %346 = vector.load %arg24[%c1_178, %c0_179, %c0_180] : memref<2x1x32xf32, #tpu.memory_space<vmem>>, vector<1x1x32xf32>
    %347 = vector.shape_cast %346 : vector<1x1x32xf32> to vector<1x32xf32>
    %cst_181 = arith.constant dense<0.000000e+00> : vector<8xf32>
    %348 = vector.multi_reduction <add>, %343, %cst_181 [1] : vector<8x32xf32> to vector<8xf32>
    %349 = vector.shape_cast %348 : vector<8xf32> to vector<8x1xf32>
    %cst_182 = arith.constant 3.200000e+01 : f32
    %350 = vector.broadcast %cst_182 : f32 to vector<8x1xf32>
    %351 = arith.divf %349, %350 : vector<8x1xf32>
    %352 = vector.broadcast %351 : vector<8x1xf32> to vector<8x32xf32>
    %353 = arith.subf %343, %352 : vector<8x32xf32>
    %354 = vector.broadcast %351 : vector<8x1xf32> to vector<8x32xf32>
    %355 = arith.subf %343, %354 : vector<8x32xf32>
    %356 = arith.mulf %353, %355 : vector<8x32xf32>
    %cst_183 = arith.constant dense<0.000000e+00> : vector<8xf32>
    %357 = vector.multi_reduction <add>, %356, %cst_183 [1] : vector<8x32xf32> to vector<8xf32>
    %358 = vector.shape_cast %357 : vector<8xf32> to vector<8x1xf32>
    %cst_184 = arith.constant 3.200000e+01 : f32
    %359 = vector.broadcast %cst_184 : f32 to vector<8x1xf32>
    %360 = arith.divf %358, %359 : vector<8x1xf32>
    %361 = vector.broadcast %351 : vector<8x1xf32> to vector<8x32xf32>
    %362 = arith.subf %343, %361 : vector<8x32xf32>
    %cst_185 = arith.constant 9.99999974E-6 : f32
    %363 = vector.broadcast %cst_185 : f32 to vector<8x1xf32>
    %364 = arith.addf %360, %363 : vector<8x1xf32>
    %365 = math.rsqrt %364 : vector<8x1xf32>
    %366 = vector.broadcast %365 : vector<8x1xf32> to vector<8x32xf32>
    %367 = arith.mulf %362, %366 : vector<8x32xf32>
    %368 = vector.broadcast %345 : vector<1x32xf32> to vector<8x32xf32>
    %369 = arith.mulf %367, %368 : vector<8x32xf32>
    %370 = vector.broadcast %347 : vector<1x32xf32> to vector<8x32xf32>
    %371 = arith.addf %369, %370 : vector<8x32xf32>
    %c0_186 = arith.constant 0 : index
    %c0_187 = arith.constant 0 : index
    %c0_188 = arith.constant 0 : index
    %372 = vector.load %arg25[%c0_186, %c0_187, %c0_188] : memref<1x8x32xf32, #tpu.memory_space<vmem>>, vector<1x8x32xf32>
    %373 = vector.shape_cast %372 : vector<1x8x32xf32> to vector<8x32xf32>
    %374 = vector.shape_cast %371 : vector<8x32xf32> to vector<1x8x32xf32>
    tpu.vector_store %arg25[%c0_186, %c0_187, %c0_188], %374 {strides = array<i32>} : memref<1x8x32xf32, #tpu.memory_space<vmem>>, vector<1x8x32xf32>,
    return
  }
  func.func @transform_0(%arg0: i32) -> (i32, i32, i32) {
    %c0_i32 = arith.constant 0 : i32
    %c0_i32_0 = arith.constant 0 : i32
    %c0_i32_1 = arith.constant 0 : i32
    return %arg0, %c0_i32, %c0_i32_0 : i32, i32, i32
  }
  func.func @transform_1(%arg0: i32) -> (i32, i32) {
    %c0_i32 = arith.constant 0 : i32
    %c0_i32_0 = arith.constant 0 : i32
    %c0_i32_1 = arith.constant 0 : i32
    return %c0_i32, %c0_i32_0 : i32, i32
  }
  func.func @transform_2(%arg0: i32) -> (i32, i32) {
    %c0_i32 = arith.constant 0 : i32
    %c0_i32_0 = arith.constant 0 : i32
    %c0_i32_1 = arith.constant 0 : i32
    return %c0_i32, %c0_i32_0 : i32, i32
  }
  func.func @transform_3(%arg0: i32) -> (i32, i32) {
    %c0_i32 = arith.constant 0 : i32
    %c0_i32_0 = arith.constant 0 : i32
    %c0_i32_1 = arith.constant 0 : i32
    return %c0_i32, %c0_i32_0 : i32, i32
  }
  func.func @transform_4(%arg0: i32) -> (i32, i32) {
    %c0_i32 = arith.constant 0 : i32
    %c0_i32_0 = arith.constant 0 : i32
    %c0_i32_1 = arith.constant 0 : i32
    return %c0_i32, %c0_i32_0 : i32, i32
  }
  func.func @transform_5(%arg0: i32) -> (i32, i32) {
    %c0_i32 = arith.constant 0 : i32
    %c0_i32_0 = arith.constant 0 : i32
    %c0_i32_1 = arith.constant 0 : i32
    return %c0_i32, %c0_i32_0 : i32, i32
  }
  func.func @transform_6(%arg0: i32) -> (i32, i32) {
    %c0_i32 = arith.constant 0 : i32
    %c0_i32_0 = arith.constant 0 : i32
    %c0_i32_1 = arith.constant 0 : i32
    return %c0_i32, %c0_i32_0 : i32, i32
  }
  func.func @transform_7(%arg0: i32) -> (i32, i32) {
    %c0_i32 = arith.constant 0 : i32
    %c0_i32_0 = arith.constant 0 : i32
    %c0_i32_1 = arith.constant 0 : i32
    return %c0_i32, %c0_i32_0 : i32, i32
  }
  func.func @transform_8(%arg0: i32) -> (i32, i32, i32) {
    %c0_i32 = arith.constant 0 : i32
    %c0_i32_0 = arith.constant 0 : i32
    %c0_i32_1 = arith.constant 0 : i32
    %c0_i32_2 = arith.constant 0 : i32
    return %c0_i32, %c0_i32_0, %c0_i32_1 : i32, i32, i32
  }
  func.func @transform_9(%arg0: i32) -> (i32, i32, i32) {
    %c0_i32 = arith.constant 0 : i32
    %c0_i32_0 = arith.constant 0 : i32
    %c0_i32_1 = arith.constant 0 : i32
    %c0_i32_2 = arith.constant 0 : i32
    return %c0_i32, %c0_i32_0, %c0_i32_1 : i32, i32, i32
  }
  func.func @transform_10(%arg0: i32) -> (i32, i32, i32) {
    %c0_i32 = arith.constant 0 : i32
    %c0_i32_0 = arith.constant 0 : i32
    %c0_i32_1 = arith.constant 0 : i32
    %c0_i32_2 = arith.constant 0 : i32
    return %c0_i32, %c0_i32_0, %c0_i32_1 : i32, i32, i32
  }
  func.func @transform_11(%arg0: i32) -> (i32, i32, i32) {
    %c0_i32 = arith.constant 0 : i32
    %c0_i32_0 = arith.constant 0 : i32
    %c0_i32_1 = arith.constant 0 : i32
    %c0_i32_2 = arith.constant 0 : i32
    return %c0_i32, %c0_i32_0, %c0_i32_1 : i32, i32, i32
  }
  func.func @transform_12(%arg0: i32) -> (i32, i32, i32) {
    %c0_i32 = arith.constant 0 : i32
    %c0_i32_0 = arith.constant 0 : i32
    %c0_i32_1 = arith.constant 0 : i32
    %c0_i32_2 = arith.constant 0 : i32
    return %c0_i32, %c0_i32_0, %c0_i32_1 : i32, i32, i32
  }
  func.func @transform_13(%arg0: i32) -> (i32, i32, i32) {
    %c0_i32 = arith.constant 0 : i32
    %c0_i32_0 = arith.constant 0 : i32
    %c0_i32_1 = arith.constant 0 : i32
    %c0_i32_2 = arith.constant 0 : i32
    return %c0_i32, %c0_i32_0, %c0_i32_1 : i32, i32, i32
  }
  func.func @transform_14(%arg0: i32) -> (i32, i32, i32) {
    %c0_i32 = arith.constant 0 : i32
    %c0_i32_0 = arith.constant 0 : i32
    %c0_i32_1 = arith.constant 0 : i32
    %c0_i32_2 = arith.constant 0 : i32
    return %c0_i32, %c0_i32_0, %c0_i32_1 : i32, i32, i32
  }
  func.func @transform_15(%arg0: i32) -> (i32, i32, i32) {
    %c0_i32 = arith.constant 0 : i32
    %c0_i32_0 = arith.constant 0 : i32
    %c0_i32_1 = arith.constant 0 : i32
    %c0_i32_2 = arith.constant 0 : i32
    return %c0_i32, %c0_i32_0, %c0_i32_1 : i32, i32, i32
  }
  func.func @transform_16(%arg0: i32) -> (i32, i32, i32) {
    %c0_i32 = arith.constant 0 : i32
    %c0_i32_0 = arith.constant 0 : i32
    %c0_i32_1 = arith.constant 0 : i32
    %c0_i32_2 = arith.constant 0 : i32
    return %c0_i32, %c0_i32_0, %c0_i32_1 : i32, i32, i32
  }
  func.func @transform_17(%arg0: i32) -> (i32, i32, i32) {
    %c0_i32 = arith.constant 0 : i32
    %c0_i32_0 = arith.constant 0 : i32
    %c0_i32_1 = arith.constant 0 : i32
    %c0_i32_2 = arith.constant 0 : i32
    return %c0_i32, %c0_i32_0, %c0_i32_1 : i32, i32, i32
  }
  func.func @transform_18(%arg0: i32) -> (i32, i32, i32) {
    %c0_i32 = arith.constant 0 : i32
    %c0_i32_0 = arith.constant 0 : i32
    %c0_i32_1 = arith.constant 0 : i32
    %c0_i32_2 = arith.constant 0 : i32
    return %c0_i32, %c0_i32_0, %c0_i32_1 : i32, i32, i32
  }
  func.func @transform_19(%arg0: i32) -> (i32, i32, i32) {
    %c0_i32 = arith.constant 0 : i32
    %c0_i32_0 = arith.constant 0 : i32
    %c0_i32_1 = arith.constant 0 : i32
    %c0_i32_2 = arith.constant 0 : i32
    return %c0_i32, %c0_i32_0, %c0_i32_1 : i32, i32, i32
  }
  func.func @transform_20(%arg0: i32) -> (i32, i32, i32) {
    %c0_i32 = arith.constant 0 : i32
    %c0_i32_0 = arith.constant 0 : i32
    %c0_i32_1 = arith.constant 0 : i32
    %c0_i32_2 = arith.constant 0 : i32
    return %c0_i32, %c0_i32_0, %c0_i32_1 : i32, i32, i32
  }
  func.func @transform_21(%arg0: i32) -> (i32, i32, i32) {
    %c0_i32 = arith.constant 0 : i32
    %c0_i32_0 = arith.constant 0 : i32
    %c0_i32_1 = arith.constant 0 : i32
    %c0_i32_2 = arith.constant 0 : i32
    return %c0_i32, %c0_i32_0, %c0_i32_1 : i32, i32, i32
  }
  func.func @transform_22(%arg0: i32) -> (i32, i32, i32) {
    %c0_i32 = arith.constant 0 : i32
    %c0_i32_0 = arith.constant 0 : i32
    %c0_i32_1 = arith.constant 0 : i32
    %c0_i32_2 = arith.constant 0 : i32
    return %c0_i32, %c0_i32_0, %c0_i32_1 : i32, i32, i32
  }
  func.func @transform_23(%arg0: i32) -> (i32, i32, i32) {
    %c0_i32 = arith.constant 0 : i32
    %c0_i32_0 = arith.constant 0 : i32
    %c0_i32_1 = arith.constant 0 : i32
    %c0_i32_2 = arith.constant 0 : i32
    return %c0_i32, %c0_i32_0, %c0_i32_1 : i32, i32, i32
  }
  func.func @transform_24(%arg0: i32) -> (i32, i32, i32) {
    %c0_i32 = arith.constant 0 : i32
    %c0_i32_0 = arith.constant 0 : i32
    %c0_i32_1 = arith.constant 0 : i32
    return %arg0, %c0_i32, %c0_i32_0 : i32, i32, i32
  }
}

</mosaic_0001>

<llo_original>
// kernel: sttr_forward.2
$region0: #{sttr_forward.2}
  #allocation0 [shape = 'u32[]', space=smem, size = 0x4, offset = 0x4, fixed_abs, tag = 'smem constant byte address 0x4 - core index']
  #allocation1 [shape = 'u32[72,128]{1,0:T(1,128)}', space=vmem, size = 0x9000, scoped, tag = 'internal scratch']
  %s0 = inlined_call_operand.hbm [shape: f32[2,8,16], index: 0, kind: input, shape index: {}]
  %s1 = inlined_call_operand.vmem [shape: f32[8,32], index: 1, kind: input, shape index: {}]
  %s2 = inlined_call_operand.hbm [shape: f32[16,32], index: 2, kind: input, shape index: {}]
  %s3 = inlined_call_operand.hbm [shape: f32[1,32], index: 3, kind: input, shape index: {}]
  %s4 = inlined_call_operand.hbm [shape: f32[1,32], index: 4, kind: input, shape index: {}]
  %s5 = inlined_call_operand.hbm [shape: f32[1,32], index: 5, kind: input, shape index: {}]
  %s6 = inlined_call_operand.hbm [shape: f32[32,32], index: 6, kind: input, shape index: {}]
  %s7 = inlined_call_operand.hbm [shape: f32[1,32], index: 7, kind: input, shape index: {}]
  %s8 = inlined_call_operand.vmem [shape: f32[2,32,32], index: 8, kind: input, shape index: {}]
  %s9 = inlined_call_operand.vmem [shape: f32[2,32,32], index: 9, kind: input, shape index: {}]
  %s10 = inlined_call_operand.vmem [shape: f32[2,32,32], index: 10, kind: input, shape index: {}]
  %s11 = inlined_call_operand.hbm [shape: f32[2,1,32], index: 11, kind: input, shape index: {}]
  %s12 = inlined_call_operand.hbm [shape: f32[2,1,32], index: 12, kind: input, shape index: {}]
  %s13 = inlined_call_operand.hbm [shape: f32[2,1,32], index: 13, kind: input, shape index: {}]
  %s14 = inlined_call_operand.vmem [shape: f32[2,32,32], index: 14, kind: input, shape index: {}]
  %s15 = inlined_call_operand.hbm [shape: f32[2,1,32], index: 15, kind: input, shape index: {}]
  %s16 = inlined_call_operand.hbm [shape: f32[2,1,32], index: 16, kind: input, shape index: {}]
  %s17 = inlined_call_operand.hbm [shape: f32[2,1,32], index: 17, kind: input, shape index: {}]
  %s18 = inlined_call_operand.hbm [shape: f32[2,32,32], index: 18, kind: input, shape index: {}]
  %s19 = inlined_call_operand.hbm [shape: f32[2,1,32], index: 19, kind: input, shape index: {}]
  %s20 = inlined_call_operand.hbm [shape: f32[2,32,32], index: 20, kind: input, shape index: {}]
  %s21 = inlined_call_operand.hbm [shape: f32[2,1,32], index: 21, kind: input, shape index: {}]
  %s22 = inlined_call_operand.hbm [shape: f32[2,1,32], index: 22, kind: input, shape index: {}]
  %s23 = inlined_call_operand.hbm [shape: f32[2,1,32], index: 23, kind: input, shape index: {}]
  %s24 = inlined_call_operand.hbm [shape: f32[2,8,32], index: 24, kind: output, shape index: {}]
  %s25 = sld [smem:[#allocation0]]
  $region205: #{sttr_forward.2} parent=0
    _
  %s27 = ssub.s32 1, %s25
  %s28 = scalar_select 0, %s27, %s25
  $region1: #{sttr_forward.2} parent=0
    #allocation2 [shape = 'u8[8192]{0}', space=vmem, size = 0x2000, scoped, tag = 'input window, operand 0']
    #allocation3 [shape = 's32[2]{0}', space=sflag, size = 0x8, scoped, tag = 'scoped memory for sttr_forward.2']
    #allocation4 [shape = 's32[2]{0}', space=sflag, size = 0x8, scoped, tag = 'scoped memory for sttr_forward.2']
    #allocation5 [shape = 'u8[8192]{0}', space=vmem, size = 0x2000, scoped, tag = 'input window, operand 2, single buffered']
    #allocation6 [shape = 's32[1]{0}', space=sflag, size = 0x4, scoped, tag = 'scoped memory for sttr_forward.2']
    #allocation7 [shape = 'u8[512]{0}', space=vmem, size = 0x400, scoped, tag = 'input window, operand 3, single buffered']
    #allocation8 [shape = 'u8[512]{0}', space=vmem, size = 0x400, scoped, tag = 'input window, operand 4, single buffered']
    #allocation9 [shape = 's32[1]{0}', space=sflag, size = 0x4, scoped, tag = 'scoped memory for sttr_forward.2']
    #allocation10 [shape = 'u8[512]{0}', space=vmem, size = 0x400, scoped, tag = 'input window, operand 5, single buffered']
    #allocation11 [shape = 'u8[16384]{0}', space=vmem, size = 0x4000, scoped, tag = 'input window, operand 6, single buffered']
    #allocation12 [shape = 's32[1]{0}', space=sflag, size = 0x4, scoped, tag = 'scoped memory for sttr_forward.2']
    #allocation13 [shape = 'u8[512]{0}', space=vmem, size = 0x400, scoped, tag = 'input window, operand 7, single buffered']
    #allocation14 [shape = 'u8[1024]{0}', space=vmem, size = 0x400, scoped, tag = 'input window, operand 11, single buffered']
    #allocation15 [shape = 's32[1]{0}', space=sflag, size = 0x4, scoped, tag = 'scoped memory for sttr_forward.2']
    #allocation16 [shape = 'u8[1024]{0}', space=vmem, size = 0x400, scoped, tag = 'input window, operand 12, single buffered']
    #allocation17 [shape = 'u8[1024]{0}', space=vmem, size = 0x400, scoped, tag = 'input window, operand 13, single buffered']
    #allocation18 [shape = 's32[1]{0}', space=sflag, size = 0x4, scoped, tag = 'scoped memory for sttr_forward.2']
    #allocation19 [shape = 'u8[1024]{0}', space=vmem, size = 0x400, scoped, tag = 'input window, operand 15, single buffered']
    #allocation20 [shape = 'u8[1024]{0}', space=vmem, size = 0x400, scoped, tag = 'input window, operand 16, single buffered']
    #allocation21 [shape = 's32[1]{0}', space=sflag, size = 0x4, scoped, tag = 'scoped memory for sttr_forward.2']
    #allocation22 [shape = 'u8[1024]{0}', space=vmem, size = 0x400, scoped, tag = 'input window, operand 17, single buffered']
    #allocation23 [shape = 'u8[32768]{0}', space=vmem, size = 0x8000, scoped, tag = 'input window, operand 18, single buffered']
    #allocation24 [shape = 's32[1]{0}', space=sflag, size = 0x4, scoped, tag = 'scoped memory for sttr_forward.2']
    #allocation25 [shape = 'u8[1024]{0}', space=vmem, size = 0x400, scoped, tag = 'input window, operand 19, single buffered']
    #allocation26 [shape = 'u8[32768]{0}', space=vmem, size = 0x8000, scoped, tag = 'input window, operand 20, single buffered']
    #allocation27 [shape = 's32[1]{0}', space=sflag, size = 0x4, scoped, tag = 'scoped memory for sttr_forward.2']
    #allocation28 [shape = 'u8[1024]{0}', space=vmem, size = 0x400, scoped, tag = 'input window, operand 21, single buffered']
    #allocation29 [shape = 'u8[1024]{0}', space=vmem, size = 0x400, scoped, tag = 'input window, operand 22, single buffered']
    #allocation30 [shape = 's32[1]{0}', space=sflag, size = 0x4, scoped, tag = 'scoped memory for sttr_forward.2']
    #allocation31 [shape = 'u8[1024]{0}', space=vmem, size = 0x400, scoped, tag = 'input window, operand 23, single buffered']
    #allocation32 [shape = 'u8[8192]{0}', space=vmem, size = 0x2000, scoped, tag = 'output window, operand 0']
    %29 = vsyncpa [#allocation3], 0
    %s30 = scalar_lea.sflag [#allocation3], 1
    %31 = vsyncpa %s30, 0
    %32 = vsyncpa [#allocation6], 0
    %33 = vsyncpa [#allocation9], 0
    %34 = vsyncpa [#allocation12], 0
    %35 = vsyncpa [#allocation15], 0
    %36 = vsyncpa [#allocation18], 0
    %37 = vsyncpa [#allocation21], 0
    %38 = vsyncpa [#allocation24], 0
    %39 = vsyncpa [#allocation27], 0
    %40 = vsyncpa [#allocation30], 0
    %41 = vsyncpa [#allocation4], 0
    %s42 = scalar_lea.sflag [#allocation4], 1
    %43 = vsyncpa %s42, 0
    loop: start=0, step=1, limit=4
    $region2: #{sttr_forward.2} parent=1 // loop_pre_header
      _
    $region3: #{sttr_forward.2} parent=1 // loop_header
      %s45 = sphi 0, %s49
      %p46 = scmp.ge.s32.totalorder %s45, 4
      %s55 = sphi 0, %s57
      %s58 = sphi 0, %s55
      %s59 = sphi 0, %s58
      %s75 = sphi 0, %s59
      %s79 = sphi 0, %s79
      %s81 = sphi 0, %s79
      %s82 = sphi 0, %s81
      %s96 = sphi 0, %s82
      %s100 = sphi 0, %s100
      %s102 = sphi 0, %s100
      %s103 = sphi 0, %s102
      %s117 = sphi 0, %s103
      %s121 = sphi 0, %s121
      %s123 = sphi 0, %s121
      %s124 = sphi 0, %s123
      %s138 = sphi 0, %s124
      %s142 = sphi 0, %s142
      %s144 = sphi 0, %s142
      %s145 = sphi 0, %s144
      %s159 = sphi 0, %s145
      %s163 = sphi 0, %s163
      %s165 = sphi 0, %s163
      %s166 = sphi 0, %s165
      %s180 = sphi 0, %s166
      %s184 = sphi 0, %s184
      %s186 = sphi 0, %s184
      %s187 = sphi 0, %s186
      %s201 = sphi 0, %s187
      %s205 = sphi 0, %s205
      %s207 = sphi 0, %s205
      %s208 = sphi 0, %s207
      %s222 = sphi 0, %s208
      %s226 = sphi 0, %s226
      %s228 = sphi 0, %s226
      %s229 = sphi 0, %s228
      %s243 = sphi 0, %s229
      %s247 = sphi 0, %s247
      %s249 = sphi 0, %s247
      %s250 = sphi 0, %s249
      %s264 = sphi 0, %s250
      %s268 = sphi 0, %s268
      %s270 = sphi 0, %s268
      %s271 = sphi 0, %s270
      %s285 = sphi 0, %s271
      %s289 = sphi 0, %s289
      %s291 = sphi 0, %s289
      %s292 = sphi 0, %s291
      %s306 = sphi 0, %s292
      %s310 = sphi 0, %s310
      %s312 = sphi 0, %s310
      %s313 = sphi 0, %s312
      %s327 = sphi 0, %s313
      %s331 = sphi 0, %s331
      %s333 = sphi 0, %s331
      %s334 = sphi 0, %s333
      %s348 = sphi 0, %s334
      %s352 = sphi 0, %s352
      %s354 = sphi 0, %s352
      %s355 = sphi 0, %s354
      %s369 = sphi 0, %s355
      %s373 = sphi 0, %s373
      %s375 = sphi 0, %s373
      %s376 = sphi 0, %s375
      %s390 = sphi 0, %s376
      %s394 = sphi 0, %s394
      %s396 = sphi 0, %s394
      %s397 = sphi 0, %s396
      %s411 = sphi 0, %s397
      %s415 = sphi 0, %s415
      %s417 = sphi 0, %s415
      %s418 = sphi 0, %s417
      %s432 = sphi 0, %s418
      %s436 = sphi 0, %s436
      %s438 = sphi 0, %s436
      %s439 = sphi 0, %s438
      %s453 = sphi 0, %s439
      %s457 = sphi 0, %s457
      %s459 = sphi 0, %s457
      %s460 = sphi 0, %s459
      %s474 = sphi 0, %s460
      %s478 = sphi 0, %s478
      %s480 = sphi 0, %s478
      %s481 = sphi 0, %s480
      %s495 = sphi 0, %s481
      %s499 = sphi 0, %s499
      %s501 = sphi 0, %s499
      %s502 = sphi 0, %s501
      %s516 = sphi 0, %s502
      %s520 = sphi 0, %s520
      %s522 = sphi 0, %s520
      %s523 = sphi 0, %s522
      %s537 = sphi 0, %s523
      %s541 = sphi 0, %s541
      %s543 = sphi 0, %s541
      %s544 = sphi 0, %s543
      %s558 = sphi 0, %s544
      %s564 = sphi 0, %s566
      %s567 = sphi 0, %s564
      %s568 = sphi 0, %s567
      %s584 = sphi 0, %s568
    $region4: #{sttr_forward.2} parent=1 // loop_header_branch
      %48 = sbr.rel (%p46) target = $region8
    $region5: #{sttr_forward.2} parent=1 // loop_body
      %s50 = ssub.s32 %s45, 1
      %s51 = ssub.s32 %s45, 2
      %s52 = sadd.s32 %s45, 1
      %s53 = ssub.s32 %s45, %s52
      %p54 = scmp.eq.s32.totalorder %s53, 0
      %s56 = sadd.s32 %s55, 1
      %s57 = scalar_select %p54, %s55, %s56
      %p60 = pneg %p54
      %p61 = scmp.eq.s32.totalorder %s45, 1
      %p62 = por %p60, %p61
      %p63 = scmp.ne.s32.totalorder %s55, %s58
      %p64 = scmp.eq.s32.totalorder %s45, 0
      %p65 = por %p63, %p64
      %p66 = scmp.ne.s32.totalorder %s55, %s58
      %p67 = scmp.eq.s32.totalorder %s50, 1
      %p68 = por %p66, %p67
      %p69 = scmp.ne.s32.totalorder %s58, %s59
      %p70 = scmp.eq.s32.totalorder %s50, 0
      %p71 = por %p69, %p70
      %p72 = scmp.ne.s32.totalorder %s58, %s59
      %p73 = scmp.eq.s32.totalorder %s51, 1
      %p74 = por %p72, %p73
      %p76 = scmp.ne.s32.totalorder %s59, %s75
      %p77 = scmp.eq.s32.totalorder %s51, 0
      %p78 = por %p76, %p77
      %s80 = sadd.s32 %s79, 1
      %p83 = scmp.eq.s32.totalorder %s45, 1
      %p84 = scmp.ne.s32.totalorder %s79, %s81
      %p85 = scmp.eq.s32.totalorder %s45, 0
      %p86 = por %p84, %p85
      %p87 = scmp.ne.s32.totalorder %s79, %s81
      %p88 = scmp.eq.s32.totalorder %s50, 1
      %p89 = por %p87, %p88
      %p90 = scmp.ne.s32.totalorder %s81, %s82
      %p91 = scmp.eq.s32.totalorder %s50, 0
      %p92 = por %p90, %p91
      %p93 = scmp.ne.s32.totalorder %s81, %s82
      %p94 = scmp.eq.s32.totalorder %s51, 1
      %p95 = por %p93, %p94
      %p97 = scmp.ne.s32.totalorder %s82, %s96
      %p98 = scmp.eq.s32.totalorder %s51, 0
      %p99 = por %p97, %p98
      %s101 = sadd.s32 %s100, 1
      %p104 = scmp.eq.s32.totalorder %s45, 1
      %p105 = scmp.ne.s32.totalorder %s100, %s102
      %p106 = scmp.eq.s32.totalorder %s45, 0
      %p107 = por %p105, %p106
      %p108 = scmp.ne.s32.totalorder %s100, %s102
      %p109 = scmp.eq.s32.totalorder %s50, 1
      %p110 = por %p108, %p109
      %p111 = scmp.ne.s32.totalorder %s102, %s103
      %p112 = scmp.eq.s32.totalorder %s50, 0
      %p113 = por %p111, %p112
      %p114 = scmp.ne.s32.totalorder %s102, %s103
      %p115 = scmp.eq.s32.totalorder %s51, 1
      %p116 = por %p114, %p115
      %p118 = scmp.ne.s32.totalorder %s103, %s117
      %p119 = scmp.eq.s32.totalorder %s51, 0
      %p120 = por %p118, %p119
      %s122 = sadd.s32 %s121, 1
      %p125 = scmp.eq.s32.totalorder %s45, 1
      %p126 = scmp.ne.s32.totalorder %s121, %s123
      %p127 = scmp.eq.s32.totalorder %s45, 0
      %p128 = por %p126, %p127
      %p129 = scmp.ne.s32.totalorder %s121, %s123
      %p130 = scmp.eq.s32.totalorder %s50, 1
      %p131 = por %p129, %p130
      %p132 = scmp.ne.s32.totalorder %s123, %s124
      %p133 = scmp.eq.s32.totalorder %s50, 0
      %p134 = por %p132, %p133
      %p135 = scmp.ne.s32.totalorder %s123, %s124
      %p136 = scmp.eq.s32.totalorder %s51, 1
      %p137 = por %p135, %p136
      %p139 = scmp.ne.s32.totalorder %s124, %s138
      %p140 = scmp.eq.s32.totalorder %s51, 0
      %p141 = por %p139, %p140
      %s143 = sadd.s32 %s142, 1
      %p146 = scmp.eq.s32.totalorder %s45, 1
      %p147 = scmp.ne.s32.totalorder %s142, %s144
      %p148 = scmp.eq.s32.totalorder %s45, 0
      %p149 = por %p147, %p148
      %p150 = scmp.ne.s32.totalorder %s142, %s144
      %p151 = scmp.eq.s32.totalorder %s50, 1
      %p152 = por %p150, %p151
      %p153 = scmp.ne.s32.totalorder %s144, %s145
      %p154 = scmp.eq.s32.totalorder %s50, 0
      %p155 = por %p153, %p154
      %p156 = scmp.ne.s32.totalorder %s144, %s145
      %p157 = scmp.eq.s32.totalorder %s51, 1
      %p158 = por %p156, %p157
      %p160 = scmp.ne.s32.totalorder %s145, %s159
      %p161 = scmp.eq.s32.totalorder %s51, 0
      %p162 = por %p160, %p161
      %s164 = sadd.s32 %s163, 1
      %p167 = scmp.eq.s32.totalorder %s45, 1
      %p168 = scmp.ne.s32.totalorder %s163, %s165
      %p169 = scmp.eq.s32.totalorder %s45, 0
      %p170 = por %p168, %p169
      %p171 = scmp.ne.s32.totalorder %s163, %s165
      %p172 = scmp.eq.s32.totalorder %s50, 1
      %p173 = por %p171, %p172
      %p174 = scmp.ne.s32.totalorder %s165, %s166
      %p175 = scmp.eq.s32.totalorder %s50, 0
      %p176 = por %p174, %p175
      %p177 = scmp.ne.s32.totalorder %s165, %s166
      %p178 = scmp.eq.s32.totalorder %s51, 1
      %p179 = por %p177, %p178
      %p181 = scmp.ne.s32.totalorder %s166, %s180
      %p182 = scmp.eq.s32.totalorder %s51, 0
      %p183 = por %p181, %p182
      %s185 = sadd.s32 %s184, 1
      %p188 = scmp.eq.s32.totalorder %s45, 1
      %p189 = scmp.ne.s32.totalorder %s184, %s186
      %p190 = scmp.eq.s32.totalorder %s45, 0
      %p191 = por %p189, %p190
      %p192 = scmp.ne.s32.totalorder %s184, %s186
      %p193 = scmp.eq.s32.totalorder %s50, 1
      %p194 = por %p192, %p193
      %p195 = scmp.ne.s32.totalorder %s186, %s187
      %p196 = scmp.eq.s32.totalorder %s50, 0
      %p197 = por %p195, %p196
      %p198 = scmp.ne.s32.totalorder %s186, %s187
      %p199 = scmp.eq.s32.totalorder %s51, 1
      %p200 = por %p198, %p199
      %p202 = scmp.ne.s32.totalorder %s187, %s201
      %p203 = scmp.eq.s32.totalorder %s51, 0
      %p204 = por %p202, %p203
      %s206 = sadd.s32 %s205, 1
      %p209 = scmp.eq.s32.totalorder %s45, 1
      %p210 = scmp.ne.s32.totalorder %s205, %s207
      %p211 = scmp.eq.s32.totalorder %s45, 0
      %p212 = por %p210, %p211
      %p213 = scmp.ne.s32.totalorder %s205, %s207
      %p214 = scmp.eq.s32.totalorder %s50, 1
      %p215 = por %p213, %p214
      %p216 = scmp.ne.s32.totalorder %s207, %s208
      %p217 = scmp.eq.s32.totalorder %s50, 0
      %p218 = por %p216, %p217
      %p219 = scmp.ne.s32.totalorder %s207, %s208
      %p220 = scmp.eq.s32.totalorder %s51, 1
      %p221 = por %p219, %p220
      %p223 = scmp.ne.s32.totalorder %s208, %s222
      %p224 = scmp.eq.s32.totalorder %s51, 0
      %p225 = por %p223, %p224
      %s227 = sadd.s32 %s226, 1
      %p230 = scmp.eq.s32.totalorder %s45, 1
      %p231 = scmp.ne.s32.totalorder %s226, %s228
      %p232 = scmp.eq.s32.totalorder %s45, 0
      %p233 = por %p231, %p232
      %p234 = scmp.ne.s32.totalorder %s226, %s228
      %p235 = scmp.eq.s32.totalorder %s50, 1
      %p236 = por %p234, %p235
      %p237 = scmp.ne.s32.totalorder %s228, %s229
      %p238 = scmp.eq.s32.totalorder %s50, 0
      %p239 = por %p237, %p238
      %p240 = scmp.ne.s32.totalorder %s228, %s229
      %p241 = scmp.eq.s32.totalorder %s51, 1
      %p242 = por %p240, %p241
      %p244 = scmp.ne.s32.totalorder %s229, %s243
      %p245 = scmp.eq.s32.totalorder %s51, 0
      %p246 = por %p244, %p245
      %s248 = sadd.s32 %s247, 1
      %p251 = scmp.eq.s32.totalorder %s45, 1
      %p252 = scmp.ne.s32.totalorder %s247, %s249
      %p253 = scmp.eq.s32.totalorder %s45, 0
      %p254 = por %p252, %p253
      %p255 = scmp.ne.s32.totalorder %s247, %s249
      %p256 = scmp.eq.s32.totalorder %s50, 1
      %p257 = por %p255, %p256
      %p258 = scmp.ne.s32.totalorder %s249, %s250
      %p259 = scmp.eq.s32.totalorder %s50, 0
      %p260 = por %p258, %p259
      %p261 = scmp.ne.s32.totalorder %s249, %s250
      %p262 = scmp.eq.s32.totalorder %s51, 1
      %p263 = por %p261, %p262
      %p265 = scmp.ne.s32.totalorder %s250, %s264
      %p266 = scmp.eq.s32.totalorder %s51, 0
      %p267 = por %p265, %p266
      %s269 = sadd.s32 %s268, 1
      %p272 = scmp.eq.s32.totalorder %s45, 1
      %p273 = scmp.ne.s32.totalorder %s268, %s270
      %p274 = scmp.eq.s32.totalorder %s45, 0
      %p275 = por %p273, %p274
      %p276 = scmp.ne.s32.totalorder %s268, %s270
      %p277 = scmp.eq.s32.totalorder %s50, 1
      %p278 = por %p276, %p277
      %p279 = scmp.ne.s32.totalorder %s270, %s271
      %p280 = scmp.eq.s32.totalorder %s50, 0
      %p281 = por %p279, %p280
      %p282 = scmp.ne.s32.totalorder %s270, %s271
      %p283 = scmp.eq.s32.totalorder %s51, 1
      %p284 = por %p282, %p283
      %p286 = scmp.ne.s32.totalorder %s271, %s285
      %p287 = scmp.eq.s32.totalorder %s51, 0
      %p288 = por %p286, %p287
      %s290 = sadd.s32 %s289, 1
      %p293 = scmp.eq.s32.totalorder %s45, 1
      %p294 = scmp.ne.s32.totalorder %s289, %s291
      %p295 = scmp.eq.s32.totalorder %s45, 0
      %p296 = por %p294, %p295
      %p297 = scmp.ne.s32.totalorder %s289, %s291
      %p298 = scmp.eq.s32.totalorder %s50, 1
      %p299 = por %p297, %p298
      %p300 = scmp.ne.s32.totalorder %s291, %s292
      %p301 = scmp.eq.s32.totalorder %s50, 0
      %p302 = por %p300, %p301
      %p303 = scmp.ne.s32.totalorder %s291, %s292
      %p304 = scmp.eq.s32.totalorder %s51, 1
      %p305 = por %p303, %p304
      %p307 = scmp.ne.s32.totalorder %s292, %s306
      %p308 = scmp.eq.s32.totalorder %s51, 0
      %p309 = por %p307, %p308
      %s311 = sadd.s32 %s310, 1
      %p314 = scmp.eq.s32.totalorder %s45, 1
      %p315 = scmp.ne.s32.totalorder %s310, %s312
      %p316 = scmp.eq.s32.totalorder %s45, 0
      %p317 = por %p315, %p316
      %p318 = scmp.ne.s32.totalorder %s310, %s312
      %p319 = scmp.eq.s32.totalorder %s50, 1
      %p320 = por %p318, %p319
      %p321 = scmp.ne.s32.totalorder %s312, %s313
      %p322 = scmp.eq.s32.totalorder %s50, 0
      %p323 = por %p321, %p322
      %p324 = scmp.ne.s32.totalorder %s312, %s313
      %p325 = scmp.eq.s32.totalorder %s51, 1
      %p326 = por %p324, %p325
      %p328 = scmp.ne.s32.totalorder %s313, %s327
      %p329 = scmp.eq.s32.totalorder %s51, 0
      %p330 = por %p328, %p329
      %s332 = sadd.s32 %s331, 1
      %p335 = scmp.eq.s32.totalorder %s45, 1
      %p336 = scmp.ne.s32.totalorder %s331, %s333
      %p337 = scmp.eq.s32.totalorder %s45, 0
      %p338 = por %p336, %p337
      %p339 = scmp.ne.s32.totalorder %s331, %s333
      %p340 = scmp.eq.s32.totalorder %s50, 1
      %p341 = por %p339, %p340
      %p342 = scmp.ne.s32.totalorder %s333, %s334
      %p343 = scmp.eq.s32.totalorder %s50, 0
      %p344 = por %p342, %p343
      %p345 = scmp.ne.s32.totalorder %s333, %s334
      %p346 = scmp.eq.s32.totalorder %s51, 1
      %p347 = por %p345, %p346
      %p349 = scmp.ne.s32.totalorder %s334, %s348
      %p350 = scmp.eq.s32.totalorder %s51, 0
      %p351 = por %p349, %p350
      %s353 = sadd.s32 %s352, 1
      %p356 = scmp.eq.s32.totalorder %s45, 1
      %p357 = scmp.ne.s32.totalorder %s352, %s354
      %p358 = scmp.eq.s32.totalorder %s45, 0
      %p359 = por %p357, %p358
      %p360 = scmp.ne.s32.totalorder %s352, %s354
      %p361 = scmp.eq.s32.totalorder %s50, 1
      %p362 = por %p360, %p361
      %p363 = scmp.ne.s32.totalorder %s354, %s355
      %p364 = scmp.eq.s32.totalorder %s50, 0
      %p365 = por %p363, %p364
      %p366 = scmp.ne.s32.totalorder %s354, %s355
      %p367 = scmp.eq.s32.totalorder %s51, 1
      %p368 = por %p366, %p367
      %p370 = scmp.ne.s32.totalorder %s355, %s369
      %p371 = scmp.eq.s32.totalorder %s51, 0
      %p372 = por %p370, %p371
      %s374 = sadd.s32 %s373, 1
      %p377 = scmp.eq.s32.totalorder %s45, 1
      %p378 = scmp.ne.s32.totalorder %s373, %s375
      %p379 = scmp.eq.s32.totalorder %s45, 0
      %p380 = por %p378, %p379
      %p381 = scmp.ne.s32.totalorder %s373, %s375
      %p382 = scmp.eq.s32.totalorder %s50, 1
      %p383 = por %p381, %p382
      %p384 = scmp.ne.s32.totalorder %s375, %s376
      %p385 = scmp.eq.s32.totalorder %s50, 0
      %p386 = por %p384, %p385
      %p387 = scmp.ne.s32.totalorder %s375, %s376
      %p388 = scmp.eq.s32.totalorder %s51, 1
      %p389 = por %p387, %p388
      %p391 = scmp.ne.s32.totalorder %s376, %s390
      %p392 = scmp.eq.s32.totalorder %s51, 0
      %p393 = por %p391, %p392
      %s395 = sadd.s32 %s394, 1
      %p398 = scmp.eq.s32.totalorder %s45, 1
      %p399 = scmp.ne.s32.totalorder %s394, %s396
      %p400 = scmp.eq.s32.totalorder %s45, 0
      %p401 = por %p399, %p400
      %p402 = scmp.ne.s32.totalorder %s394, %s396
      %p403 = scmp.eq.s32.totalorder %s50, 1
      %p404 = por %p402, %p403
      %p405 = scmp.ne.s32.totalorder %s396, %s397
      %p406 = scmp.eq.s32.totalorder %s50, 0
      %p407 = por %p405, %p406
      %p408 = scmp.ne.s32.totalorder %s396, %s397
      %p409 = scmp.eq.s32.totalorder %s51, 1
      %p410 = por %p408, %p409
      %p412 = scmp.ne.s32.totalorder %s397, %s411
      %p413 = scmp.eq.s32.totalorder %s51, 0
      %p414 = por %p412, %p413
      %s416 = sadd.s32 %s415, 1
      %p419 = scmp.eq.s32.totalorder %s45, 1
      %p420 = scmp.ne.s32.totalorder %s415, %s417
      %p421 = scmp.eq.s32.totalorder %s45, 0
      %p422 = por %p420, %p421
      %p423 = scmp.ne.s32.totalorder %s415, %s417
      %p424 = scmp.eq.s32.totalorder %s50, 1
      %p425 = por %p423, %p424
      %p426 = scmp.ne.s32.totalorder %s417, %s418
      %p427 = scmp.eq.s32.totalorder %s50, 0
      %p428 = por %p426, %p427
      %p429 = scmp.ne.s32.totalorder %s417, %s418
      %p430 = scmp.eq.s32.totalorder %s51, 1
      %p431 = por %p429, %p430
      %p433 = scmp.ne.s32.totalorder %s418, %s432
      %p434 = scmp.eq.s32.totalorder %s51, 0
      %p435 = por %p433, %p434
      %s437 = sadd.s32 %s436, 1
      %p440 = scmp.eq.s32.totalorder %s45, 1
      %p441 = scmp.ne.s32.totalorder %s436, %s438
      %p442 = scmp.eq.s32.totalorder %s45, 0
      %p443 = por %p441, %p442
      %p444 = scmp.ne.s32.totalorder %s436, %s438
      %p445 = scmp.eq.s32.totalorder %s50, 1
      %p446 = por %p444, %p445
      %p447 = scmp.ne.s32.totalorder %s438, %s439
      %p448 = scmp.eq.s32.totalorder %s50, 0
      %p449 = por %p447, %p448
      %p450 = scmp.ne.s32.totalorder %s438, %s439
      %p451 = scmp.eq.s32.totalorder %s51, 1
      %p452 = por %p450, %p451
      %p454 = scmp.ne.s32.totalorder %s439, %s453
      %p455 = scmp.eq.s32.totalorder %s51, 0
      %p456 = por %p454, %p455
      %s458 = sadd.s32 %s457, 1
      %p461 = scmp.eq.s32.totalorder %s45, 1
      %p462 = scmp.ne.s32.totalorder %s457, %s459
      %p463 = scmp.eq.s32.totalorder %s45, 0
      %p464 = por %p462, %p463
      %p465 = scmp.ne.s32.totalorder %s457, %s459
      %p466 = scmp.eq.s32.totalorder %s50, 1
      %p467 = por %p465, %p466
      %p468 = scmp.ne.s32.totalorder %s459, %s460
      %p469 = scmp.eq.s32.totalorder %s50, 0
      %p470 = por %p468, %p469
      %p471 = scmp.ne.s32.totalorder %s459, %s460
      %p472 = scmp.eq.s32.totalorder %s51, 1
      %p473 = por %p471, %p472
      %p475 = scmp.ne.s32.totalorder %s460, %s474
      %p476 = scmp.eq.s32.totalorder %s51, 0
      %p477 = por %p475, %p476
      %s479 = sadd.s32 %s478, 1
      %p482 = scmp.eq.s32.totalorder %s45, 1
      %p483 = scmp.ne.s32.totalorder %s478, %s480
      %p484 = scmp.eq.s32.totalorder %s45, 0
      %p485 = por %p483, %p484
      %p486 = scmp.ne.s32.totalorder %s478, %s480
      %p487 = scmp.eq.s32.totalorder %s50, 1
      %p488 = por %p486, %p487
      %p489 = scmp.ne.s32.totalorder %s480, %s481
      %p490 = scmp.eq.s32.totalorder %s50, 0
      %p491 = por %p489, %p490
      %p492 = scmp.ne.s32.totalorder %s480, %s481
      %p493 = scmp.eq.s32.totalorder %s51, 1
      %p494 = por %p492, %p493
      %p496 = scmp.ne.s32.totalorder %s481, %s495
      %p497 = scmp.eq.s32.totalorder %s51, 0
      %p498 = por %p496, %p497
      %s500 = sadd.s32 %s499, 1
      %p503 = scmp.eq.s32.totalorder %s45, 1
      %p504 = scmp.ne.s32.totalorder %s499, %s501
      %p505 = scmp.eq.s32.totalorder %s45, 0
      %p506 = por %p504, %p505
      %p507 = scmp.ne.s32.totalorder %s499, %s501
      %p508 = scmp.eq.s32.totalorder %s50, 1
      %p509 = por %p507, %p508
      %p510 = scmp.ne.s32.totalorder %s501, %s502
      %p511 = scmp.eq.s32.totalorder %s50, 0
      %p512 = por %p510, %p511
      %p513 = scmp.ne.s32.totalorder %s501, %s502
      %p514 = scmp.eq.s32.totalorder %s51, 1
      %p515 = por %p513, %p514
      %p517 = scmp.ne.s32.totalorder %s502, %s516
      %p518 = scmp.eq.s32.totalorder %s51, 0
      %p519 = por %p517, %p518
      %s521 = sadd.s32 %s520, 1
      %p524 = scmp.eq.s32.totalorder %s45, 1
      %p525 = scmp.ne.s32.totalorder %s520, %s522
      %p526 = scmp.eq.s32.totalorder %s45, 0
      %p527 = por %p525, %p526
      %p528 = scmp.ne.s32.totalorder %s520, %s522
      %p529 = scmp.eq.s32.totalorder %s50, 1
      %p530 = por %p528, %p529
      %p531 = scmp.ne.s32.totalorder %s522, %s523
      %p532 = scmp.eq.s32.totalorder %s50, 0
      %p533 = por %p531, %p532
      %p534 = scmp.ne.s32.totalorder %s522, %s523
      %p535 = scmp.eq.s32.totalorder %s51, 1
      %p536 = por %p534, %p535
      %p538 = scmp.ne.s32.totalorder %s523, %s537
      %p539 = scmp.eq.s32.totalorder %s51, 0
      %p540 = por %p538, %p539
      %s542 = sadd.s32 %s541, 1
      %p545 = scmp.eq.s32.totalorder %s45, 1
      %p546 = scmp.ne.s32.totalorder %s541, %s543
      %p547 = scmp.eq.s32.totalorder %s45, 0
      %p548 = por %p546, %p547
      %p549 = scmp.ne.s32.totalorder %s541, %s543
      %p550 = scmp.eq.s32.totalorder %s50, 1
      %p551 = por %p549, %p550
      %p552 = scmp.ne.s32.totalorder %s543, %s544
      %p553 = scmp.eq.s32.totalorder %s50, 0
      %p554 = por %p552, %p553
      %p555 = scmp.ne.s32.totalorder %s543, %s544
      %p556 = scmp.eq.s32.totalorder %s51, 1
      %p557 = por %p555, %p556
      %p559 = scmp.ne.s32.totalorder %s544, %s558
      %p560 = scmp.eq.s32.totalorder %s51, 0
      %p561 = por %p559, %p560
      %s562 = ssub.s32 %s45, %s52
      %p563 = scmp.eq.s32.totalorder %s562, 0
      %s565 = sadd.s32 %s564, 1
      %s566 = scalar_select %p563, %s564, %s565
      %p569 = pneg %p563
      %p570 = scmp.eq.s32.totalorder %s45, 1
      %p571 = por %p569, %p570
      %p572 = scmp.ne.s32.totalorder %s564, %s567
      %p573 = scmp.eq.s32.totalorder %s45, 0
      %p574 = por %p572, %p573
      %p575 = scmp.ne.s32.totalorder %s564, %s567
      %p576 = scmp.eq.s32.totalorder %s50, 1
      %p577 = por %p575, %p576
      %p578 = scmp.ne.s32.totalorder %s567, %s568
      %p579 = scmp.eq.s32.totalorder %s50, 0
      %p580 = por %p578, %p579
      %p581 = scmp.ne.s32.totalorder %s567, %s568
      %p582 = scmp.eq.s32.totalorder %s51, 1
      %p583 = por %p581, %p582
      %p585 = scmp.ne.s32.totalorder %s568, %s584
      %p586 = scmp.eq.s32.totalorder %s51, 0
      %p587 = por %p585, %p586
      %p588 = scmp.le.s32.totalorder 1, %s45
      %p589 = scmp.lt.s32.totalorder %s45, 3
      %p590 = pnand %p588, %p589
      %p591 = pneg %p590
      // Predicated region
      $region9: #{sttr_forward.2} parent=5 // pred_check
        _
      $region10: #{sttr_forward.2} parent=5 // pred_check_branch
        %593 = sbr.rel (%p590) target = $region12
      $region11: #{sttr_forward.2} parent=5 // pred_region
        %s594 = ssub.s32 %s45, 1
        // Predicated region
        $region13: #{sttr_forward.2} parent=11 // pred_check
          %p595 = pneg %p92
        $region14: #{sttr_forward.2} parent=11 // pred_check_branch
          %597 = sbr.rel (%p595) target = $region16
        $region15: #{sttr_forward.2} parent=11 // pred_region
          _
        $region16: #{sttr_forward.2} parent=11 // pred_fallthru
          _
        // Predicated region
        $region17: #{sttr_forward.2} parent=11 // pred_check
          %p598 = pneg %p113
        $region18: #{sttr_forward.2} parent=11 // pred_check_branch
          %600 = sbr.rel (%p598) target = $region20
        $region19: #{sttr_forward.2} parent=11 // pred_region
          %602 = vsyncadd [#allocation6], 0
          %s603 = sshll.u32 %s2, 4
          %s604 = int_to_ptr.hbm [resolvable:$true] %s603
          %s605 = sshll.u32 [#allocation5], 4
          %s606 = int_to_ptr.vmem [resolvable:$true] %s605
          %611 = dma.hbm_to_vmem [thread:$0]  %s604, 256, %s606, [#allocation6], 128, 128, 8
        $region20: #{sttr_forward.2} parent=11 // pred_fallthru
          _
        // Predicated region
        $region21: #{sttr_forward.2} parent=11 // pred_check
          %p612 = pneg %p134
        $region22: #{sttr_forward.2} parent=11 // pred_check_branch
          %614 = sbr.rel (%p612) target = $region24
        $region23: #{sttr_forward.2} parent=11 // pred_region
          %616 = vsyncadd [#allocation6], 0
          %s618 = sshll.u32 %s3, 4
          %s619 = int_to_ptr.hbm [resolvable:$true] %s618
          %s620 = sshll.u32 [#allocation7], 4
          %s621 = int_to_ptr.vmem [resolvable:$true] %s620
          %623 = dma.hbm_to_vmem [thread:$0]  %s619, 16, %s621, [#allocation6]
        $region24: #{sttr_forward.2} parent=11 // pred_fallthru
          _
        // Predicated region
        $region25: #{sttr_forward.2} parent=11 // pred_check
          %p624 = pneg %p155
        $region26: #{sttr_forward.2} parent=11 // pred_check_branch
          %626 = sbr.rel (%p624) target = $region28
        $region27: #{sttr_forward.2} parent=11 // pred_region
          %628 = vsyncadd [#allocation9], 0
          %s630 = sshll.u32 %s4, 4
          %s631 = int_to_ptr.hbm [resolvable:$true] %s630
          %s632 = sshll.u32 [#allocation8], 4
          %s633 = int_to_ptr.vmem [resolvable:$true] %s632
          %635 = dma.hbm_to_vmem [thread:$0]  %s631, 16, %s633, [#allocation9]
        $region28: #{sttr_forward.2} parent=11 // pred_fallthru
          _
        // Predicated region
        $region29: #{sttr_forward.2} parent=11 // pred_check
          %p636 = pneg %p176
        $region30: #{sttr_forward.2} parent=11 // pred_check_branch
          %638 = sbr.rel (%p636) target = $region32
        $region31: #{sttr_forward.2} parent=11 // pred_region
          %640 = vsyncadd [#allocation9], 0
          %s642 = sshll.u32 %s5, 4
          %s643 = int_to_ptr.hbm [resolvable:$true] %s642
          %s644 = sshll.u32 [#allocation10], 4
          %s645 = int_to_ptr.vmem [resolvable:$true] %s644
          %647 = dma.hbm_to_vmem [thread:$0]  %s643, 16, %s645, [#allocation9]
        $region32: #{sttr_forward.2} parent=11 // pred_fallthru
          _
        // Predicated region
        $region33: #{sttr_forward.2} parent=11 // pred_check
          %p648 = pneg %p197
        $region34: #{sttr_forward.2} parent=11 // pred_check_branch
          %650 = sbr.rel (%p648) target = $region36
        $region35: #{sttr_forward.2} parent=11 // pred_region
          %652 = vsyncadd [#allocation12], 0
          %s653 = sshll.u32 %s6, 4
          %s654 = int_to_ptr.hbm [resolvable:$true] %s653
          %s655 = sshll.u32 [#allocation11], 4
          %s656 = int_to_ptr.vmem [resolvable:$true] %s655
          %661 = dma.hbm_to_vmem [thread:$0]  %s654, 512, %s656, [#allocation12], 128, 128, 8
        $region36: #{sttr_forward.2} parent=11 // pred_fallthru
          _
        // Predicated region
        $region37: #{sttr_forward.2} parent=11 // pred_check
          %p662 = pneg %p218
        $region38: #{sttr_forward.2} parent=11 // pred_check_branch
          %664 = sbr.rel (%p662) target = $region40
        $region39: #{sttr_forward.2} parent=11 // pred_region
          %666 = vsyncadd [#allocation12], 0
          %s668 = sshll.u32 %s7, 4
          %s669 = int_to_ptr.hbm [resolvable:$true] %s668
          %s670 = sshll.u32 [#allocation13], 4
          %s671 = int_to_ptr.vmem [resolvable:$true] %s670
          %673 = dma.hbm_to_vmem [thread:$0]  %s669, 16, %s671, [#allocation12]
        $region40: #{sttr_forward.2} parent=11 // pred_fallthru
          _
        // Predicated region
        $region41: #{sttr_forward.2} parent=11 // pred_check
          %p674 = pneg %p239
        $region42: #{sttr_forward.2} parent=11 // pred_check_branch
          %676 = sbr.rel (%p674) target = $region44
        $region43: #{sttr_forward.2} parent=11 // pred_region
          _
        $region44: #{sttr_forward.2} parent=11 // pred_fallthru
          _
        // Predicated region
        $region45: #{sttr_forward.2} parent=11 // pred_check
          %p677 = pneg %p260
        $region46: #{sttr_forward.2} parent=11 // pred_check_branch
          %679 = sbr.rel (%p677) target = $region48
        $region47: #{sttr_forward.2} parent=11 // pred_region
          _
        $region48: #{sttr_forward.2} parent=11 // pred_fallthru
          _
        // Predicated region
        $region49: #{sttr_forward.2} parent=11 // pred_check
          %p680 = pneg %p281
        $region50: #{sttr_forward.2} parent=11 // pred_check_branch
          %682 = sbr.rel (%p680) target = $region52
        $region51: #{sttr_forward.2} parent=11 // pred_region
          _
        $region52: #{sttr_forward.2} parent=11 // pred_fallthru
          _
        // Predicated region
        $region53: #{sttr_forward.2} parent=11 // pred_check
          %p683 = pneg %p302
        $region54: #{sttr_forward.2} parent=11 // pred_check_branch
          %685 = sbr.rel (%p683) target = $region56
        $region55: #{sttr_forward.2} parent=11 // pred_region
          %687 = vsyncadd [#allocation15], 0
          %s688 = sshll.u32 %s11, 4
          %s689 = int_to_ptr.hbm [resolvable:$true] %s688
          %s690 = sshll.u32 [#allocation14], 4
          %s691 = int_to_ptr.vmem [resolvable:$true] %s690
          %696 = dma.hbm_to_vmem [thread:$0]  %s689, 32, %s691, [#allocation15], 16, 16, 1
        $region56: #{sttr_forward.2} parent=11 // pred_fallthru
          _
        // Predicated region
        $region57: #{sttr_forward.2} parent=11 // pred_check
          %p697 = pneg %p323
        $region58: #{sttr_forward.2} parent=11 // pred_check_branch
          %699 = sbr.rel (%p697) target = $region60
        $region59: #{sttr_forward.2} parent=11 // pred_region
          %701 = vsyncadd [#allocation15], 0
          %s702 = sshll.u32 %s12, 4
          %s703 = int_to_ptr.hbm [resolvable:$true] %s702
          %s704 = sshll.u32 [#allocation16], 4
          %s705 = int_to_ptr.vmem [resolvable:$true] %s704
          %710 = dma.hbm_to_vmem [thread:$0]  %s703, 32, %s705, [#allocation15], 16, 16, 1
        $region60: #{sttr_forward.2} parent=11 // pred_fallthru
          _
        // Predicated region
        $region61: #{sttr_forward.2} parent=11 // pred_check
          %p711 = pneg %p344
        $region62: #{sttr_forward.2} parent=11 // pred_check_branch
          %713 = sbr.rel (%p711) target = $region64
        $region63: #{sttr_forward.2} parent=11 // pred_region
          %715 = vsyncadd [#allocation18], 0
          %s716 = sshll.u32 %s13, 4
          %s717 = int_to_ptr.hbm [resolvable:$true] %s716
          %s718 = sshll.u32 [#allocation17], 4
          %s719 = int_to_ptr.vmem [resolvable:$true] %s718
          %724 = dma.hbm_to_vmem [thread:$0]  %s717, 32, %s719, [#allocation18], 16, 16, 1
        $region64: #{sttr_forward.2} parent=11 // pred_fallthru
          _
        // Predicated region
        $region65: #{sttr_forward.2} parent=11 // pred_check
          %p725 = pneg %p365
        $region66: #{sttr_forward.2} parent=11 // pred_check_branch
          %727 = sbr.rel (%p725) target = $region68
        $region67: #{sttr_forward.2} parent=11 // pred_region
          _
        $region68: #{sttr_forward.2} parent=11 // pred_fallthru
          _
        // Predicated region
        $region69: #{sttr_forward.2} parent=11 // pred_check
          %p728 = pneg %p386
        $region70: #{sttr_forward.2} parent=11 // pred_check_branch
          %730 = sbr.rel (%p728) target = $region72
        $region71: #{sttr_forward.2} parent=11 // pred_region
          %732 = vsyncadd [#allocation18], 0
          %s733 = sshll.u32 %s15, 4
          %s734 = int_to_ptr.hbm [resolvable:$true] %s733
          %s735 = sshll.u32 [#allocation19], 4
          %s736 = int_to_ptr.vmem [resolvable:$true] %s735
          %741 = dma.hbm_to_vmem [thread:$0]  %s734, 32, %s736, [#allocation18], 16, 16, 1
        $region72: #{sttr_forward.2} parent=11 // pred_fallthru
          _
        // Predicated region
        $region73: #{sttr_forward.2} parent=11 // pred_check
          %p742 = pneg %p407
        $region74: #{sttr_forward.2} parent=11 // pred_check_branch
          %744 = sbr.rel (%p742) target = $region76
        $region75: #{sttr_forward.2} parent=11 // pred_region
          %746 = vsyncadd [#allocation21], 0
          %s747 = sshll.u32 %s16, 4
          %s748 = int_to_ptr.hbm [resolvable:$true] %s747
          %s749 = sshll.u32 [#allocation20], 4
          %s750 = int_to_ptr.vmem [resolvable:$true] %s749
          %755 = dma.hbm_to_vmem [thread:$0]  %s748, 32, %s750, [#allocation21], 16, 16, 1
        $region76: #{sttr_forward.2} parent=11 // pred_fallthru
          _
        // Predicated region
        $region77: #{sttr_forward.2} parent=11 // pred_check
          %p756 = pneg %p428
        $region78: #{sttr_forward.2} parent=11 // pred_check_branch
          %758 = sbr.rel (%p756) target = $region80
        $region79: #{sttr_forward.2} parent=11 // pred_region
          %760 = vsyncadd [#allocation21], 0
          %s761 = sshll.u32 %s17, 4
          %s762 = int_to_ptr.hbm [resolvable:$true] %s761
          %s763 = sshll.u32 [#allocation22], 4
          %s764 = int_to_ptr.vmem [resolvable:$true] %s763
          %769 = dma.hbm_to_vmem [thread:$0]  %s762, 32, %s764, [#allocation21], 16, 16, 1
        $region80: #{sttr_forward.2} parent=11 // pred_fallthru
          _
        // Predicated region
        $region81: #{sttr_forward.2} parent=11 // pred_check
          %p770 = pneg %p449
        $region82: #{sttr_forward.2} parent=11 // pred_check_branch
          %772 = sbr.rel (%p770) target = $region84
        $region83: #{sttr_forward.2} parent=11 // pred_region
          %774 = vsyncadd [#allocation24], 0
          %s775 = sshll.u32 %s18, 4
          %s776 = int_to_ptr.hbm [resolvable:$true] %s775
          %s777 = sshll.u32 [#allocation23], 4
          %s778 = int_to_ptr.vmem [resolvable:$true] %s777
          %783 = dma.hbm_to_vmem [thread:$0]  %s776, 1024, %s778, [#allocation24], 128, 128, 8
        $region84: #{sttr_forward.2} parent=11 // pred_fallthru
          _
        // Predicated region
        $region85: #{sttr_forward.2} parent=11 // pred_check
          %p784 = pneg %p470
        $region86: #{sttr_forward.2} parent=11 // pred_check_branch
          %786 = sbr.rel (%p784) target = $region88
        $region87: #{sttr_forward.2} parent=11 // pred_region
          %788 = vsyncadd [#allocation24], 0
          %s789 = sshll.u32 %s19, 4
          %s790 = int_to_ptr.hbm [resolvable:$true] %s789
          %s791 = sshll.u32 [#allocation25], 4
          %s792 = int_to_ptr.vmem [resolvable:$true] %s791
          %797 = dma.hbm_to_vmem [thread:$0]  %s790, 32, %s792, [#allocation24], 16, 16, 1
        $region88: #{sttr_forward.2} parent=11 // pred_fallthru
          _
        // Predicated region
        $region89: #{sttr_forward.2} parent=11 // pred_check
          %p798 = pneg %p491
        $region90: #{sttr_forward.2} parent=11 // pred_check_branch
          %800 = sbr.rel (%p798) target = $region92
        $region91: #{sttr_forward.2} parent=11 // pred_region
          %802 = vsyncadd [#allocation27], 0
          %s803 = sshll.u32 %s20, 4
          %s804 = int_to_ptr.hbm [resolvable:$true] %s803
          %s805 = sshll.u32 [#allocation26], 4
          %s806 = int_to_ptr.vmem [resolvable:$true] %s805
          %811 = dma.hbm_to_vmem [thread:$0]  %s804, 1024, %s806, [#allocation27], 128, 128, 8
        $region92: #{sttr_forward.2} parent=11 // pred_fallthru
          _
        // Predicated region
        $region93: #{sttr_forward.2} parent=11 // pred_check
          %p812 = pneg %p512
        $region94: #{sttr_forward.2} parent=11 // pred_check_branch
          %814 = sbr.rel (%p812) target = $region96
        $region95: #{sttr_forward.2} parent=11 // pred_region
          %816 = vsyncadd [#allocation27], 0
          %s817 = sshll.u32 %s21, 4
          %s818 = int_to_ptr.hbm [resolvable:$true] %s817
          %s819 = sshll.u32 [#allocation28], 4
          %s820 = int_to_ptr.vmem [resolvable:$true] %s819
          %825 = dma.hbm_to_vmem [thread:$0]  %s818, 32, %s820, [#allocation27], 16, 16, 1
        $region96: #{sttr_forward.2} parent=11 // pred_fallthru
          _
        // Predicated region
        $region97: #{sttr_forward.2} parent=11 // pred_check
          %p826 = pneg %p533
        $region98: #{sttr_forward.2} parent=11 // pred_check_branch
          %828 = sbr.rel (%p826) target = $region100
        $region99: #{sttr_forward.2} parent=11 // pred_region
          %830 = vsyncadd [#allocation30], 0
          %s831 = sshll.u32 %s22, 4
          %s832 = int_to_ptr.hbm [resolvable:$true] %s831
          %s833 = sshll.u32 [#allocation29], 4
          %s834 = int_to_ptr.vmem [resolvable:$true] %s833
          %839 = dma.hbm_to_vmem [thread:$0]  %s832, 32, %s834, [#allocation30], 16, 16, 1
        $region100: #{sttr_forward.2} parent=11 // pred_fallthru
          _
        // Predicated region
        $region101: #{sttr_forward.2} parent=11 // pred_check
          %p840 = pneg %p554
        $region102: #{sttr_forward.2} parent=11 // pred_check_branch
          %842 = sbr.rel (%p840) target = $region104
        $region103: #{sttr_forward.2} parent=11 // pred_region
          %844 = vsyncadd [#allocation30], 0
          %s845 = sshll.u32 %s23, 4
          %s846 = int_to_ptr.hbm [resolvable:$true] %s845
          %s847 = sshll.u32 [#allocation31], 4
          %s848 = int_to_ptr.vmem [resolvable:$true] %s847
          %853 = dma.hbm_to_vmem [thread:$0]  %s846, 32, %s848, [#allocation30], 16, 16, 1
        $region104: #{sttr_forward.2} parent=11 // pred_fallthru
          _
      $region12: #{sttr_forward.2} parent=5 // pred_fallthru
        _
      %p854 = scmp.lt.s32.totalorder %s45, 2
      // Predicated region
      $region105: #{sttr_forward.2} parent=5 // pred_check
        %p855 = pneg %p854
      $region106: #{sttr_forward.2} parent=5 // pred_check_branch
        %857 = sbr.rel (%p855) target = $region108
      $region107: #{sttr_forward.2} parent=5 // pred_region
        // Predicated region
        $region109: #{sttr_forward.2} parent=107 // pred_check
          %p858 = pneg %p65
        $region110: #{sttr_forward.2} parent=107 // pred_check_branch
          %860 = sbr.rel (%p858) target = $region112
        $region111: #{sttr_forward.2} parent=107 // pred_region
          %s861 = sand.u32 %s55, 1
          %s862 = scalar_lea.sflag [#allocation3], %s861
          %s863 = sand.u32 %s55, 1
          %s864 = smul.addr %s863, 8
          %s865 = scalar_lea.vmem [#allocation2], %s864
          %867 = vsyncadd %s862, 0
          %s868 = smul.addr %s45, 8
          %s869 = scalar_lea.hbm %s0, %s868
          %s871 = sshll.u32 %s869, 4
          %s872 = int_to_ptr.hbm [resolvable:$true] %s871
          %s873 = sshll.u32 %s865, 4
          %s874 = int_to_ptr.vmem [resolvable:$true] %s873
          %876 = dma.hbm_to_vmem [thread:$0]  %s872, 128, %s874, %s862
        $region112: #{sttr_forward.2} parent=107 // pred_fallthru
          _
      $region108: #{sttr_forward.2} parent=5 // pred_fallthru
        _
      %p877 = scmp.le.s32.totalorder 1, %s45
      %p878 = scmp.lt.s32.totalorder %s45, 3
      %p879 = pnand %p877, %p878
      %p880 = pneg %p879
      // Predicated region
      $region113: #{sttr_forward.2} parent=5 // pred_check
        _
      $region114: #{sttr_forward.2} parent=5 // pred_check_branch
        %882 = sbr.rel (%p879) target = $region116
      $region115: #{sttr_forward.2} parent=5 // pred_region
        %s883 = ssub.s32 %s45, 1
        %s884 = sand.u32 %s58, 1
        %s885 = scalar_lea.sflag [#allocation3], %s884
        %s886 = sand.u32 %s58, 1
        %s887 = smul.addr %s886, 8
        %s888 = scalar_lea.vmem [#allocation2], %s887
        // Predicated region
        $region117: #{sttr_forward.2} parent=115 // pred_check
          %p889 = pneg %p71
        $region118: #{sttr_forward.2} parent=115 // pred_check_branch
          %891 = sbr.rel (%p889) target = $region120
        $region119: #{sttr_forward.2} parent=115 // pred_region
          %893 = dma.done %s885, 128
        $region120: #{sttr_forward.2} parent=115 // pred_fallthru
          _
        // Predicated region
        $region121: #{sttr_forward.2} parent=115 // pred_check
          %p894 = pneg %p113
        $region122: #{sttr_forward.2} parent=115 // pred_check_branch
          %896 = sbr.rel (%p894) target = $region124
        $region123: #{sttr_forward.2} parent=115 // pred_region
          %898 = dma.done [#allocation6], 256
        $region124: #{sttr_forward.2} parent=115 // pred_fallthru
          _
        // Predicated region
        $region125: #{sttr_forward.2} parent=115 // pred_check
          %p899 = pneg %p134
        $region126: #{sttr_forward.2} parent=115 // pred_check_branch
          %901 = sbr.rel (%p899) target = $region128
        $region127: #{sttr_forward.2} parent=115 // pred_region
          %903 = dma.done [#allocation6], 16
        $region128: #{sttr_forward.2} parent=115 // pred_fallthru
          _
        // Predicated region
        $region129: #{sttr_forward.2} parent=115 // pred_check
          %p904 = pneg %p155
        $region130: #{sttr_forward.2} parent=115 // pred_check_branch
          %906 = sbr.rel (%p904) target = $region132
        $region131: #{sttr_forward.2} parent=115 // pred_region
          %908 = dma.done [#allocation9], 16
        $region132: #{sttr_forward.2} parent=115 // pred_fallthru
          _
        // Predicated region
        $region133: #{sttr_forward.2} parent=115 // pred_check
          %p909 = pneg %p176
        $region134: #{sttr_forward.2} parent=115 // pred_check_branch
          %911 = sbr.rel (%p909) target = $region136
        $region135: #{sttr_forward.2} parent=115 // pred_region
          %913 = dma.done [#allocation9], 16
        $region136: #{sttr_forward.2} parent=115 // pred_fallthru
          _
        // Predicated region
        $region137: #{sttr_forward.2} parent=115 // pred_check
          %p914 = pneg %p197
        $region138: #{sttr_forward.2} parent=115 // pred_check_branch
          %916 = sbr.rel (%p914) target = $region140
        $region139: #{sttr_forward.2} parent=115 // pred_region
          %918 = dma.done [#allocation12], 512
        $region140: #{sttr_forward.2} parent=115 // pred_fallthru
          _
        // Predicated region
        $region141: #{sttr_forward.2} parent=115 // pred_check
          %p919 = pneg %p218
        $region142: #{sttr_forward.2} parent=115 // pred_check_branch
          %921 = sbr.rel (%p919) target = $region144
        $region143: #{sttr_forward.2} parent=115 // pred_region
          %923 = dma.done [#allocation12], 16
        $region144: #{sttr_forward.2} parent=115 // pred_fallthru
          _
        // Predicated region
        $region145: #{sttr_forward.2} parent=115 // pred_check
          %p924 = pneg %p302
        $region146: #{sttr_forward.2} parent=115 // pred_check_branch
          %926 = sbr.rel (%p924) target = $region148
        $region147: #{sttr_forward.2} parent=115 // pred_region
          %928 = dma.done [#allocation15], 32
        $region148: #{sttr_forward.2} parent=115 // pred_fallthru
          _
        // Predicated region
        $region149: #{sttr_forward.2} parent=115 // pred_check
          %p929 = pneg %p323
        $region150: #{sttr_forward.2} parent=115 // pred_check_branch
          %931 = sbr.rel (%p929) target = $region152
        $region151: #{sttr_forward.2} parent=115 // pred_region
          %933 = dma.done [#allocation15], 32
        $region152: #{sttr_forward.2} parent=115 // pred_fallthru
          _
        // Predicated region
        $region153: #{sttr_forward.2} parent=115 // pred_check
          %p934 = pneg %p344
        $region154: #{sttr_forward.2} parent=115 // pred_check_branch
          %936 = sbr.rel (%p934) target = $region156
        $region155: #{sttr_forward.2} parent=115 // pred_region
          %938 = dma.done [#allocation18], 32
        $region156: #{sttr_forward.2} parent=115 // pred_fallthru
          _
        // Predicated region
        $region157: #{sttr_forward.2} parent=115 // pred_check
          %p939 = pneg %p386
        $region158: #{sttr_forward.2} parent=115 // pred_check_branch
          %941 = sbr.rel (%p939) target = $region160
        $region159: #{sttr_forward.2} parent=115 // pred_region
          %943 = dma.done [#allocation18], 32
        $region160: #{sttr_forward.2} parent=115 // pred_fallthru
          _
        // Predicated region
        $region161: #{sttr_forward.2} parent=115 // pred_check
          %p944 = pneg %p407
        $region162: #{sttr_forward.2} parent=115 // pred_check_branch
          %946 = sbr.rel (%p944) target = $region164
        $region163: #{sttr_forward.2} parent=115 // pred_region
          %948 = dma.done [#allocation21], 32
        $region164: #{sttr_forward.2} parent=115 // pred_fallthru
          _
        // Predicated region
        $region165: #{sttr_forward.2} parent=115 // pred_check
          %p949 = pneg %p428
        $region166: #{sttr_forward.2} parent=115 // pred_check_branch
          %951 = sbr.rel (%p949) target = $region168
        $region167: #{sttr_forward.2} parent=115 // pred_region
          %953 = dma.done [#allocation21], 32
        $region168: #{sttr_forward.2} parent=115 // pred_fallthru
          _
        // Predicated region
        $region169: #{sttr_forward.2} parent=115 // pred_check
          %p954 = pneg %p449
        $region170: #{sttr_forward.2} parent=115 // pred_check_branch
          %956 = sbr.rel (%p954) target = $region172
        $region171: #{sttr_forward.2} parent=115 // pred_region
          %958 = dma.done [#allocation24], 1024
        $region172: #{sttr_forward.2} parent=115 // pred_fallthru
          _
        // Predicated region
        $region173: #{sttr_forward.2} parent=115 // pred_check
          %p959 = pneg %p470
        $region174: #{sttr_forward.2} parent=115 // pred_check_branch
          %961 = sbr.rel (%p959) target = $region176
        $region175: #{sttr_forward.2} parent=115 // pred_region
          %963 = dma.done [#allocation24], 32
        $region176: #{sttr_forward.2} parent=115 // pred_fallthru
          _
        // Predicated region
        $region177: #{sttr_forward.2} parent=115 // pred_check
          %p964 = pneg %p491
        $region178: #{sttr_forward.2} parent=115 // pred_check_branch
          %966 = sbr.rel (%p964) target = $region180
        $region179: #{sttr_forward.2} parent=115 // pred_region
          %968 = dma.done [#allocation27], 1024
        $region180: #{sttr_forward.2} parent=115 // pred_fallthru
          _
        // Predicated region
        $region181: #{sttr_forward.2} parent=115 // pred_check
          %p969 = pneg %p512
        $region182: #{sttr_forward.2} parent=115 // pred_check_branch
          %971 = sbr.rel (%p969) target = $region184
        $region183: #{sttr_forward.2} parent=115 // pred_region
          %973 = dma.done [#allocation27], 32
        $region184: #{sttr_forward.2} parent=115 // pred_fallthru
          _
        // Predicated region
        $region185: #{sttr_forward.2} parent=115 // pred_check
          %p974 = pneg %p533
        $region186: #{sttr_forward.2} parent=115 // pred_check_branch
          %976 = sbr.rel (%p974) target = $region188
        $region187: #{sttr_forward.2} parent=115 // pred_region
          %978 = dma.done [#allocation30], 32
        $region188: #{sttr_forward.2} parent=115 // pred_fallthru
          _
        // Predicated region
        $region189: #{sttr_forward.2} parent=115 // pred_check
          %p979 = pneg %p554
        $region190: #{sttr_forward.2} parent=115 // pred_check_branch
          %981 = sbr.rel (%p979) target = $region192
        $region191: #{sttr_forward.2} parent=115 // pred_region
          %983 = dma.done [#allocation30], 32
        $region192: #{sttr_forward.2} parent=115 // pred_fallthru
          _
        %s984 = sand.u32 %s58, 1
        %s985 = scalar_lea.sflag [#allocation3], %s984
        %s986 = sand.u32 %s58, 1
        %s987 = smul.addr %s986, 8
        %s988 = scalar_lea.vmem [#allocation2], %s987
        %p989 = pneg %p71
        %p990 = pneg %p68
        %p991 = pneg %p92
        %p992 = pneg %p89
        %p993 = pneg %p113
        %p994 = pneg %p110
        %p995 = pneg %p134
        %p996 = pneg %p131
        %p997 = pneg %p155
        %p998 = pneg %p152
        %p999 = pneg %p176
        %p1000 = pneg %p173
        %p1001 = pneg %p197
        %p1002 = pneg %p194
        %p1003 = pneg %p218
        %p1004 = pneg %p215
        %p1005 = pneg %p239
        %p1006 = pneg %p236
        %p1007 = pneg %p260
        %p1008 = pneg %p257
        %p1009 = pneg %p281
        %p1010 = pneg %p278
        %p1011 = pneg %p302
        %p1012 = pneg %p299
        %p1013 = pneg %p323
        %p1014 = pneg %p320
        %p1015 = pneg %p344
        %p1016 = pneg %p341
        %p1017 = pneg %p365
        %p1018 = pneg %p362
        %p1019 = pneg %p386
        %p1020 = pneg %p383
        %p1021 = pneg %p407
        %p1022 = pneg %p404
        %p1023 = pneg %p428
        %p1024 = pneg %p425
        %p1025 = pneg %p449
        %p1026 = pneg %p446
        %p1027 = pneg %p470
        %p1028 = pneg %p467
        %p1029 = pneg %p491
        %p1030 = pneg %p488
        %p1031 = pneg %p512
        %p1032 = pneg %p509
        %p1033 = pneg %p533
        %p1034 = pneg %p530
        %p1035 = pneg %p554
        %p1036 = pneg %p551
        %p1037 = pneg %p580
        %p1038 = pneg %p577
        %s1039 = sand.u32 %s567, 1
        %s1040 = scalar_lea.sflag [#allocation4], %s1039
        %s1041 = sand.u32 %s567, 1
        %s1042 = smul.addr %s1041, 8
        %s1043 = scalar_lea.vmem [#allocation32], %s1042
        %v1044 = vld [vmem:[%s888] sm:$0xff]
        %v1045 = vld [vmem:[#allocation5] sm:$0xff]
        %v1046 = vld [vmem:[#allocation5 + $0x8] sm:$0xff]
        %v1047 = vld [vmem:[#allocation7] sm:$0x1]
        %v1049 = vperm.slane %v1047, 0
        %vm1051 = vcmask 130048
        %v1053 = vsel %vm1051, %v1044, 0
        %1055 = vmatpush.msra.mxu0 0.0
        %1056 = vmatpush.msra.mxu0 0.0
        %1057 = vmatpush.msra.mxu0 0.0
        %1058 = vmatpush.msra.mxu0 0.0
        %1059 = vmatpush.msra.mxu0 0.0
        %1060 = vmatpush.msra.mxu0 0.0
        %1061 = vmatpush.msra.mxu0 0.0
        %1062 = vmatpush.msra.mxu0 0.0
        %1063 = vmatpush.msra.mxu0 0.0
        %1064 = vmatpush.msra.mxu0 0.0
        %1065 = vmatpush.msra.mxu0 0.0
        %1066 = vmatpush.msra.mxu0 0.0
        %1067 = vmatpush.msra.mxu0 0.0
        %1068 = vmatpush.msra.mxu0 0.0
        %1069 = vmatpush.msra.mxu0 %v1046
        %1070 = vmatpush.msra.mxu0 %v1045
        %1071 = vmatmul.f32.gmra.mxu0 %v1053
        %v1072 = vpop.f32.mrf.mxu0
        %v1073 = vadd.f32 %v1049, %v1072
        %1074 = vdwg.mxu0
        %v1075 = vld [vmem:[#allocation8] sm:$0x1]
        %v1076 = vld [vmem:[#allocation10] sm:$0x1]
        %vm1077 = vcmask 261120
        %v1078 = vsel %vm1077, %v1073, 0.0
        %1079 = vadd.xlane.f32.xlu0 %v1078
        %v1080 = vpop.xlane.xlu0 %1079
        %v1081 = vrcp.pop 32.0
        %v1082 = vmul.f32 32.0, %v1081
        %v1083 = vsub.f32 1.0, %v1082
        %v1084 = vmul.f32 %v1081, %v1083
        %v1085 = vadd.f32 %v1081, %v1084
        %vm1086 = vweird.f32 %v1081
        %v1087 = vsel %vm1086, %v1081, %v1085
        %v1088 = vmul.f32 %v1080, %v1087
        %v1089 = vsub.f32 %v1073, %v1088
        %v1090 = vmul.f32 %v1089, %v1089
        %v1091 = vsel %vm1077, %v1090, 0.0
        %1092 = vadd.xlane.f32.xlu0 %v1091
        %v1093 = vpop.xlane.xlu0 %1092
        %v1094 = vmul.f32 %v1093, %v1087
        %v1095 = vadd.f32 %v1094, 1e-05
        %v1096 = vrsqrt.pop %v1095
        %v1097 = vmul.f32 %v1096, %v1095
        %v1098 = vmul.f32 %v1097, %v1096
        %v1099 = vmul.f32 0.5, %v1098
        %v1100 = vsub.f32 1.5, %v1099
        %v1101 = vmul.f32 %v1096, %v1100
        %vm1102 = vweird.f32 %v1095
        %vm1103 = vweird.f32 %v1096
        %vm1104 = vmor %vm1102, %vm1103
        %v1105 = vsel %vm1104, %v1096, %v1101
        %v1106 = vmul.f32 %v1089, %v1105
        %v1108 = vperm.slane %v1075, 0
        %v1110 = vmul.f32 %v1106, %v1108
        %v1112 = vperm.slane %v1076, 0
        %v1114 = vadd.f32 %v1110, %v1112
        %v1115 = vmax.f32 %v1114, 0.0
        %v1116 = vld [vmem:[#allocation11] sm:$0xff]
        %v1117 = vld [vmem:[#allocation11 + $0x8] sm:$0xff]
        %v1118 = vld [vmem:[#allocation11 + $0x10] sm:$0xff]
        %v1119 = vld [vmem:[#allocation11 + $0x18] sm:$0xff]
        %v1120 = vld [vmem:[#allocation13] sm:$0x1]
        %v1122 = vperm.slane %v1120, 0
        %v1125 = vsel %vm1077, %v1115, 0
        %1127 = vmatpush.msra.mxu0 0.0
        %1128 = vmatpush.msra.mxu0 0.0
        %1129 = vmatpush.msra.mxu0 0.0
        %1130 = vmatpush.msra.mxu0 0.0
        %1131 = vmatpush.msra.mxu0 0.0
        %1132 = vmatpush.msra.mxu0 0.0
        %1133 = vmatpush.msra.mxu0 0.0
        %1134 = vmatpush.msra.mxu0 0.0
        %1135 = vmatpush.msra.mxu0 0.0
        %1136 = vmatpush.msra.mxu0 0.0
        %1137 = vmatpush.msra.mxu0 0.0
        %1138 = vmatpush.msra.mxu0 0.0
        %1139 = vmatpush.msra.mxu0 %v1119
        %1140 = vmatpush.msra.mxu0 %v1118
        %1141 = vmatpush.msra.mxu0 %v1117
        %1142 = vmatpush.msra.mxu0 %v1116
        %1143 = vmatmul.f32.gmra.mxu0 %v1125
        %v1144 = vpop.f32.mrf.mxu0
        %v1145 = vadd.f32 %v1122, %v1144
        %1146 = vdwg.mxu0
        %v1147 = vld [vmem:[%s1] sm:$0xff]
        %v1148 = vadd.f32 %v1145, %v1147
        %v1149 = vld [vmem:[%s8] sm:$0xff]
        %v1150 = vld [vmem:[%s8 + $0x8] sm:$0xff]
        %v1151 = vld [vmem:[%s8 + $0x10] sm:$0xff]
        %v1152 = vld [vmem:[%s8 + $0x18] sm:$0xff]
        %v1153 = vld [vmem:[#allocation14] sm:$0x1]
        %v1155 = vperm.slane %v1153, 0
        %v1158 = vsel %vm1077, %v1148, 0
        %1160 = vmatpush.msra.mxu0 0.0
        %1161 = vmatpush.msra.mxu0 0.0
        %1162 = vmatpush.msra.mxu0 0.0
        %1163 = vmatpush.msra.mxu0 0.0
        %1164 = vmatpush.msra.mxu0 0.0
        %1165 = vmatpush.msra.mxu0 0.0
        %1166 = vmatpush.msra.mxu0 0.0
        %1167 = vmatpush.msra.mxu0 0.0
        %1168 = vmatpush.msra.mxu0 0.0
        %1169 = vmatpush.msra.mxu0 0.0
        %1170 = vmatpush.msra.mxu0 0.0
        %1171 = vmatpush.msra.mxu0 0.0
        %1172 = vmatpush.msra.mxu0 %v1152
        %1173 = vmatpush.msra.mxu0 %v1151
        %1174 = vmatpush.msra.mxu0 %v1150
        %1175 = vmatpush.msra.mxu0 %v1149
        %1176 = vmatmul.f32.gmra.mxu0 %v1158
        %v1177 = vpop.f32.mrf.mxu0
        %v1178 = vadd.f32 %v1155, %v1177
        %1179 = vdwg.mxu0
        %v1180 = vmul.f32 %v1178, 0.35355338
        %v1181 = vld [vmem:[%s9] sm:$0xff]
        %v1182 = vld [vmem:[%s9 + $0x8] sm:$0xff]
        %v1183 = vld [vmem:[%s9 + $0x10] sm:$0xff]
        %v1184 = vld [vmem:[%s9 + $0x18] sm:$0xff]
        %v1185 = vld [vmem:[#allocation16] sm:$0x1]
        %v1187 = vperm.slane %v1185, 0
        %1189 = vmatpush.msra.mxu0 0.0
        %1190 = vmatpush.msra.mxu0 0.0
        %1191 = vmatpush.msra.mxu0 0.0
        %1192 = vmatpush.msra.mxu0 0.0
        %1193 = vmatpush.msra.mxu0 0.0
        %1194 = vmatpush.msra.mxu0 0.0
        %1195 = vmatpush.msra.mxu0 0.0
        %1196 = vmatpush.msra.mxu0 0.0
        %1197 = vmatpush.msra.mxu0 0.0
        %1198 = vmatpush.msra.mxu0 0.0
        %1199 = vmatpush.msra.mxu0 0.0
        %1200 = vmatpush.msra.mxu0 0.0
        %1201 = vmatpush.msra.mxu0 %v1184
        %1202 = vmatpush.msra.mxu0 %v1183
        %1203 = vmatpush.msra.mxu0 %v1182
        %1204 = vmatpush.msra.mxu0 %v1181
        %1205 = vmatmul.f32.gmra.mxu0 %v1158
        %v1206 = vpop.f32.mrf.mxu0
        %v1207 = vadd.f32 %v1187, %v1206
        %1208 = vdwg.mxu0
        %v1209 = vld [vmem:[%s10] sm:$0xff]
        %v1210 = vld [vmem:[%s10 + $0x8] sm:$0xff]
        %v1211 = vld [vmem:[%s10 + $0x10] sm:$0xff]
        %v1212 = vld [vmem:[%s10 + $0x18] sm:$0xff]
        %v1213 = vld [vmem:[#allocation17] sm:$0x1]
        %v1215 = vperm.slane %v1213, 0
        %1217 = vmatpush.msra.mxu0 0.0
        %1218 = vmatpush.msra.mxu0 0.0
        %1219 = vmatpush.msra.mxu0 0.0
        %1220 = vmatpush.msra.mxu0 0.0
        %1221 = vmatpush.msra.mxu0 0.0
        %1222 = vmatpush.msra.mxu0 0.0
        %1223 = vmatpush.msra.mxu0 0.0
        %1224 = vmatpush.msra.mxu0 0.0
        %1225 = vmatpush.msra.mxu0 0.0
        %1226 = vmatpush.msra.mxu0 0.0
        %1227 = vmatpush.msra.mxu0 0.0
        %1228 = vmatpush.msra.mxu0 0.0
        %1229 = vmatpush.msra.mxu0 %v1212
        %1230 = vmatpush.msra.mxu0 %v1211
        %1231 = vmatpush.msra.mxu0 %v1210
        %1232 = vmatpush.msra.mxu0 %v1209
        %1233 = vmatmul.f32.gmra.mxu0 %v1158
        %v1234 = vpop.f32.mrf.mxu0
        %v1235 = vadd.f32 %v1215, %v1234
        %1236 = vdwg.mxu0
        %vm1237 = vcmask 64512
        %v1239 = vsel %vm1237, %v1180, 0
        %v1242 = vsel %vm1237, %v1207, 0
        %1244 = vmatpush.xpose.msra.mxu0 0.0
        %1245 = vmatpush.xpose.msra.mxu0 0.0
        %1246 = vmatpush.xpose.msra.mxu0 0.0
        %1247 = vmatpush.xpose.msra.mxu0 0.0
        %1248 = vmatpush.xpose.msra.mxu0 0.0
        %1249 = vmatpush.xpose.msra.mxu0 0.0
        %1250 = vmatpush.xpose.msra.mxu0 0.0
        %1251 = vmatpush.xpose.msra.mxu0 0.0
        %1252 = vmatpush.xpose.msra.mxu0 0.0
        %1253 = vmatpush.xpose.msra.mxu0 0.0
        %1254 = vmatpush.xpose.msra.mxu0 0.0
        %1255 = vmatpush.xpose.msra.mxu0 0.0
        %1256 = vmatpush.xpose.msra.mxu0 0.0
        %1257 = vmatpush.xpose.msra.mxu0 0.0
        %1258 = vmatpush.xpose.msra.mxu0 0.0
        %1259 = vmatpush.xpose.msra.mxu0 %v1242
        %1260 = vmatmul.f32.gmra.mxu0 %v1239
        %v1261 = vpop.f32.mrf.mxu0
        %v1262 = vadd.f32 0.0, %v1261
        %1263 = vdwg.mxu0
        %v1264 = vsel %vm1237, %v1262, -inf
        %1265 = vmax.xlane.f32.xlu0 %v1264
        %v1266 = vpop.xlane.xlu0 %1265
        %v1267 = vsub.f32 %v1262, %v1266
        %v1268 = vmul.f32 %v1267, 1.442695
        %v1269 = vpow.pop %v1268
        %v1270 = vsel %vm1237, %v1269, 0.0
        %1271 = vadd.xlane.f32.xlu0 %v1270
        %v1272 = vpop.xlane.xlu0 %1271
        %v1273 = vrcp.pop %v1272
        %v1274 = vmul.f32 %v1269, %v1273
        %v1276 = vsel %vm1237, %v1274, 0
        %1278 = vmatpush.msra.mxu0 0.0
        %1279 = vmatpush.msra.mxu0 0.0
        %1280 = vmatpush.msra.mxu0 0.0
        %1281 = vmatpush.msra.mxu0 0.0
        %1282 = vmatpush.msra.mxu0 0.0
        %1283 = vmatpush.msra.mxu0 0.0
        %1284 = vmatpush.msra.mxu0 0.0
        %1285 = vmatpush.msra.mxu0 0.0
        %1286 = vmatpush.msra.mxu0 0.0
        %1287 = vmatpush.msra.mxu0 0.0
        %1288 = vmatpush.msra.mxu0 0.0
        %1289 = vmatpush.msra.mxu0 0.0
        %1290 = vmatpush.msra.mxu0 0.0
        %1291 = vmatpush.msra.mxu0 0.0
        %1292 = vmatpush.msra.mxu0 0.0
        %1293 = vmatpush.msra.mxu0 %v1235
        %1294 = vmatmul.f32.gmra.mxu0 %v1276
        %v1295 = vpop.f32.mrf.mxu0
        %v1296 = vadd.f32 0.0, %v1295
        %1297 = vdwg.mxu0
        %1298 = vrot.lane.b32.xlu0 %v1180, 120
        %v1299 = vpop.permute.xlu0 %1298
        %1300 = vrot.lane.b32.xlu0 %v1207, 120
        %v1301 = vpop.permute.xlu0 %1300
        %v1302 = vsel %vm1237, %v1299, 0
        %v1304 = vsel %vm1237, %v1301, 0
        %1306 = vmatpush.xpose.msra.mxu0 0.0
        %1307 = vmatpush.xpose.msra.mxu0 0.0
        %1308 = vmatpush.xpose.msra.mxu0 0.0
        %1309 = vmatpush.xpose.msra.mxu0 0.0
        %1310 = vmatpush.xpose.msra.mxu0 0.0
        %1311 = vmatpush.xpose.msra.mxu0 0.0
        %1312 = vmatpush.xpose.msra.mxu0 0.0
        %1313 = vmatpush.xpose.msra.mxu0 0.0
        %1314 = vmatpush.xpose.msra.mxu0 0.0
        %1315 = vmatpush.xpose.msra.mxu0 0.0
        %1316 = vmatpush.xpose.msra.mxu0 0.0
        %1317 = vmatpush.xpose.msra.mxu0 0.0
        %1318 = vmatpush.xpose.msra.mxu0 0.0
        %1319 = vmatpush.xpose.msra.mxu0 0.0
        %1320 = vmatpush.xpose.msra.mxu0 0.0
        %1321 = vmatpush.xpose.msra.mxu0 %v1304
        %1322 = vmatmul.f32.gmra.mxu0 %v1302
        %v1323 = vpop.f32.mrf.mxu0
        %v1324 = vadd.f32 0.0, %v1323
        %1325 = vdwg.mxu0
        %v1326 = vsel %vm1237, %v1324, -inf
        %1327 = vmax.xlane.f32.xlu0 %v1326
        %v1328 = vpop.xlane.xlu0 %1327
        %v1329 = vsub.f32 %v1324, %v1328
        %v1330 = vmul.f32 %v1329, 1.442695
        %v1331 = vpow.pop %v1330
        %v1332 = vsel %vm1237, %v1331, 0.0
        %1333 = vadd.xlane.f32.xlu0 %v1332
        %v1334 = vpop.xlane.xlu0 %1333
        %v1335 = vrcp.pop %v1334
        %v1336 = vmul.f32 %v1331, %v1335
        %1338 = vrot.lane.b32.xlu0 %v1235, 120
        %v1339 = vpop.permute.xlu0 %1338
        %v1342 = vsel %vm1237, %v1336, 0
        %1344 = vmatpush.msra.mxu0 0.0
        %1345 = vmatpush.msra.mxu0 0.0
        %1346 = vmatpush.msra.mxu0 0.0
        %1347 = vmatpush.msra.mxu0 0.0
        %1348 = vmatpush.msra.mxu0 0.0
        %1349 = vmatpush.msra.mxu0 0.0
        %1350 = vmatpush.msra.mxu0 0.0
        %1351 = vmatpush.msra.mxu0 0.0
        %1352 = vmatpush.msra.mxu0 0.0
        %1353 = vmatpush.msra.mxu0 0.0
        %1354 = vmatpush.msra.mxu0 0.0
        %1355 = vmatpush.msra.mxu0 0.0
        %1356 = vmatpush.msra.mxu0 0.0
        %1357 = vmatpush.msra.mxu0 0.0
        %1358 = vmatpush.msra.mxu0 0.0
        %1359 = vmatpush.msra.mxu0 %v1339
        %1360 = vmatmul.f32.gmra.mxu0 %v1342
        %v1361 = vpop.f32.mrf.mxu0
        %v1362 = vadd.f32 0.0, %v1361
        %1363 = vdwg.mxu0
        %1364 = vrot.lane.b32.xlu0 %v1180, 112
        %v1365 = vpop.permute.xlu0 %1364
        %1366 = vrot.lane.b32.xlu0 %v1207, 112
        %v1367 = vpop.permute.xlu0 %1366
        %v1368 = vsel %vm1237, %v1365, 0
        %v1370 = vsel %vm1237, %v1367, 0
        %1372 = vmatpush.xpose.msra.mxu0 0.0
        %1373 = vmatpush.xpose.msra.mxu0 0.0
        %1374 = vmatpush.xpose.msra.mxu0 0.0
        %1375 = vmatpush.xpose.msra.mxu0 0.0
        %1376 = vmatpush.xpose.msra.mxu0 0.0
        %1377 = vmatpush.xpose.msra.mxu0 0.0
        %1378 = vmatpush.xpose.msra.mxu0 0.0
        %1379 = vmatpush.xpose.msra.mxu0 0.0
        %1380 = vmatpush.xpose.msra.mxu0 0.0
        %1381 = vmatpush.xpose.msra.mxu0 0.0
        %1382 = vmatpush.xpose.msra.mxu0 0.0
        %1383 = vmatpush.xpose.msra.mxu0 0.0
        %1384 = vmatpush.xpose.msra.mxu0 0.0
        %1385 = vmatpush.xpose.msra.mxu0 0.0
        %1386 = vmatpush.xpose.msra.mxu0 0.0
        %1387 = vmatpush.xpose.msra.mxu0 %v1370
        %1388 = vmatmul.f32.gmra.mxu0 %v1368
        %v1389 = vpop.f32.mrf.mxu0
        %v1390 = vadd.f32 0.0, %v1389
        %1391 = vdwg.mxu0
        %v1392 = vsel %vm1237, %v1390, -inf
        %1393 = vmax.xlane.f32.xlu0 %v1392
        %v1394 = vpop.xlane.xlu0 %1393
        %v1395 = vsub.f32 %v1390, %v1394
        %v1396 = vmul.f32 %v1395, 1.442695
        %v1397 = vpow.pop %v1396
        %v1398 = vsel %vm1237, %v1397, 0.0
        %1399 = vadd.xlane.f32.xlu0 %v1398
        %v1400 = vpop.xlane.xlu0 %1399
        %v1401 = vrcp.pop %v1400
        %v1402 = vmul.f32 %v1397, %v1401
        %1403 = vrot.lane.b32.xlu0 %v1235, 112
        %v1404 = vpop.permute.xlu0 %1403
        %v1407 = vsel %vm1237, %v1402, 0
        %1409 = vmatpush.msra.mxu0 0.0
        %1410 = vmatpush.msra.mxu0 0.0
        %1411 = vmatpush.msra.mxu0 0.0
        %1412 = vmatpush.msra.mxu0 0.0
        %1413 = vmatpush.msra.mxu0 0.0
        %1414 = vmatpush.msra.mxu0 0.0
        %1415 = vmatpush.msra.mxu0 0.0
        %1416 = vmatpush.msra.mxu0 0.0
        %1417 = vmatpush.msra.mxu0 0.0
        %1418 = vmatpush.msra.mxu0 0.0
        %1419 = vmatpush.msra.mxu0 0.0
        %1420 = vmatpush.msra.mxu0 0.0
        %1421 = vmatpush.msra.mxu0 0.0
        %1422 = vmatpush.msra.mxu0 0.0
        %1423 = vmatpush.msra.mxu0 0.0
        %1424 = vmatpush.msra.mxu0 %v1404
        %1425 = vmatmul.f32.gmra.mxu0 %v1407
        %v1426 = vpop.f32.mrf.mxu0
        %v1427 = vadd.f32 0.0, %v1426
        %1428 = vdwg.mxu0
        %1429 = vrot.lane.b32.xlu0 %v1180, 104
        %v1430 = vpop.permute.xlu0 %1429
        %1431 = vrot.lane.b32.xlu0 %v1207, 104
        %v1432 = vpop.permute.xlu0 %1431
        %v1433 = vsel %vm1237, %v1430, 0
        %v1435 = vsel %vm1237, %v1432, 0
        %1437 = vmatpush.xpose.msra.mxu0 0.0
        %1438 = vmatpush.xpose.msra.mxu0 0.0
        %1439 = vmatpush.xpose.msra.mxu0 0.0
        %1440 = vmatpush.xpose.msra.mxu0 0.0
        %1441 = vmatpush.xpose.msra.mxu0 0.0
        %1442 = vmatpush.xpose.msra.mxu0 0.0
        %1443 = vmatpush.xpose.msra.mxu0 0.0
        %1444 = vmatpush.xpose.msra.mxu0 0.0
        %1445 = vmatpush.xpose.msra.mxu0 0.0
        %1446 = vmatpush.xpose.msra.mxu0 0.0
        %1447 = vmatpush.xpose.msra.mxu0 0.0
        %1448 = vmatpush.xpose.msra.mxu0 0.0
        %1449 = vmatpush.xpose.msra.mxu0 0.0
        %1450 = vmatpush.xpose.msra.mxu0 0.0
        %1451 = vmatpush.xpose.msra.mxu0 0.0
        %1452 = vmatpush.xpose.msra.mxu0 %v1435
        %1453 = vmatmul.f32.gmra.mxu0 %v1433
        %v1454 = vpop.f32.mrf.mxu0
        %v1455 = vadd.f32 0.0, %v1454
        %1456 = vdwg.mxu0
        %v1457 = vsel %vm1237, %v1455, -inf
        %1458 = vmax.xlane.f32.xlu0 %v1457
        %v1459 = vpop.xlane.xlu0 %1458
        %v1460 = vsub.f32 %v1455, %v1459
        %v1461 = vmul.f32 %v1460, 1.442695
        %v1462 = vpow.pop %v1461
        %v1463 = vsel %vm1237, %v1462, 0.0
        %1464 = vadd.xlane.f32.xlu0 %v1463
        %v1465 = vpop.xlane.xlu0 %1464
        %v1466 = vrcp.pop %v1465
        %v1467 = vmul.f32 %v1462, %v1466
        %1468 = vrot.lane.b32.xlu0 %v1235, 104
        %v1469 = vpop.permute.xlu0 %1468
        %v1472 = vsel %vm1237, %v1467, 0
        %1474 = vmatpush.msra.mxu0 0.0
        %1475 = vmatpush.msra.mxu0 0.0
        %1476 = vmatpush.msra.mxu0 0.0
        %1477 = vmatpush.msra.mxu0 0.0
        %1478 = vmatpush.msra.mxu0 0.0
        %1479 = vmatpush.msra.mxu0 0.0
        %1480 = vmatpush.msra.mxu0 0.0
        %1481 = vmatpush.msra.mxu0 0.0
        %1482 = vmatpush.msra.mxu0 0.0
        %1483 = vmatpush.msra.mxu0 0.0
        %1484 = vmatpush.msra.mxu0 0.0
        %1485 = vmatpush.msra.mxu0 0.0
        %1486 = vmatpush.msra.mxu0 0.0
        %1487 = vmatpush.msra.mxu0 0.0
        %1488 = vmatpush.msra.mxu0 0.0
        %1489 = vmatpush.msra.mxu0 %v1469
        %1490 = vmatmul.f32.gmra.mxu0 %v1472
        %v1491 = vpop.f32.mrf.mxu0
        %v1492 = vadd.f32 0.0, %v1491
        %1493 = vdwg.mxu0
        %1495 = vrot.lane.b32.xlu0 %v1362, 8
        %v1496 = vpop.permute.xlu0 %1495
        %1499 = vrot.lane.b32.xlu0 %v1427, 16
        %v1500 = vpop.permute.xlu0 %1499
        %1503 = vrot.lane.b32.xlu0 %v1492, 24
        %v1504 = vpop.permute.xlu0 %1503
        %v1506 = vsel %vm1237, %v1296, %v1496
        %v1507 = vsel %vm1051, %v1506, %v1500
        %vm1508 = vcmask 195584
        %v1509 = vsel %vm1508, %v1507, %v1504
        %v1510 = vld [vmem:[%s14] sm:$0xff]
        %v1511 = vld [vmem:[%s14 + $0x8] sm:$0xff]
        %v1512 = vld [vmem:[%s14 + $0x10] sm:$0xff]
        %v1513 = vld [vmem:[%s14 + $0x18] sm:$0xff]
        %v1514 = vld [vmem:[#allocation19] sm:$0x1]
        %v1516 = vperm.slane %v1514, 0
        %v1519 = vsel %vm1077, %v1509, 0
        %1521 = vmatpush.msra.mxu0 0.0
        %1522 = vmatpush.msra.mxu0 0.0
        %1523 = vmatpush.msra.mxu0 0.0
        %1524 = vmatpush.msra.mxu0 0.0
        %1525 = vmatpush.msra.mxu0 0.0
        %1526 = vmatpush.msra.mxu0 0.0
        %1527 = vmatpush.msra.mxu0 0.0
        %1528 = vmatpush.msra.mxu0 0.0
        %1529 = vmatpush.msra.mxu0 0.0
        %1530 = vmatpush.msra.mxu0 0.0
        %1531 = vmatpush.msra.mxu0 0.0
        %1532 = vmatpush.msra.mxu0 0.0
        %1533 = vmatpush.msra.mxu0 %v1513
        %1534 = vmatpush.msra.mxu0 %v1512
        %1535 = vmatpush.msra.mxu0 %v1511
        %1536 = vmatpush.msra.mxu0 %v1510
        %1537 = vmatmul.f32.gmra.mxu0 %v1519
        %v1538 = vpop.f32.mrf.mxu0
        %v1539 = vadd.f32 %v1516, %v1538
        %1540 = vdwg.mxu0
        %v1541 = vadd.f32 %v1148, %v1539
        %v1542 = vld [vmem:[#allocation20] sm:$0x1]
        %v1543 = vld [vmem:[#allocation22] sm:$0x1]
        %v1544 = vsel %vm1077, %v1541, 0.0
        %1545 = vadd.xlane.f32.xlu0 %v1544
        %v1546 = vpop.xlane.xlu0 %1545
        %v1547 = vmul.f32 %v1546, %v1087
        %v1548 = vsub.f32 %v1541, %v1547
        %v1549 = vmul.f32 %v1548, %v1548
        %v1550 = vsel %vm1077, %v1549, 0.0
        %1551 = vadd.xlane.f32.xlu0 %v1550
        %v1552 = vpop.xlane.xlu0 %1551
        %v1553 = vmul.f32 %v1552, %v1087
        %v1554 = vadd.f32 %v1553, 1e-05
        %v1555 = vrsqrt.pop %v1554
        %v1556 = vmul.f32 %v1555, %v1554
        %v1557 = vmul.f32 %v1556, %v1555
        %v1558 = vmul.f32 0.5, %v1557
        %v1559 = vsub.f32 1.5, %v1558
        %v1560 = vmul.f32 %v1555, %v1559
        %vm1561 = vweird.f32 %v1554
        %vm1562 = vweird.f32 %v1555
        %vm1563 = vmor %vm1561, %vm1562
        %v1564 = vsel %vm1563, %v1555, %v1560
        %v1565 = vmul.f32 %v1548, %v1564
        %v1567 = vperm.slane %v1542, 0
        %v1569 = vmul.f32 %v1565, %v1567
        %v1571 = vperm.slane %v1543, 0
        %v1573 = vadd.f32 %v1569, %v1571
        %v1574 = vld [vmem:[#allocation23] sm:$0xff]
        %v1575 = vld [vmem:[#allocation23 + $0x8] sm:$0xff]
        %v1576 = vld [vmem:[#allocation23 + $0x10] sm:$0xff]
        %v1577 = vld [vmem:[#allocation23 + $0x18] sm:$0xff]
        %v1578 = vld [vmem:[#allocation25] sm:$0x1]
        %v1580 = vperm.slane %v1578, 0
        %v1583 = vsel %vm1077, %v1573, 0
        %1585 = vmatpush.msra.mxu0 0.0
        %1586 = vmatpush.msra.mxu0 0.0
        %1587 = vmatpush.msra.mxu0 0.0
        %1588 = vmatpush.msra.mxu0 0.0
        %1589 = vmatpush.msra.mxu0 0.0
        %1590 = vmatpush.msra.mxu0 0.0
        %1591 = vmatpush.msra.mxu0 0.0
        %1592 = vmatpush.msra.mxu0 0.0
        %1593 = vmatpush.msra.mxu0 0.0
        %1594 = vmatpush.msra.mxu0 0.0
        %1595 = vmatpush.msra.mxu0 0.0
        %1596 = vmatpush.msra.mxu0 0.0
        %1597 = vmatpush.msra.mxu0 %v1577
        %1598 = vmatpush.msra.mxu0 %v1576
        %1599 = vmatpush.msra.mxu0 %v1575
        %1600 = vmatpush.msra.mxu0 %v1574
        %1601 = vmatmul.f32.gmra.mxu0 %v1583
        %v1602 = vpop.f32.mrf.mxu0
        %v1603 = vadd.f32 %v1580, %v1602
        %1604 = vdwg.mxu0
        %v1605 = vmax.f32 %v1603, 0.0
        %v1606 = vld [vmem:[#allocation26] sm:$0xff]
        %v1607 = vld [vmem:[#allocation26 + $0x8] sm:$0xff]
        %v1608 = vld [vmem:[#allocation26 + $0x10] sm:$0xff]
        %v1609 = vld [vmem:[#allocation26 + $0x18] sm:$0xff]
        %v1610 = vld [vmem:[#allocation28] sm:$0x1]
        %v1612 = vperm.slane %v1610, 0
        %v1615 = vsel %vm1077, %v1605, 0
        %1617 = vmatpush.msra.mxu0 0.0
        %1618 = vmatpush.msra.mxu0 0.0
        %1619 = vmatpush.msra.mxu0 0.0
        %1620 = vmatpush.msra.mxu0 0.0
        %1621 = vmatpush.msra.mxu0 0.0
        %1622 = vmatpush.msra.mxu0 0.0
        %1623 = vmatpush.msra.mxu0 0.0
        %1624 = vmatpush.msra.mxu0 0.0
        %1625 = vmatpush.msra.mxu0 0.0
        %1626 = vmatpush.msra.mxu0 0.0
        %1627 = vmatpush.msra.mxu0 0.0
        %1628 = vmatpush.msra.mxu0 0.0
        %1629 = vmatpush.msra.mxu0 %v1609
        %1630 = vmatpush.msra.mxu0 %v1608
        %1631 = vmatpush.msra.mxu0 %v1607
        %1632 = vmatpush.msra.mxu0 %v1606
        %1633 = vmatmul.f32.gmra.mxu0 %v1615
        %v1634 = vpop.f32.mrf.mxu0
        %v1635 = vadd.f32 %v1612, %v1634
        %1636 = vdwg.mxu0
        %v1637 = vadd.f32 %v1573, %v1635
        %v1638 = vld [vmem:[#allocation29] sm:$0x1]
        %v1639 = vld [vmem:[#allocation31] sm:$0x1]
        %v1640 = vsel %vm1077, %v1637, 0.0
        %1641 = vadd.xlane.f32.xlu0 %v1640
        %v1642 = vpop.xlane.xlu0 %1641
        %v1643 = vmul.f32 %v1642, %v1087
        %v1644 = vsub.f32 %v1637, %v1643
        %v1645 = vmul.f32 %v1644, %v1644
        %v1646 = vsel %vm1077, %v1645, 0.0
        %1647 = vadd.xlane.f32.xlu0 %v1646
        %v1648 = vpop.xlane.xlu0 %1647
        %v1649 = vmul.f32 %v1648, %v1087
        %v1650 = vadd.f32 %v1649, 1e-05
        %v1651 = vrsqrt.pop %v1650
        %v1652 = vmul.f32 %v1651, %v1650
        %v1653 = vmul.f32 %v1652, %v1651
        %v1654 = vmul.f32 0.5, %v1653
        %v1655 = vsub.f32 1.5, %v1654
        %v1656 = vmul.f32 %v1651, %v1655
        %vm1657 = vweird.f32 %v1650
        %vm1658 = vweird.f32 %v1651
        %vm1659 = vmor %vm1657, %vm1658
        %v1660 = vsel %vm1659, %v1651, %v1656
        %v1661 = vmul.f32 %v1644, %v1660
        %v1663 = vperm.slane %v1638, 0
        %v1665 = vmul.f32 %v1661, %v1663
        %v1667 = vperm.slane %v1639, 0
        %v1669 = vadd.f32 %v1665, %v1667
        %s1670 = scalar_lea.vmem %s8, 32
        %v1671 = vld [vmem:[%s1670] sm:$0xff]
        %v1672 = vld [vmem:[%s1670 + $0x8] sm:$0xff]
        %v1673 = vld [vmem:[%s1670 + $0x10] sm:$0xff]
        %v1674 = vld [vmem:[%s1670 + $0x18] sm:$0xff]
        %s1675 = scalar_lea.vmem [#allocation14], 1
        %v1676 = vld [vmem:[%s1675] sm:$0x1]
        %v1678 = vperm.slane %v1676, 0
        %v1681 = vsel %vm1077, %v1669, 0
        %1683 = vmatpush.msra.mxu0 0.0
        %1684 = vmatpush.msra.mxu0 0.0
        %1685 = vmatpush.msra.mxu0 0.0
        %1686 = vmatpush.msra.mxu0 0.0
        %1687 = vmatpush.msra.mxu0 0.0
        %1688 = vmatpush.msra.mxu0 0.0
        %1689 = vmatpush.msra.mxu0 0.0
        %1690 = vmatpush.msra.mxu0 0.0
        %1691 = vmatpush.msra.mxu0 0.0
        %1692 = vmatpush.msra.mxu0 0.0
        %1693 = vmatpush.msra.mxu0 0.0
        %1694 = vmatpush.msra.mxu0 0.0
        %1695 = vmatpush.msra.mxu0 %v1674
        %1696 = vmatpush.msra.mxu0 %v1673
        %1697 = vmatpush.msra.mxu0 %v1672
        %1698 = vmatpush.msra.mxu0 %v1671
        %1699 = vmatmul.f32.gmra.mxu0 %v1681
        %v1700 = vpop.f32.mrf.mxu0
        %v1701 = vadd.f32 %v1678, %v1700
        %1702 = vdwg.mxu0
        %v1703 = vmul.f32 %v1701, 0.35355338
        %s1704 = scalar_lea.vmem %s9, 32
        %v1705 = vld [vmem:[%s1704] sm:$0xff]
        %v1706 = vld [vmem:[%s1704 + $0x8] sm:$0xff]
        %v1707 = vld [vmem:[%s1704 + $0x10] sm:$0xff]
        %v1708 = vld [vmem:[%s1704 + $0x18] sm:$0xff]
        %s1709 = scalar_lea.vmem [#allocation16], 1
        %v1710 = vld [vmem:[%s1709] sm:$0x1]
        %v1712 = vperm.slane %v1710, 0
        %1714 = vmatpush.msra.mxu0 0.0
        %1715 = vmatpush.msra.mxu0 0.0
        %1716 = vmatpush.msra.mxu0 0.0
        %1717 = vmatpush.msra.mxu0 0.0
        %1718 = vmatpush.msra.mxu0 0.0
        %1719 = vmatpush.msra.mxu0 0.0
        %1720 = vmatpush.msra.mxu0 0.0
        %1721 = vmatpush.msra.mxu0 0.0
        %1722 = vmatpush.msra.mxu0 0.0
        %1723 = vmatpush.msra.mxu0 0.0
        %1724 = vmatpush.msra.mxu0 0.0
        %1725 = vmatpush.msra.mxu0 0.0
        %1726 = vmatpush.msra.mxu0 %v1708
        %1727 = vmatpush.msra.mxu0 %v1707
        %1728 = vmatpush.msra.mxu0 %v1706
        %1729 = vmatpush.msra.mxu0 %v1705
        %1730 = vmatmul.f32.gmra.mxu0 %v1681
        %v1731 = vpop.f32.mrf.mxu0
        %v1732 = vadd.f32 %v1712, %v1731
        %1733 = vdwg.mxu0
        %s1734 = scalar_lea.vmem %s10, 32
        %v1735 = vld [vmem:[%s1734] sm:$0xff]
        %v1736 = vld [vmem:[%s1734 + $0x8] sm:$0xff]
        %v1737 = vld [vmem:[%s1734 + $0x10] sm:$0xff]
        %v1738 = vld [vmem:[%s1734 + $0x18] sm:$0xff]
        %s1739 = scalar_lea.vmem [#allocation17], 1
        %v1740 = vld [vmem:[%s1739] sm:$0x1]
        %v1742 = vperm.slane %v1740, 0
        %1744 = vmatpush.msra.mxu0 0.0
        %1745 = vmatpush.msra.mxu0 0.0
        %1746 = vmatpush.msra.mxu0 0.0
        %1747 = vmatpush.msra.mxu0 0.0
        %1748 = vmatpush.msra.mxu0 0.0
        %1749 = vmatpush.msra.mxu0 0.0
        %1750 = vmatpush.msra.mxu0 0.0
        %1751 = vmatpush.msra.mxu0 0.0
        %1752 = vmatpush.msra.mxu0 0.0
        %1753 = vmatpush.msra.mxu0 0.0
        %1754 = vmatpush.msra.mxu0 0.0
        %1755 = vmatpush.msra.mxu0 0.0
        %1756 = vmatpush.msra.mxu0 %v1738
        %1757 = vmatpush.msra.mxu0 %v1737
        %1758 = vmatpush.msra.mxu0 %v1736
        %1759 = vmatpush.msra.mxu0 %v1735
        %1760 = vmatmul.f32.gmra.mxu0 %v1681
        %v1761 = vpop.f32.mrf.mxu0
        %v1762 = vadd.f32 %v1742, %v1761
        %1763 = vdwg.mxu0
        %v1765 = vsel %vm1237, %v1703, 0
        %v1768 = vsel %vm1237, %v1732, 0
        %1770 = vmatpush.xpose.msra.mxu0 0.0
        %1771 = vmatpush.xpose.msra.mxu0 0.0
        %1772 = vmatpush.xpose.msra.mxu0 0.0
        %1773 = vmatpush.xpose.msra.mxu0 0.0
        %1774 = vmatpush.xpose.msra.mxu0 0.0
        %1775 = vmatpush.xpose.msra.mxu0 0.0
        %1776 = vmatpush.xpose.msra.mxu0 0.0
        %1777 = vmatpush.xpose.msra.mxu0 0.0
        %1778 = vmatpush.xpose.msra.mxu0 0.0
        %1779 = vmatpush.xpose.msra.mxu0 0.0
        %1780 = vmatpush.xpose.msra.mxu0 0.0
        %1781 = vmatpush.xpose.msra.mxu0 0.0
        %1782 = vmatpush.xpose.msra.mxu0 0.0
        %1783 = vmatpush.xpose.msra.mxu0 0.0
        %1784 = vmatpush.xpose.msra.mxu0 0.0
        %1785 = vmatpush.xpose.msra.mxu0 %v1768
        %1786 = vmatmul.f32.gmra.mxu0 %v1765
        %v1787 = vpop.f32.mrf.mxu0
        %v1788 = vadd.f32 0.0, %v1787
        %1789 = vdwg.mxu0
        %v1790 = vsel %vm1237, %v1788, -inf
        %1791 = vmax.xlane.f32.xlu0 %v1790
        %v1792 = vpop.xlane.xlu0 %1791
        %v1793 = vsub.f32 %v1788, %v1792
        %v1794 = vmul.f32 %v1793, 1.442695
        %v1795 = vpow.pop %v1794
        %v1796 = vsel %vm1237, %v1795, 0.0
        %1797 = vadd.xlane.f32.xlu0 %v1796
        %v1798 = vpop.xlane.xlu0 %1797
        %v1799 = vrcp.pop %v1798
        %v1800 = vmul.f32 %v1795, %v1799
        %v1802 = vsel %vm1237, %v1800, 0
        %1804 = vmatpush.msra.mxu0 0.0
        %1805 = vmatpush.msra.mxu0 0.0
        %1806 = vmatpush.msra.mxu0 0.0
        %1807 = vmatpush.msra.mxu0 0.0
        %1808 = vmatpush.msra.mxu0 0.0
        %1809 = vmatpush.msra.mxu0 0.0
        %1810 = vmatpush.msra.mxu0 0.0
        %1811 = vmatpush.msra.mxu0 0.0
        %1812 = vmatpush.msra.mxu0 0.0
        %1813 = vmatpush.msra.mxu0 0.0
        %1814 = vmatpush.msra.mxu0 0.0
        %1815 = vmatpush.msra.mxu0 0.0
        %1816 = vmatpush.msra.mxu0 0.0
        %1817 = vmatpush.msra.mxu0 0.0
        %1818 = vmatpush.msra.mxu0 0.0
        %1819 = vmatpush.msra.mxu0 %v1762
        %1820 = vmatmul.f32.gmra.mxu0 %v1802
        %v1821 = vpop.f32.mrf.mxu0
        %v1822 = vadd.f32 0.0, %v1821
        %1823 = vdwg.mxu0
        %1824 = vrot.lane.b32.xlu0 %v1703, 120
        %v1825 = vpop.permute.xlu0 %1824
        %1826 = vrot.lane.b32.xlu0 %v1732, 120
        %v1827 = vpop.permute.xlu0 %1826
        %v1828 = vsel %vm1237, %v1825, 0
        %v1830 = vsel %vm1237, %v1827, 0
        %1832 = vmatpush.xpose.msra.mxu0 0.0
        %1833 = vmatpush.xpose.msra.mxu0 0.0
        %1834 = vmatpush.xpose.msra.mxu0 0.0
        %1835 = vmatpush.xpose.msra.mxu0 0.0
        %1836 = vmatpush.xpose.msra.mxu0 0.0
        %1837 = vmatpush.xpose.msra.mxu0 0.0
        %1838 = vmatpush.xpose.msra.mxu0 0.0
        %1839 = vmatpush.xpose.msra.mxu0 0.0
        %1840 = vmatpush.xpose.msra.mxu0 0.0
        %1841 = vmatpush.xpose.msra.mxu0 0.0
        %1842 = vmatpush.xpose.msra.mxu0 0.0
        %1843 = vmatpush.xpose.msra.mxu0 0.0
        %1844 = vmatpush.xpose.msra.mxu0 0.0
        %1845 = vmatpush.xpose.msra.mxu0 0.0
        %1846 = vmatpush.xpose.msra.mxu0 0.0
        %1847 = vmatpush.xpose.msra.mxu0 %v1830
        %1848 = vmatmul.f32.gmra.mxu0 %v1828
        %v1849 = vpop.f32.mrf.mxu0
        %v1850 = vadd.f32 0.0, %v1849
        %1851 = vdwg.mxu0
        %v1852 = vsel %vm1237, %v1850, -inf
        %1853 = vmax.xlane.f32.xlu0 %v1852
        %v1854 = vpop.xlane.xlu0 %1853
        %v1855 = vsub.f32 %v1850, %v1854
        %v1856 = vmul.f32 %v1855, 1.442695
        %v1857 = vpow.pop %v1856
        %v1858 = vsel %vm1237, %v1857, 0.0
        %1859 = vadd.xlane.f32.xlu0 %v1858
        %v1860 = vpop.xlane.xlu0 %1859
        %v1861 = vrcp.pop %v1860
        %v1862 = vmul.f32 %v1857, %v1861
        %1864 = vrot.lane.b32.xlu0 %v1762, 120
        %v1865 = vpop.permute.xlu0 %1864
        %v1868 = vsel %vm1237, %v1862, 0
        %1870 = vmatpush.msra.mxu0 0.0
        %1871 = vmatpush.msra.mxu0 0.0
        %1872 = vmatpush.msra.mxu0 0.0
        %1873 = vmatpush.msra.mxu0 0.0
        %1874 = vmatpush.msra.mxu0 0.0
        %1875 = vmatpush.msra.mxu0 0.0
        %1876 = vmatpush.msra.mxu0 0.0
        %1877 = vmatpush.msra.mxu0 0.0
        %1878 = vmatpush.msra.mxu0 0.0
        %1879 = vmatpush.msra.mxu0 0.0
        %1880 = vmatpush.msra.mxu0 0.0
        %1881 = vmatpush.msra.mxu0 0.0
        %1882 = vmatpush.msra.mxu0 0.0
        %1883 = vmatpush.msra.mxu0 0.0
        %1884 = vmatpush.msra.mxu0 0.0
        %1885 = vmatpush.msra.mxu0 %v1865
        %1886 = vmatmul.f32.gmra.mxu0 %v1868
        %v1887 = vpop.f32.mrf.mxu0
        %v1888 = vadd.f32 0.0, %v1887
        %1889 = vdwg.mxu0
        %1890 = vrot.lane.b32.xlu0 %v1703, 112
        %v1891 = vpop.permute.xlu0 %1890
        %1892 = vrot.lane.b32.xlu0 %v1732, 112
        %v1893 = vpop.permute.xlu0 %1892
        %v1894 = vsel %vm1237, %v1891, 0
        %v1896 = vsel %vm1237, %v1893, 0
        %1898 = vmatpush.xpose.msra.mxu0 0.0
        %1899 = vmatpush.xpose.msra.mxu0 0.0
        %1900 = vmatpush.xpose.msra.mxu0 0.0
        %1901 = vmatpush.xpose.msra.mxu0 0.0
        %1902 = vmatpush.xpose.msra.mxu0 0.0
        %1903 = vmatpush.xpose.msra.mxu0 0.0
        %1904 = vmatpush.xpose.msra.mxu0 0.0
        %1905 = vmatpush.xpose.msra.mxu0 0.0
        %1906 = vmatpush.xpose.msra.mxu0 0.0
        %1907 = vmatpush.xpose.msra.mxu0 0.0
        %1908 = vmatpush.xpose.msra.mxu0 0.0
        %1909 = vmatpush.xpose.msra.mxu0 0.0
        %1910 = vmatpush.xpose.msra.mxu0 0.0
        %1911 = vmatpush.xpose.msra.mxu0 0.0
        %1912 = vmatpush.xpose.msra.mxu0 0.0
        %1913 = vmatpush.xpose.msra.mxu0 %v1896
        %1914 = vmatmul.f32.gmra.mxu0 %v1894
        %v1915 = vpop.f32.mrf.mxu0
        %v1916 = vadd.f32 0.0, %v1915
        %1917 = vdwg.mxu0
        %v1918 = vsel %vm1237, %v1916, -inf
        %1919 = vmax.xlane.f32.xlu0 %v1918
        %v1920 = vpop.xlane.xlu0 %1919
        %v1921 = vsub.f32 %v1916, %v1920
        %v1922 = vmul.f32 %v1921, 1.442695
        %v1923 = vpow.pop %v1922
        %v1924 = vsel %vm1237, %v1923, 0.0
        %1925 = vadd.xlane.f32.xlu0 %v1924
        %v1926 = vpop.xlane.xlu0 %1925
        %v1927 = vrcp.pop %v1926
        %v1928 = vmul.f32 %v1923, %v1927
        %1929 = vrot.lane.b32.xlu0 %v1762, 112
        %v1930 = vpop.permute.xlu0 %1929
        %v1933 = vsel %vm1237, %v1928, 0
        %1935 = vmatpush.msra.mxu0 0.0
        %1936 = vmatpush.msra.mxu0 0.0
        %1937 = vmatpush.msra.mxu0 0.0
        %1938 = vmatpush.msra.mxu0 0.0
        %1939 = vmatpush.msra.mxu0 0.0
        %1940 = vmatpush.msra.mxu0 0.0
        %1941 = vmatpush.msra.mxu0 0.0
        %1942 = vmatpush.msra.mxu0 0.0
        %1943 = vmatpush.msra.mxu0 0.0
        %1944 = vmatpush.msra.mxu0 0.0
        %1945 = vmatpush.msra.mxu0 0.0
        %1946 = vmatpush.msra.mxu0 0.0
        %1947 = vmatpush.msra.mxu0 0.0
        %1948 = vmatpush.msra.mxu0 0.0
        %1949 = vmatpush.msra.mxu0 0.0
        %1950 = vmatpush.msra.mxu0 %v1930
        %1951 = vmatmul.f32.gmra.mxu0 %v1933
        %v1952 = vpop.f32.mrf.mxu0
        %v1953 = vadd.f32 0.0, %v1952
        %1954 = vdwg.mxu0
        %1955 = vrot.lane.b32.xlu0 %v1703, 104
        %v1956 = vpop.permute.xlu0 %1955
        %1957 = vrot.lane.b32.xlu0 %v1732, 104
        %v1958 = vpop.permute.xlu0 %1957
        %v1959 = vsel %vm1237, %v1956, 0
        %v1961 = vsel %vm1237, %v1958, 0
        %1963 = vmatpush.xpose.msra.mxu0 0.0
        %1964 = vmatpush.xpose.msra.mxu0 0.0
        %1965 = vmatpush.xpose.msra.mxu0 0.0
        %1966 = vmatpush.xpose.msra.mxu0 0.0
        %1967 = vmatpush.xpose.msra.mxu0 0.0
        %1968 = vmatpush.xpose.msra.mxu0 0.0
        %1969 = vmatpush.xpose.msra.mxu0 0.0
        %1970 = vmatpush.xpose.msra.mxu0 0.0
        %1971 = vmatpush.xpose.msra.mxu0 0.0
        %1972 = vmatpush.xpose.msra.mxu0 0.0
        %1973 = vmatpush.xpose.msra.mxu0 0.0
        %1974 = vmatpush.xpose.msra.mxu0 0.0
        %1975 = vmatpush.xpose.msra.mxu0 0.0
        %1976 = vmatpush.xpose.msra.mxu0 0.0
        %1977 = vmatpush.xpose.msra.mxu0 0.0
        %1978 = vmatpush.xpose.msra.mxu0 %v1961
        %1979 = vmatmul.f32.gmra.mxu0 %v1959
        %v1980 = vpop.f32.mrf.mxu0
        %v1981 = vadd.f32 0.0, %v1980
        %1982 = vdwg.mxu0
        %v1983 = vsel %vm1237, %v1981, -inf
        %1984 = vmax.xlane.f32.xlu0 %v1983
        %v1985 = vpop.xlane.xlu0 %1984
        %v1986 = vsub.f32 %v1981, %v1985
        %v1987 = vmul.f32 %v1986, 1.442695
        %v1988 = vpow.pop %v1987
        %v1989 = vsel %vm1237, %v1988, 0.0
        %1990 = vadd.xlane.f32.xlu0 %v1989
        %v1991 = vpop.xlane.xlu0 %1990
        %v1992 = vrcp.pop %v1991
        %v1993 = vmul.f32 %v1988, %v1992
        %1994 = vrot.lane.b32.xlu0 %v1762, 104
        %v1995 = vpop.permute.xlu0 %1994
        %v1998 = vsel %vm1237, %v1993, 0
        %2000 = vmatpush.msra.mxu0 0.0
        %2001 = vmatpush.msra.mxu0 0.0
        %2002 = vmatpush.msra.mxu0 0.0
        %2003 = vmatpush.msra.mxu0 0.0
        %2004 = vmatpush.msra.mxu0 0.0
        %2005 = vmatpush.msra.mxu0 0.0
        %2006 = vmatpush.msra.mxu0 0.0
        %2007 = vmatpush.msra.mxu0 0.0
        %2008 = vmatpush.msra.mxu0 0.0
        %2009 = vmatpush.msra.mxu0 0.0
        %2010 = vmatpush.msra.mxu0 0.0
        %2011 = vmatpush.msra.mxu0 0.0
        %2012 = vmatpush.msra.mxu0 0.0
        %2013 = vmatpush.msra.mxu0 0.0
        %2014 = vmatpush.msra.mxu0 0.0
        %2015 = vmatpush.msra.mxu0 %v1995
        %2016 = vmatmul.f32.gmra.mxu0 %v1998
        %v2017 = vpop.f32.mrf.mxu0
        %v2018 = vadd.f32 0.0, %v2017
        %2019 = vdwg.mxu0
        %2021 = vrot.lane.b32.xlu0 %v1888, 8
        %v2022 = vpop.permute.xlu0 %2021
        %2025 = vrot.lane.b32.xlu0 %v1953, 16
        %v2026 = vpop.permute.xlu0 %2025
        %2029 = vrot.lane.b32.xlu0 %v2018, 24
        %v2030 = vpop.permute.xlu0 %2029
        %v2032 = vsel %vm1237, %v1822, %v2022
        %v2033 = vsel %vm1051, %v2032, %v2026
        %v2034 = vsel %vm1508, %v2033, %v2030
        %s2035 = scalar_lea.vmem %s14, 32
        %v2036 = vld [vmem:[%s2035] sm:$0xff]
        %v2037 = vld [vmem:[%s2035 + $0x8] sm:$0xff]
        %v2038 = vld [vmem:[%s2035 + $0x10] sm:$0xff]
        %v2039 = vld [vmem:[%s2035 + $0x18] sm:$0xff]
        %s2040 = scalar_lea.vmem [#allocation19], 1
        %v2041 = vld [vmem:[%s2040] sm:$0x1]
        %v2043 = vperm.slane %v2041, 0
        %v2046 = vsel %vm1077, %v2034, 0
        %2048 = vmatpush.msra.mxu0 0.0
        %2049 = vmatpush.msra.mxu0 0.0
        %2050 = vmatpush.msra.mxu0 0.0
        %2051 = vmatpush.msra.mxu0 0.0
        %2052 = vmatpush.msra.mxu0 0.0
        %2053 = vmatpush.msra.mxu0 0.0
        %2054 = vmatpush.msra.mxu0 0.0
        %2055 = vmatpush.msra.mxu0 0.0
        %2056 = vmatpush.msra.mxu0 0.0
        %2057 = vmatpush.msra.mxu0 0.0
        %2058 = vmatpush.msra.mxu0 0.0
        %2059 = vmatpush.msra.mxu0 0.0
        %2060 = vmatpush.msra.mxu0 %v2039
        %2061 = vmatpush.msra.mxu0 %v2038
        %2062 = vmatpush.msra.mxu0 %v2037
        %2063 = vmatpush.msra.mxu0 %v2036
        %2064 = vmatmul.f32.gmra.mxu0 %v2046
        %v2065 = vpop.f32.mrf.mxu0
        %v2066 = vadd.f32 %v2043, %v2065
        %2067 = vdwg.mxu0
        %v2068 = vadd.f32 %v1669, %v2066
        %s2069 = scalar_lea.vmem [#allocation20], 1
        %v2070 = vld [vmem:[%s2069] sm:$0x1]
        %s2071 = scalar_lea.vmem [#allocation22], 1
        %v2072 = vld [vmem:[%s2071] sm:$0x1]
        %v2073 = vsel %vm1077, %v2068, 0.0
        %2074 = vadd.xlane.f32.xlu0 %v2073
        %v2075 = vpop.xlane.xlu0 %2074
        %v2076 = vmul.f32 %v2075, %v1087
        %v2077 = vsub.f32 %v2068, %v2076
        %v2078 = vmul.f32 %v2077, %v2077
        %v2079 = vsel %vm1077, %v2078, 0.0
        %2080 = vadd.xlane.f32.xlu0 %v2079
        %v2081 = vpop.xlane.xlu0 %2080
        %v2082 = vmul.f32 %v2081, %v1087
        %v2083 = vadd.f32 %v2082, 1e-05
        %v2084 = vrsqrt.pop %v2083
        %v2085 = vmul.f32 %v2084, %v2083
        %v2086 = vmul.f32 %v2085, %v2084
        %v2087 = vmul.f32 0.5, %v2086
        %v2088 = vsub.f32 1.5, %v2087
        %v2089 = vmul.f32 %v2084, %v2088
        %vm2090 = vweird.f32 %v2083
        %vm2091 = vweird.f32 %v2084
        %vm2092 = vmor %vm2090, %vm2091
        %v2093 = vsel %vm2092, %v2084, %v2089
        %v2094 = vmul.f32 %v2077, %v2093
        %v2096 = vperm.slane %v2070, 0
        %v2098 = vmul.f32 %v2094, %v2096
        %v2100 = vperm.slane %v2072, 0
        %v2102 = vadd.f32 %v2098, %v2100
        %s2103 = scalar_lea.vmem [#allocation23], 32
        %v2104 = vld [vmem:[%s2103] sm:$0xff]
        %v2105 = vld [vmem:[%s2103 + $0x8] sm:$0xff]
        %v2106 = vld [vmem:[%s2103 + $0x10] sm:$0xff]
        %v2107 = vld [vmem:[%s2103 + $0x18] sm:$0xff]
        %s2108 = scalar_lea.vmem [#allocation25], 1
        %v2109 = vld [vmem:[%s2108] sm:$0x1]
        %v2111 = vperm.slane %v2109, 0
        %v2114 = vsel %vm1077, %v2102, 0
        %2116 = vmatpush.msra.mxu0 0.0
        %2117 = vmatpush.msra.mxu0 0.0
        %2118 = vmatpush.msra.mxu0 0.0
        %2119 = vmatpush.msra.mxu0 0.0
        %2120 = vmatpush.msra.mxu0 0.0
        %2121 = vmatpush.msra.mxu0 0.0
        %2122 = vmatpush.msra.mxu0 0.0
        %2123 = vmatpush.msra.mxu0 0.0
        %2124 = vmatpush.msra.mxu0 0.0
        %2125 = vmatpush.msra.mxu0 0.0
        %2126 = vmatpush.msra.mxu0 0.0
        %2127 = vmatpush.msra.mxu0 0.0
        %2128 = vmatpush.msra.mxu0 %v2107
        %2129 = vmatpush.msra.mxu0 %v2106
        %2130 = vmatpush.msra.mxu0 %v2105
        %2131 = vmatpush.msra.mxu0 %v2104
        %2132 = vmatmul.f32.gmra.mxu0 %v2114
        %v2133 = vpop.f32.mrf.mxu0
        %v2134 = vadd.f32 %v2111, %v2133
        %2135 = vdwg.mxu0
        %v2136 = vmax.f32 %v2134, 0.0
        %s2137 = scalar_lea.vmem [#allocation26], 32
        %v2138 = vld [vmem:[%s2137] sm:$0xff]
        %v2139 = vld [vmem:[%s2137 + $0x8] sm:$0xff]
        %v2140 = vld [vmem:[%s2137 + $0x10] sm:$0xff]
        %v2141 = vld [vmem:[%s2137 + $0x18] sm:$0xff]
        %s2142 = scalar_lea.vmem [#allocation28], 1
        %v2143 = vld [vmem:[%s2142] sm:$0x1]
        %v2145 = vperm.slane %v2143, 0
        %v2148 = vsel %vm1077, %v2136, 0
        %2150 = vmatpush.msra.mxu0 0.0
        %2151 = vmatpush.msra.mxu0 0.0
        %2152 = vmatpush.msra.mxu0 0.0
        %2153 = vmatpush.msra.mxu0 0.0
        %2154 = vmatpush.msra.mxu0 0.0
        %2155 = vmatpush.msra.mxu0 0.0
        %2156 = vmatpush.msra.mxu0 0.0
        %2157 = vmatpush.msra.mxu0 0.0
        %2158 = vmatpush.msra.mxu0 0.0
        %2159 = vmatpush.msra.mxu0 0.0
        %2160 = vmatpush.msra.mxu0 0.0
        %2161 = vmatpush.msra.mxu0 0.0
        %2162 = vmatpush.msra.mxu0 %v2141
        %2163 = vmatpush.msra.mxu0 %v2140
        %2164 = vmatpush.msra.mxu0 %v2139
        %2165 = vmatpush.msra.mxu0 %v2138
        %2166 = vmatmul.f32.gmra.mxu0 %v2148
        %v2167 = vpop.f32.mrf.mxu0
        %v2168 = vadd.f32 %v2145, %v2167
        %2169 = vdwg.mxu0
        %v2170 = vadd.f32 %v2102, %v2168
        %s2171 = scalar_lea.vmem [#allocation29], 1
        %v2172 = vld [vmem:[%s2171] sm:$0x1]
        %s2173 = scalar_lea.vmem [#allocation31], 1
        %v2174 = vld [vmem:[%s2173] sm:$0x1]
        %v2175 = vsel %vm1077, %v2170, 0.0
        %2176 = vadd.xlane.f32.xlu0 %v2175
        %v2177 = vpop.xlane.xlu0 %2176
        %v2178 = vmul.f32 %v2177, %v1087
        %v2179 = vsub.f32 %v2170, %v2178
        %v2180 = vmul.f32 %v2179, %v2179
        %v2181 = vsel %vm1077, %v2180, 0.0
        %2182 = vadd.xlane.f32.xlu0 %v2181
        %v2183 = vpop.xlane.xlu0 %2182
        %v2184 = vmul.f32 %v2183, %v1087
        %v2185 = vadd.f32 %v2184, 1e-05
        %v2186 = vrsqrt.pop %v2185
        %v2187 = vmul.f32 %v2186, %v2185
        %v2188 = vmul.f32 %v2187, %v2186
        %v2189 = vmul.f32 0.5, %v2188
        %v2190 = vsub.f32 1.5, %v2189
        %v2191 = vmul.f32 %v2186, %v2190
        %vm2192 = vweird.f32 %v2185
        %vm2193 = vweird.f32 %v2186
        %vm2194 = vmor %vm2192, %vm2193
        %v2195 = vsel %vm2194, %v2186, %v2191
        %v2196 = vmul.f32 %v2179, %v2195
        %v2198 = vperm.slane %v2172, 0
        %v2200 = vmul.f32 %v2196, %v2198
        %v2202 = vperm.slane %v2174, 0
        %v2204 = vadd.f32 %v2200, %v2202
        %2205 = vst.msk [vmem:[%s1043] sm:$0xff] %vm1077, %v2204
        %s2206 = sand.u32 %s567, 1
        %s2207 = scalar_lea.sflag [#allocation4], %s2206
        %s2208 = sand.u32 %s567, 1
        %s2209 = smul.addr %s2208, 8
        %s2210 = scalar_lea.vmem [#allocation32], %s2209
        // Predicated region
        $region193: #{sttr_forward.2} parent=115 // pred_check
          %p2211 = pneg %p577
        $region194: #{sttr_forward.2} parent=115 // pred_check_branch
          %2213 = sbr.rel (%p2211) target = $region196
        $region195: #{sttr_forward.2} parent=115 // pred_region
          %2215 = vsyncadd %s2207, 0
          %s2216 = smul.addr %s50, 8
          %s2217 = scalar_lea.hbm %s24, %s2216
          %s2219 = sshll.u32 %s2210, 4
          %s2220 = int_to_ptr.vmem [resolvable:$true] %s2219
          %s2221 = sshll.u32 %s2217, 4
          %s2222 = int_to_ptr.hbm [resolvable:$true] %s2221
          %2224 = dma.vmem_to_hbm [thread:$0]  %s2220, 128, %s2222, %s2207
        $region196: #{sttr_forward.2} parent=115 // pred_fallthru
          _
      $region116: #{sttr_forward.2} parent=5 // pred_fallthru
        _
      %p2225 = scmp.le.s32.totalorder 2, %s45
      // Predicated region
      $region197: #{sttr_forward.2} parent=5 // pred_check
        %p2226 = pneg %p2225
      $region198: #{sttr_forward.2} parent=5 // pred_check_branch
        %2228 = sbr.rel (%p2226) target = $region200
      $region199: #{sttr_forward.2} parent=5 // pred_region
        %s2229 = ssub.s32 %s45, 2
        // Predicated region
        $region201: #{sttr_forward.2} parent=199 // pred_check
          %p2230 = pneg %p583
        $region202: #{sttr_forward.2} parent=199 // pred_check_branch
          %2232 = sbr.rel (%p2230) target = $region204
        $region203: #{sttr_forward.2} parent=199 // pred_region
          %s2233 = sand.u32 %s568, 1
          %s2234 = scalar_lea.sflag [#allocation4], %s2233
          %s2235 = sand.u32 %s568, 1
          %s2236 = smul.addr %s2235, 8
          %s2237 = scalar_lea.vmem [#allocation32], %s2236
          %2239 = dma.done %s2234, 128
        $region204: #{sttr_forward.2} parent=199 // pred_fallthru
          _
      $region200: #{sttr_forward.2} parent=5 // pred_fallthru
        _
    $region6: #{sttr_forward.2} parent=1 // loop_footer
      %s49 = sadd.s32 1, %s45
    $region7: #{sttr_forward.2} parent=1 // loop_footer_branch
      %44 = sbr.rel target = $region3
    $region8: #{sttr_forward.2} parent=1 // loop_exit
      _
    %2240 = vsyncpa [#allocation3], 1
    %s2241 = scalar_lea.sflag [#allocation3], 1
    %2242 = vsyncpa %s2241, 1
    %2243 = vsyncpa [#allocation6], 1
    %2244 = vsyncpa [#allocation9], 1
    %2245 = vsyncpa [#allocation12], 1
    %2246 = vsyncpa [#allocation15], 1
    %2247 = vsyncpa [#allocation18], 1
    %2248 = vsyncpa [#allocation21], 1
    %2249 = vsyncpa [#allocation24], 1
    %2250 = vsyncpa [#allocation27], 1
    %2251 = vsyncpa [#allocation30], 1
    %2252 = vsyncpa [#allocation4], 1
    %s2253 = scalar_lea.sflag [#allocation4], 1
    %2254 = vsyncpa %s2253, 1

// kernel: sttr_forward.3
$region0: #{sttr_forward.3}
  #allocation0 [shape = 'u32[]', space=smem, size = 0x4, offset = 0x4, fixed_abs, tag = 'smem constant byte address 0x4 - core index']
  #allocation1 [shape = 'u32[72,128]{1,0:T(1,128)}', space=vmem, size = 0x9000, scoped, tag = 'internal scratch']
  %s0 = inlined_call_operand.vmem [shape: f32[2,50,24], index: 0, kind: input, shape index: {}]
  %s1 = inlined_call_operand.vmem [shape: f32[50,32], index: 1, kind: input, shape index: {}]
  %s2 = inlined_call_operand.hbm [shape: f32[24,32], index: 2, kind: input, shape index: {}]
  %s3 = inlined_call_operand.vmem [shape: f32[1,32], index: 3, kind: input, shape index: {}]
  %s4 = inlined_call_operand.vmem [shape: f32[1,32], index: 4, kind: input, shape index: {}]
  %s5 = inlined_call_operand.vmem [shape: f32[1,32], index: 5, kind: input, shape index: {}]
  %s6 = inlined_call_operand.vmem [shape: f32[32,32], index: 6, kind: input, shape index: {}]
  %s7 = inlined_call_operand.vmem [shape: f32[1,32], index: 7, kind: input, shape index: {}]
  %s8 = inlined_call_operand.vmem [shape: f32[2,32,32], index: 8, kind: input, shape index: {}]
  %s9 = inlined_call_operand.vmem [shape: f32[2,32,32], index: 9, kind: input, shape index: {}]
  %s10 = inlined_call_operand.vmem [shape: f32[2,32,32], index: 10, kind: input, shape index: {}]
  %s11 = inlined_call_operand.vmem [shape: f32[2,1,32], index: 11, kind: input, shape index: {}]
  %s12 = inlined_call_operand.vmem [shape: f32[2,1,32], index: 12, kind: input, shape index: {}]
  %s13 = inlined_call_operand.vmem [shape: f32[2,1,32], index: 13, kind: input, shape index: {}]
  %s14 = inlined_call_operand.hbm [shape: f32[2,32,32], index: 14, kind: input, shape index: {}]
  %s15 = inlined_call_operand.vmem [shape: f32[2,1,32], index: 15, kind: input, shape index: {}]
  %s16 = inlined_call_operand.vmem [shape: f32[2,1,32], index: 16, kind: input, shape index: {}]
  %s17 = inlined_call_operand.vmem [shape: f32[2,1,32], index: 17, kind: input, shape index: {}]
  %s18 = inlined_call_operand.hbm [shape: f32[2,32,32], index: 18, kind: input, shape index: {}]
  %s19 = inlined_call_operand.vmem [shape: f32[2,1,32], index: 19, kind: input, shape index: {}]
  %s20 = inlined_call_operand.hbm [shape: f32[2,32,32], index: 20, kind: input, shape index: {}]
  %s21 = inlined_call_operand.vmem [shape: f32[2,1,32], index: 21, kind: input, shape index: {}]
  %s22 = inlined_call_operand.hbm [shape: f32[2,1,32], index: 22, kind: input, shape index: {}]
  %s23 = inlined_call_operand.vmem [shape: f32[2,1,32], index: 23, kind: input, shape index: {}]
  %s24 = inlined_call_operand.vmem [shape: f32[2,50,32], index: 24, kind: output, shape index: {}]
  %s25 = sld [smem:[#allocation0]]
  $region149: #{sttr_forward.3} parent=0
    _
  %s27 = ssub.s32 1, %s25
  %s28 = scalar_select 0, %s27, %s25
  $region1: #{sttr_forward.3} parent=0
    #allocation2 [shape = 'u8[12288]{0}', space=vmem, size = 0x3000, scoped, tag = 'input window, operand 2, single buffered']
    #allocation3 [shape = 's32[2]{0}', space=sflag, size = 0x8, scoped, tag = 'scoped memory for sttr_forward.3']
    #allocation4 [shape = 'u8[32768]{0}', space=vmem, size = 0x8000, scoped, tag = 'input window, operand 14, single buffered']
    #allocation5 [shape = 's32[1]{0}', space=sflag, size = 0x4, scoped, tag = 'scoped memory for sttr_forward.3']
    #allocation6 [shape = 'u8[32768]{0}', space=vmem, size = 0x8000, scoped, tag = 'input window, operand 18, single buffered']
    #allocation7 [shape = 'u8[32768]{0}', space=vmem, size = 0x8000, scoped, tag = 'input window, operand 20, single buffered']
    #allocation8 [shape = 's32[1]{0}', space=sflag, size = 0x4, scoped, tag = 'scoped memory for sttr_forward.3']
    #allocation9 [shape = 'u8[1024]{0}', space=vmem, size = 0x400, scoped, tag = 'input window, operand 22, single buffered']
    %29 = vsyncpa [#allocation3], 0
    %30 = vsyncpa [#allocation5], 0
    %31 = vsyncpa [#allocation8], 0
    loop: start=0, step=1, limit=4
    $region2: #{sttr_forward.3} parent=1 // loop_pre_header
      _
    $region3: #{sttr_forward.3} parent=1 // loop_header
      %s33 = sphi 0, %s37
      %p34 = scmp.ge.s32.totalorder %s33, 4
      %s43 = sphi 0, %s45
      %s46 = sphi 0, %s43
      %s47 = sphi 0, %s46
      %s63 = sphi 0, %s47
      %s67 = sphi 0, %s67
      %s69 = sphi 0, %s67
      %s70 = sphi 0, %s69
      %s84 = sphi 0, %s70
      %s88 = sphi 0, %s88
      %s90 = sphi 0, %s88
      %s91 = sphi 0, %s90
      %s105 = sphi 0, %s91
      %s109 = sphi 0, %s109
      %s111 = sphi 0, %s109
      %s112 = sphi 0, %s111
      %s126 = sphi 0, %s112
      %s130 = sphi 0, %s130
      %s132 = sphi 0, %s130
      %s133 = sphi 0, %s132
      %s147 = sphi 0, %s133
      %s151 = sphi 0, %s151
      %s153 = sphi 0, %s151
      %s154 = sphi 0, %s153
      %s168 = sphi 0, %s154
      %s172 = sphi 0, %s172
      %s174 = sphi 0, %s172
      %s175 = sphi 0, %s174
      %s189 = sphi 0, %s175
      %s193 = sphi 0, %s193
      %s195 = sphi 0, %s193
      %s196 = sphi 0, %s195
      %s210 = sphi 0, %s196
      %s214 = sphi 0, %s214
      %s216 = sphi 0, %s214
      %s217 = sphi 0, %s216
      %s231 = sphi 0, %s217
      %s235 = sphi 0, %s235
      %s237 = sphi 0, %s235
      %s238 = sphi 0, %s237
      %s252 = sphi 0, %s238
      %s256 = sphi 0, %s256
      %s258 = sphi 0, %s256
      %s259 = sphi 0, %s258
      %s273 = sphi 0, %s259
      %s277 = sphi 0, %s277
      %s279 = sphi 0, %s277
      %s280 = sphi 0, %s279
      %s294 = sphi 0, %s280
      %s298 = sphi 0, %s298
      %s300 = sphi 0, %s298
      %s301 = sphi 0, %s300
      %s315 = sphi 0, %s301
      %s319 = sphi 0, %s319
      %s321 = sphi 0, %s319
      %s322 = sphi 0, %s321
      %s336 = sphi 0, %s322
      %s340 = sphi 0, %s340
      %s342 = sphi 0, %s340
      %s343 = sphi 0, %s342
      %s357 = sphi 0, %s343
      %s361 = sphi 0, %s361
      %s363 = sphi 0, %s361
      %s364 = sphi 0, %s363
      %s378 = sphi 0, %s364
      %s382 = sphi 0, %s382
      %s384 = sphi 0, %s382
      %s385 = sphi 0, %s384
      %s399 = sphi 0, %s385
      %s403 = sphi 0, %s403
      %s405 = sphi 0, %s403
      %s406 = sphi 0, %s405
      %s420 = sphi 0, %s406
      %s424 = sphi 0, %s424
      %s426 = sphi 0, %s424
      %s427 = sphi 0, %s426
      %s441 = sphi 0, %s427
      %s445 = sphi 0, %s445
      %s447 = sphi 0, %s445
      %s448 = sphi 0, %s447
      %s462 = sphi 0, %s448
      %s466 = sphi 0, %s466
      %s468 = sphi 0, %s466
      %s469 = sphi 0, %s468
      %s483 = sphi 0, %s469
      %s487 = sphi 0, %s487
      %s489 = sphi 0, %s487
      %s490 = sphi 0, %s489
      %s504 = sphi 0, %s490
      %s508 = sphi 0, %s508
      %s510 = sphi 0, %s508
      %s511 = sphi 0, %s510
      %s525 = sphi 0, %s511
      %s529 = sphi 0, %s529
      %s531 = sphi 0, %s529
      %s532 = sphi 0, %s531
      %s546 = sphi 0, %s532
      %s552 = sphi 0, %s554
      %s555 = sphi 0, %s552
      %s556 = sphi 0, %s555
      %s572 = sphi 0, %s556
    $region4: #{sttr_forward.3} parent=1 // loop_header_branch
      %36 = sbr.rel (%p34) target = $region8
    $region5: #{sttr_forward.3} parent=1 // loop_body
      %s38 = ssub.s32 %s33, 1
      %s39 = ssub.s32 %s33, 2
      %s40 = sadd.s32 %s33, 1
      %s41 = ssub.s32 %s33, %s40
      %p42 = scmp.eq.s32.totalorder %s41, 0
      %s44 = sadd.s32 %s43, 1
      %s45 = scalar_select %p42, %s43, %s44
      %p48 = pneg %p42
      %p49 = scmp.eq.s32.totalorder %s33, 1
      %p50 = por %p48, %p49
      %p51 = scmp.ne.s32.totalorder %s43, %s46
      %p52 = scmp.eq.s32.totalorder %s33, 0
      %p53 = por %p51, %p52
      %p54 = scmp.ne.s32.totalorder %s43, %s46
      %p55 = scmp.eq.s32.totalorder %s38, 1
      %p56 = por %p54, %p55
      %p57 = scmp.ne.s32.totalorder %s46, %s47
      %p58 = scmp.eq.s32.totalorder %s38, 0
      %p59 = por %p57, %p58
      %p60 = scmp.ne.s32.totalorder %s46, %s47
      %p61 = scmp.eq.s32.totalorder %s39, 1
      %p62 = por %p60, %p61
      %p64 = scmp.ne.s32.totalorder %s47, %s63
      %p65 = scmp.eq.s32.totalorder %s39, 0
      %p66 = por %p64, %p65
      %s68 = sadd.s32 %s67, 1
      %p71 = scmp.eq.s32.totalorder %s33, 1
      %p72 = scmp.ne.s32.totalorder %s67, %s69
      %p73 = scmp.eq.s32.totalorder %s33, 0
      %p74 = por %p72, %p73
      %p75 = scmp.ne.s32.totalorder %s67, %s69
      %p76 = scmp.eq.s32.totalorder %s38, 1
      %p77 = por %p75, %p76
      %p78 = scmp.ne.s32.totalorder %s69, %s70
      %p79 = scmp.eq.s32.totalorder %s38, 0
      %p80 = por %p78, %p79
      %p81 = scmp.ne.s32.totalorder %s69, %s70
      %p82 = scmp.eq.s32.totalorder %s39, 1
      %p83 = por %p81, %p82
      %p85 = scmp.ne.s32.totalorder %s70, %s84
      %p86 = scmp.eq.s32.totalorder %s39, 0
      %p87 = por %p85, %p86
      %s89 = sadd.s32 %s88, 1
      %p92 = scmp.eq.s32.totalorder %s33, 1
      %p93 = scmp.ne.s32.totalorder %s88, %s90
      %p94 = scmp.eq.s32.totalorder %s33, 0
      %p95 = por %p93, %p94
      %p96 = scmp.ne.s32.totalorder %s88, %s90
      %p97 = scmp.eq.s32.totalorder %s38, 1
      %p98 = por %p96, %p97
      %p99 = scmp.ne.s32.totalorder %s90, %s91
      %p100 = scmp.eq.s32.totalorder %s38, 0
      %p101 = por %p99, %p100
      %p102 = scmp.ne.s32.totalorder %s90, %s91
      %p103 = scmp.eq.s32.totalorder %s39, 1
      %p104 = por %p102, %p103
      %p106 = scmp.ne.s32.totalorder %s91, %s105
      %p107 = scmp.eq.s32.totalorder %s39, 0
      %p108 = por %p106, %p107
      %s110 = sadd.s32 %s109, 1
      %p113 = scmp.eq.s32.totalorder %s33, 1
      %p114 = scmp.ne.s32.totalorder %s109, %s111
      %p115 = scmp.eq.s32.totalorder %s33, 0
      %p116 = por %p114, %p115
      %p117 = scmp.ne.s32.totalorder %s109, %s111
      %p118 = scmp.eq.s32.totalorder %s38, 1
      %p119 = por %p117, %p118
      %p120 = scmp.ne.s32.totalorder %s111, %s112
      %p121 = scmp.eq.s32.totalorder %s38, 0
      %p122 = por %p120, %p121
      %p123 = scmp.ne.s32.totalorder %s111, %s112
      %p124 = scmp.eq.s32.totalorder %s39, 1
      %p125 = por %p123, %p124
      %p127 = scmp.ne.s32.totalorder %s112, %s126
      %p128 = scmp.eq.s32.totalorder %s39, 0
      %p129 = por %p127, %p128
      %s131 = sadd.s32 %s130, 1
      %p134 = scmp.eq.s32.totalorder %s33, 1
      %p135 = scmp.ne.s32.totalorder %s130, %s132
      %p136 = scmp.eq.s32.totalorder %s33, 0
      %p137 = por %p135, %p136
      %p138 = scmp.ne.s32.totalorder %s130, %s132
      %p139 = scmp.eq.s32.totalorder %s38, 1
      %p140 = por %p138, %p139
      %p141 = scmp.ne.s32.totalorder %s132, %s133
      %p142 = scmp.eq.s32.totalorder %s38, 0
      %p143 = por %p141, %p142
      %p144 = scmp.ne.s32.totalorder %s132, %s133
      %p145 = scmp.eq.s32.totalorder %s39, 1
      %p146 = por %p144, %p145
      %p148 = scmp.ne.s32.totalorder %s133, %s147
      %p149 = scmp.eq.s32.totalorder %s39, 0
      %p150 = por %p148, %p149
      %s152 = sadd.s32 %s151, 1
      %p155 = scmp.eq.s32.totalorder %s33, 1
      %p156 = scmp.ne.s32.totalorder %s151, %s153
      %p157 = scmp.eq.s32.totalorder %s33, 0
      %p158 = por %p156, %p157
      %p159 = scmp.ne.s32.totalorder %s151, %s153
      %p160 = scmp.eq.s32.totalorder %s38, 1
      %p161 = por %p159, %p160
      %p162 = scmp.ne.s32.totalorder %s153, %s154
      %p163 = scmp.eq.s32.totalorder %s38, 0
      %p164 = por %p162, %p163
      %p165 = scmp.ne.s32.totalorder %s153, %s154
      %p166 = scmp.eq.s32.totalorder %s39, 1
      %p167 = por %p165, %p166
      %p169 = scmp.ne.s32.totalorder %s154, %s168
      %p170 = scmp.eq.s32.totalorder %s39, 0
      %p171 = por %p169, %p170
      %s173 = sadd.s32 %s172, 1
      %p176 = scmp.eq.s32.totalorder %s33, 1
      %p177 = scmp.ne.s32.totalorder %s172, %s174
      %p178 = scmp.eq.s32.totalorder %s33, 0
      %p179 = por %p177, %p178
      %p180 = scmp.ne.s32.totalorder %s172, %s174
      %p181 = scmp.eq.s32.totalorder %s38, 1
      %p182 = por %p180, %p181
      %p183 = scmp.ne.s32.totalorder %s174, %s175
      %p184 = scmp.eq.s32.totalorder %s38, 0
      %p185 = por %p183, %p184
      %p186 = scmp.ne.s32.totalorder %s174, %s175
      %p187 = scmp.eq.s32.totalorder %s39, 1
      %p188 = por %p186, %p187
      %p190 = scmp.ne.s32.totalorder %s175, %s189
      %p191 = scmp.eq.s32.totalorder %s39, 0
      %p192 = por %p190, %p191
      %s194 = sadd.s32 %s193, 1
      %p197 = scmp.eq.s32.totalorder %s33, 1
      %p198 = scmp.ne.s32.totalorder %s193, %s195
      %p199 = scmp.eq.s32.totalorder %s33, 0
      %p200 = por %p198, %p199
      %p201 = scmp.ne.s32.totalorder %s193, %s195
      %p202 = scmp.eq.s32.totalorder %s38, 1
      %p203 = por %p201, %p202
      %p204 = scmp.ne.s32.totalorder %s195, %s196
      %p205 = scmp.eq.s32.totalorder %s38, 0
      %p206 = por %p204, %p205
      %p207 = scmp.ne.s32.totalorder %s195, %s196
      %p208 = scmp.eq.s32.totalorder %s39, 1
      %p209 = por %p207, %p208
      %p211 = scmp.ne.s32.totalorder %s196, %s210
      %p212 = scmp.eq.s32.totalorder %s39, 0
      %p213 = por %p211, %p212
      %s215 = sadd.s32 %s214, 1
      %p218 = scmp.eq.s32.totalorder %s33, 1
      %p219 = scmp.ne.s32.totalorder %s214, %s216
      %p220 = scmp.eq.s32.totalorder %s33, 0
      %p221 = por %p219, %p220
      %p222 = scmp.ne.s32.totalorder %s214, %s216
      %p223 = scmp.eq.s32.totalorder %s38, 1
      %p224 = por %p222, %p223
      %p225 = scmp.ne.s32.totalorder %s216, %s217
      %p226 = scmp.eq.s32.totalorder %s38, 0
      %p227 = por %p225, %p226
      %p228 = scmp.ne.s32.totalorder %s216, %s217
      %p229 = scmp.eq.s32.totalorder %s39, 1
      %p230 = por %p228, %p229
      %p232 = scmp.ne.s32.totalorder %s217, %s231
      %p233 = scmp.eq.s32.totalorder %s39, 0
      %p234 = por %p232, %p233
      %s236 = sadd.s32 %s235, 1
      %p239 = scmp.eq.s32.totalorder %s33, 1
      %p240 = scmp.ne.s32.totalorder %s235, %s237
      %p241 = scmp.eq.s32.totalorder %s33, 0
      %p242 = por %p240, %p241
      %p243 = scmp.ne.s32.totalorder %s235, %s237
      %p244 = scmp.eq.s32.totalorder %s38, 1
      %p245 = por %p243, %p244
      %p246 = scmp.ne.s32.totalorder %s237, %s238
      %p247 = scmp.eq.s32.totalorder %s38, 0
      %p248 = por %p246, %p247
      %p249 = scmp.ne.s32.totalorder %s237, %s238
      %p250 = scmp.eq.s32.totalorder %s39, 1
      %p251 = por %p249, %p250
      %p253 = scmp.ne.s32.totalorder %s238, %s252
      %p254 = scmp.eq.s32.totalorder %s39, 0
      %p255 = por %p253, %p254
      %s257 = sadd.s32 %s256, 1
      %p260 = scmp.eq.s32.totalorder %s33, 1
      %p261 = scmp.ne.s32.totalorder %s256, %s258
      %p262 = scmp.eq.s32.totalorder %s33, 0
      %p263 = por %p261, %p262
      %p264 = scmp.ne.s32.totalorder %s256, %s258
      %p265 = scmp.eq.s32.totalorder %s38, 1
      %p266 = por %p264, %p265
      %p267 = scmp.ne.s32.totalorder %s258, %s259
      %p268 = scmp.eq.s32.totalorder %s38, 0
      %p269 = por %p267, %p268
      %p270 = scmp.ne.s32.totalorder %s258, %s259
      %p271 = scmp.eq.s32.totalorder %s39, 1
      %p272 = por %p270, %p271
      %p274 = scmp.ne.s32.totalorder %s259, %s273
      %p275 = scmp.eq.s32.totalorder %s39, 0
      %p276 = por %p274, %p275
      %s278 = sadd.s32 %s277, 1
      %p281 = scmp.eq.s32.totalorder %s33, 1
      %p282 = scmp.ne.s32.totalorder %s277, %s279
      %p283 = scmp.eq.s32.totalorder %s33, 0
      %p284 = por %p282, %p283
      %p285 = scmp.ne.s32.totalorder %s277, %s279
      %p286 = scmp.eq.s32.totalorder %s38, 1
      %p287 = por %p285, %p286
      %p288 = scmp.ne.s32.totalorder %s279, %s280
      %p289 = scmp.eq.s32.totalorder %s38, 0
      %p290 = por %p288, %p289
      %p291 = scmp.ne.s32.totalorder %s279, %s280
      %p292 = scmp.eq.s32.totalorder %s39, 1
      %p293 = por %p291, %p292
      %p295 = scmp.ne.s32.totalorder %s280, %s294
      %p296 = scmp.eq.s32.totalorder %s39, 0
      %p297 = por %p295, %p296
      %s299 = sadd.s32 %s298, 1
      %p302 = scmp.eq.s32.totalorder %s33, 1
      %p303 = scmp.ne.s32.totalorder %s298, %s300
      %p304 = scmp.eq.s32.totalorder %s33, 0
      %p305 = por %p303, %p304
      %p306 = scmp.ne.s32.totalorder %s298, %s300
      %p307 = scmp.eq.s32.totalorder %s38, 1
      %p308 = por %p306, %p307
      %p309 = scmp.ne.s32.totalorder %s300, %s301
      %p310 = scmp.eq.s32.totalorder %s38, 0
      %p311 = por %p309, %p310
      %p312 = scmp.ne.s32.totalorder %s300, %s301
      %p313 = scmp.eq.s32.totalorder %s39, 1
      %p314 = por %p312, %p313
      %p316 = scmp.ne.s32.totalorder %s301, %s315
      %p317 = scmp.eq.s32.totalorder %s39, 0
      %p318 = por %p316, %p317
      %s320 = sadd.s32 %s319, 1
      %p323 = scmp.eq.s32.totalorder %s33, 1
      %p324 = scmp.ne.s32.totalorder %s319, %s321
      %p325 = scmp.eq.s32.totalorder %s33, 0
      %p326 = por %p324, %p325
      %p327 = scmp.ne.s32.totalorder %s319, %s321
      %p328 = scmp.eq.s32.totalorder %s38, 1
      %p329 = por %p327, %p328
      %p330 = scmp.ne.s32.totalorder %s321, %s322
      %p331 = scmp.eq.s32.totalorder %s38, 0
      %p332 = por %p330, %p331
      %p333 = scmp.ne.s32.totalorder %s321, %s322
      %p334 = scmp.eq.s32.totalorder %s39, 1
      %p335 = por %p333, %p334
      %p337 = scmp.ne.s32.totalorder %s322, %s336
      %p338 = scmp.eq.s32.totalorder %s39, 0
      %p339 = por %p337, %p338
      %s341 = sadd.s32 %s340, 1
      %p344 = scmp.eq.s32.totalorder %s33, 1
      %p345 = scmp.ne.s32.totalorder %s340, %s342
      %p346 = scmp.eq.s32.totalorder %s33, 0
      %p347 = por %p345, %p346
      %p348 = scmp.ne.s32.totalorder %s340, %s342
      %p349 = scmp.eq.s32.totalorder %s38, 1
      %p350 = por %p348, %p349
      %p351 = scmp.ne.s32.totalorder %s342, %s343
      %p352 = scmp.eq.s32.totalorder %s38, 0
      %p353 = por %p351, %p352
      %p354 = scmp.ne.s32.totalorder %s342, %s343
      %p355 = scmp.eq.s32.totalorder %s39, 1
      %p356 = por %p354, %p355
      %p358 = scmp.ne.s32.totalorder %s343, %s357
      %p359 = scmp.eq.s32.totalorder %s39, 0
      %p360 = por %p358, %p359
      %s362 = sadd.s32 %s361, 1
      %p365 = scmp.eq.s32.totalorder %s33, 1
      %p366 = scmp.ne.s32.totalorder %s361, %s363
      %p367 = scmp.eq.s32.totalorder %s33, 0
      %p368 = por %p366, %p367
      %p369 = scmp.ne.s32.totalorder %s361, %s363
      %p370 = scmp.eq.s32.totalorder %s38, 1
      %p371 = por %p369, %p370
      %p372 = scmp.ne.s32.totalorder %s363, %s364
      %p373 = scmp.eq.s32.totalorder %s38, 0
      %p374 = por %p372, %p373
      %p375 = scmp.ne.s32.totalorder %s363, %s364
      %p376 = scmp.eq.s32.totalorder %s39, 1
      %p377 = por %p375, %p376
      %p379 = scmp.ne.s32.totalorder %s364, %s378
      %p380 = scmp.eq.s32.totalorder %s39, 0
      %p381 = por %p379, %p380
      %s383 = sadd.s32 %s382, 1
      %p386 = scmp.eq.s32.totalorder %s33, 1
      %p387 = scmp.ne.s32.totalorder %s382, %s384
      %p388 = scmp.eq.s32.totalorder %s33, 0
      %p389 = por %p387, %p388
      %p390 = scmp.ne.s32.totalorder %s382, %s384
      %p391 = scmp.eq.s32.totalorder %s38, 1
      %p392 = por %p390, %p391
      %p393 = scmp.ne.s32.totalorder %s384, %s385
      %p394 = scmp.eq.s32.totalorder %s38, 0
      %p395 = por %p393, %p394
      %p396 = scmp.ne.s32.totalorder %s384, %s385
      %p397 = scmp.eq.s32.totalorder %s39, 1
      %p398 = por %p396, %p397
      %p400 = scmp.ne.s32.totalorder %s385, %s399
      %p401 = scmp.eq.s32.totalorder %s39, 0
      %p402 = por %p400, %p401
      %s404 = sadd.s32 %s403, 1
      %p407 = scmp.eq.s32.totalorder %s33, 1
      %p408 = scmp.ne.s32.totalorder %s403, %s405
      %p409 = scmp.eq.s32.totalorder %s33, 0
      %p410 = por %p408, %p409
      %p411 = scmp.ne.s32.totalorder %s403, %s405
      %p412 = scmp.eq.s32.totalorder %s38, 1
      %p413 = por %p411, %p412
      %p414 = scmp.ne.s32.totalorder %s405, %s406
      %p415 = scmp.eq.s32.totalorder %s38, 0
      %p416 = por %p414, %p415
      %p417 = scmp.ne.s32.totalorder %s405, %s406
      %p418 = scmp.eq.s32.totalorder %s39, 1
      %p419 = por %p417, %p418
      %p421 = scmp.ne.s32.totalorder %s406, %s420
      %p422 = scmp.eq.s32.totalorder %s39, 0
      %p423 = por %p421, %p422
      %s425 = sadd.s32 %s424, 1
      %p428 = scmp.eq.s32.totalorder %s33, 1
      %p429 = scmp.ne.s32.totalorder %s424, %s426
      %p430 = scmp.eq.s32.totalorder %s33, 0
      %p431 = por %p429, %p430
      %p432 = scmp.ne.s32.totalorder %s424, %s426
      %p433 = scmp.eq.s32.totalorder %s38, 1
      %p434 = por %p432, %p433
      %p435 = scmp.ne.s32.totalorder %s426, %s427
      %p436 = scmp.eq.s32.totalorder %s38, 0
      %p437 = por %p435, %p436
      %p438 = scmp.ne.s32.totalorder %s426, %s427
      %p439 = scmp.eq.s32.totalorder %s39, 1
      %p440 = por %p438, %p439
      %p442 = scmp.ne.s32.totalorder %s427, %s441
      %p443 = scmp.eq.s32.totalorder %s39, 0
      %p444 = por %p442, %p443
      %s446 = sadd.s32 %s445, 1
      %p449 = scmp.eq.s32.totalorder %s33, 1
      %p450 = scmp.ne.s32.totalorder %s445, %s447
      %p451 = scmp.eq.s32.totalorder %s33, 0
      %p452 = por %p450, %p451
      %p453 = scmp.ne.s32.totalorder %s445, %s447
      %p454 = scmp.eq.s32.totalorder %s38, 1
      %p455 = por %p453, %p454
      %p456 = scmp.ne.s32.totalorder %s447, %s448
      %p457 = scmp.eq.s32.totalorder %s38, 0
      %p458 = por %p456, %p457
      %p459 = scmp.ne.s32.totalorder %s447, %s448
      %p460 = scmp.eq.s32.totalorder %s39, 1
      %p461 = por %p459, %p460
      %p463 = scmp.ne.s32.totalorder %s448, %s462
      %p464 = scmp.eq.s32.totalorder %s39, 0
      %p465 = por %p463, %p464
      %s467 = sadd.s32 %s466, 1
      %p470 = scmp.eq.s32.totalorder %s33, 1
      %p471 = scmp.ne.s32.totalorder %s466, %s468
      %p472 = scmp.eq.s32.totalorder %s33, 0
      %p473 = por %p471, %p472
      %p474 = scmp.ne.s32.totalorder %s466, %s468
      %p475 = scmp.eq.s32.totalorder %s38, 1
      %p476 = por %p474, %p475
      %p477 = scmp.ne.s32.totalorder %s468, %s469
      %p478 = scmp.eq.s32.totalorder %s38, 0
      %p479 = por %p477, %p478
      %p480 = scmp.ne.s32.totalorder %s468, %s469
      %p481 = scmp.eq.s32.totalorder %s39, 1
      %p482 = por %p480, %p481
      %p484 = scmp.ne.s32.totalorder %s469, %s483
      %p485 = scmp.eq.s32.totalorder %s39, 0
      %p486 = por %p484, %p485
      %s488 = sadd.s32 %s487, 1
      %p491 = scmp.eq.s32.totalorder %s33, 1
      %p492 = scmp.ne.s32.totalorder %s487, %s489
      %p493 = scmp.eq.s32.totalorder %s33, 0
      %p494 = por %p492, %p493
      %p495 = scmp.ne.s32.totalorder %s487, %s489
      %p496 = scmp.eq.s32.totalorder %s38, 1
      %p497 = por %p495, %p496
      %p498 = scmp.ne.s32.totalorder %s489, %s490
      %p499 = scmp.eq.s32.totalorder %s38, 0
      %p500 = por %p498, %p499
      %p501 = scmp.ne.s32.totalorder %s489, %s490
      %p502 = scmp.eq.s32.totalorder %s39, 1
      %p503 = por %p501, %p502
      %p505 = scmp.ne.s32.totalorder %s490, %s504
      %p506 = scmp.eq.s32.totalorder %s39, 0
      %p507 = por %p505, %p506
      %s509 = sadd.s32 %s508, 1
      %p512 = scmp.eq.s32.totalorder %s33, 1
      %p513 = scmp.ne.s32.totalorder %s508, %s510
      %p514 = scmp.eq.s32.totalorder %s33, 0
      %p515 = por %p513, %p514
      %p516 = scmp.ne.s32.totalorder %s508, %s510
      %p517 = scmp.eq.s32.totalorder %s38, 1
      %p518 = por %p516, %p517
      %p519 = scmp.ne.s32.totalorder %s510, %s511
      %p520 = scmp.eq.s32.totalorder %s38, 0
      %p521 = por %p519, %p520
      %p522 = scmp.ne.s32.totalorder %s510, %s511
      %p523 = scmp.eq.s32.totalorder %s39, 1
      %p524 = por %p522, %p523
      %p526 = scmp.ne.s32.totalorder %s511, %s525
      %p527 = scmp.eq.s32.totalorder %s39, 0
      %p528 = por %p526, %p527
      %s530 = sadd.s32 %s529, 1
      %p533 = scmp.eq.s32.totalorder %s33, 1
      %p534 = scmp.ne.s32.totalorder %s529, %s531
      %p535 = scmp.eq.s32.totalorder %s33, 0
      %p536 = por %p534, %p535
      %p537 = scmp.ne.s32.totalorder %s529, %s531
      %p538 = scmp.eq.s32.totalorder %s38, 1
      %p539 = por %p537, %p538
      %p540 = scmp.ne.s32.totalorder %s531, %s532
      %p541 = scmp.eq.s32.totalorder %s38, 0
      %p542 = por %p540, %p541
      %p543 = scmp.ne.s32.totalorder %s531, %s532
      %p544 = scmp.eq.s32.totalorder %s39, 1
      %p545 = por %p543, %p544
      %p547 = scmp.ne.s32.totalorder %s532, %s546
      %p548 = scmp.eq.s32.totalorder %s39, 0
      %p549 = por %p547, %p548
      %s550 = ssub.s32 %s33, %s40
      %p551 = scmp.eq.s32.totalorder %s550, 0
      %s553 = sadd.s32 %s552, 1
      %s554 = scalar_select %p551, %s552, %s553
      %p557 = pneg %p551
      %p558 = scmp.eq.s32.totalorder %s33, 1
      %p559 = por %p557, %p558
      %p560 = scmp.ne.s32.totalorder %s552, %s555
      %p561 = scmp.eq.s32.totalorder %s33, 0
      %p562 = por %p560, %p561
      %p563 = scmp.ne.s32.totalorder %s552, %s555
      %p564 = scmp.eq.s32.totalorder %s38, 1
      %p565 = por %p563, %p564
      %p566 = scmp.ne.s32.totalorder %s555, %s556
      %p567 = scmp.eq.s32.totalorder %s38, 0
      %p568 = por %p566, %p567
      %p569 = scmp.ne.s32.totalorder %s555, %s556
      %p570 = scmp.eq.s32.totalorder %s39, 1
      %p571 = por %p569, %p570
      %p573 = scmp.ne.s32.totalorder %s556, %s572
      %p574 = scmp.eq.s32.totalorder %s39, 0
      %p575 = por %p573, %p574
      %p576 = scmp.le.s32.totalorder 1, %s33
      %p577 = scmp.lt.s32.totalorder %s33, 3
      %p578 = pnand %p576, %p577
      %p579 = pneg %p578
      // Predicated region
      $region9: #{sttr_forward.3} parent=5 // pred_check
        _
      $region10: #{sttr_forward.3} parent=5 // pred_check_branch
        %581 = sbr.rel (%p578) target = $region12
      $region11: #{sttr_forward.3} parent=5 // pred_region
        %s582 = ssub.s32 %s33, 1
        // Predicated region
        $region13: #{sttr_forward.3} parent=11 // pred_check
          %p583 = pneg %p80
        $region14: #{sttr_forward.3} parent=11 // pred_check_branch
          %585 = sbr.rel (%p583) target = $region16
        $region15: #{sttr_forward.3} parent=11 // pred_region
          _
        $region16: #{sttr_forward.3} parent=11 // pred_fallthru
          _
        // Predicated region
        $region17: #{sttr_forward.3} parent=11 // pred_check
          %p586 = pneg %p101
        $region18: #{sttr_forward.3} parent=11 // pred_check_branch
          %588 = sbr.rel (%p586) target = $region20
        $region19: #{sttr_forward.3} parent=11 // pred_region
          %590 = vsyncadd [#allocation3], 0
          %s591 = sshll.u32 %s2, 4
          %s592 = int_to_ptr.hbm [resolvable:$true] %s591
          %s593 = sshll.u32 [#allocation2], 4
          %s594 = int_to_ptr.vmem [resolvable:$true] %s593
          %599 = dma.hbm_to_vmem [thread:$0]  %s592, 384, %s594, [#allocation3], 128, 128, 8
        $region20: #{sttr_forward.3} parent=11 // pred_fallthru
          _
        // Predicated region
        $region21: #{sttr_forward.3} parent=11 // pred_check
          %p600 = pneg %p122
        $region22: #{sttr_forward.3} parent=11 // pred_check_branch
          %602 = sbr.rel (%p600) target = $region24
        $region23: #{sttr_forward.3} parent=11 // pred_region
          _
        $region24: #{sttr_forward.3} parent=11 // pred_fallthru
          _
        // Predicated region
        $region25: #{sttr_forward.3} parent=11 // pred_check
          %p603 = pneg %p143
        $region26: #{sttr_forward.3} parent=11 // pred_check_branch
          %605 = sbr.rel (%p603) target = $region28
        $region27: #{sttr_forward.3} parent=11 // pred_region
          _
        $region28: #{sttr_forward.3} parent=11 // pred_fallthru
          _
        // Predicated region
        $region29: #{sttr_forward.3} parent=11 // pred_check
          %p606 = pneg %p164
        $region30: #{sttr_forward.3} parent=11 // pred_check_branch
          %608 = sbr.rel (%p606) target = $region32
        $region31: #{sttr_forward.3} parent=11 // pred_region
          _
        $region32: #{sttr_forward.3} parent=11 // pred_fallthru
          _
        // Predicated region
        $region33: #{sttr_forward.3} parent=11 // pred_check
          %p609 = pneg %p185
        $region34: #{sttr_forward.3} parent=11 // pred_check_branch
          %611 = sbr.rel (%p609) target = $region36
        $region35: #{sttr_forward.3} parent=11 // pred_region
          _
        $region36: #{sttr_forward.3} parent=11 // pred_fallthru
          _
        // Predicated region
        $region37: #{sttr_forward.3} parent=11 // pred_check
          %p612 = pneg %p206
        $region38: #{sttr_forward.3} parent=11 // pred_check_branch
          %614 = sbr.rel (%p612) target = $region40
        $region39: #{sttr_forward.3} parent=11 // pred_region
          _
        $region40: #{sttr_forward.3} parent=11 // pred_fallthru
          _
        // Predicated region
        $region41: #{sttr_forward.3} parent=11 // pred_check
          %p615 = pneg %p227
        $region42: #{sttr_forward.3} parent=11 // pred_check_branch
          %617 = sbr.rel (%p615) target = $region44
        $region43: #{sttr_forward.3} parent=11 // pred_region
          _
        $region44: #{sttr_forward.3} parent=11 // pred_fallthru
          _
        // Predicated region
        $region45: #{sttr_forward.3} parent=11 // pred_check
          %p618 = pneg %p248
        $region46: #{sttr_forward.3} parent=11 // pred_check_branch
          %620 = sbr.rel (%p618) target = $region48
        $region47: #{sttr_forward.3} parent=11 // pred_region
          _
        $region48: #{sttr_forward.3} parent=11 // pred_fallthru
          _
        // Predicated region
        $region49: #{sttr_forward.3} parent=11 // pred_check
          %p621 = pneg %p269
        $region50: #{sttr_forward.3} parent=11 // pred_check_branch
          %623 = sbr.rel (%p621) target = $region52
        $region51: #{sttr_forward.3} parent=11 // pred_region
          _
        $region52: #{sttr_forward.3} parent=11 // pred_fallthru
          _
        // Predicated region
        $region53: #{sttr_forward.3} parent=11 // pred_check
          %p624 = pneg %p290
        $region54: #{sttr_forward.3} parent=11 // pred_check_branch
          %626 = sbr.rel (%p624) target = $region56
        $region55: #{sttr_forward.3} parent=11 // pred_region
          _
        $region56: #{sttr_forward.3} parent=11 // pred_fallthru
          _
        // Predicated region
        $region57: #{sttr_forward.3} parent=11 // pred_check
          %p627 = pneg %p311
        $region58: #{sttr_forward.3} parent=11 // pred_check_branch
          %629 = sbr.rel (%p627) target = $region60
        $region59: #{sttr_forward.3} parent=11 // pred_region
          _
        $region60: #{sttr_forward.3} parent=11 // pred_fallthru
          _
        // Predicated region
        $region61: #{sttr_forward.3} parent=11 // pred_check
          %p630 = pneg %p332
        $region62: #{sttr_forward.3} parent=11 // pred_check_branch
          %632 = sbr.rel (%p630) target = $region64
        $region63: #{sttr_forward.3} parent=11 // pred_region
          _
        $region64: #{sttr_forward.3} parent=11 // pred_fallthru
          _
        // Predicated region
        $region65: #{sttr_forward.3} parent=11 // pred_check
          %p633 = pneg %p353
        $region66: #{sttr_forward.3} parent=11 // pred_check_branch
          %635 = sbr.rel (%p633) target = $region68
        $region67: #{sttr_forward.3} parent=11 // pred_region
          %637 = vsyncadd [#allocation5], 0
          %s638 = sshll.u32 %s14, 4
          %s639 = int_to_ptr.hbm [resolvable:$true] %s638
          %s640 = sshll.u32 [#allocation4], 4
          %s641 = int_to_ptr.vmem [resolvable:$true] %s640
          %646 = dma.hbm_to_vmem [thread:$0]  %s639, 1024, %s641, [#allocation5], 128, 128, 8
        $region68: #{sttr_forward.3} parent=11 // pred_fallthru
          _
        // Predicated region
        $region69: #{sttr_forward.3} parent=11 // pred_check
          %p647 = pneg %p374
        $region70: #{sttr_forward.3} parent=11 // pred_check_branch
          %649 = sbr.rel (%p647) target = $region72
        $region71: #{sttr_forward.3} parent=11 // pred_region
          _
        $region72: #{sttr_forward.3} parent=11 // pred_fallthru
          _
        // Predicated region
        $region73: #{sttr_forward.3} parent=11 // pred_check
          %p650 = pneg %p395
        $region74: #{sttr_forward.3} parent=11 // pred_check_branch
          %652 = sbr.rel (%p650) target = $region76
        $region75: #{sttr_forward.3} parent=11 // pred_region
          _
        $region76: #{sttr_forward.3} parent=11 // pred_fallthru
          _
        // Predicated region
        $region77: #{sttr_forward.3} parent=11 // pred_check
          %p653 = pneg %p416
        $region78: #{sttr_forward.3} parent=11 // pred_check_branch
          %655 = sbr.rel (%p653) target = $region80
        $region79: #{sttr_forward.3} parent=11 // pred_region
          _
        $region80: #{sttr_forward.3} parent=11 // pred_fallthru
          _
        // Predicated region
        $region81: #{sttr_forward.3} parent=11 // pred_check
          %p656 = pneg %p437
        $region82: #{sttr_forward.3} parent=11 // pred_check_branch
          %658 = sbr.rel (%p656) target = $region84
        $region83: #{sttr_forward.3} parent=11 // pred_region
          %660 = vsyncadd [#allocation5], 0
          %s661 = sshll.u32 %s18, 4
          %s662 = int_to_ptr.hbm [resolvable:$true] %s661
          %s663 = sshll.u32 [#allocation6], 4
          %s664 = int_to_ptr.vmem [resolvable:$true] %s663
          %669 = dma.hbm_to_vmem [thread:$0]  %s662, 1024, %s664, [#allocation5], 128, 128, 8
        $region84: #{sttr_forward.3} parent=11 // pred_fallthru
          _
        // Predicated region
        $region85: #{sttr_forward.3} parent=11 // pred_check
          %p670 = pneg %p458
        $region86: #{sttr_forward.3} parent=11 // pred_check_branch
          %672 = sbr.rel (%p670) target = $region88
        $region87: #{sttr_forward.3} parent=11 // pred_region
          _
        $region88: #{sttr_forward.3} parent=11 // pred_fallthru
          _
        // Predicated region
        $region89: #{sttr_forward.3} parent=11 // pred_check
          %p673 = pneg %p479
        $region90: #{sttr_forward.3} parent=11 // pred_check_branch
          %675 = sbr.rel (%p673) target = $region92
        $region91: #{sttr_forward.3} parent=11 // pred_region
          %677 = vsyncadd [#allocation8], 0
          %s678 = sshll.u32 %s20, 4
          %s679 = int_to_ptr.hbm [resolvable:$true] %s678
          %s680 = sshll.u32 [#allocation7], 4
          %s681 = int_to_ptr.vmem [resolvable:$true] %s680
          %686 = dma.hbm_to_vmem [thread:$0]  %s679, 1024, %s681, [#allocation8], 128, 128, 8
        $region92: #{sttr_forward.3} parent=11 // pred_fallthru
          _
        // Predicated region
        $region93: #{sttr_forward.3} parent=11 // pred_check
          %p687 = pneg %p500
        $region94: #{sttr_forward.3} parent=11 // pred_check_branch
          %689 = sbr.rel (%p687) target = $region96
        $region95: #{sttr_forward.3} parent=11 // pred_region
          _
        $region96: #{sttr_forward.3} parent=11 // pred_fallthru
          _
        // Predicated region
        $region97: #{sttr_forward.3} parent=11 // pred_check
          %p690 = pneg %p521
        $region98: #{sttr_forward.3} parent=11 // pred_check_branch
          %692 = sbr.rel (%p690) target = $region100
        $region99: #{sttr_forward.3} parent=11 // pred_region
          %694 = vsyncadd [#allocation8], 0
          %s695 = sshll.u32 %s22, 4
          %s696 = int_to_ptr.hbm [resolvable:$true] %s695
          %s697 = sshll.u32 [#allocation9], 4
          %s698 = int_to_ptr.vmem [resolvable:$true] %s697
          %703 = dma.hbm_to_vmem [thread:$0]  %s696, 32, %s698, [#allocation8], 16, 16, 1
        $region100: #{sttr_forward.3} parent=11 // pred_fallthru
          _
        // Predicated region
        $region101: #{sttr_forward.3} parent=11 // pred_check
          %p704 = pneg %p542
        $region102: #{sttr_forward.3} parent=11 // pred_check_branch
          %706 = sbr.rel (%p704) target = $region104
        $region103: #{sttr_forward.3} parent=11 // pred_region
          _
        $region104: #{sttr_forward.3} parent=11 // pred_fallthru
          _
      $region12: #{sttr_forward.3} parent=5 // pred_fallthru
        _
      %p707 = scmp.lt.s32.totalorder %s33, 2
      // Predicated region
      $region105: #{sttr_forward.3} parent=5 // pred_check
        %p708 = pneg %p707
      $region106: #{sttr_forward.3} parent=5 // pred_check_branch
        %710 = sbr.rel (%p708) target = $region108
      $region107: #{sttr_forward.3} parent=5 // pred_region
        // Predicated region
        $region109: #{sttr_forward.3} parent=107 // pred_check
          %p711 = pneg %p53
        $region110: #{sttr_forward.3} parent=107 // pred_check_branch
          %713 = sbr.rel (%p711) target = $region112
        $region111: #{sttr_forward.3} parent=107 // pred_region
          %p714 = scmp.lt.s32.totalorder %s33, 1
          %s715 = scalar_select %p714, %s33, 1
          %s716 = smul.addr %s715, 7
          %s717 = smul.addr %s716, 8
          %s718 = scalar_lea.vmem %s0, %s717
        $region112: #{sttr_forward.3} parent=107 // pred_fallthru
          _
      $region108: #{sttr_forward.3} parent=5 // pred_fallthru
        _
      %p719 = scmp.le.s32.totalorder 1, %s33
      %p720 = scmp.lt.s32.totalorder %s33, 3
      %p721 = pnand %p719, %p720
      %p722 = pneg %p721
      // Predicated region
      $region113: #{sttr_forward.3} parent=5 // pred_check
        _
      $region114: #{sttr_forward.3} parent=5 // pred_check_branch
        %724 = sbr.rel (%p721) target = $region116
      $region115: #{sttr_forward.3} parent=5 // pred_region
        %s725 = ssub.s32 %s33, 1
        // Predicated region
        $region117: #{sttr_forward.3} parent=115 // pred_check
          %p726 = pneg %p101
        $region118: #{sttr_forward.3} parent=115 // pred_check_branch
          %728 = sbr.rel (%p726) target = $region120
        $region119: #{sttr_forward.3} parent=115 // pred_region
          %730 = dma.done [#allocation3], 384
        $region120: #{sttr_forward.3} parent=115 // pred_fallthru
          _
        // Predicated region
        $region121: #{sttr_forward.3} parent=115 // pred_check
          %p731 = pneg %p353
        $region122: #{sttr_forward.3} parent=115 // pred_check_branch
          %733 = sbr.rel (%p731) target = $region124
        $region123: #{sttr_forward.3} parent=115 // pred_region
          %735 = dma.done [#allocation5], 1024
        $region124: #{sttr_forward.3} parent=115 // pred_fallthru
          _
        // Predicated region
        $region125: #{sttr_forward.3} parent=115 // pred_check
          %p736 = pneg %p437
        $region126: #{sttr_forward.3} parent=115 // pred_check_branch
          %738 = sbr.rel (%p736) target = $region128
        $region127: #{sttr_forward.3} parent=115 // pred_region
          %740 = dma.done [#allocation5], 1024
        $region128: #{sttr_forward.3} parent=115 // pred_fallthru
          _
        // Predicated region
        $region129: #{sttr_forward.3} parent=115 // pred_check
          %p741 = pneg %p479
        $region130: #{sttr_forward.3} parent=115 // pred_check_branch
          %743 = sbr.rel (%p741) target = $region132
        $region131: #{sttr_forward.3} parent=115 // pred_region
          %745 = dma.done [#allocation8], 1024
        $region132: #{sttr_forward.3} parent=115 // pred_fallthru
          _
        // Predicated region
        $region133: #{sttr_forward.3} parent=115 // pred_check
          %p746 = pneg %p521
        $region134: #{sttr_forward.3} parent=115 // pred_check_branch
          %748 = sbr.rel (%p746) target = $region136
        $region135: #{sttr_forward.3} parent=115 // pred_region
          %750 = dma.done [#allocation8], 32
        $region136: #{sttr_forward.3} parent=115 // pred_fallthru
          _
        %p751 = scmp.lt.s32.totalorder %s38, 1
        %s752 = scalar_select %p751, %s38, 1
        %s753 = smul.addr %s752, 7
        %s754 = smul.addr %s753, 8
        %s755 = scalar_lea.vmem %s0, %s754
        %p756 = pneg %p59
        %p757 = pneg %p56
        %p758 = pneg %p80
        %p759 = pneg %p77
        %p760 = pneg %p101
        %p761 = pneg %p98
        %p762 = pneg %p122
        %p763 = pneg %p119
        %p764 = pneg %p143
        %p765 = pneg %p140
        %p766 = pneg %p164
        %p767 = pneg %p161
        %p768 = pneg %p185
        %p769 = pneg %p182
        %p770 = pneg %p206
        %p771 = pneg %p203
        %p772 = pneg %p227
        %p773 = pneg %p224
        %p774 = pneg %p248
        %p775 = pneg %p245
        %p776 = pneg %p269
        %p777 = pneg %p266
        %p778 = pneg %p290
        %p779 = pneg %p287
        %p780 = pneg %p311
        %p781 = pneg %p308
        %p782 = pneg %p332
        %p783 = pneg %p329
        %p784 = pneg %p353
        %p785 = pneg %p350
        %p786 = pneg %p374
        %p787 = pneg %p371
        %p788 = pneg %p395
        %p789 = pneg %p392
        %p790 = pneg %p416
        %p791 = pneg %p413
        %p792 = pneg %p437
        %p793 = pneg %p434
        %p794 = pneg %p458
        %p795 = pneg %p455
        %p796 = pneg %p479
        %p797 = pneg %p476
        %p798 = pneg %p500
        %p799 = pneg %p497
        %p800 = pneg %p521
        %p801 = pneg %p518
        %p802 = pneg %p542
        %p803 = pneg %p539
        %p804 = pneg %p568
        %p805 = pneg %p565
        %p806 = scmp.lt.s32.totalorder %s38, 1
        %s807 = scalar_select %p806, %s38, 1
        %s808 = smul.addr %s807, 7
        %s809 = smul.addr %s808, 8
        %s810 = scalar_lea.vmem %s24, %s809
        %p811 = scmp.lt.s32.totalorder %s38, 1
        %s812 = scalar_select %p811, %s38, 1
        %s813 = smul.addr %s812, 7
        %s814 = smul.addr %s813, 8
        %s815 = scalar_lea.vmem %s0, %s814
        %p816 = scmp.lt.s32.totalorder %s38, 1
        %s817 = scalar_select %p816, %s38, 1
        %s818 = smul.addr %s817, 7
        %s819 = smul.addr %s818, 8
        %s820 = scalar_lea.vmem %s24, %s819
        %v821 = vld [vmem:[%s815] sm:$0xff]
        %v822 = vld [vmem:[%s815 + $0x8] sm:$0xff]
        %v823 = vld [vmem:[%s815 + $0x10] sm:$0xff]
        %v824 = vld [vmem:[%s815 + $0x18] sm:$0xff]
        %v825 = vld [vmem:[%s815 + $0x20] sm:$0xff]
        %v826 = vld [vmem:[%s815 + $0x28] sm:$0xff]
        %v827 = vld [vmem:[%s815 + $0x30] sm:$0x3]
        %v828 = vld [vmem:[#allocation2] sm:$0xff]
        %v829 = vld [vmem:[#allocation2 + $0x8] sm:$0xff]
        %v830 = vld [vmem:[#allocation2 + $0x10] sm:$0xff]
        %v831 = vld [vmem:[%s3] sm:$0x1]
        %v833 = vperm.slane %v831, 0
        %vm835 = vcmask 195584
        %v837 = vsel %vm835, %v821, 0
        %v840 = vsel %vm835, %v822, 0
        %v843 = vsel %vm835, %v823, 0
        %v846 = vsel %vm835, %v824, 0
        %v849 = vsel %vm835, %v825, 0
        %v852 = vsel %vm835, %v826, 0
        %v855 = vsel %vm835, %v827, 0
        %857 = vmatpush.msra.mxu0 0.0
        %858 = vmatpush.msra.mxu0 0.0
        %859 = vmatpush.msra.mxu0 0.0
        %860 = vmatpush.msra.mxu0 0.0
        %861 = vmatpush.msra.mxu0 0.0
        %862 = vmatpush.msra.mxu0 0.0
        %863 = vmatpush.msra.mxu0 0.0
        %864 = vmatpush.msra.mxu0 0.0
        %865 = vmatpush.msra.mxu0 0.0
        %866 = vmatpush.msra.mxu0 0.0
        %867 = vmatpush.msra.mxu0 0.0
        %868 = vmatpush.msra.mxu0 0.0
        %869 = vmatpush.msra.mxu0 0.0
        %870 = vmatpush.msra.mxu0 %v830
        %871 = vmatpush.msra.mxu0 %v829
        %872 = vmatpush.msra.mxu0 %v828
        %873 = vmatmul.f32.gmra.mxu0 %v837
        %v874 = vpop.f32.mrf.mxu0
        %v875 = vadd.f32 %v833, %v874
        %876 = vmatmul.f32.gmra.mxu0 %v840
        %v877 = vpop.f32.mrf.mxu0
        %v878 = vadd.f32 %v833, %v877
        %879 = vmatmul.f32.gmra.mxu0 %v843
        %v880 = vpop.f32.mrf.mxu0
        %v881 = vadd.f32 %v833, %v880
        %882 = vmatmul.f32.gmra.mxu0 %v846
        %v883 = vpop.f32.mrf.mxu0
        %v884 = vadd.f32 %v833, %v883
        %885 = vmatmul.f32.gmra.mxu0 %v849
        %v886 = vpop.f32.mrf.mxu0
        %v887 = vadd.f32 %v833, %v886
        %888 = vmatmul.f32.gmra.mxu0 %v852
        %v889 = vpop.f32.mrf.mxu0
        %v890 = vadd.f32 %v833, %v889
        %891 = vmatmul.f32.gmra.mxu0 %v855
        %v892 = vpop.f32.mrf.mxu0
        %v893 = vadd.f32 %v833, %v892
        %894 = vdwg.mxu0
        %v895 = vld [vmem:[%s4] sm:$0x1]
        %v896 = vld [vmem:[%s5] sm:$0x1]
        %vm897 = vcmask 261120
        %v898 = vsel %vm897, %v875, 0.0
        %899 = vadd.xlane.f32.xlu0 %v898
        %v900 = vpop.xlane.xlu0 %899
        %v901 = vsel %vm897, %v878, 0.0
        %902 = vadd.xlane.f32.xlu0 %v901
        %v903 = vpop.xlane.xlu0 %902
        %v904 = vsel %vm897, %v881, 0.0
        %905 = vadd.xlane.f32.xlu0 %v904
        %v906 = vpop.xlane.xlu0 %905
        %v907 = vsel %vm897, %v884, 0.0
        %908 = vadd.xlane.f32.xlu0 %v907
        %v909 = vpop.xlane.xlu0 %908
        %v910 = vsel %vm897, %v887, 0.0
        %911 = vadd.xlane.f32.xlu0 %v910
        %v912 = vpop.xlane.xlu0 %911
        %v913 = vsel %vm897, %v890, 0.0
        %914 = vadd.xlane.f32.xlu0 %v913
        %v915 = vpop.xlane.xlu0 %914
        %vm916 = vcmask 254976
        %v917 = vsel %vm916, %v893, 0.0
        %918 = vadd.xlane.f32.xlu0 %v917
        %v919 = vpop.xlane.xlu0 %918
        %v920 = vrcp.pop 32.0
        %v921 = vmul.f32 32.0, %v920
        %v922 = vsub.f32 1.0, %v921
        %v923 = vmul.f32 %v920, %v922
        %v924 = vadd.f32 %v920, %v923
        %vm925 = vweird.f32 %v920
        %v926 = vsel %vm925, %v920, %v924
        %v927 = vmul.f32 %v900, %v926
        %v928 = vmul.f32 %v903, %v926
        %v929 = vmul.f32 %v906, %v926
        %v930 = vmul.f32 %v909, %v926
        %v931 = vmul.f32 %v912, %v926
        %v932 = vmul.f32 %v915, %v926
        %v933 = vmul.f32 %v919, %v926
        %v934 = vsub.f32 %v875, %v927
        %v935 = vsub.f32 %v878, %v928
        %v936 = vsub.f32 %v881, %v929
        %v937 = vsub.f32 %v884, %v930
        %v938 = vsub.f32 %v887, %v931
        %v939 = vsub.f32 %v890, %v932
        %v940 = vsub.f32 %v893, %v933
        %v941 = vmul.f32 %v934, %v934
        %v942 = vmul.f32 %v935, %v935
        %v943 = vmul.f32 %v936, %v936
        %v944 = vmul.f32 %v937, %v937
        %v945 = vmul.f32 %v938, %v938
        %v946 = vmul.f32 %v939, %v939
        %v947 = vmul.f32 %v940, %v940
        %v948 = vsel %vm897, %v941, 0.0
        %949 = vadd.xlane.f32.xlu0 %v948
        %v950 = vpop.xlane.xlu0 %949
        %v951 = vsel %vm897, %v942, 0.0
        %952 = vadd.xlane.f32.xlu0 %v951
        %v953 = vpop.xlane.xlu0 %952
        %v954 = vsel %vm897, %v943, 0.0
        %955 = vadd.xlane.f32.xlu0 %v954
        %v956 = vpop.xlane.xlu0 %955
        %v957 = vsel %vm897, %v944, 0.0
        %958 = vadd.xlane.f32.xlu0 %v957
        %v959 = vpop.xlane.xlu0 %958
        %v960 = vsel %vm897, %v945, 0.0
        %961 = vadd.xlane.f32.xlu0 %v960
        %v962 = vpop.xlane.xlu0 %961
        %v963 = vsel %vm897, %v946, 0.0
        %964 = vadd.xlane.f32.xlu0 %v963
        %v965 = vpop.xlane.xlu0 %964
        %v966 = vsel %vm916, %v947, 0.0
        %967 = vadd.xlane.f32.xlu0 %v966
        %v968 = vpop.xlane.xlu0 %967
        %v969 = vmul.f32 %v950, %v926
        %v970 = vmul.f32 %v953, %v926
        %v971 = vmul.f32 %v956, %v926
        %v972 = vmul.f32 %v959, %v926
        %v973 = vmul.f32 %v962, %v926
        %v974 = vmul.f32 %v965, %v926
        %v975 = vmul.f32 %v968, %v926
        %v976 = vadd.f32 %v969, 1e-05
        %v977 = vadd.f32 %v970, 1e-05
        %v978 = vadd.f32 %v971, 1e-05
        %v979 = vadd.f32 %v972, 1e-05
        %v980 = vadd.f32 %v973, 1e-05
        %v981 = vadd.f32 %v974, 1e-05
        %v982 = vadd.f32 %v975, 1e-05
        %v983 = vrsqrt.pop %v976
        %v984 = vmul.f32 %v983, %v976
        %v985 = vmul.f32 %v984, %v983
        %v986 = vmul.f32 0.5, %v985
        %v987 = vsub.f32 1.5, %v986
        %v988 = vmul.f32 %v983, %v987
        %vm989 = vweird.f32 %v976
        %vm990 = vweird.f32 %v983
        %vm991 = vmor %vm989, %vm990
        %v992 = vsel %vm991, %v983, %v988
        %v993 = vrsqrt.pop %v977
        %v994 = vmul.f32 %v993, %v977
        %v995 = vmul.f32 %v994, %v993
        %v996 = vmul.f32 0.5, %v995
        %v997 = vsub.f32 1.5, %v996
        %v998 = vmul.f32 %v993, %v997
        %vm999 = vweird.f32 %v977
        %vm1000 = vweird.f32 %v993
        %vm1001 = vmor %vm999, %vm1000
        %v1002 = vsel %vm1001, %v993, %v998
        %v1003 = vrsqrt.pop %v978
        %v1004 = vmul.f32 %v1003, %v978
        %v1005 = vmul.f32 %v1004, %v1003
        %v1006 = vmul.f32 0.5, %v1005
        %v1007 = vsub.f32 1.5, %v1006
        %v1008 = vmul.f32 %v1003, %v1007
        %vm1009 = vweird.f32 %v978
        %vm1010 = vweird.f32 %v1003
        %vm1011 = vmor %vm1009, %vm1010
        %v1012 = vsel %vm1011, %v1003, %v1008
        %v1013 = vrsqrt.pop %v979
        %v1014 = vmul.f32 %v1013, %v979
        %v1015 = vmul.f32 %v1014, %v1013
        %v1016 = vmul.f32 0.5, %v1015
        %v1017 = vsub.f32 1.5, %v1016
        %v1018 = vmul.f32 %v1013, %v1017
        %vm1019 = vweird.f32 %v979
        %vm1020 = vweird.f32 %v1013
        %vm1021 = vmor %vm1019, %vm1020
        %v1022 = vsel %vm1021, %v1013, %v1018
        %v1023 = vrsqrt.pop %v980
        %v1024 = vmul.f32 %v1023, %v980
        %v1025 = vmul.f32 %v1024, %v1023
        %v1026 = vmul.f32 0.5, %v1025
        %v1027 = vsub.f32 1.5, %v1026
        %v1028 = vmul.f32 %v1023, %v1027
        %vm1029 = vweird.f32 %v980
        %vm1030 = vweird.f32 %v1023
        %vm1031 = vmor %vm1029, %vm1030
        %v1032 = vsel %vm1031, %v1023, %v1028
        %v1033 = vrsqrt.pop %v981
        %v1034 = vmul.f32 %v1033, %v981
        %v1035 = vmul.f32 %v1034, %v1033
        %v1036 = vmul.f32 0.5, %v1035
        %v1037 = vsub.f32 1.5, %v1036
        %v1038 = vmul.f32 %v1033, %v1037
        %vm1039 = vweird.f32 %v981
        %vm1040 = vweird.f32 %v1033
        %vm1041 = vmor %vm1039, %vm1040
        %v1042 = vsel %vm1041, %v1033, %v1038
        %v1043 = vrsqrt.pop %v982
        %v1044 = vmul.f32 %v1043, %v982
        %v1045 = vmul.f32 %v1044, %v1043
        %v1046 = vmul.f32 0.5, %v1045
        %v1047 = vsub.f32 1.5, %v1046
        %v1048 = vmul.f32 %v1043, %v1047
        %vm1049 = vweird.f32 %v982
        %vm1050 = vweird.f32 %v1043
        %vm1051 = vmor %vm1049, %vm1050
        %v1052 = vsel %vm1051, %v1043, %v1048
        %v1053 = vmul.f32 %v934, %v992
        %v1054 = vmul.f32 %v935, %v1002
        %v1055 = vmul.f32 %v936, %v1012
        %v1056 = vmul.f32 %v937, %v1022
        %v1057 = vmul.f32 %v938, %v1032
        %v1058 = vmul.f32 %v939, %v1042
        %v1059 = vmul.f32 %v940, %v1052
        %v1061 = vperm.slane %v895, 0
        %v1063 = vmul.f32 %v1053, %v1061
        %v1064 = vmul.f32 %v1054, %v1061
        %v1065 = vmul.f32 %v1055, %v1061
        %v1066 = vmul.f32 %v1056, %v1061
        %v1067 = vmul.f32 %v1057, %v1061
        %v1068 = vmul.f32 %v1058, %v1061
        %v1069 = vmul.f32 %v1059, %v1061
        %v1071 = vperm.slane %v896, 0
        %v1073 = vadd.f32 %v1063, %v1071
        %v1074 = vadd.f32 %v1064, %v1071
        %v1075 = vadd.f32 %v1065, %v1071
        %v1076 = vadd.f32 %v1066, %v1071
        %v1077 = vadd.f32 %v1067, %v1071
        %v1078 = vadd.f32 %v1068, %v1071
        %v1079 = vadd.f32 %v1069, %v1071
        %v1080 = vmax.f32 %v1073, 0.0
        %v1081 = vmax.f32 %v1074, 0.0
        %v1082 = vmax.f32 %v1075, 0.0
        %v1083 = vmax.f32 %v1076, 0.0
        %v1084 = vmax.f32 %v1077, 0.0
        %v1085 = vmax.f32 %v1078, 0.0
        %v1086 = vmax.f32 %v1079, 0.0
        %v1087 = vld [vmem:[%s6] sm:$0xff]
        %v1088 = vld [vmem:[%s6 + $0x8] sm:$0xff]
        %v1089 = vld [vmem:[%s6 + $0x10] sm:$0xff]
        %v1090 = vld [vmem:[%s6 + $0x18] sm:$0xff]
        %v1091 = vld [vmem:[%s7] sm:$0x1]
        %v1093 = vperm.slane %v1091, 0
        %v1096 = vsel %vm897, %v1080, 0
        %v1099 = vsel %vm897, %v1081, 0
        %v1102 = vsel %vm897, %v1082, 0
        %v1105 = vsel %vm897, %v1083, 0
        %v1108 = vsel %vm897, %v1084, 0
        %v1111 = vsel %vm897, %v1085, 0
        %v1114 = vsel %vm897, %v1086, 0
        %1116 = vmatpush.msra.mxu0 0.0
        %1117 = vmatpush.msra.mxu0 0.0
        %1118 = vmatpush.msra.mxu0 0.0
        %1119 = vmatpush.msra.mxu0 0.0
        %1120 = vmatpush.msra.mxu0 0.0
        %1121 = vmatpush.msra.mxu0 0.0
        %1122 = vmatpush.msra.mxu0 0.0
        %1123 = vmatpush.msra.mxu0 0.0
        %1124 = vmatpush.msra.mxu0 0.0
        %1125 = vmatpush.msra.mxu0 0.0
        %1126 = vmatpush.msra.mxu0 0.0
        %1127 = vmatpush.msra.mxu0 0.0
        %1128 = vmatpush.msra.mxu0 %v1090
        %1129 = vmatpush.msra.mxu0 %v1089
        %1130 = vmatpush.msra.mxu0 %v1088
        %1131 = vmatpush.msra.mxu0 %v1087
        %1132 = vmatmul.f32.gmra.mxu0 %v1096
        %v1133 = vpop.f32.mrf.mxu0
        %v1134 = vadd.f32 %v1093, %v1133
        %1135 = vmatmul.f32.gmra.mxu0 %v1099
        %v1136 = vpop.f32.mrf.mxu0
        %v1137 = vadd.f32 %v1093, %v1136
        %1138 = vmatmul.f32.gmra.mxu0 %v1102
        %v1139 = vpop.f32.mrf.mxu0
        %v1140 = vadd.f32 %v1093, %v1139
        %1141 = vmatmul.f32.gmra.mxu0 %v1105
        %v1142 = vpop.f32.mrf.mxu0
        %v1143 = vadd.f32 %v1093, %v1142
        %1144 = vmatmul.f32.gmra.mxu0 %v1108
        %v1145 = vpop.f32.mrf.mxu0
        %v1146 = vadd.f32 %v1093, %v1145
        %1147 = vmatmul.f32.gmra.mxu0 %v1111
        %v1148 = vpop.f32.mrf.mxu0
        %v1149 = vadd.f32 %v1093, %v1148
        %1150 = vmatmul.f32.gmra.mxu0 %v1114
        %v1151 = vpop.f32.mrf.mxu0
        %v1152 = vadd.f32 %v1093, %v1151
        %1153 = vdwg.mxu0
        %v1154 = vld [vmem:[%s1] sm:$0xff]
        %v1155 = vld [vmem:[%s1 + $0x8] sm:$0xff]
        %v1156 = vld [vmem:[%s1 + $0x10] sm:$0xff]
        %v1157 = vld [vmem:[%s1 + $0x18] sm:$0xff]
        %v1158 = vld [vmem:[%s1 + $0x20] sm:$0xff]
        %v1159 = vld [vmem:[%s1 + $0x28] sm:$0xff]
        %v1160 = vld [vmem:[%s1 + $0x30] sm:$0x3]
        %v1161 = vadd.f32 %v1134, %v1154
        %v1162 = vadd.f32 %v1137, %v1155
        %v1163 = vadd.f32 %v1140, %v1156
        %v1164 = vadd.f32 %v1143, %v1157
        %v1165 = vadd.f32 %v1146, %v1158
        %v1166 = vadd.f32 %v1149, %v1159
        %v1167 = vadd.f32 %v1152, %v1160
        %v1168 = vld [vmem:[%s8] sm:$0xff]
        %v1169 = vld [vmem:[%s8 + $0x8] sm:$0xff]
        %v1170 = vld [vmem:[%s8 + $0x10] sm:$0xff]
        %v1171 = vld [vmem:[%s8 + $0x18] sm:$0xff]
        %v1172 = vld [vmem:[%s11] sm:$0x1]
        %v1174 = vperm.slane %v1172, 0
        %v1177 = vsel %vm897, %v1161, 0
        %v1180 = vsel %vm897, %v1162, 0
        %v1183 = vsel %vm897, %v1163, 0
        %v1186 = vsel %vm897, %v1164, 0
        %v1189 = vsel %vm897, %v1165, 0
        %v1192 = vsel %vm897, %v1166, 0
        %v1195 = vsel %vm897, %v1167, 0
        %1197 = vmatpush.msra.mxu0 0.0
        %1198 = vmatpush.msra.mxu0 0.0
        %1199 = vmatpush.msra.mxu0 0.0
        %1200 = vmatpush.msra.mxu0 0.0
        %1201 = vmatpush.msra.mxu0 0.0
        %1202 = vmatpush.msra.mxu0 0.0
        %1203 = vmatpush.msra.mxu0 0.0
        %1204 = vmatpush.msra.mxu0 0.0
        %1205 = vmatpush.msra.mxu0 0.0
        %1206 = vmatpush.msra.mxu0 0.0
        %1207 = vmatpush.msra.mxu0 0.0
        %1208 = vmatpush.msra.mxu0 0.0
        %1209 = vmatpush.msra.mxu0 %v1171
        %1210 = vmatpush.msra.mxu0 %v1170
        %1211 = vmatpush.msra.mxu0 %v1169
        %1212 = vmatpush.msra.mxu0 %v1168
        %1213 = vmatmul.f32.gmra.mxu0 %v1177
        %v1214 = vpop.f32.mrf.mxu0
        %v1215 = vadd.f32 %v1174, %v1214
        %1216 = vmatmul.f32.gmra.mxu0 %v1180
        %v1217 = vpop.f32.mrf.mxu0
        %v1218 = vadd.f32 %v1174, %v1217
        %1219 = vmatmul.f32.gmra.mxu0 %v1183
        %v1220 = vpop.f32.mrf.mxu0
        %v1221 = vadd.f32 %v1174, %v1220
        %1222 = vmatmul.f32.gmra.mxu0 %v1186
        %v1223 = vpop.f32.mrf.mxu0
        %v1224 = vadd.f32 %v1174, %v1223
        %1225 = vmatmul.f32.gmra.mxu0 %v1189
        %v1226 = vpop.f32.mrf.mxu0
        %v1227 = vadd.f32 %v1174, %v1226
        %1228 = vmatmul.f32.gmra.mxu0 %v1192
        %v1229 = vpop.f32.mrf.mxu0
        %v1230 = vadd.f32 %v1174, %v1229
        %1231 = vmatmul.f32.gmra.mxu0 %v1195
        %v1232 = vpop.f32.mrf.mxu0
        %v1233 = vadd.f32 %v1174, %v1232
        %1234 = vdwg.mxu0
        %v1235 = vmul.f32 %v1215, 0.35355338
        %v1236 = vmul.f32 %v1218, 0.35355338
        %v1237 = vmul.f32 %v1221, 0.35355338
        %v1238 = vmul.f32 %v1224, 0.35355338
        %v1239 = vmul.f32 %v1227, 0.35355338
        %v1240 = vmul.f32 %v1230, 0.35355338
        %v1241 = vmul.f32 %v1233, 0.35355338
        %v1242 = vld [vmem:[%s9] sm:$0xff]
        %v1243 = vld [vmem:[%s9 + $0x8] sm:$0xff]
        %v1244 = vld [vmem:[%s9 + $0x10] sm:$0xff]
        %v1245 = vld [vmem:[%s9 + $0x18] sm:$0xff]
        %v1246 = vld [vmem:[%s12] sm:$0x1]
        %v1248 = vperm.slane %v1246, 0
        %1250 = vmatpush.msra.mxu0 0.0
        %1251 = vmatpush.msra.mxu0 0.0
        %1252 = vmatpush.msra.mxu0 0.0
        %1253 = vmatpush.msra.mxu0 0.0
        %1254 = vmatpush.msra.mxu0 0.0
        %1255 = vmatpush.msra.mxu0 0.0
        %1256 = vmatpush.msra.mxu0 0.0
        %1257 = vmatpush.msra.mxu0 0.0
        %1258 = vmatpush.msra.mxu0 0.0
        %1259 = vmatpush.msra.mxu0 0.0
        %1260 = vmatpush.msra.mxu0 0.0
        %1261 = vmatpush.msra.mxu0 0.0
        %1262 = vmatpush.msra.mxu0 %v1245
        %1263 = vmatpush.msra.mxu0 %v1244
        %1264 = vmatpush.msra.mxu0 %v1243
        %1265 = vmatpush.msra.mxu0 %v1242
        %1266 = vmatmul.f32.gmra.mxu0 %v1177
        %v1267 = vpop.f32.mrf.mxu0
        %v1268 = vadd.f32 %v1248, %v1267
        %1269 = vmatmul.f32.gmra.mxu0 %v1180
        %v1270 = vpop.f32.mrf.mxu0
        %v1271 = vadd.f32 %v1248, %v1270
        %1272 = vmatmul.f32.gmra.mxu0 %v1183
        %v1273 = vpop.f32.mrf.mxu0
        %v1274 = vadd.f32 %v1248, %v1273
        %1275 = vmatmul.f32.gmra.mxu0 %v1186
        %v1276 = vpop.f32.mrf.mxu0
        %v1277 = vadd.f32 %v1248, %v1276
        %1278 = vmatmul.f32.gmra.mxu0 %v1189
        %v1279 = vpop.f32.mrf.mxu0
        %v1280 = vadd.f32 %v1248, %v1279
        %1281 = vmatmul.f32.gmra.mxu0 %v1192
        %v1282 = vpop.f32.mrf.mxu0
        %v1283 = vadd.f32 %v1248, %v1282
        %1284 = vmatmul.f32.gmra.mxu0 %v1195
        %v1285 = vpop.f32.mrf.mxu0
        %v1286 = vadd.f32 %v1248, %v1285
        %1287 = vdwg.mxu0
        %v1288 = vld [vmem:[%s10] sm:$0xff]
        %v1289 = vld [vmem:[%s10 + $0x8] sm:$0xff]
        %v1290 = vld [vmem:[%s10 + $0x10] sm:$0xff]
        %v1291 = vld [vmem:[%s10 + $0x18] sm:$0xff]
        %v1292 = vld [vmem:[%s13] sm:$0x1]
        %v1294 = vperm.slane %v1292, 0
        %1296 = vmatpush.msra.mxu0 0.0
        %1297 = vmatpush.msra.mxu0 0.0
        %1298 = vmatpush.msra.mxu0 0.0
        %1299 = vmatpush.msra.mxu0 0.0
        %1300 = vmatpush.msra.mxu0 0.0
        %1301 = vmatpush.msra.mxu0 0.0
        %1302 = vmatpush.msra.mxu0 0.0
        %1303 = vmatpush.msra.mxu0 0.0
        %1304 = vmatpush.msra.mxu0 0.0
        %1305 = vmatpush.msra.mxu0 0.0
        %1306 = vmatpush.msra.mxu0 0.0
        %1307 = vmatpush.msra.mxu0 0.0
        %1308 = vmatpush.msra.mxu0 %v1291
        %1309 = vmatpush.msra.mxu0 %v1290
        %1310 = vmatpush.msra.mxu0 %v1289
        %1311 = vmatpush.msra.mxu0 %v1288
        %1312 = vmatmul.f32.gmra.mxu0 %v1177
        %v1313 = vpop.f32.mrf.mxu0
        %v1314 = vadd.f32 %v1294, %v1313
        %1315 = vmatmul.f32.gmra.mxu0 %v1180
        %v1316 = vpop.f32.mrf.mxu0
        %v1317 = vadd.f32 %v1294, %v1316
        %1318 = vmatmul.f32.gmra.mxu0 %v1183
        %v1319 = vpop.f32.mrf.mxu0
        %v1320 = vadd.f32 %v1294, %v1319
        %1321 = vmatmul.f32.gmra.mxu0 %v1186
        %v1322 = vpop.f32.mrf.mxu0
        %v1323 = vadd.f32 %v1294, %v1322
        %1324 = vmatmul.f32.gmra.mxu0 %v1189
        %v1325 = vpop.f32.mrf.mxu0
        %v1326 = vadd.f32 %v1294, %v1325
        %1327 = vmatmul.f32.gmra.mxu0 %v1192
        %v1328 = vpop.f32.mrf.mxu0
        %v1329 = vadd.f32 %v1294, %v1328
        %1330 = vmatmul.f32.gmra.mxu0 %v1195
        %v1331 = vpop.f32.mrf.mxu0
        %v1332 = vadd.f32 %v1294, %v1331
        %1333 = vdwg.mxu0
        %vm1334 = vcmask 64512
        %v1336 = vsel %vm1334, %v1235, 0
        %v1339 = vsel %vm1334, %v1236, 0
        %v1342 = vsel %vm1334, %v1237, 0
        %v1345 = vsel %vm1334, %v1238, 0
        %v1348 = vsel %vm1334, %v1239, 0
        %v1351 = vsel %vm1334, %v1240, 0
        %v1354 = vsel %vm1334, %v1241, 0
        %v1357 = vsel %vm1334, %v1268, 0
        %v1360 = vsel %vm1334, %v1271, 0
        %v1363 = vsel %vm1334, %v1274, 0
        %v1366 = vsel %vm1334, %v1277, 0
        %v1369 = vsel %vm1334, %v1280, 0
        %v1372 = vsel %vm1334, %v1283, 0
        %v1375 = vsel %vm1334, %v1286, 0
        %1377 = vmatpush.xpose.msra.mxu0 0.0
        %1378 = vmatpush.xpose.msra.mxu0 0.0
        %1379 = vmatpush.xpose.msra.mxu0 0.0
        %1380 = vmatpush.xpose.msra.mxu0 0.0
        %1381 = vmatpush.xpose.msra.mxu0 0.0
        %1382 = vmatpush.xpose.msra.mxu0 0.0
        %1383 = vmatpush.xpose.msra.mxu0 0.0
        %1384 = vmatpush.xpose.msra.mxu0 0.0
        %1385 = vmatpush.xpose.msra.mxu0 0.0
        %1386 = vmatpush.xpose.msra.mxu0 %v1375
        %1387 = vmatpush.xpose.msra.mxu0 %v1372
        %1388 = vmatpush.xpose.msra.mxu0 %v1369
        %1389 = vmatpush.xpose.msra.mxu0 %v1366
        %1390 = vmatpush.xpose.msra.mxu0 %v1363
        %1391 = vmatpush.xpose.msra.mxu0 %v1360
        %1392 = vmatpush.xpose.msra.mxu0 %v1357
        %1393 = vmatmul.f32.gmra.mxu0 %v1336
        %v1394 = vpop.f32.mrf.mxu0
        %v1395 = vadd.f32 0.0, %v1394
        %1396 = vmatmul.f32.gmra.mxu0 %v1339
        %v1397 = vpop.f32.mrf.mxu0
        %v1398 = vadd.f32 0.0, %v1397
        %1399 = vmatmul.f32.gmra.mxu0 %v1342
        %v1400 = vpop.f32.mrf.mxu0
        %v1401 = vadd.f32 0.0, %v1400
        %1402 = vmatmul.f32.gmra.mxu0 %v1345
        %v1403 = vpop.f32.mrf.mxu0
        %v1404 = vadd.f32 0.0, %v1403
        %1405 = vmatmul.f32.gmra.mxu0 %v1348
        %v1406 = vpop.f32.mrf.mxu0
        %v1407 = vadd.f32 0.0, %v1406
        %1408 = vmatmul.f32.gmra.mxu0 %v1351
        %v1409 = vpop.f32.mrf.mxu0
        %v1410 = vadd.f32 0.0, %v1409
        %1411 = vmatmul.f32.gmra.mxu0 %v1354
        %v1412 = vpop.f32.mrf.mxu0
        %v1413 = vadd.f32 0.0, %v1412
        %1414 = vdwg.mxu0
        %vm1415 = vcmask 408576
        %v1416 = vsel %vm1415, %v1395, -inf
        %1417 = vmax.xlane.f32.xlu0 %v1416
        %v1418 = vpop.xlane.xlu0 %1417
        %v1419 = vsel %vm1415, %v1398, -inf
        %1420 = vmax.xlane.f32.xlu0 %v1419
        %v1421 = vpop.xlane.xlu0 %1420
        %v1422 = vsel %vm1415, %v1401, -inf
        %1423 = vmax.xlane.f32.xlu0 %v1422
        %v1424 = vpop.xlane.xlu0 %1423
        %v1425 = vsel %vm1415, %v1404, -inf
        %1426 = vmax.xlane.f32.xlu0 %v1425
        %v1427 = vpop.xlane.xlu0 %1426
        %v1428 = vsel %vm1415, %v1407, -inf
        %1429 = vmax.xlane.f32.xlu0 %v1428
        %v1430 = vpop.xlane.xlu0 %1429
        %v1431 = vsel %vm1415, %v1410, -inf
        %1432 = vmax.xlane.f32.xlu0 %v1431
        %v1433 = vpop.xlane.xlu0 %1432
        %vm1434 = vcmask 402432
        %v1435 = vsel %vm1434, %v1413, -inf
        %1436 = vmax.xlane.f32.xlu0 %v1435
        %v1437 = vpop.xlane.xlu0 %1436
        %v1438 = vsub.f32 %v1395, %v1418
        %v1439 = vsub.f32 %v1398, %v1421
        %v1440 = vsub.f32 %v1401, %v1424
        %v1441 = vsub.f32 %v1404, %v1427
        %v1442 = vsub.f32 %v1407, %v1430
        %v1443 = vsub.f32 %v1410, %v1433
        %v1444 = vsub.f32 %v1413, %v1437
        %v1445 = vmul.f32 %v1438, 1.442695
        %v1446 = vpow.pop %v1445
        %v1447 = vmul.f32 %v1439, 1.442695
        %v1448 = vpow.pop %v1447
        %v1449 = vmul.f32 %v1440, 1.442695
        %v1450 = vpow.pop %v1449
        %v1451 = vmul.f32 %v1441, 1.442695
        %v1452 = vpow.pop %v1451
        %v1453 = vmul.f32 %v1442, 1.442695
        %v1454 = vpow.pop %v1453
        %v1455 = vmul.f32 %v1443, 1.442695
        %v1456 = vpow.pop %v1455
        %v1457 = vmul.f32 %v1444, 1.442695
        %v1458 = vpow.pop %v1457
        %v1459 = vsel %vm1415, %v1446, 0.0
        %1460 = vadd.xlane.f32.xlu0 %v1459
        %v1461 = vpop.xlane.xlu0 %1460
        %v1462 = vsel %vm1415, %v1448, 0.0
        %1463 = vadd.xlane.f32.xlu0 %v1462
        %v1464 = vpop.xlane.xlu0 %1463
        %v1465 = vsel %vm1415, %v1450, 0.0
        %1466 = vadd.xlane.f32.xlu0 %v1465
        %v1467 = vpop.xlane.xlu0 %1466
        %v1468 = vsel %vm1415, %v1452, 0.0
        %1469 = vadd.xlane.f32.xlu0 %v1468
        %v1470 = vpop.xlane.xlu0 %1469
        %v1471 = vsel %vm1415, %v1454, 0.0
        %1472 = vadd.xlane.f32.xlu0 %v1471
        %v1473 = vpop.xlane.xlu0 %1472
        %v1474 = vsel %vm1415, %v1456, 0.0
        %1475 = vadd.xlane.f32.xlu0 %v1474
        %v1476 = vpop.xlane.xlu0 %1475
        %v1477 = vsel %vm1434, %v1458, 0.0
        %1478 = vadd.xlane.f32.xlu0 %v1477
        %v1479 = vpop.xlane.xlu0 %1478
        %v1480 = vrcp.pop %v1461
        %v1481 = vrcp.pop %v1464
        %v1482 = vrcp.pop %v1467
        %v1483 = vrcp.pop %v1470
        %v1484 = vrcp.pop %v1473
        %v1485 = vrcp.pop %v1476
        %v1486 = vrcp.pop %v1479
        %v1487 = vmul.f32 %v1446, %v1480
        %v1488 = vmul.f32 %v1448, %v1481
        %v1489 = vmul.f32 %v1450, %v1482
        %v1490 = vmul.f32 %v1452, %v1483
        %v1491 = vmul.f32 %v1454, %v1484
        %v1492 = vmul.f32 %v1456, %v1485
        %v1493 = vmul.f32 %v1458, %v1486
        %v1495 = vsel %vm1415, %v1487, 0
        %v1498 = vsel %vm1415, %v1488, 0
        %v1501 = vsel %vm1415, %v1489, 0
        %v1504 = vsel %vm1415, %v1490, 0
        %v1507 = vsel %vm1415, %v1491, 0
        %v1510 = vsel %vm1415, %v1492, 0
        %v1513 = vsel %vm1415, %v1493, 0
        %vm1515 = vcmask 1041408
        %v1517 = vsel %vm1515, %v1332, 0
        %1519 = vmatpush.msra.mxu0 0.0
        %1520 = vmatpush.msra.mxu0 0.0
        %1521 = vmatpush.msra.mxu0 0.0
        %1522 = vmatpush.msra.mxu0 0.0
        %1523 = vmatpush.msra.mxu0 0.0
        %1524 = vmatpush.msra.mxu0 0.0
        %1525 = vmatpush.msra.mxu0 0.0
        %1526 = vmatpush.msra.mxu0 0.0
        %1527 = vmatpush.msra.mxu0 0.0
        %1528 = vmatpush.msra.mxu0 %v1517
        %1529 = vmatpush.msra.mxu0 %v1329
        %1530 = vmatpush.msra.mxu0 %v1326
        %1531 = vmatpush.msra.mxu0 %v1323
        %1532 = vmatpush.msra.mxu0 %v1320
        %1533 = vmatpush.msra.mxu0 %v1317
        %1534 = vmatpush.msra.mxu0 %v1314
        %1535 = vmatmul.f32.gmra.mxu0 %v1495
        %v1536 = vpop.f32.mrf.mxu0
        %v1537 = vadd.f32 0.0, %v1536
        %1538 = vmatmul.f32.gmra.mxu0 %v1498
        %v1539 = vpop.f32.mrf.mxu0
        %v1540 = vadd.f32 0.0, %v1539
        %1541 = vmatmul.f32.gmra.mxu0 %v1501
        %v1542 = vpop.f32.mrf.mxu0
        %v1543 = vadd.f32 0.0, %v1542
        %1544 = vmatmul.f32.gmra.mxu0 %v1504
        %v1545 = vpop.f32.mrf.mxu0
        %v1546 = vadd.f32 0.0, %v1545
        %1547 = vmatmul.f32.gmra.mxu0 %v1507
        %v1548 = vpop.f32.mrf.mxu0
        %v1549 = vadd.f32 0.0, %v1548
        %1550 = vmatmul.f32.gmra.mxu0 %v1510
        %v1551 = vpop.f32.mrf.mxu0
        %v1552 = vadd.f32 0.0, %v1551
        %1553 = vmatmul.f32.gmra.mxu0 %v1513
        %v1554 = vpop.f32.mrf.mxu0
        %v1555 = vadd.f32 0.0, %v1554
        %1556 = vdwg.mxu0
        %1557 = vrot.lane.b32.xlu0 %v1235, 120
        %v1558 = vpop.permute.xlu0 %1557
        %1559 = vrot.lane.b32.xlu0 %v1236, 120
        %v1560 = vpop.permute.xlu0 %1559
        %1561 = vrot.lane.b32.xlu0 %v1237, 120
        %v1562 = vpop.permute.xlu0 %1561
        %1563 = vrot.lane.b32.xlu0 %v1238, 120
        %v1564 = vpop.permute.xlu0 %1563
        %1565 = vrot.lane.b32.xlu0 %v1239, 120
        %v1566 = vpop.permute.xlu0 %1565
        %1567 = vrot.lane.b32.xlu0 %v1240, 120
        %v1568 = vpop.permute.xlu0 %1567
        %1569 = vrot.lane.b32.xlu0 %v1241, 120
        %v1570 = vpop.permute.xlu0 %1569
        %1571 = vrot.lane.b32.xlu0 %v1268, 120
        %v1572 = vpop.permute.xlu0 %1571
        %1573 = vrot.lane.b32.xlu0 %v1271, 120
        %v1574 = vpop.permute.xlu0 %1573
        %1575 = vrot.lane.b32.xlu0 %v1274, 120
        %v1576 = vpop.permute.xlu0 %1575
        %1577 = vrot.lane.b32.xlu0 %v1277, 120
        %v1578 = vpop.permute.xlu0 %1577
        %1579 = vrot.lane.b32.xlu0 %v1280, 120
        %v1580 = vpop.permute.xlu0 %1579
        %1581 = vrot.lane.b32.xlu0 %v1283, 120
        %v1582 = vpop.permute.xlu0 %1581
        %1583 = vrot.lane.b32.xlu0 %v1286, 120
        %v1584 = vpop.permute.xlu0 %1583
        %v1585 = vsel %vm1334, %v1558, 0
        %v1587 = vsel %vm1334, %v1560, 0
        %v1589 = vsel %vm1334, %v1562, 0
        %v1591 = vsel %vm1334, %v1564, 0
        %v1593 = vsel %vm1334, %v1566, 0
        %v1595 = vsel %vm1334, %v1568, 0
        %v1597 = vsel %vm1334, %v1570, 0
        %v1599 = vsel %vm1334, %v1572, 0
        %v1601 = vsel %vm1334, %v1574, 0
        %v1603 = vsel %vm1334, %v1576, 0
        %v1605 = vsel %vm1334, %v1578, 0
        %v1607 = vsel %vm1334, %v1580, 0
        %v1609 = vsel %vm1334, %v1582, 0
        %v1611 = vsel %vm1334, %v1584, 0
        %1613 = vmatpush.xpose.msra.mxu0 0.0
        %1614 = vmatpush.xpose.msra.mxu0 0.0
        %1615 = vmatpush.xpose.msra.mxu0 0.0
        %1616 = vmatpush.xpose.msra.mxu0 0.0
        %1617 = vmatpush.xpose.msra.mxu0 0.0
        %1618 = vmatpush.xpose.msra.mxu0 0.0
        %1619 = vmatpush.xpose.msra.mxu0 0.0
        %1620 = vmatpush.xpose.msra.mxu0 0.0
        %1621 = vmatpush.xpose.msra.mxu0 0.0
        %1622 = vmatpush.xpose.msra.mxu0 %v1611
        %1623 = vmatpush.xpose.msra.mxu0 %v1609
        %1624 = vmatpush.xpose.msra.mxu0 %v1607
        %1625 = vmatpush.xpose.msra.mxu0 %v1605
        %1626 = vmatpush.xpose.msra.mxu0 %v1603
        %1627 = vmatpush.xpose.msra.mxu0 %v1601
        %1628 = vmatpush.xpose.msra.mxu0 %v1599
        %1629 = vmatmul.f32.gmra.mxu0 %v1585
        %v1630 = vpop.f32.mrf.mxu0
        %v1631 = vadd.f32 0.0, %v1630
        %1632 = vmatmul.f32.gmra.mxu0 %v1587
        %v1633 = vpop.f32.mrf.mxu0
        %v1634 = vadd.f32 0.0, %v1633
        %1635 = vmatmul.f32.gmra.mxu0 %v1589
        %v1636 = vpop.f32.mrf.mxu0
        %v1637 = vadd.f32 0.0, %v1636
        %1638 = vmatmul.f32.gmra.mxu0 %v1591
        %v1639 = vpop.f32.mrf.mxu0
        %v1640 = vadd.f32 0.0, %v1639
        %1641 = vmatmul.f32.gmra.mxu0 %v1593
        %v1642 = vpop.f32.mrf.mxu0
        %v1643 = vadd.f32 0.0, %v1642
        %1644 = vmatmul.f32.gmra.mxu0 %v1595
        %v1645 = vpop.f32.mrf.mxu0
        %v1646 = vadd.f32 0.0, %v1645
        %1647 = vmatmul.f32.gmra.mxu0 %v1597
        %v1648 = vpop.f32.mrf.mxu0
        %v1649 = vadd.f32 0.0, %v1648
        %1650 = vdwg.mxu0
        %v1651 = vsel %vm1415, %v1631, -inf
        %1652 = vmax.xlane.f32.xlu0 %v1651
        %v1653 = vpop.xlane.xlu0 %1652
        %v1654 = vsel %vm1415, %v1634, -inf
        %1655 = vmax.xlane.f32.xlu0 %v1654
        %v1656 = vpop.xlane.xlu0 %1655
        %v1657 = vsel %vm1415, %v1637, -inf
        %1658 = vmax.xlane.f32.xlu0 %v1657
        %v1659 = vpop.xlane.xlu0 %1658
        %v1660 = vsel %vm1415, %v1640, -inf
        %1661 = vmax.xlane.f32.xlu0 %v1660
        %v1662 = vpop.xlane.xlu0 %1661
        %v1663 = vsel %vm1415, %v1643, -inf
        %1664 = vmax.xlane.f32.xlu0 %v1663
        %v1665 = vpop.xlane.xlu0 %1664
        %v1666 = vsel %vm1415, %v1646, -inf
        %1667 = vmax.xlane.f32.xlu0 %v1666
        %v1668 = vpop.xlane.xlu0 %1667
        %v1669 = vsel %vm1434, %v1649, -inf
        %1670 = vmax.xlane.f32.xlu0 %v1669
        %v1671 = vpop.xlane.xlu0 %1670
        %v1672 = vsub.f32 %v1631, %v1653
        %v1673 = vsub.f32 %v1634, %v1656
        %v1674 = vsub.f32 %v1637, %v1659
        %v1675 = vsub.f32 %v1640, %v1662
        %v1676 = vsub.f32 %v1643, %v1665
        %v1677 = vsub.f32 %v1646, %v1668
        %v1678 = vsub.f32 %v1649, %v1671
        %v1679 = vmul.f32 %v1672, 1.442695
        %v1680 = vpow.pop %v1679
        %v1681 = vmul.f32 %v1673, 1.442695
        %v1682 = vpow.pop %v1681
        %v1683 = vmul.f32 %v1674, 1.442695
        %v1684 = vpow.pop %v1683
        %v1685 = vmul.f32 %v1675, 1.442695
        %v1686 = vpow.pop %v1685
        %v1687 = vmul.f32 %v1676, 1.442695
        %v1688 = vpow.pop %v1687
        %v1689 = vmul.f32 %v1677, 1.442695
        %v1690 = vpow.pop %v1689
        %v1691 = vmul.f32 %v1678, 1.442695
        %v1692 = vpow.pop %v1691
        %v1693 = vsel %vm1415, %v1680, 0.0
        %1694 = vadd.xlane.f32.xlu0 %v1693
        %v1695 = vpop.xlane.xlu0 %1694
        %v1696 = vsel %vm1415, %v1682, 0.0
        %1697 = vadd.xlane.f32.xlu0 %v1696
        %v1698 = vpop.xlane.xlu0 %1697
        %v1699 = vsel %vm1415, %v1684, 0.0
        %1700 = vadd.xlane.f32.xlu0 %v1699
        %v1701 = vpop.xlane.xlu0 %1700
        %v1702 = vsel %vm1415, %v1686, 0.0
        %1703 = vadd.xlane.f32.xlu0 %v1702
        %v1704 = vpop.xlane.xlu0 %1703
        %v1705 = vsel %vm1415, %v1688, 0.0
        %1706 = vadd.xlane.f32.xlu0 %v1705
        %v1707 = vpop.xlane.xlu0 %1706
        %v1708 = vsel %vm1415, %v1690, 0.0
        %1709 = vadd.xlane.f32.xlu0 %v1708
        %v1710 = vpop.xlane.xlu0 %1709
        %v1711 = vsel %vm1434, %v1692, 0.0
        %1712 = vadd.xlane.f32.xlu0 %v1711
        %v1713 = vpop.xlane.xlu0 %1712
        %v1714 = vrcp.pop %v1695
        %v1715 = vrcp.pop %v1698
        %v1716 = vrcp.pop %v1701
        %v1717 = vrcp.pop %v1704
        %v1718 = vrcp.pop %v1707
        %v1719 = vrcp.pop %v1710
        %v1720 = vrcp.pop %v1713
        %v1721 = vmul.f32 %v1680, %v1714
        %v1722 = vmul.f32 %v1682, %v1715
        %v1723 = vmul.f32 %v1684, %v1716
        %v1724 = vmul.f32 %v1686, %v1717
        %v1725 = vmul.f32 %v1688, %v1718
        %v1726 = vmul.f32 %v1690, %v1719
        %v1727 = vmul.f32 %v1692, %v1720
        %1734 = vrot.lane.b32.xlu0 %v1314, 120
        %v1735 = vpop.permute.xlu0 %1734
        %1736 = vrot.lane.b32.xlu0 %v1317, 120
        %v1737 = vpop.permute.xlu0 %1736
        %1738 = vrot.lane.b32.xlu0 %v1320, 120
        %v1739 = vpop.permute.xlu0 %1738
        %1740 = vrot.lane.b32.xlu0 %v1323, 120
        %v1741 = vpop.permute.xlu0 %1740
        %1742 = vrot.lane.b32.xlu0 %v1326, 120
        %v1743 = vpop.permute.xlu0 %1742
        %1744 = vrot.lane.b32.xlu0 %v1329, 120
        %v1745 = vpop.permute.xlu0 %1744
        %1746 = vrot.lane.b32.xlu0 %v1332, 120
        %v1747 = vpop.permute.xlu0 %1746
        %v1755 = vsel %vm1415, %v1721, 0
        %v1758 = vsel %vm1415, %v1722, 0
        %v1761 = vsel %vm1415, %v1723, 0
        %v1764 = vsel %vm1415, %v1724, 0
        %v1767 = vsel %vm1415, %v1725, 0
        %v1770 = vsel %vm1415, %v1726, 0
        %v1773 = vsel %vm1415, %v1727, 0
        %v1775 = vsel %vm1515, %v1747, 0
        %1777 = vmatpush.msra.mxu0 0.0
        %1778 = vmatpush.msra.mxu0 0.0
        %1779 = vmatpush.msra.mxu0 0.0
        %1780 = vmatpush.msra.mxu0 0.0
        %1781 = vmatpush.msra.mxu0 0.0
        %1782 = vmatpush.msra.mxu0 0.0
        %1783 = vmatpush.msra.mxu0 0.0
        %1784 = vmatpush.msra.mxu0 0.0
        %1785 = vmatpush.msra.mxu0 0.0
        %1786 = vmatpush.msra.mxu0 %v1775
        %1787 = vmatpush.msra.mxu0 %v1745
        %1788 = vmatpush.msra.mxu0 %v1743
        %1789 = vmatpush.msra.mxu0 %v1741
        %1790 = vmatpush.msra.mxu0 %v1739
        %1791 = vmatpush.msra.mxu0 %v1737
        %1792 = vmatpush.msra.mxu0 %v1735
        %1793 = vmatmul.f32.gmra.mxu0 %v1755
        %v1794 = vpop.f32.mrf.mxu0
        %v1795 = vadd.f32 0.0, %v1794
        %1796 = vmatmul.f32.gmra.mxu0 %v1758
        %v1797 = vpop.f32.mrf.mxu0
        %v1798 = vadd.f32 0.0, %v1797
        %1799 = vmatmul.f32.gmra.mxu0 %v1761
        %v1800 = vpop.f32.mrf.mxu0
        %v1801 = vadd.f32 0.0, %v1800
        %1802 = vmatmul.f32.gmra.mxu0 %v1764
        %v1803 = vpop.f32.mrf.mxu0
        %v1804 = vadd.f32 0.0, %v1803
        %1805 = vmatmul.f32.gmra.mxu0 %v1767
        %v1806 = vpop.f32.mrf.mxu0
        %v1807 = vadd.f32 0.0, %v1806
        %1808 = vmatmul.f32.gmra.mxu0 %v1770
        %v1809 = vpop.f32.mrf.mxu0
        %v1810 = vadd.f32 0.0, %v1809
        %1811 = vmatmul.f32.gmra.mxu0 %v1773
        %v1812 = vpop.f32.mrf.mxu0
        %v1813 = vadd.f32 0.0, %v1812
        %1814 = vdwg.mxu0
        %1815 = vrot.lane.b32.xlu0 %v1235, 112
        %v1816 = vpop.permute.xlu0 %1815
        %1817 = vrot.lane.b32.xlu0 %v1236, 112
        %v1818 = vpop.permute.xlu0 %1817
        %1819 = vrot.lane.b32.xlu0 %v1237, 112
        %v1820 = vpop.permute.xlu0 %1819
        %1821 = vrot.lane.b32.xlu0 %v1238, 112
        %v1822 = vpop.permute.xlu0 %1821
        %1823 = vrot.lane.b32.xlu0 %v1239, 112
        %v1824 = vpop.permute.xlu0 %1823
        %1825 = vrot.lane.b32.xlu0 %v1240, 112
        %v1826 = vpop.permute.xlu0 %1825
        %1827 = vrot.lane.b32.xlu0 %v1241, 112
        %v1828 = vpop.permute.xlu0 %1827
        %1829 = vrot.lane.b32.xlu0 %v1268, 112
        %v1830 = vpop.permute.xlu0 %1829
        %1831 = vrot.lane.b32.xlu0 %v1271, 112
        %v1832 = vpop.permute.xlu0 %1831
        %1833 = vrot.lane.b32.xlu0 %v1274, 112
        %v1834 = vpop.permute.xlu0 %1833
        %1835 = vrot.lane.b32.xlu0 %v1277, 112
        %v1836 = vpop.permute.xlu0 %1835
        %1837 = vrot.lane.b32.xlu0 %v1280, 112
        %v1838 = vpop.permute.xlu0 %1837
        %1839 = vrot.lane.b32.xlu0 %v1283, 112
        %v1840 = vpop.permute.xlu0 %1839
        %1841 = vrot.lane.b32.xlu0 %v1286, 112
        %v1842 = vpop.permute.xlu0 %1841
        %v1843 = vsel %vm1334, %v1816, 0
        %v1845 = vsel %vm1334, %v1818, 0
        %v1847 = vsel %vm1334, %v1820, 0
        %v1849 = vsel %vm1334, %v1822, 0
        %v1851 = vsel %vm1334, %v1824, 0
        %v1853 = vsel %vm1334, %v1826, 0
        %v1855 = vsel %vm1334, %v1828, 0
        %v1857 = vsel %vm1334, %v1830, 0
        %v1859 = vsel %vm1334, %v1832, 0
        %v1861 = vsel %vm1334, %v1834, 0
        %v1863 = vsel %vm1334, %v1836, 0
        %v1865 = vsel %vm1334, %v1838, 0
        %v1867 = vsel %vm1334, %v1840, 0
        %v1869 = vsel %vm1334, %v1842, 0
        %1871 = vmatpush.xpose.msra.mxu0 0.0
        %1872 = vmatpush.xpose.msra.mxu0 0.0
        %1873 = vmatpush.xpose.msra.mxu0 0.0
        %1874 = vmatpush.xpose.msra.mxu0 0.0
        %1875 = vmatpush.xpose.msra.mxu0 0.0
        %1876 = vmatpush.xpose.msra.mxu0 0.0
        %1877 = vmatpush.xpose.msra.mxu0 0.0
        %1878 = vmatpush.xpose.msra.mxu0 0.0
        %1879 = vmatpush.xpose.msra.mxu0 0.0
        %1880 = vmatpush.xpose.msra.mxu0 %v1869
        %1881 = vmatpush.xpose.msra.mxu0 %v1867
        %1882 = vmatpush.xpose.msra.mxu0 %v1865
        %1883 = vmatpush.xpose.msra.mxu0 %v1863
        %1884 = vmatpush.xpose.msra.mxu0 %v1861
        %1885 = vmatpush.xpose.msra.mxu0 %v1859
        %1886 = vmatpush.xpose.msra.mxu0 %v1857
        %1887 = vmatmul.f32.gmra.mxu0 %v1843
        %v1888 = vpop.f32.mrf.mxu0
        %v1889 = vadd.f32 0.0, %v1888
        %1890 = vmatmul.f32.gmra.mxu0 %v1845
        %v1891 = vpop.f32.mrf.mxu0
        %v1892 = vadd.f32 0.0, %v1891
        %1893 = vmatmul.f32.gmra.mxu0 %v1847
        %v1894 = vpop.f32.mrf.mxu0
        %v1895 = vadd.f32 0.0, %v1894
        %1896 = vmatmul.f32.gmra.mxu0 %v1849
        %v1897 = vpop.f32.mrf.mxu0
        %v1898 = vadd.f32 0.0, %v1897
        %1899 = vmatmul.f32.gmra.mxu0 %v1851
        %v1900 = vpop.f32.mrf.mxu0
        %v1901 = vadd.f32 0.0, %v1900
        %1902 = vmatmul.f32.gmra.mxu0 %v1853
        %v1903 = vpop.f32.mrf.mxu0
        %v1904 = vadd.f32 0.0, %v1903
        %1905 = vmatmul.f32.gmra.mxu0 %v1855
        %v1906 = vpop.f32.mrf.mxu0
        %v1907 = vadd.f32 0.0, %v1906
        %1908 = vdwg.mxu0
        %v1909 = vsel %vm1415, %v1889, -inf
        %1910 = vmax.xlane.f32.xlu0 %v1909
        %v1911 = vpop.xlane.xlu0 %1910
        %v1912 = vsel %vm1415, %v1892, -inf
        %1913 = vmax.xlane.f32.xlu0 %v1912
        %v1914 = vpop.xlane.xlu0 %1913
        %v1915 = vsel %vm1415, %v1895, -inf
        %1916 = vmax.xlane.f32.xlu0 %v1915
        %v1917 = vpop.xlane.xlu0 %1916
        %v1918 = vsel %vm1415, %v1898, -inf
        %1919 = vmax.xlane.f32.xlu0 %v1918
        %v1920 = vpop.xlane.xlu0 %1919
        %v1921 = vsel %vm1415, %v1901, -inf
        %1922 = vmax.xlane.f32.xlu0 %v1921
        %v1923 = vpop.xlane.xlu0 %1922
        %v1924 = vsel %vm1415, %v1904, -inf
        %1925 = vmax.xlane.f32.xlu0 %v1924
        %v1926 = vpop.xlane.xlu0 %1925
        %v1927 = vsel %vm1434, %v1907, -inf
        %1928 = vmax.xlane.f32.xlu0 %v1927
        %v1929 = vpop.xlane.xlu0 %1928
        %v1930 = vsub.f32 %v1889, %v1911
        %v1931 = vsub.f32 %v1892, %v1914
        %v1932 = vsub.f32 %v1895, %v1917
        %v1933 = vsub.f32 %v1898, %v1920
        %v1934 = vsub.f32 %v1901, %v1923
        %v1935 = vsub.f32 %v1904, %v1926
        %v1936 = vsub.f32 %v1907, %v1929
        %v1937 = vmul.f32 %v1930, 1.442695
        %v1938 = vpow.pop %v1937
        %v1939 = vmul.f32 %v1931, 1.442695
        %v1940 = vpow.pop %v1939
        %v1941 = vmul.f32 %v1932, 1.442695
        %v1942 = vpow.pop %v1941
        %v1943 = vmul.f32 %v1933, 1.442695
        %v1944 = vpow.pop %v1943
        %v1945 = vmul.f32 %v1934, 1.442695
        %v1946 = vpow.pop %v1945
        %v1947 = vmul.f32 %v1935, 1.442695
        %v1948 = vpow.pop %v1947
        %v1949 = vmul.f32 %v1936, 1.442695
        %v1950 = vpow.pop %v1949
        %v1951 = vsel %vm1415, %v1938, 0.0
        %1952 = vadd.xlane.f32.xlu0 %v1951
        %v1953 = vpop.xlane.xlu0 %1952
        %v1954 = vsel %vm1415, %v1940, 0.0
        %1955 = vadd.xlane.f32.xlu0 %v1954
        %v1956 = vpop.xlane.xlu0 %1955
        %v1957 = vsel %vm1415, %v1942, 0.0
        %1958 = vadd.xlane.f32.xlu0 %v1957
        %v1959 = vpop.xlane.xlu0 %1958
        %v1960 = vsel %vm1415, %v1944, 0.0
        %1961 = vadd.xlane.f32.xlu0 %v1960
        %v1962 = vpop.xlane.xlu0 %1961
        %v1963 = vsel %vm1415, %v1946, 0.0
        %1964 = vadd.xlane.f32.xlu0 %v1963
        %v1965 = vpop.xlane.xlu0 %1964
        %v1966 = vsel %vm1415, %v1948, 0.0
        %1967 = vadd.xlane.f32.xlu0 %v1966
        %v1968 = vpop.xlane.xlu0 %1967
        %v1969 = vsel %vm1434, %v1950, 0.0
        %1970 = vadd.xlane.f32.xlu0 %v1969
        %v1971 = vpop.xlane.xlu0 %1970
        %v1972 = vrcp.pop %v1953
        %v1973 = vrcp.pop %v1956
        %v1974 = vrcp.pop %v1959
        %v1975 = vrcp.pop %v1962
        %v1976 = vrcp.pop %v1965
        %v1977 = vrcp.pop %v1968
        %v1978 = vrcp.pop %v1971
        %v1979 = vmul.f32 %v1938, %v1972
        %v1980 = vmul.f32 %v1940, %v1973
        %v1981 = vmul.f32 %v1942, %v1974
        %v1982 = vmul.f32 %v1944, %v1975
        %v1983 = vmul.f32 %v1946, %v1976
        %v1984 = vmul.f32 %v1948, %v1977
        %v1985 = vmul.f32 %v1950, %v1978
        %1986 = vrot.lane.b32.xlu0 %v1314, 112
        %v1987 = vpop.permute.xlu0 %1986
        %1988 = vrot.lane.b32.xlu0 %v1317, 112
        %v1989 = vpop.permute.xlu0 %1988
        %1990 = vrot.lane.b32.xlu0 %v1320, 112
        %v1991 = vpop.permute.xlu0 %1990
        %1992 = vrot.lane.b32.xlu0 %v1323, 112
        %v1993 = vpop.permute.xlu0 %1992
        %1994 = vrot.lane.b32.xlu0 %v1326, 112
        %v1995 = vpop.permute.xlu0 %1994
        %1996 = vrot.lane.b32.xlu0 %v1329, 112
        %v1997 = vpop.permute.xlu0 %1996
        %1998 = vrot.lane.b32.xlu0 %v1332, 112
        %v1999 = vpop.permute.xlu0 %1998
        %v2007 = vsel %vm1415, %v1979, 0
        %v2010 = vsel %vm1415, %v1980, 0
        %v2013 = vsel %vm1415, %v1981, 0
        %v2016 = vsel %vm1415, %v1982, 0
        %v2019 = vsel %vm1415, %v1983, 0
        %v2022 = vsel %vm1415, %v1984, 0
        %v2025 = vsel %vm1415, %v1985, 0
        %v2027 = vsel %vm1515, %v1999, 0
        %2029 = vmatpush.msra.mxu0 0.0
        %2030 = vmatpush.msra.mxu0 0.0
        %2031 = vmatpush.msra.mxu0 0.0
        %2032 = vmatpush.msra.mxu0 0.0
        %2033 = vmatpush.msra.mxu0 0.0
        %2034 = vmatpush.msra.mxu0 0.0
        %2035 = vmatpush.msra.mxu0 0.0
        %2036 = vmatpush.msra.mxu0 0.0
        %2037 = vmatpush.msra.mxu0 0.0
        %2038 = vmatpush.msra.mxu0 %v2027
        %2039 = vmatpush.msra.mxu0 %v1997
        %2040 = vmatpush.msra.mxu0 %v1995
        %2041 = vmatpush.msra.mxu0 %v1993
        %2042 = vmatpush.msra.mxu0 %v1991
        %2043 = vmatpush.msra.mxu0 %v1989
        %2044 = vmatpush.msra.mxu0 %v1987
        %2045 = vmatmul.f32.gmra.mxu0 %v2007
        %v2046 = vpop.f32.mrf.mxu0
        %v2047 = vadd.f32 0.0, %v2046
        %2048 = vmatmul.f32.gmra.mxu0 %v2010
        %v2049 = vpop.f32.mrf.mxu0
        %v2050 = vadd.f32 0.0, %v2049
        %2051 = vmatmul.f32.gmra.mxu0 %v2013
        %v2052 = vpop.f32.mrf.mxu0
        %v2053 = vadd.f32 0.0, %v2052
        %2054 = vmatmul.f32.gmra.mxu0 %v2016
        %v2055 = vpop.f32.mrf.mxu0
        %v2056 = vadd.f32 0.0, %v2055
        %2057 = vmatmul.f32.gmra.mxu0 %v2019
        %v2058 = vpop.f32.mrf.mxu0
        %v2059 = vadd.f32 0.0, %v2058
        %2060 = vmatmul.f32.gmra.mxu0 %v2022
        %v2061 = vpop.f32.mrf.mxu0
        %v2062 = vadd.f32 0.0, %v2061
        %2063 = vmatmul.f32.gmra.mxu0 %v2025
        %v2064 = vpop.f32.mrf.mxu0
        %v2065 = vadd.f32 0.0, %v2064
        %2066 = vdwg.mxu0
        %2067 = vrot.lane.b32.xlu0 %v1235, 104
        %v2068 = vpop.permute.xlu0 %2067
        %2069 = vrot.lane.b32.xlu0 %v1236, 104
        %v2070 = vpop.permute.xlu0 %2069
        %2071 = vrot.lane.b32.xlu0 %v1237, 104
        %v2072 = vpop.permute.xlu0 %2071
        %2073 = vrot.lane.b32.xlu0 %v1238, 104
        %v2074 = vpop.permute.xlu0 %2073
        %2075 = vrot.lane.b32.xlu0 %v1239, 104
        %v2076 = vpop.permute.xlu0 %2075
        %2077 = vrot.lane.b32.xlu0 %v1240, 104
        %v2078 = vpop.permute.xlu0 %2077
        %2079 = vrot.lane.b32.xlu0 %v1241, 104
        %v2080 = vpop.permute.xlu0 %2079
        %2081 = vrot.lane.b32.xlu0 %v1268, 104
        %v2082 = vpop.permute.xlu0 %2081
        %2083 = vrot.lane.b32.xlu0 %v1271, 104
        %v2084 = vpop.permute.xlu0 %2083
        %2085 = vrot.lane.b32.xlu0 %v1274, 104
        %v2086 = vpop.permute.xlu0 %2085
        %2087 = vrot.lane.b32.xlu0 %v1277, 104
        %v2088 = vpop.permute.xlu0 %2087
        %2089 = vrot.lane.b32.xlu0 %v1280, 104
        %v2090 = vpop.permute.xlu0 %2089
        %2091 = vrot.lane.b32.xlu0 %v1283, 104
        %v2092 = vpop.permute.xlu0 %2091
        %2093 = vrot.lane.b32.xlu0 %v1286, 104
        %v2094 = vpop.permute.xlu0 %2093
        %v2095 = vsel %vm1334, %v2068, 0
        %v2097 = vsel %vm1334, %v2070, 0
        %v2099 = vsel %vm1334, %v2072, 0
        %v2101 = vsel %vm1334, %v2074, 0
        %v2103 = vsel %vm1334, %v2076, 0
        %v2105 = vsel %vm1334, %v2078, 0
        %v2107 = vsel %vm1334, %v2080, 0
        %v2109 = vsel %vm1334, %v2082, 0
        %v2111 = vsel %vm1334, %v2084, 0
        %v2113 = vsel %vm1334, %v2086, 0
        %v2115 = vsel %vm1334, %v2088, 0
        %v2117 = vsel %vm1334, %v2090, 0
        %v2119 = vsel %vm1334, %v2092, 0
        %v2121 = vsel %vm1334, %v2094, 0
        %2123 = vmatpush.xpose.msra.mxu0 0.0
        %2124 = vmatpush.xpose.msra.mxu0 0.0
        %2125 = vmatpush.xpose.msra.mxu0 0.0
        %2126 = vmatpush.xpose.msra.mxu0 0.0
        %2127 = vmatpush.xpose.msra.mxu0 0.0
        %2128 = vmatpush.xpose.msra.mxu0 0.0
        %2129 = vmatpush.xpose.msra.mxu0 0.0
        %2130 = vmatpush.xpose.msra.mxu0 0.0
        %2131 = vmatpush.xpose.msra.mxu0 0.0
        %2132 = vmatpush.xpose.msra.mxu0 %v2121
        %2133 = vmatpush.xpose.msra.mxu0 %v2119
        %2134 = vmatpush.xpose.msra.mxu0 %v2117
        %2135 = vmatpush.xpose.msra.mxu0 %v2115
        %2136 = vmatpush.xpose.msra.mxu0 %v2113
        %2137 = vmatpush.xpose.msra.mxu0 %v2111
        %2138 = vmatpush.xpose.msra.mxu0 %v2109
        %2139 = vmatmul.f32.gmra.mxu0 %v2095
        %v2140 = vpop.f32.mrf.mxu0
        %v2141 = vadd.f32 0.0, %v2140
        %2142 = vmatmul.f32.gmra.mxu0 %v2097
        %v2143 = vpop.f32.mrf.mxu0
        %v2144 = vadd.f32 0.0, %v2143
        %2145 = vmatmul.f32.gmra.mxu0 %v2099
        %v2146 = vpop.f32.mrf.mxu0
        %v2147 = vadd.f32 0.0, %v2146
        %2148 = vmatmul.f32.gmra.mxu0 %v2101
        %v2149 = vpop.f32.mrf.mxu0
        %v2150 = vadd.f32 0.0, %v2149
        %2151 = vmatmul.f32.gmra.mxu0 %v2103
        %v2152 = vpop.f32.mrf.mxu0
        %v2153 = vadd.f32 0.0, %v2152
        %2154 = vmatmul.f32.gmra.mxu0 %v2105
        %v2155 = vpop.f32.mrf.mxu0
        %v2156 = vadd.f32 0.0, %v2155
        %2157 = vmatmul.f32.gmra.mxu0 %v2107
        %v2158 = vpop.f32.mrf.mxu0
        %v2159 = vadd.f32 0.0, %v2158
        %2160 = vdwg.mxu0
        %v2161 = vsel %vm1415, %v2141, -inf
        %2162 = vmax.xlane.f32.xlu0 %v2161
        %v2163 = vpop.xlane.xlu0 %2162
        %v2164 = vsel %vm1415, %v2144, -inf
        %2165 = vmax.xlane.f32.xlu0 %v2164
        %v2166 = vpop.xlane.xlu0 %2165
        %v2167 = vsel %vm1415, %v2147, -inf
        %2168 = vmax.xlane.f32.xlu0 %v2167
        %v2169 = vpop.xlane.xlu0 %2168
        %v2170 = vsel %vm1415, %v2150, -inf
        %2171 = vmax.xlane.f32.xlu0 %v2170
        %v2172 = vpop.xlane.xlu0 %2171
        %v2173 = vsel %vm1415, %v2153, -inf
        %2174 = vmax.xlane.f32.xlu0 %v2173
        %v2175 = vpop.xlane.xlu0 %2174
        %v2176 = vsel %vm1415, %v2156, -inf
        %2177 = vmax.xlane.f32.xlu0 %v2176
        %v2178 = vpop.xlane.xlu0 %2177
        %v2179 = vsel %vm1434, %v2159, -inf
        %2180 = vmax.xlane.f32.xlu0 %v2179
        %v2181 = vpop.xlane.xlu0 %2180
        %v2182 = vsub.f32 %v2141, %v2163
        %v2183 = vsub.f32 %v2144, %v2166
        %v2184 = vsub.f32 %v2147, %v2169
        %v2185 = vsub.f32 %v2150, %v2172
        %v2186 = vsub.f32 %v2153, %v2175
        %v2187 = vsub.f32 %v2156, %v2178
        %v2188 = vsub.f32 %v2159, %v2181
        %v2189 = vmul.f32 %v2182, 1.442695
        %v2190 = vpow.pop %v2189
        %v2191 = vmul.f32 %v2183, 1.442695
        %v2192 = vpow.pop %v2191
        %v2193 = vmul.f32 %v2184, 1.442695
        %v2194 = vpow.pop %v2193
        %v2195 = vmul.f32 %v2185, 1.442695
        %v2196 = vpow.pop %v2195
        %v2197 = vmul.f32 %v2186, 1.442695
        %v2198 = vpow.pop %v2197
        %v2199 = vmul.f32 %v2187, 1.442695
        %v2200 = vpow.pop %v2199
        %v2201 = vmul.f32 %v2188, 1.442695
        %v2202 = vpow.pop %v2201
        %v2203 = vsel %vm1415, %v2190, 0.0
        %2204 = vadd.xlane.f32.xlu0 %v2203
        %v2205 = vpop.xlane.xlu0 %2204
        %v2206 = vsel %vm1415, %v2192, 0.0
        %2207 = vadd.xlane.f32.xlu0 %v2206
        %v2208 = vpop.xlane.xlu0 %2207
        %v2209 = vsel %vm1415, %v2194, 0.0
        %2210 = vadd.xlane.f32.xlu0 %v2209
        %v2211 = vpop.xlane.xlu0 %2210
        %v2212 = vsel %vm1415, %v2196, 0.0
        %2213 = vadd.xlane.f32.xlu0 %v2212
        %v2214 = vpop.xlane.xlu0 %2213
        %v2215 = vsel %vm1415, %v2198, 0.0
        %2216 = vadd.xlane.f32.xlu0 %v2215
        %v2217 = vpop.xlane.xlu0 %2216
        %v2218 = vsel %vm1415, %v2200, 0.0
        %2219 = vadd.xlane.f32.xlu0 %v2218
        %v2220 = vpop.xlane.xlu0 %2219
        %v2221 = vsel %vm1434, %v2202, 0.0
        %2222 = vadd.xlane.f32.xlu0 %v2221
        %v2223 = vpop.xlane.xlu0 %2222
        %v2224 = vrcp.pop %v2205
        %v2225 = vrcp.pop %v2208
        %v2226 = vrcp.pop %v2211
        %v2227 = vrcp.pop %v2214
        %v2228 = vrcp.pop %v2217
        %v2229 = vrcp.pop %v2220
        %v2230 = vrcp.pop %v2223
        %v2231 = vmul.f32 %v2190, %v2224
        %v2232 = vmul.f32 %v2192, %v2225
        %v2233 = vmul.f32 %v2194, %v2226
        %v2234 = vmul.f32 %v2196, %v2227
        %v2235 = vmul.f32 %v2198, %v2228
        %v2236 = vmul.f32 %v2200, %v2229
        %v2237 = vmul.f32 %v2202, %v2230
        %2238 = vrot.lane.b32.xlu0 %v1314, 104
        %v2239 = vpop.permute.xlu0 %2238
        %2240 = vrot.lane.b32.xlu0 %v1317, 104
        %v2241 = vpop.permute.xlu0 %2240
        %2242 = vrot.lane.b32.xlu0 %v1320, 104
        %v2243 = vpop.permute.xlu0 %2242
        %2244 = vrot.lane.b32.xlu0 %v1323, 104
        %v2245 = vpop.permute.xlu0 %2244
        %2246 = vrot.lane.b32.xlu0 %v1326, 104
        %v2247 = vpop.permute.xlu0 %2246
        %2248 = vrot.lane.b32.xlu0 %v1329, 104
        %v2249 = vpop.permute.xlu0 %2248
        %2250 = vrot.lane.b32.xlu0 %v1332, 104
        %v2251 = vpop.permute.xlu0 %2250
        %v2259 = vsel %vm1415, %v2231, 0
        %v2262 = vsel %vm1415, %v2232, 0
        %v2265 = vsel %vm1415, %v2233, 0
        %v2268 = vsel %vm1415, %v2234, 0
        %v2271 = vsel %vm1415, %v2235, 0
        %v2274 = vsel %vm1415, %v2236, 0
        %v2277 = vsel %vm1415, %v2237, 0
        %v2279 = vsel %vm1515, %v2251, 0
        %2281 = vmatpush.msra.mxu0 0.0
        %2282 = vmatpush.msra.mxu0 0.0
        %2283 = vmatpush.msra.mxu0 0.0
        %2284 = vmatpush.msra.mxu0 0.0
        %2285 = vmatpush.msra.mxu0 0.0
        %2286 = vmatpush.msra.mxu0 0.0
        %2287 = vmatpush.msra.mxu0 0.0
        %2288 = vmatpush.msra.mxu0 0.0
        %2289 = vmatpush.msra.mxu0 0.0
        %2290 = vmatpush.msra.mxu0 %v2279
        %2291 = vmatpush.msra.mxu0 %v2249
        %2292 = vmatpush.msra.mxu0 %v2247
        %2293 = vmatpush.msra.mxu0 %v2245
        %2294 = vmatpush.msra.mxu0 %v2243
        %2295 = vmatpush.msra.mxu0 %v2241
        %2296 = vmatpush.msra.mxu0 %v2239
        %2297 = vmatmul.f32.gmra.mxu0 %v2259
        %v2298 = vpop.f32.mrf.mxu0
        %v2299 = vadd.f32 0.0, %v2298
        %2300 = vmatmul.f32.gmra.mxu0 %v2262
        %v2301 = vpop.f32.mrf.mxu0
        %v2302 = vadd.f32 0.0, %v2301
        %2303 = vmatmul.f32.gmra.mxu0 %v2265
        %v2304 = vpop.f32.mrf.mxu0
        %v2305 = vadd.f32 0.0, %v2304
        %2306 = vmatmul.f32.gmra.mxu0 %v2268
        %v2307 = vpop.f32.mrf.mxu0
        %v2308 = vadd.f32 0.0, %v2307
        %2309 = vmatmul.f32.gmra.mxu0 %v2271
        %v2310 = vpop.f32.mrf.mxu0
        %v2311 = vadd.f32 0.0, %v2310
        %2312 = vmatmul.f32.gmra.mxu0 %v2274
        %v2313 = vpop.f32.mrf.mxu0
        %v2314 = vadd.f32 0.0, %v2313
        %2315 = vmatmul.f32.gmra.mxu0 %v2277
        %v2316 = vpop.f32.mrf.mxu0
        %v2317 = vadd.f32 0.0, %v2316
        %2318 = vdwg.mxu0
        %2326 = vrot.lane.b32.xlu0 %v1795, 8
        %v2327 = vpop.permute.xlu0 %2326
        %2328 = vrot.lane.b32.xlu0 %v1798, 8
        %v2329 = vpop.permute.xlu0 %2328
        %2330 = vrot.lane.b32.xlu0 %v1801, 8
        %v2331 = vpop.permute.xlu0 %2330
        %2332 = vrot.lane.b32.xlu0 %v1804, 8
        %v2333 = vpop.permute.xlu0 %2332
        %2334 = vrot.lane.b32.xlu0 %v1807, 8
        %v2335 = vpop.permute.xlu0 %2334
        %2336 = vrot.lane.b32.xlu0 %v1810, 8
        %v2337 = vpop.permute.xlu0 %2336
        %2338 = vrot.lane.b32.xlu0 %v1813, 8
        %v2339 = vpop.permute.xlu0 %2338
        %2354 = vrot.lane.b32.xlu0 %v2047, 16
        %v2355 = vpop.permute.xlu0 %2354
        %2356 = vrot.lane.b32.xlu0 %v2050, 16
        %v2357 = vpop.permute.xlu0 %2356
        %2358 = vrot.lane.b32.xlu0 %v2053, 16
        %v2359 = vpop.permute.xlu0 %2358
        %2360 = vrot.lane.b32.xlu0 %v2056, 16
        %v2361 = vpop.permute.xlu0 %2360
        %2362 = vrot.lane.b32.xlu0 %v2059, 16
        %v2363 = vpop.permute.xlu0 %2362
        %2364 = vrot.lane.b32.xlu0 %v2062, 16
        %v2365 = vpop.permute.xlu0 %2364
        %2366 = vrot.lane.b32.xlu0 %v2065, 16
        %v2367 = vpop.permute.xlu0 %2366
        %2382 = vrot.lane.b32.xlu0 %v2299, 24
        %v2383 = vpop.permute.xlu0 %2382
        %2384 = vrot.lane.b32.xlu0 %v2302, 24
        %v2385 = vpop.permute.xlu0 %2384
        %2386 = vrot.lane.b32.xlu0 %v2305, 24
        %v2387 = vpop.permute.xlu0 %2386
        %2388 = vrot.lane.b32.xlu0 %v2308, 24
        %v2389 = vpop.permute.xlu0 %2388
        %2390 = vrot.lane.b32.xlu0 %v2311, 24
        %v2391 = vpop.permute.xlu0 %2390
        %2392 = vrot.lane.b32.xlu0 %v2314, 24
        %v2393 = vpop.permute.xlu0 %2392
        %2394 = vrot.lane.b32.xlu0 %v2317, 24
        %v2395 = vpop.permute.xlu0 %2394
        %v2403 = vsel %vm1334, %v1537, %v2327
        %v2404 = vsel %vm1334, %v1540, %v2329
        %v2405 = vsel %vm1334, %v1543, %v2331
        %v2406 = vsel %vm1334, %v1546, %v2333
        %v2407 = vsel %vm1334, %v1549, %v2335
        %v2408 = vsel %vm1334, %v1552, %v2337
        %v2409 = vsel %vm1334, %v1555, %v2339
        %vm2410 = vcmask 130048
        %v2411 = vsel %vm2410, %v2403, %v2355
        %v2412 = vsel %vm2410, %v2404, %v2357
        %v2413 = vsel %vm2410, %v2405, %v2359
        %v2414 = vsel %vm2410, %v2406, %v2361
        %v2415 = vsel %vm2410, %v2407, %v2363
        %v2416 = vsel %vm2410, %v2408, %v2365
        %v2417 = vsel %vm2410, %v2409, %v2367
        %v2418 = vsel %vm835, %v2411, %v2383
        %v2419 = vsel %vm835, %v2412, %v2385
        %v2420 = vsel %vm835, %v2413, %v2387
        %v2421 = vsel %vm835, %v2414, %v2389
        %v2422 = vsel %vm835, %v2415, %v2391
        %v2423 = vsel %vm835, %v2416, %v2393
        %v2424 = vsel %vm835, %v2417, %v2395
        %v2425 = vld [vmem:[#allocation4] sm:$0xff]
        %v2426 = vld [vmem:[#allocation4 + $0x8] sm:$0xff]
        %v2427 = vld [vmem:[#allocation4 + $0x10] sm:$0xff]
        %v2428 = vld [vmem:[#allocation4 + $0x18] sm:$0xff]
        %v2429 = vld [vmem:[%s15] sm:$0x1]
        %v2431 = vperm.slane %v2429, 0
        %v2434 = vsel %vm897, %v2418, 0
        %v2437 = vsel %vm897, %v2419, 0
        %v2440 = vsel %vm897, %v2420, 0
        %v2443 = vsel %vm897, %v2421, 0
        %v2446 = vsel %vm897, %v2422, 0
        %v2449 = vsel %vm897, %v2423, 0
        %v2452 = vsel %vm897, %v2424, 0
        %2454 = vmatpush.msra.mxu0 0.0
        %2455 = vmatpush.msra.mxu0 0.0
        %2456 = vmatpush.msra.mxu0 0.0
        %2457 = vmatpush.msra.mxu0 0.0
        %2458 = vmatpush.msra.mxu0 0.0
        %2459 = vmatpush.msra.mxu0 0.0
        %2460 = vmatpush.msra.mxu0 0.0
        %2461 = vmatpush.msra.mxu0 0.0
        %2462 = vmatpush.msra.mxu0 0.0
        %2463 = vmatpush.msra.mxu0 0.0
        %2464 = vmatpush.msra.mxu0 0.0
        %2465 = vmatpush.msra.mxu0 0.0
        %2466 = vmatpush.msra.mxu0 %v2428
        %2467 = vmatpush.msra.mxu0 %v2427
        %2468 = vmatpush.msra.mxu0 %v2426
        %2469 = vmatpush.msra.mxu0 %v2425
        %2470 = vmatmul.f32.gmra.mxu0 %v2434
        %v2471 = vpop.f32.mrf.mxu0
        %v2472 = vadd.f32 %v2431, %v2471
        %2473 = vmatmul.f32.gmra.mxu0 %v2437
        %v2474 = vpop.f32.mrf.mxu0
        %v2475 = vadd.f32 %v2431, %v2474
        %2476 = vmatmul.f32.gmra.mxu0 %v2440
        %v2477 = vpop.f32.mrf.mxu0
        %v2478 = vadd.f32 %v2431, %v2477
        %2479 = vmatmul.f32.gmra.mxu0 %v2443
        %v2480 = vpop.f32.mrf.mxu0
        %v2481 = vadd.f32 %v2431, %v2480
        %2482 = vmatmul.f32.gmra.mxu0 %v2446
        %v2483 = vpop.f32.mrf.mxu0
        %v2484 = vadd.f32 %v2431, %v2483
        %2485 = vmatmul.f32.gmra.mxu0 %v2449
        %v2486 = vpop.f32.mrf.mxu0
        %v2487 = vadd.f32 %v2431, %v2486
        %2488 = vmatmul.f32.gmra.mxu0 %v2452
        %v2489 = vpop.f32.mrf.mxu0
        %v2490 = vadd.f32 %v2431, %v2489
        %2491 = vdwg.mxu0
        %v2492 = vadd.f32 %v1161, %v2472
        %v2493 = vadd.f32 %v1162, %v2475
        %v2494 = vadd.f32 %v1163, %v2478
        %v2495 = vadd.f32 %v1164, %v2481
        %v2496 = vadd.f32 %v1165, %v2484
        %v2497 = vadd.f32 %v1166, %v2487
        %v2498 = vadd.f32 %v1167, %v2490
        %v2499 = vld [vmem:[%s16] sm:$0x1]
        %v2500 = vld [vmem:[%s17] sm:$0x1]
        %v2501 = vsel %vm897, %v2492, 0.0
        %2502 = vadd.xlane.f32.xlu0 %v2501
        %v2503 = vpop.xlane.xlu0 %2502
        %v2504 = vsel %vm897, %v2493, 0.0
        %2505 = vadd.xlane.f32.xlu0 %v2504
        %v2506 = vpop.xlane.xlu0 %2505
        %v2507 = vsel %vm897, %v2494, 0.0
        %2508 = vadd.xlane.f32.xlu0 %v2507
        %v2509 = vpop.xlane.xlu0 %2508
        %v2510 = vsel %vm897, %v2495, 0.0
        %2511 = vadd.xlane.f32.xlu0 %v2510
        %v2512 = vpop.xlane.xlu0 %2511
        %v2513 = vsel %vm897, %v2496, 0.0
        %2514 = vadd.xlane.f32.xlu0 %v2513
        %v2515 = vpop.xlane.xlu0 %2514
        %v2516 = vsel %vm897, %v2497, 0.0
        %2517 = vadd.xlane.f32.xlu0 %v2516
        %v2518 = vpop.xlane.xlu0 %2517
        %v2519 = vsel %vm916, %v2498, 0.0
        %2520 = vadd.xlane.f32.xlu0 %v2519
        %v2521 = vpop.xlane.xlu0 %2520
        %v2522 = vmul.f32 %v2503, %v926
        %v2523 = vmul.f32 %v2506, %v926
        %v2524 = vmul.f32 %v2509, %v926
        %v2525 = vmul.f32 %v2512, %v926
        %v2526 = vmul.f32 %v2515, %v926
        %v2527 = vmul.f32 %v2518, %v926
        %v2528 = vmul.f32 %v2521, %v926
        %v2529 = vsub.f32 %v2492, %v2522
        %v2530 = vsub.f32 %v2493, %v2523
        %v2531 = vsub.f32 %v2494, %v2524
        %v2532 = vsub.f32 %v2495, %v2525
        %v2533 = vsub.f32 %v2496, %v2526
        %v2534 = vsub.f32 %v2497, %v2527
        %v2535 = vsub.f32 %v2498, %v2528
        %v2536 = vmul.f32 %v2529, %v2529
        %v2537 = vmul.f32 %v2530, %v2530
        %v2538 = vmul.f32 %v2531, %v2531
        %v2539 = vmul.f32 %v2532, %v2532
        %v2540 = vmul.f32 %v2533, %v2533
        %v2541 = vmul.f32 %v2534, %v2534
        %v2542 = vmul.f32 %v2535, %v2535
        %v2543 = vsel %vm897, %v2536, 0.0
        %2544 = vadd.xlane.f32.xlu0 %v2543
        %v2545 = vpop.xlane.xlu0 %2544
        %v2546 = vsel %vm897, %v2537, 0.0
        %2547 = vadd.xlane.f32.xlu0 %v2546
        %v2548 = vpop.xlane.xlu0 %2547
        %v2549 = vsel %vm897, %v2538, 0.0
        %2550 = vadd.xlane.f32.xlu0 %v2549
        %v2551 = vpop.xlane.xlu0 %2550
        %v2552 = vsel %vm897, %v2539, 0.0
        %2553 = vadd.xlane.f32.xlu0 %v2552
        %v2554 = vpop.xlane.xlu0 %2553
        %v2555 = vsel %vm897, %v2540, 0.0
        %2556 = vadd.xlane.f32.xlu0 %v2555
        %v2557 = vpop.xlane.xlu0 %2556
        %v2558 = vsel %vm897, %v2541, 0.0
        %2559 = vadd.xlane.f32.xlu0 %v2558
        %v2560 = vpop.xlane.xlu0 %2559
        %v2561 = vsel %vm916, %v2542, 0.0
        %2562 = vadd.xlane.f32.xlu0 %v2561
        %v2563 = vpop.xlane.xlu0 %2562
        %v2564 = vmul.f32 %v2545, %v926
        %v2565 = vmul.f32 %v2548, %v926
        %v2566 = vmul.f32 %v2551, %v926
        %v2567 = vmul.f32 %v2554, %v926
        %v2568 = vmul.f32 %v2557, %v926
        %v2569 = vmul.f32 %v2560, %v926
        %v2570 = vmul.f32 %v2563, %v926
        %v2571 = vadd.f32 %v2564, 1e-05
        %v2572 = vadd.f32 %v2565, 1e-05
        %v2573 = vadd.f32 %v2566, 1e-05
        %v2574 = vadd.f32 %v2567, 1e-05
        %v2575 = vadd.f32 %v2568, 1e-05
        %v2576 = vadd.f32 %v2569, 1e-05
        %v2577 = vadd.f32 %v2570, 1e-05
        %v2578 = vrsqrt.pop %v2571
        %v2579 = vmul.f32 %v2578, %v2571
        %v2580 = vmul.f32 %v2579, %v2578
        %v2581 = vmul.f32 0.5, %v2580
        %v2582 = vsub.f32 1.5, %v2581
        %v2583 = vmul.f32 %v2578, %v2582
        %vm2584 = vweird.f32 %v2571
        %vm2585 = vweird.f32 %v2578
        %vm2586 = vmor %vm2584, %vm2585
        %v2587 = vsel %vm2586, %v2578, %v2583
        %v2588 = vrsqrt.pop %v2572
        %v2589 = vmul.f32 %v2588, %v2572
        %v2590 = vmul.f32 %v2589, %v2588
        %v2591 = vmul.f32 0.5, %v2590
        %v2592 = vsub.f32 1.5, %v2591
        %v2593 = vmul.f32 %v2588, %v2592
        %vm2594 = vweird.f32 %v2572
        %vm2595 = vweird.f32 %v2588
        %vm2596 = vmor %vm2594, %vm2595
        %v2597 = vsel %vm2596, %v2588, %v2593
        %v2598 = vrsqrt.pop %v2573
        %v2599 = vmul.f32 %v2598, %v2573
        %v2600 = vmul.f32 %v2599, %v2598
        %v2601 = vmul.f32 0.5, %v2600
        %v2602 = vsub.f32 1.5, %v2601
        %v2603 = vmul.f32 %v2598, %v2602
        %vm2604 = vweird.f32 %v2573
        %vm2605 = vweird.f32 %v2598
        %vm2606 = vmor %vm2604, %vm2605
        %v2607 = vsel %vm2606, %v2598, %v2603
        %v2608 = vrsqrt.pop %v2574
        %v2609 = vmul.f32 %v2608, %v2574
        %v2610 = vmul.f32 %v2609, %v2608
        %v2611 = vmul.f32 0.5, %v2610
        %v2612 = vsub.f32 1.5, %v2611
        %v2613 = vmul.f32 %v2608, %v2612
        %vm2614 = vweird.f32 %v2574
        %vm2615 = vweird.f32 %v2608
        %vm2616 = vmor %vm2614, %vm2615
        %v2617 = vsel %vm2616, %v2608, %v2613
        %v2618 = vrsqrt.pop %v2575
        %v2619 = vmul.f32 %v2618, %v2575
        %v2620 = vmul.f32 %v2619, %v2618
        %v2621 = vmul.f32 0.5, %v2620
        %v2622 = vsub.f32 1.5, %v2621
        %v2623 = vmul.f32 %v2618, %v2622
        %vm2624 = vweird.f32 %v2575
        %vm2625 = vweird.f32 %v2618
        %vm2626 = vmor %vm2624, %vm2625
        %v2627 = vsel %vm2626, %v2618, %v2623
        %v2628 = vrsqrt.pop %v2576
        %v2629 = vmul.f32 %v2628, %v2576
        %v2630 = vmul.f32 %v2629, %v2628
        %v2631 = vmul.f32 0.5, %v2630
        %v2632 = vsub.f32 1.5, %v2631
        %v2633 = vmul.f32 %v2628, %v2632
        %vm2634 = vweird.f32 %v2576
        %vm2635 = vweird.f32 %v2628
        %vm2636 = vmor %vm2634, %vm2635
        %v2637 = vsel %vm2636, %v2628, %v2633
        %v2638 = vrsqrt.pop %v2577
        %v2639 = vmul.f32 %v2638, %v2577
        %v2640 = vmul.f32 %v2639, %v2638
        %v2641 = vmul.f32 0.5, %v2640
        %v2642 = vsub.f32 1.5, %v2641
        %v2643 = vmul.f32 %v2638, %v2642
        %vm2644 = vweird.f32 %v2577
        %vm2645 = vweird.f32 %v2638
        %vm2646 = vmor %vm2644, %vm2645
        %v2647 = vsel %vm2646, %v2638, %v2643
        %v2648 = vmul.f32 %v2529, %v2587
        %v2649 = vmul.f32 %v2530, %v2597
        %v2650 = vmul.f32 %v2531, %v2607
        %v2651 = vmul.f32 %v2532, %v2617
        %v2652 = vmul.f32 %v2533, %v2627
        %v2653 = vmul.f32 %v2534, %v2637
        %v2654 = vmul.f32 %v2535, %v2647
        %v2656 = vperm.slane %v2499, 0
        %v2658 = vmul.f32 %v2648, %v2656
        %v2659 = vmul.f32 %v2649, %v2656
        %v2660 = vmul.f32 %v2650, %v2656
        %v2661 = vmul.f32 %v2651, %v2656
        %v2662 = vmul.f32 %v2652, %v2656
        %v2663 = vmul.f32 %v2653, %v2656
        %v2664 = vmul.f32 %v2654, %v2656
        %v2666 = vperm.slane %v2500, 0
        %v2668 = vadd.f32 %v2658, %v2666
        %v2669 = vadd.f32 %v2659, %v2666
        %v2670 = vadd.f32 %v2660, %v2666
        %v2671 = vadd.f32 %v2661, %v2666
        %v2672 = vadd.f32 %v2662, %v2666
        %v2673 = vadd.f32 %v2663, %v2666
        %v2674 = vadd.f32 %v2664, %v2666
        %v2675 = vld [vmem:[#allocation6] sm:$0xff]
        %v2676 = vld [vmem:[#allocation6 + $0x8] sm:$0xff]
        %v2677 = vld [vmem:[#allocation6 + $0x10] sm:$0xff]
        %v2678 = vld [vmem:[#allocation6 + $0x18] sm:$0xff]
        %v2679 = vld [vmem:[%s19] sm:$0x1]
        %v2681 = vperm.slane %v2679, 0
        %v2684 = vsel %vm897, %v2668, 0
        %v2687 = vsel %vm897, %v2669, 0
        %v2690 = vsel %vm897, %v2670, 0
        %v2693 = vsel %vm897, %v2671, 0
        %v2696 = vsel %vm897, %v2672, 0
        %v2699 = vsel %vm897, %v2673, 0
        %v2702 = vsel %vm897, %v2674, 0
        %2704 = vmatpush.msra.mxu0 0.0
        %2705 = vmatpush.msra.mxu0 0.0
        %2706 = vmatpush.msra.mxu0 0.0
        %2707 = vmatpush.msra.mxu0 0.0
        %2708 = vmatpush.msra.mxu0 0.0
        %2709 = vmatpush.msra.mxu0 0.0
        %2710 = vmatpush.msra.mxu0 0.0
        %2711 = vmatpush.msra.mxu0 0.0
        %2712 = vmatpush.msra.mxu0 0.0
        %2713 = vmatpush.msra.mxu0 0.0
        %2714 = vmatpush.msra.mxu0 0.0
        %2715 = vmatpush.msra.mxu0 0.0
        %2716 = vmatpush.msra.mxu0 %v2678
        %2717 = vmatpush.msra.mxu0 %v2677
        %2718 = vmatpush.msra.mxu0 %v2676
        %2719 = vmatpush.msra.mxu0 %v2675
        %2720 = vmatmul.f32.gmra.mxu0 %v2684
        %v2721 = vpop.f32.mrf.mxu0
        %v2722 = vadd.f32 %v2681, %v2721
        %2723 = vmatmul.f32.gmra.mxu0 %v2687
        %v2724 = vpop.f32.mrf.mxu0
        %v2725 = vadd.f32 %v2681, %v2724
        %2726 = vmatmul.f32.gmra.mxu0 %v2690
        %v2727 = vpop.f32.mrf.mxu0
        %v2728 = vadd.f32 %v2681, %v2727
        %2729 = vmatmul.f32.gmra.mxu0 %v2693
        %v2730 = vpop.f32.mrf.mxu0
        %v2731 = vadd.f32 %v2681, %v2730
        %2732 = vmatmul.f32.gmra.mxu0 %v2696
        %v2733 = vpop.f32.mrf.mxu0
        %v2734 = vadd.f32 %v2681, %v2733
        %2735 = vmatmul.f32.gmra.mxu0 %v2699
        %v2736 = vpop.f32.mrf.mxu0
        %v2737 = vadd.f32 %v2681, %v2736
        %2738 = vmatmul.f32.gmra.mxu0 %v2702
        %v2739 = vpop.f32.mrf.mxu0
        %v2740 = vadd.f32 %v2681, %v2739
        %2741 = vdwg.mxu0
        %v2742 = vmax.f32 %v2722, 0.0
        %v2743 = vmax.f32 %v2725, 0.0
        %v2744 = vmax.f32 %v2728, 0.0
        %v2745 = vmax.f32 %v2731, 0.0
        %v2746 = vmax.f32 %v2734, 0.0
        %v2747 = vmax.f32 %v2737, 0.0
        %v2748 = vmax.f32 %v2740, 0.0
        %v2749 = vld [vmem:[#allocation7] sm:$0xff]
        %v2750 = vld [vmem:[#allocation7 + $0x8] sm:$0xff]
        %v2751 = vld [vmem:[#allocation7 + $0x10] sm:$0xff]
        %v2752 = vld [vmem:[#allocation7 + $0x18] sm:$0xff]
        %v2753 = vld [vmem:[%s21] sm:$0x1]
        %v2755 = vperm.slane %v2753, 0
        %v2758 = vsel %vm897, %v2742, 0
        %v2761 = vsel %vm897, %v2743, 0
        %v2764 = vsel %vm897, %v2744, 0
        %v2767 = vsel %vm897, %v2745, 0
        %v2770 = vsel %vm897, %v2746, 0
        %v2773 = vsel %vm897, %v2747, 0
        %v2776 = vsel %vm897, %v2748, 0
        %2778 = vmatpush.msra.mxu0 0.0
        %2779 = vmatpush.msra.mxu0 0.0
        %2780 = vmatpush.msra.mxu0 0.0
        %2781 = vmatpush.msra.mxu0 0.0
        %2782 = vmatpush.msra.mxu0 0.0
        %2783 = vmatpush.msra.mxu0 0.0
        %2784 = vmatpush.msra.mxu0 0.0
        %2785 = vmatpush.msra.mxu0 0.0
        %2786 = vmatpush.msra.mxu0 0.0
        %2787 = vmatpush.msra.mxu0 0.0
        %2788 = vmatpush.msra.mxu0 0.0
        %2789 = vmatpush.msra.mxu0 0.0
        %2790 = vmatpush.msra.mxu0 %v2752
        %2791 = vmatpush.msra.mxu0 %v2751
        %2792 = vmatpush.msra.mxu0 %v2750
        %2793 = vmatpush.msra.mxu0 %v2749
        %2794 = vmatmul.f32.gmra.mxu0 %v2758
        %v2795 = vpop.f32.mrf.mxu0
        %v2796 = vadd.f32 %v2755, %v2795
        %2797 = vmatmul.f32.gmra.mxu0 %v2761
        %v2798 = vpop.f32.mrf.mxu0
        %v2799 = vadd.f32 %v2755, %v2798
        %2800 = vmatmul.f32.gmra.mxu0 %v2764
        %v2801 = vpop.f32.mrf.mxu0
        %v2802 = vadd.f32 %v2755, %v2801
        %2803 = vmatmul.f32.gmra.mxu0 %v2767
        %v2804 = vpop.f32.mrf.mxu0
        %v2805 = vadd.f32 %v2755, %v2804
        %2806 = vmatmul.f32.gmra.mxu0 %v2770
        %v2807 = vpop.f32.mrf.mxu0
        %v2808 = vadd.f32 %v2755, %v2807
        %2809 = vmatmul.f32.gmra.mxu0 %v2773
        %v2810 = vpop.f32.mrf.mxu0
        %v2811 = vadd.f32 %v2755, %v2810
        %2812 = vmatmul.f32.gmra.mxu0 %v2776
        %v2813 = vpop.f32.mrf.mxu0
        %v2814 = vadd.f32 %v2755, %v2813
        %2815 = vdwg.mxu0
        %v2816 = vadd.f32 %v2668, %v2796
        %v2817 = vadd.f32 %v2669, %v2799
        %v2818 = vadd.f32 %v2670, %v2802
        %v2819 = vadd.f32 %v2671, %v2805
        %v2820 = vadd.f32 %v2672, %v2808
        %v2821 = vadd.f32 %v2673, %v2811
        %v2822 = vadd.f32 %v2674, %v2814
        %v2823 = vld [vmem:[#allocation9] sm:$0x1]
        %v2824 = vld [vmem:[%s23] sm:$0x1]
        %v2825 = vsel %vm897, %v2816, 0.0
        %2826 = vadd.xlane.f32.xlu0 %v2825
        %v2827 = vpop.xlane.xlu0 %2826
        %v2828 = vsel %vm897, %v2817, 0.0
        %2829 = vadd.xlane.f32.xlu0 %v2828
        %v2830 = vpop.xlane.xlu0 %2829
        %v2831 = vsel %vm897, %v2818, 0.0
        %2832 = vadd.xlane.f32.xlu0 %v2831
        %v2833 = vpop.xlane.xlu0 %2832
        %v2834 = vsel %vm897, %v2819, 0.0
        %2835 = vadd.xlane.f32.xlu0 %v2834
        %v2836 = vpop.xlane.xlu0 %2835
        %v2837 = vsel %vm897, %v2820, 0.0
        %2838 = vadd.xlane.f32.xlu0 %v2837
        %v2839 = vpop.xlane.xlu0 %2838
        %v2840 = vsel %vm897, %v2821, 0.0
        %2841 = vadd.xlane.f32.xlu0 %v2840
        %v2842 = vpop.xlane.xlu0 %2841
        %v2843 = vsel %vm916, %v2822, 0.0
        %2844 = vadd.xlane.f32.xlu0 %v2843
        %v2845 = vpop.xlane.xlu0 %2844
        %v2846 = vmul.f32 %v2827, %v926
        %v2847 = vmul.f32 %v2830, %v926
        %v2848 = vmul.f32 %v2833, %v926
        %v2849 = vmul.f32 %v2836, %v926
        %v2850 = vmul.f32 %v2839, %v926
        %v2851 = vmul.f32 %v2842, %v926
        %v2852 = vmul.f32 %v2845, %v926
        %v2853 = vsub.f32 %v2816, %v2846
        %v2854 = vsub.f32 %v2817, %v2847
        %v2855 = vsub.f32 %v2818, %v2848
        %v2856 = vsub.f32 %v2819, %v2849
        %v2857 = vsub.f32 %v2820, %v2850
        %v2858 = vsub.f32 %v2821, %v2851
        %v2859 = vsub.f32 %v2822, %v2852
        %v2860 = vmul.f32 %v2853, %v2853
        %v2861 = vmul.f32 %v2854, %v2854
        %v2862 = vmul.f32 %v2855, %v2855
        %v2863 = vmul.f32 %v2856, %v2856
        %v2864 = vmul.f32 %v2857, %v2857
        %v2865 = vmul.f32 %v2858, %v2858
        %v2866 = vmul.f32 %v2859, %v2859
        %v2867 = vsel %vm897, %v2860, 0.0
        %2868 = vadd.xlane.f32.xlu0 %v2867
        %v2869 = vpop.xlane.xlu0 %2868
        %v2870 = vsel %vm897, %v2861, 0.0
        %2871 = vadd.xlane.f32.xlu0 %v2870
        %v2872 = vpop.xlane.xlu0 %2871
        %v2873 = vsel %vm897, %v2862, 0.0
        %2874 = vadd.xlane.f32.xlu0 %v2873
        %v2875 = vpop.xlane.xlu0 %2874
        %v2876 = vsel %vm897, %v2863, 0.0
        %2877 = vadd.xlane.f32.xlu0 %v2876
        %v2878 = vpop.xlane.xlu0 %2877
        %v2879 = vsel %vm897, %v2864, 0.0
        %2880 = vadd.xlane.f32.xlu0 %v2879
        %v2881 = vpop.xlane.xlu0 %2880
        %v2882 = vsel %vm897, %v2865, 0.0
        %2883 = vadd.xlane.f32.xlu0 %v2882
        %v2884 = vpop.xlane.xlu0 %2883
        %v2885 = vsel %vm916, %v2866, 0.0
        %2886 = vadd.xlane.f32.xlu0 %v2885
        %v2887 = vpop.xlane.xlu0 %2886
        %v2888 = vmul.f32 %v2869, %v926
        %v2889 = vmul.f32 %v2872, %v926
        %v2890 = vmul.f32 %v2875, %v926
        %v2891 = vmul.f32 %v2878, %v926
        %v2892 = vmul.f32 %v2881, %v926
        %v2893 = vmul.f32 %v2884, %v926
        %v2894 = vmul.f32 %v2887, %v926
        %v2895 = vadd.f32 %v2888, 1e-05
        %v2896 = vadd.f32 %v2889, 1e-05
        %v2897 = vadd.f32 %v2890, 1e-05
        %v2898 = vadd.f32 %v2891, 1e-05
        %v2899 = vadd.f32 %v2892, 1e-05
        %v2900 = vadd.f32 %v2893, 1e-05
        %v2901 = vadd.f32 %v2894, 1e-05
        %v2902 = vrsqrt.pop %v2895
        %v2903 = vmul.f32 %v2902, %v2895
        %v2904 = vmul.f32 %v2903, %v2902
        %v2905 = vmul.f32 0.5, %v2904
        %v2906 = vsub.f32 1.5, %v2905
        %v2907 = vmul.f32 %v2902, %v2906
        %vm2908 = vweird.f32 %v2895
        %vm2909 = vweird.f32 %v2902
        %vm2910 = vmor %vm2908, %vm2909
        %v2911 = vsel %vm2910, %v2902, %v2907
        %v2912 = vrsqrt.pop %v2896
        %v2913 = vmul.f32 %v2912, %v2896
        %v2914 = vmul.f32 %v2913, %v2912
        %v2915 = vmul.f32 0.5, %v2914
        %v2916 = vsub.f32 1.5, %v2915
        %v2917 = vmul.f32 %v2912, %v2916
        %vm2918 = vweird.f32 %v2896
        %vm2919 = vweird.f32 %v2912
        %vm2920 = vmor %vm2918, %vm2919
        %v2921 = vsel %vm2920, %v2912, %v2917
        %v2922 = vrsqrt.pop %v2897
        %v2923 = vmul.f32 %v2922, %v2897
        %v2924 = vmul.f32 %v2923, %v2922
        %v2925 = vmul.f32 0.5, %v2924
        %v2926 = vsub.f32 1.5, %v2925
        %v2927 = vmul.f32 %v2922, %v2926
        %vm2928 = vweird.f32 %v2897
        %vm2929 = vweird.f32 %v2922
        %vm2930 = vmor %vm2928, %vm2929
        %v2931 = vsel %vm2930, %v2922, %v2927
        %v2932 = vrsqrt.pop %v2898
        %v2933 = vmul.f32 %v2932, %v2898
        %v2934 = vmul.f32 %v2933, %v2932
        %v2935 = vmul.f32 0.5, %v2934
        %v2936 = vsub.f32 1.5, %v2935
        %v2937 = vmul.f32 %v2932, %v2936
        %vm2938 = vweird.f32 %v2898
        %vm2939 = vweird.f32 %v2932
        %vm2940 = vmor %vm2938, %vm2939
        %v2941 = vsel %vm2940, %v2932, %v2937
        %v2942 = vrsqrt.pop %v2899
        %v2943 = vmul.f32 %v2942, %v2899
        %v2944 = vmul.f32 %v2943, %v2942
        %v2945 = vmul.f32 0.5, %v2944
        %v2946 = vsub.f32 1.5, %v2945
        %v2947 = vmul.f32 %v2942, %v2946
        %vm2948 = vweird.f32 %v2899
        %vm2949 = vweird.f32 %v2942
        %vm2950 = vmor %vm2948, %vm2949
        %v2951 = vsel %vm2950, %v2942, %v2947
        %v2952 = vrsqrt.pop %v2900
        %v2953 = vmul.f32 %v2952, %v2900
        %v2954 = vmul.f32 %v2953, %v2952
        %v2955 = vmul.f32 0.5, %v2954
        %v2956 = vsub.f32 1.5, %v2955
        %v2957 = vmul.f32 %v2952, %v2956
        %vm2958 = vweird.f32 %v2900
        %vm2959 = vweird.f32 %v2952
        %vm2960 = vmor %vm2958, %vm2959
        %v2961 = vsel %vm2960, %v2952, %v2957
        %v2962 = vrsqrt.pop %v2901
        %v2963 = vmul.f32 %v2962, %v2901
        %v2964 = vmul.f32 %v2963, %v2962
        %v2965 = vmul.f32 0.5, %v2964
        %v2966 = vsub.f32 1.5, %v2965
        %v2967 = vmul.f32 %v2962, %v2966
        %vm2968 = vweird.f32 %v2901
        %vm2969 = vweird.f32 %v2962
        %vm2970 = vmor %vm2968, %vm2969
        %v2971 = vsel %vm2970, %v2962, %v2967
        %v2972 = vmul.f32 %v2853, %v2911
        %v2973 = vmul.f32 %v2854, %v2921
        %v2974 = vmul.f32 %v2855, %v2931
        %v2975 = vmul.f32 %v2856, %v2941
        %v2976 = vmul.f32 %v2857, %v2951
        %v2977 = vmul.f32 %v2858, %v2961
        %v2978 = vmul.f32 %v2859, %v2971
        %v2980 = vperm.slane %v2823, 0
        %v2982 = vmul.f32 %v2972, %v2980
        %v2983 = vmul.f32 %v2973, %v2980
        %v2984 = vmul.f32 %v2974, %v2980
        %v2985 = vmul.f32 %v2975, %v2980
        %v2986 = vmul.f32 %v2976, %v2980
        %v2987 = vmul.f32 %v2977, %v2980
        %v2988 = vmul.f32 %v2978, %v2980
        %v2990 = vperm.slane %v2824, 0
        %v2992 = vadd.f32 %v2982, %v2990
        %v2993 = vadd.f32 %v2983, %v2990
        %v2994 = vadd.f32 %v2984, %v2990
        %v2995 = vadd.f32 %v2985, %v2990
        %v2996 = vadd.f32 %v2986, %v2990
        %v2997 = vadd.f32 %v2987, %v2990
        %v2998 = vadd.f32 %v2988, %v2990
        %s2999 = scalar_lea.vmem %s8, 32
        %v3000 = vld [vmem:[%s2999] sm:$0xff]
        %v3001 = vld [vmem:[%s2999 + $0x8] sm:$0xff]
        %v3002 = vld [vmem:[%s2999 + $0x10] sm:$0xff]
        %v3003 = vld [vmem:[%s2999 + $0x18] sm:$0xff]
        %s3004 = scalar_lea.vmem %s11, 1
        %v3005 = vld [vmem:[%s3004] sm:$0x1]
        %v3007 = vperm.slane %v3005, 0
        %v3010 = vsel %vm897, %v2992, 0
        %v3013 = vsel %vm897, %v2993, 0
        %v3016 = vsel %vm897, %v2994, 0
        %v3019 = vsel %vm897, %v2995, 0
        %v3022 = vsel %vm897, %v2996, 0
        %v3025 = vsel %vm897, %v2997, 0
        %v3028 = vsel %vm897, %v2998, 0
        %3030 = vmatpush.msra.mxu0 0.0
        %3031 = vmatpush.msra.mxu0 0.0
        %3032 = vmatpush.msra.mxu0 0.0
        %3033 = vmatpush.msra.mxu0 0.0
        %3034 = vmatpush.msra.mxu0 0.0
        %3035 = vmatpush.msra.mxu0 0.0
        %3036 = vmatpush.msra.mxu0 0.0
        %3037 = vmatpush.msra.mxu0 0.0
        %3038 = vmatpush.msra.mxu0 0.0
        %3039 = vmatpush.msra.mxu0 0.0
        %3040 = vmatpush.msra.mxu0 0.0
        %3041 = vmatpush.msra.mxu0 0.0
        %3042 = vmatpush.msra.mxu0 %v3003
        %3043 = vmatpush.msra.mxu0 %v3002
        %3044 = vmatpush.msra.mxu0 %v3001
        %3045 = vmatpush.msra.mxu0 %v3000
        %3046 = vmatmul.f32.gmra.mxu0 %v3010
        %v3047 = vpop.f32.mrf.mxu0
        %v3048 = vadd.f32 %v3007, %v3047
        %3049 = vmatmul.f32.gmra.mxu0 %v3013
        %v3050 = vpop.f32.mrf.mxu0
        %v3051 = vadd.f32 %v3007, %v3050
        %3052 = vmatmul.f32.gmra.mxu0 %v3016
        %v3053 = vpop.f32.mrf.mxu0
        %v3054 = vadd.f32 %v3007, %v3053
        %3055 = vmatmul.f32.gmra.mxu0 %v3019
        %v3056 = vpop.f32.mrf.mxu0
        %v3057 = vadd.f32 %v3007, %v3056
        %3058 = vmatmul.f32.gmra.mxu0 %v3022
        %v3059 = vpop.f32.mrf.mxu0
        %v3060 = vadd.f32 %v3007, %v3059
        %3061 = vmatmul.f32.gmra.mxu0 %v3025
        %v3062 = vpop.f32.mrf.mxu0
        %v3063 = vadd.f32 %v3007, %v3062
        %3064 = vmatmul.f32.gmra.mxu0 %v3028
        %v3065 = vpop.f32.mrf.mxu0
        %v3066 = vadd.f32 %v3007, %v3065
        %3067 = vdwg.mxu0
        %v3068 = vmul.f32 %v3048, 0.35355338
        %v3069 = vmul.f32 %v3051, 0.35355338
        %v3070 = vmul.f32 %v3054, 0.35355338
        %v3071 = vmul.f32 %v3057, 0.35355338
        %v3072 = vmul.f32 %v3060, 0.35355338
        %v3073 = vmul.f32 %v3063, 0.35355338
        %v3074 = vmul.f32 %v3066, 0.35355338
        %s3075 = scalar_lea.vmem %s9, 32
        %v3076 = vld [vmem:[%s3075] sm:$0xff]
        %v3077 = vld [vmem:[%s3075 + $0x8] sm:$0xff]
        %v3078 = vld [vmem:[%s3075 + $0x10] sm:$0xff]
        %v3079 = vld [vmem:[%s3075 + $0x18] sm:$0xff]
        %s3080 = scalar_lea.vmem %s12, 1
        %v3081 = vld [vmem:[%s3080] sm:$0x1]
        %v3083 = vperm.slane %v3081, 0
        %3085 = vmatpush.msra.mxu0 0.0
        %3086 = vmatpush.msra.mxu0 0.0
        %3087 = vmatpush.msra.mxu0 0.0
        %3088 = vmatpush.msra.mxu0 0.0
        %3089 = vmatpush.msra.mxu0 0.0
        %3090 = vmatpush.msra.mxu0 0.0
        %3091 = vmatpush.msra.mxu0 0.0
        %3092 = vmatpush.msra.mxu0 0.0
        %3093 = vmatpush.msra.mxu0 0.0
        %3094 = vmatpush.msra.mxu0 0.0
        %3095 = vmatpush.msra.mxu0 0.0
        %3096 = vmatpush.msra.mxu0 0.0
        %3097 = vmatpush.msra.mxu0 %v3079
        %3098 = vmatpush.msra.mxu0 %v3078
        %3099 = vmatpush.msra.mxu0 %v3077
        %3100 = vmatpush.msra.mxu0 %v3076
        %3101 = vmatmul.f32.gmra.mxu0 %v3010
        %v3102 = vpop.f32.mrf.mxu0
        %v3103 = vadd.f32 %v3083, %v3102
        %3104 = vmatmul.f32.gmra.mxu0 %v3013
        %v3105 = vpop.f32.mrf.mxu0
        %v3106 = vadd.f32 %v3083, %v3105
        %3107 = vmatmul.f32.gmra.mxu0 %v3016
        %v3108 = vpop.f32.mrf.mxu0
        %v3109 = vadd.f32 %v3083, %v3108
        %3110 = vmatmul.f32.gmra.mxu0 %v3019
        %v3111 = vpop.f32.mrf.mxu0
        %v3112 = vadd.f32 %v3083, %v3111
        %3113 = vmatmul.f32.gmra.mxu0 %v3022
        %v3114 = vpop.f32.mrf.mxu0
        %v3115 = vadd.f32 %v3083, %v3114
        %3116 = vmatmul.f32.gmra.mxu0 %v3025
        %v3117 = vpop.f32.mrf.mxu0
        %v3118 = vadd.f32 %v3083, %v3117
        %3119 = vmatmul.f32.gmra.mxu0 %v3028
        %v3120 = vpop.f32.mrf.mxu0
        %v3121 = vadd.f32 %v3083, %v3120
        %3122 = vdwg.mxu0
        %s3123 = scalar_lea.vmem %s10, 32
        %v3124 = vld [vmem:[%s3123] sm:$0xff]
        %v3125 = vld [vmem:[%s3123 + $0x8] sm:$0xff]
        %v3126 = vld [vmem:[%s3123 + $0x10] sm:$0xff]
        %v3127 = vld [vmem:[%s3123 + $0x18] sm:$0xff]
        %s3128 = scalar_lea.vmem %s13, 1
        %v3129 = vld [vmem:[%s3128] sm:$0x1]
        %v3131 = vperm.slane %v3129, 0
        %3133 = vmatpush.msra.mxu0 0.0
        %3134 = vmatpush.msra.mxu0 0.0
        %3135 = vmatpush.msra.mxu0 0.0
        %3136 = vmatpush.msra.mxu0 0.0
        %3137 = vmatpush.msra.mxu0 0.0
        %3138 = vmatpush.msra.mxu0 0.0
        %3139 = vmatpush.msra.mxu0 0.0
        %3140 = vmatpush.msra.mxu0 0.0
        %3141 = vmatpush.msra.mxu0 0.0
        %3142 = vmatpush.msra.mxu0 0.0
        %3143 = vmatpush.msra.mxu0 0.0
        %3144 = vmatpush.msra.mxu0 0.0
        %3145 = vmatpush.msra.mxu0 %v3127
        %3146 = vmatpush.msra.mxu0 %v3126
        %3147 = vmatpush.msra.mxu0 %v3125
        %3148 = vmatpush.msra.mxu0 %v3124
        %3149 = vmatmul.f32.gmra.mxu0 %v3010
        %v3150 = vpop.f32.mrf.mxu0
        %v3151 = vadd.f32 %v3131, %v3150
        %3152 = vmatmul.f32.gmra.mxu0 %v3013
        %v3153 = vpop.f32.mrf.mxu0
        %v3154 = vadd.f32 %v3131, %v3153
        %3155 = vmatmul.f32.gmra.mxu0 %v3016
        %v3156 = vpop.f32.mrf.mxu0
        %v3157 = vadd.f32 %v3131, %v3156
        %3158 = vmatmul.f32.gmra.mxu0 %v3019
        %v3159 = vpop.f32.mrf.mxu0
        %v3160 = vadd.f32 %v3131, %v3159
        %3161 = vmatmul.f32.gmra.mxu0 %v3022
        %v3162 = vpop.f32.mrf.mxu0
        %v3163 = vadd.f32 %v3131, %v3162
        %3164 = vmatmul.f32.gmra.mxu0 %v3025
        %v3165 = vpop.f32.mrf.mxu0
        %v3166 = vadd.f32 %v3131, %v3165
        %3167 = vmatmul.f32.gmra.mxu0 %v3028
        %v3168 = vpop.f32.mrf.mxu0
        %v3169 = vadd.f32 %v3131, %v3168
        %3170 = vdwg.mxu0
        %v3172 = vsel %vm1334, %v3068, 0
        %v3175 = vsel %vm1334, %v3069, 0
        %v3178 = vsel %vm1334, %v3070, 0
        %v3181 = vsel %vm1334, %v3071, 0
        %v3184 = vsel %vm1334, %v3072, 0
        %v3187 = vsel %vm1334, %v3073, 0
        %v3190 = vsel %vm1334, %v3074, 0
        %v3193 = vsel %vm1334, %v3103, 0
        %v3196 = vsel %vm1334, %v3106, 0
        %v3199 = vsel %vm1334, %v3109, 0
        %v3202 = vsel %vm1334, %v3112, 0
        %v3205 = vsel %vm1334, %v3115, 0
        %v3208 = vsel %vm1334, %v3118, 0
        %v3211 = vsel %vm1334, %v3121, 0
        %3213 = vmatpush.xpose.msra.mxu0 0.0
        %3214 = vmatpush.xpose.msra.mxu0 0.0
        %3215 = vmatpush.xpose.msra.mxu0 0.0
        %3216 = vmatpush.xpose.msra.mxu0 0.0
        %3217 = vmatpush.xpose.msra.mxu0 0.0
        %3218 = vmatpush.xpose.msra.mxu0 0.0
        %3219 = vmatpush.xpose.msra.mxu0 0.0
        %3220 = vmatpush.xpose.msra.mxu0 0.0
        %3221 = vmatpush.xpose.msra.mxu0 0.0
        %3222 = vmatpush.xpose.msra.mxu0 %v3211
        %3223 = vmatpush.xpose.msra.mxu0 %v3208
        %3224 = vmatpush.xpose.msra.mxu0 %v3205
        %3225 = vmatpush.xpose.msra.mxu0 %v3202
        %3226 = vmatpush.xpose.msra.mxu0 %v3199
        %3227 = vmatpush.xpose.msra.mxu0 %v3196
        %3228 = vmatpush.xpose.msra.mxu0 %v3193
        %3229 = vmatmul.f32.gmra.mxu0 %v3172
        %v3230 = vpop.f32.mrf.mxu0
        %v3231 = vadd.f32 0.0, %v3230
        %3232 = vmatmul.f32.gmra.mxu0 %v3175
        %v3233 = vpop.f32.mrf.mxu0
        %v3234 = vadd.f32 0.0, %v3233
        %3235 = vmatmul.f32.gmra.mxu0 %v3178
        %v3236 = vpop.f32.mrf.mxu0
        %v3237 = vadd.f32 0.0, %v3236
        %3238 = vmatmul.f32.gmra.mxu0 %v3181
        %v3239 = vpop.f32.mrf.mxu0
        %v3240 = vadd.f32 0.0, %v3239
        %3241 = vmatmul.f32.gmra.mxu0 %v3184
        %v3242 = vpop.f32.mrf.mxu0
        %v3243 = vadd.f32 0.0, %v3242
        %3244 = vmatmul.f32.gmra.mxu0 %v3187
        %v3245 = vpop.f32.mrf.mxu0
        %v3246 = vadd.f32 0.0, %v3245
        %3247 = vmatmul.f32.gmra.mxu0 %v3190
        %v3248 = vpop.f32.mrf.mxu0
        %v3249 = vadd.f32 0.0, %v3248
        %3250 = vdwg.mxu0
        %v3251 = vsel %vm1415, %v3231, -inf
        %3252 = vmax.xlane.f32.xlu0 %v3251
        %v3253 = vpop.xlane.xlu0 %3252
        %v3254 = vsel %vm1415, %v3234, -inf
        %3255 = vmax.xlane.f32.xlu0 %v3254
        %v3256 = vpop.xlane.xlu0 %3255
        %v3257 = vsel %vm1415, %v3237, -inf
        %3258 = vmax.xlane.f32.xlu0 %v3257
        %v3259 = vpop.xlane.xlu0 %3258
        %v3260 = vsel %vm1415, %v3240, -inf
        %3261 = vmax.xlane.f32.xlu0 %v3260
        %v3262 = vpop.xlane.xlu0 %3261
        %v3263 = vsel %vm1415, %v3243, -inf
        %3264 = vmax.xlane.f32.xlu0 %v3263
        %v3265 = vpop.xlane.xlu0 %3264
        %v3266 = vsel %vm1415, %v3246, -inf
        %3267 = vmax.xlane.f32.xlu0 %v3266
        %v3268 = vpop.xlane.xlu0 %3267
        %v3269 = vsel %vm1434, %v3249, -inf
        %3270 = vmax.xlane.f32.xlu0 %v3269
        %v3271 = vpop.xlane.xlu0 %3270
        %v3272 = vsub.f32 %v3231, %v3253
        %v3273 = vsub.f32 %v3234, %v3256
        %v3274 = vsub.f32 %v3237, %v3259
        %v3275 = vsub.f32 %v3240, %v3262
        %v3276 = vsub.f32 %v3243, %v3265
        %v3277 = vsub.f32 %v3246, %v3268
        %v3278 = vsub.f32 %v3249, %v3271
        %v3279 = vmul.f32 %v3272, 1.442695
        %v3280 = vpow.pop %v3279
        %v3281 = vmul.f32 %v3273, 1.442695
        %v3282 = vpow.pop %v3281
        %v3283 = vmul.f32 %v3274, 1.442695
        %v3284 = vpow.pop %v3283
        %v3285 = vmul.f32 %v3275, 1.442695
        %v3286 = vpow.pop %v3285
        %v3287 = vmul.f32 %v3276, 1.442695
        %v3288 = vpow.pop %v3287
        %v3289 = vmul.f32 %v3277, 1.442695
        %v3290 = vpow.pop %v3289
        %v3291 = vmul.f32 %v3278, 1.442695
        %v3292 = vpow.pop %v3291
        %v3293 = vsel %vm1415, %v3280, 0.0
        %3294 = vadd.xlane.f32.xlu0 %v3293
        %v3295 = vpop.xlane.xlu0 %3294
        %v3296 = vsel %vm1415, %v3282, 0.0
        %3297 = vadd.xlane.f32.xlu0 %v3296
        %v3298 = vpop.xlane.xlu0 %3297
        %v3299 = vsel %vm1415, %v3284, 0.0
        %3300 = vadd.xlane.f32.xlu0 %v3299
        %v3301 = vpop.xlane.xlu0 %3300
        %v3302 = vsel %vm1415, %v3286, 0.0
        %3303 = vadd.xlane.f32.xlu0 %v3302
        %v3304 = vpop.xlane.xlu0 %3303
        %v3305 = vsel %vm1415, %v3288, 0.0
        %3306 = vadd.xlane.f32.xlu0 %v3305
        %v3307 = vpop.xlane.xlu0 %3306
        %v3308 = vsel %vm1415, %v3290, 0.0
        %3309 = vadd.xlane.f32.xlu0 %v3308
        %v3310 = vpop.xlane.xlu0 %3309
        %v3311 = vsel %vm1434, %v3292, 0.0
        %3312 = vadd.xlane.f32.xlu0 %v3311
        %v3313 = vpop.xlane.xlu0 %3312
        %v3314 = vrcp.pop %v3295
        %v3315 = vrcp.pop %v3298
        %v3316 = vrcp.pop %v3301
        %v3317 = vrcp.pop %v3304
        %v3318 = vrcp.pop %v3307
        %v3319 = vrcp.pop %v3310
        %v3320 = vrcp.pop %v3313
        %v3321 = vmul.f32 %v3280, %v3314
        %v3322 = vmul.f32 %v3282, %v3315
        %v3323 = vmul.f32 %v3284, %v3316
        %v3324 = vmul.f32 %v3286, %v3317
        %v3325 = vmul.f32 %v3288, %v3318
        %v3326 = vmul.f32 %v3290, %v3319
        %v3327 = vmul.f32 %v3292, %v3320
        %v3329 = vsel %vm1415, %v3321, 0
        %v3332 = vsel %vm1415, %v3322, 0
        %v3335 = vsel %vm1415, %v3323, 0
        %v3338 = vsel %vm1415, %v3324, 0
        %v3341 = vsel %vm1415, %v3325, 0
        %v3344 = vsel %vm1415, %v3326, 0
        %v3347 = vsel %vm1415, %v3327, 0
        %v3350 = vsel %vm1515, %v3169, 0
        %3352 = vmatpush.msra.mxu0 0.0
        %3353 = vmatpush.msra.mxu0 0.0
        %3354 = vmatpush.msra.mxu0 0.0
        %3355 = vmatpush.msra.mxu0 0.0
        %3356 = vmatpush.msra.mxu0 0.0
        %3357 = vmatpush.msra.mxu0 0.0
        %3358 = vmatpush.msra.mxu0 0.0
        %3359 = vmatpush.msra.mxu0 0.0
        %3360 = vmatpush.msra.mxu0 0.0
        %3361 = vmatpush.msra.mxu0 %v3350
        %3362 = vmatpush.msra.mxu0 %v3166
        %3363 = vmatpush.msra.mxu0 %v3163
        %3364 = vmatpush.msra.mxu0 %v3160
        %3365 = vmatpush.msra.mxu0 %v3157
        %3366 = vmatpush.msra.mxu0 %v3154
        %3367 = vmatpush.msra.mxu0 %v3151
        %3368 = vmatmul.f32.gmra.mxu0 %v3329
        %v3369 = vpop.f32.mrf.mxu0
        %v3370 = vadd.f32 0.0, %v3369
        %3371 = vmatmul.f32.gmra.mxu0 %v3332
        %v3372 = vpop.f32.mrf.mxu0
        %v3373 = vadd.f32 0.0, %v3372
        %3374 = vmatmul.f32.gmra.mxu0 %v3335
        %v3375 = vpop.f32.mrf.mxu0
        %v3376 = vadd.f32 0.0, %v3375
        %3377 = vmatmul.f32.gmra.mxu0 %v3338
        %v3378 = vpop.f32.mrf.mxu0
        %v3379 = vadd.f32 0.0, %v3378
        %3380 = vmatmul.f32.gmra.mxu0 %v3341
        %v3381 = vpop.f32.mrf.mxu0
        %v3382 = vadd.f32 0.0, %v3381
        %3383 = vmatmul.f32.gmra.mxu0 %v3344
        %v3384 = vpop.f32.mrf.mxu0
        %v3385 = vadd.f32 0.0, %v3384
        %3386 = vmatmul.f32.gmra.mxu0 %v3347
        %v3387 = vpop.f32.mrf.mxu0
        %v3388 = vadd.f32 0.0, %v3387
        %3389 = vdwg.mxu0
        %3390 = vrot.lane.b32.xlu0 %v3068, 120
        %v3391 = vpop.permute.xlu0 %3390
        %3392 = vrot.lane.b32.xlu0 %v3069, 120
        %v3393 = vpop.permute.xlu0 %3392
        %3394 = vrot.lane.b32.xlu0 %v3070, 120
        %v3395 = vpop.permute.xlu0 %3394
        %3396 = vrot.lane.b32.xlu0 %v3071, 120
        %v3397 = vpop.permute.xlu0 %3396
        %3398 = vrot.lane.b32.xlu0 %v3072, 120
        %v3399 = vpop.permute.xlu0 %3398
        %3400 = vrot.lane.b32.xlu0 %v3073, 120
        %v3401 = vpop.permute.xlu0 %3400
        %3402 = vrot.lane.b32.xlu0 %v3074, 120
        %v3403 = vpop.permute.xlu0 %3402
        %3404 = vrot.lane.b32.xlu0 %v3103, 120
        %v3405 = vpop.permute.xlu0 %3404
        %3406 = vrot.lane.b32.xlu0 %v3106, 120
        %v3407 = vpop.permute.xlu0 %3406
        %3408 = vrot.lane.b32.xlu0 %v3109, 120
        %v3409 = vpop.permute.xlu0 %3408
        %3410 = vrot.lane.b32.xlu0 %v3112, 120
        %v3411 = vpop.permute.xlu0 %3410
        %3412 = vrot.lane.b32.xlu0 %v3115, 120
        %v3413 = vpop.permute.xlu0 %3412
        %3414 = vrot.lane.b32.xlu0 %v3118, 120
        %v3415 = vpop.permute.xlu0 %3414
        %3416 = vrot.lane.b32.xlu0 %v3121, 120
        %v3417 = vpop.permute.xlu0 %3416
        %v3418 = vsel %vm1334, %v3391, 0
        %v3420 = vsel %vm1334, %v3393, 0
        %v3422 = vsel %vm1334, %v3395, 0
        %v3424 = vsel %vm1334, %v3397, 0
        %v3426 = vsel %vm1334, %v3399, 0
        %v3428 = vsel %vm1334, %v3401, 0
        %v3430 = vsel %vm1334, %v3403, 0
        %v3432 = vsel %vm1334, %v3405, 0
        %v3434 = vsel %vm1334, %v3407, 0
        %v3436 = vsel %vm1334, %v3409, 0
        %v3438 = vsel %vm1334, %v3411, 0
        %v3440 = vsel %vm1334, %v3413, 0
        %v3442 = vsel %vm1334, %v3415, 0
        %v3444 = vsel %vm1334, %v3417, 0
        %3446 = vmatpush.xpose.msra.mxu0 0.0
        %3447 = vmatpush.xpose.msra.mxu0 0.0
        %3448 = vmatpush.xpose.msra.mxu0 0.0
        %3449 = vmatpush.xpose.msra.mxu0 0.0
        %3450 = vmatpush.xpose.msra.mxu0 0.0
        %3451 = vmatpush.xpose.msra.mxu0 0.0
        %3452 = vmatpush.xpose.msra.mxu0 0.0
        %3453 = vmatpush.xpose.msra.mxu0 0.0
        %3454 = vmatpush.xpose.msra.mxu0 0.0
        %3455 = vmatpush.xpose.msra.mxu0 %v3444
        %3456 = vmatpush.xpose.msra.mxu0 %v3442
        %3457 = vmatpush.xpose.msra.mxu0 %v3440
        %3458 = vmatpush.xpose.msra.mxu0 %v3438
        %3459 = vmatpush.xpose.msra.mxu0 %v3436
        %3460 = vmatpush.xpose.msra.mxu0 %v3434
        %3461 = vmatpush.xpose.msra.mxu0 %v3432
        %3462 = vmatmul.f32.gmra.mxu0 %v3418
        %v3463 = vpop.f32.mrf.mxu0
        %v3464 = vadd.f32 0.0, %v3463
        %3465 = vmatmul.f32.gmra.mxu0 %v3420
        %v3466 = vpop.f32.mrf.mxu0
        %v3467 = vadd.f32 0.0, %v3466
        %3468 = vmatmul.f32.gmra.mxu0 %v3422
        %v3469 = vpop.f32.mrf.mxu0
        %v3470 = vadd.f32 0.0, %v3469
        %3471 = vmatmul.f32.gmra.mxu0 %v3424
        %v3472 = vpop.f32.mrf.mxu0
        %v3473 = vadd.f32 0.0, %v3472
        %3474 = vmatmul.f32.gmra.mxu0 %v3426
        %v3475 = vpop.f32.mrf.mxu0
        %v3476 = vadd.f32 0.0, %v3475
        %3477 = vmatmul.f32.gmra.mxu0 %v3428
        %v3478 = vpop.f32.mrf.mxu0
        %v3479 = vadd.f32 0.0, %v3478
        %3480 = vmatmul.f32.gmra.mxu0 %v3430
        %v3481 = vpop.f32.mrf.mxu0
        %v3482 = vadd.f32 0.0, %v3481
        %3483 = vdwg.mxu0
        %v3484 = vsel %vm1415, %v3464, -inf
        %3485 = vmax.xlane.f32.xlu0 %v3484
        %v3486 = vpop.xlane.xlu0 %3485
        %v3487 = vsel %vm1415, %v3467, -inf
        %3488 = vmax.xlane.f32.xlu0 %v3487
        %v3489 = vpop.xlane.xlu0 %3488
        %v3490 = vsel %vm1415, %v3470, -inf
        %3491 = vmax.xlane.f32.xlu0 %v3490
        %v3492 = vpop.xlane.xlu0 %3491
        %v3493 = vsel %vm1415, %v3473, -inf
        %3494 = vmax.xlane.f32.xlu0 %v3493
        %v3495 = vpop.xlane.xlu0 %3494
        %v3496 = vsel %vm1415, %v3476, -inf
        %3497 = vmax.xlane.f32.xlu0 %v3496
        %v3498 = vpop.xlane.xlu0 %3497
        %v3499 = vsel %vm1415, %v3479, -inf
        %3500 = vmax.xlane.f32.xlu0 %v3499
        %v3501 = vpop.xlane.xlu0 %3500
        %v3502 = vsel %vm1434, %v3482, -inf
        %3503 = vmax.xlane.f32.xlu0 %v3502
        %v3504 = vpop.xlane.xlu0 %3503
        %v3505 = vsub.f32 %v3464, %v3486
        %v3506 = vsub.f32 %v3467, %v3489
        %v3507 = vsub.f32 %v3470, %v3492
        %v3508 = vsub.f32 %v3473, %v3495
        %v3509 = vsub.f32 %v3476, %v3498
        %v3510 = vsub.f32 %v3479, %v3501
        %v3511 = vsub.f32 %v3482, %v3504
        %v3512 = vmul.f32 %v3505, 1.442695
        %v3513 = vpow.pop %v3512
        %v3514 = vmul.f32 %v3506, 1.442695
        %v3515 = vpow.pop %v3514
        %v3516 = vmul.f32 %v3507, 1.442695
        %v3517 = vpow.pop %v3516
        %v3518 = vmul.f32 %v3508, 1.442695
        %v3519 = vpow.pop %v3518
        %v3520 = vmul.f32 %v3509, 1.442695
        %v3521 = vpow.pop %v3520
        %v3522 = vmul.f32 %v3510, 1.442695
        %v3523 = vpow.pop %v3522
        %v3524 = vmul.f32 %v3511, 1.442695
        %v3525 = vpow.pop %v3524
        %v3526 = vsel %vm1415, %v3513, 0.0
        %3527 = vadd.xlane.f32.xlu0 %v3526
        %v3528 = vpop.xlane.xlu0 %3527
        %v3529 = vsel %vm1415, %v3515, 0.0
        %3530 = vadd.xlane.f32.xlu0 %v3529
        %v3531 = vpop.xlane.xlu0 %3530
        %v3532 = vsel %vm1415, %v3517, 0.0
        %3533 = vadd.xlane.f32.xlu0 %v3532
        %v3534 = vpop.xlane.xlu0 %3533
        %v3535 = vsel %vm1415, %v3519, 0.0
        %3536 = vadd.xlane.f32.xlu0 %v3535
        %v3537 = vpop.xlane.xlu0 %3536
        %v3538 = vsel %vm1415, %v3521, 0.0
        %3539 = vadd.xlane.f32.xlu0 %v3538
        %v3540 = vpop.xlane.xlu0 %3539
        %v3541 = vsel %vm1415, %v3523, 0.0
        %3542 = vadd.xlane.f32.xlu0 %v3541
        %v3543 = vpop.xlane.xlu0 %3542
        %v3544 = vsel %vm1434, %v3525, 0.0
        %3545 = vadd.xlane.f32.xlu0 %v3544
        %v3546 = vpop.xlane.xlu0 %3545
        %v3547 = vrcp.pop %v3528
        %v3548 = vrcp.pop %v3531
        %v3549 = vrcp.pop %v3534
        %v3550 = vrcp.pop %v3537
        %v3551 = vrcp.pop %v3540
        %v3552 = vrcp.pop %v3543
        %v3553 = vrcp.pop %v3546
        %v3554 = vmul.f32 %v3513, %v3547
        %v3555 = vmul.f32 %v3515, %v3548
        %v3556 = vmul.f32 %v3517, %v3549
        %v3557 = vmul.f32 %v3519, %v3550
        %v3558 = vmul.f32 %v3521, %v3551
        %v3559 = vmul.f32 %v3523, %v3552
        %v3560 = vmul.f32 %v3525, %v3553
        %3567 = vrot.lane.b32.xlu0 %v3151, 120
        %v3568 = vpop.permute.xlu0 %3567
        %3569 = vrot.lane.b32.xlu0 %v3154, 120
        %v3570 = vpop.permute.xlu0 %3569
        %3571 = vrot.lane.b32.xlu0 %v3157, 120
        %v3572 = vpop.permute.xlu0 %3571
        %3573 = vrot.lane.b32.xlu0 %v3160, 120
        %v3574 = vpop.permute.xlu0 %3573
        %3575 = vrot.lane.b32.xlu0 %v3163, 120
        %v3576 = vpop.permute.xlu0 %3575
        %3577 = vrot.lane.b32.xlu0 %v3166, 120
        %v3578 = vpop.permute.xlu0 %3577
        %3579 = vrot.lane.b32.xlu0 %v3169, 120
        %v3580 = vpop.permute.xlu0 %3579
        %v3588 = vsel %vm1415, %v3554, 0
        %v3591 = vsel %vm1415, %v3555, 0
        %v3594 = vsel %vm1415, %v3556, 0
        %v3597 = vsel %vm1415, %v3557, 0
        %v3600 = vsel %vm1415, %v3558, 0
        %v3603 = vsel %vm1415, %v3559, 0
        %v3606 = vsel %vm1415, %v3560, 0
        %v3608 = vsel %vm1515, %v3580, 0
        %3610 = vmatpush.msra.mxu0 0.0
        %3611 = vmatpush.msra.mxu0 0.0
        %3612 = vmatpush.msra.mxu0 0.0
        %3613 = vmatpush.msra.mxu0 0.0
        %3614 = vmatpush.msra.mxu0 0.0
        %3615 = vmatpush.msra.mxu0 0.0
        %3616 = vmatpush.msra.mxu0 0.0
        %3617 = vmatpush.msra.mxu0 0.0
        %3618 = vmatpush.msra.mxu0 0.0
        %3619 = vmatpush.msra.mxu0 %v3608
        %3620 = vmatpush.msra.mxu0 %v3578
        %3621 = vmatpush.msra.mxu0 %v3576
        %3622 = vmatpush.msra.mxu0 %v3574
        %3623 = vmatpush.msra.mxu0 %v3572
        %3624 = vmatpush.msra.mxu0 %v3570
        %3625 = vmatpush.msra.mxu0 %v3568
        %3626 = vmatmul.f32.gmra.mxu0 %v3588
        %v3627 = vpop.f32.mrf.mxu0
        %v3628 = vadd.f32 0.0, %v3627
        %3629 = vmatmul.f32.gmra.mxu0 %v3591
        %v3630 = vpop.f32.mrf.mxu0
        %v3631 = vadd.f32 0.0, %v3630
        %3632 = vmatmul.f32.gmra.mxu0 %v3594
        %v3633 = vpop.f32.mrf.mxu0
        %v3634 = vadd.f32 0.0, %v3633
        %3635 = vmatmul.f32.gmra.mxu0 %v3597
        %v3636 = vpop.f32.mrf.mxu0
        %v3637 = vadd.f32 0.0, %v3636
        %3638 = vmatmul.f32.gmra.mxu0 %v3600
        %v3639 = vpop.f32.mrf.mxu0
        %v3640 = vadd.f32 0.0, %v3639
        %3641 = vmatmul.f32.gmra.mxu0 %v3603
        %v3642 = vpop.f32.mrf.mxu0
        %v3643 = vadd.f32 0.0, %v3642
        %3644 = vmatmul.f32.gmra.mxu0 %v3606
        %v3645 = vpop.f32.mrf.mxu0
        %v3646 = vadd.f32 0.0, %v3645
        %3647 = vdwg.mxu0
        %3648 = vrot.lane.b32.xlu0 %v3068, 112
        %v3649 = vpop.permute.xlu0 %3648
        %3650 = vrot.lane.b32.xlu0 %v3069, 112
        %v3651 = vpop.permute.xlu0 %3650
        %3652 = vrot.lane.b32.xlu0 %v3070, 112
        %v3653 = vpop.permute.xlu0 %3652
        %3654 = vrot.lane.b32.xlu0 %v3071, 112
        %v3655 = vpop.permute.xlu0 %3654
        %3656 = vrot.lane.b32.xlu0 %v3072, 112
        %v3657 = vpop.permute.xlu0 %3656
        %3658 = vrot.lane.b32.xlu0 %v3073, 112
        %v3659 = vpop.permute.xlu0 %3658
        %3660 = vrot.lane.b32.xlu0 %v3074, 112
        %v3661 = vpop.permute.xlu0 %3660
        %3662 = vrot.lane.b32.xlu0 %v3103, 112
        %v3663 = vpop.permute.xlu0 %3662
        %3664 = vrot.lane.b32.xlu0 %v3106, 112
        %v3665 = vpop.permute.xlu0 %3664
        %3666 = vrot.lane.b32.xlu0 %v3109, 112
        %v3667 = vpop.permute.xlu0 %3666
        %3668 = vrot.lane.b32.xlu0 %v3112, 112
        %v3669 = vpop.permute.xlu0 %3668
        %3670 = vrot.lane.b32.xlu0 %v3115, 112
        %v3671 = vpop.permute.xlu0 %3670
        %3672 = vrot.lane.b32.xlu0 %v3118, 112
        %v3673 = vpop.permute.xlu0 %3672
        %3674 = vrot.lane.b32.xlu0 %v3121, 112
        %v3675 = vpop.permute.xlu0 %3674
        %v3676 = vsel %vm1334, %v3649, 0
        %v3678 = vsel %vm1334, %v3651, 0
        %v3680 = vsel %vm1334, %v3653, 0
        %v3682 = vsel %vm1334, %v3655, 0
        %v3684 = vsel %vm1334, %v3657, 0
        %v3686 = vsel %vm1334, %v3659, 0
        %v3688 = vsel %vm1334, %v3661, 0
        %v3690 = vsel %vm1334, %v3663, 0
        %v3692 = vsel %vm1334, %v3665, 0
        %v3694 = vsel %vm1334, %v3667, 0
        %v3696 = vsel %vm1334, %v3669, 0
        %v3698 = vsel %vm1334, %v3671, 0
        %v3700 = vsel %vm1334, %v3673, 0
        %v3702 = vsel %vm1334, %v3675, 0
        %3704 = vmatpush.xpose.msra.mxu0 0.0
        %3705 = vmatpush.xpose.msra.mxu0 0.0
        %3706 = vmatpush.xpose.msra.mxu0 0.0
        %3707 = vmatpush.xpose.msra.mxu0 0.0
        %3708 = vmatpush.xpose.msra.mxu0 0.0
        %3709 = vmatpush.xpose.msra.mxu0 0.0
        %3710 = vmatpush.xpose.msra.mxu0 0.0
        %3711 = vmatpush.xpose.msra.mxu0 0.0
        %3712 = vmatpush.xpose.msra.mxu0 0.0
        %3713 = vmatpush.xpose.msra.mxu0 %v3702
        %3714 = vmatpush.xpose.msra.mxu0 %v3700
        %3715 = vmatpush.xpose.msra.mxu0 %v3698
        %3716 = vmatpush.xpose.msra.mxu0 %v3696
        %3717 = vmatpush.xpose.msra.mxu0 %v3694
        %3718 = vmatpush.xpose.msra.mxu0 %v3692
        %3719 = vmatpush.xpose.msra.mxu0 %v3690
        %3720 = vmatmul.f32.gmra.mxu0 %v3676
        %v3721 = vpop.f32.mrf.mxu0
        %v3722 = vadd.f32 0.0, %v3721
        %3723 = vmatmul.f32.gmra.mxu0 %v3678
        %v3724 = vpop.f32.mrf.mxu0
        %v3725 = vadd.f32 0.0, %v3724
        %3726 = vmatmul.f32.gmra.mxu0 %v3680
        %v3727 = vpop.f32.mrf.mxu0
        %v3728 = vadd.f32 0.0, %v3727
        %3729 = vmatmul.f32.gmra.mxu0 %v3682
        %v3730 = vpop.f32.mrf.mxu0
        %v3731 = vadd.f32 0.0, %v3730
        %3732 = vmatmul.f32.gmra.mxu0 %v3684
        %v3733 = vpop.f32.mrf.mxu0
        %v3734 = vadd.f32 0.0, %v3733
        %3735 = vmatmul.f32.gmra.mxu0 %v3686
        %v3736 = vpop.f32.mrf.mxu0
        %v3737 = vadd.f32 0.0, %v3736
        %3738 = vmatmul.f32.gmra.mxu0 %v3688
        %v3739 = vpop.f32.mrf.mxu0
        %v3740 = vadd.f32 0.0, %v3739
        %3741 = vdwg.mxu0
        %v3742 = vsel %vm1415, %v3722, -inf
        %3743 = vmax.xlane.f32.xlu0 %v3742
        %v3744 = vpop.xlane.xlu0 %3743
        %v3745 = vsel %vm1415, %v3725, -inf
        %3746 = vmax.xlane.f32.xlu0 %v3745
        %v3747 = vpop.xlane.xlu0 %3746
        %v3748 = vsel %vm1415, %v3728, -inf
        %3749 = vmax.xlane.f32.xlu0 %v3748
        %v3750 = vpop.xlane.xlu0 %3749
        %v3751 = vsel %vm1415, %v3731, -inf
        %3752 = vmax.xlane.f32.xlu0 %v3751
        %v3753 = vpop.xlane.xlu0 %3752
        %v3754 = vsel %vm1415, %v3734, -inf
        %3755 = vmax.xlane.f32.xlu0 %v3754
        %v3756 = vpop.xlane.xlu0 %3755
        %v3757 = vsel %vm1415, %v3737, -inf
        %3758 = vmax.xlane.f32.xlu0 %v3757
        %v3759 = vpop.xlane.xlu0 %3758
        %v3760 = vsel %vm1434, %v3740, -inf
        %3761 = vmax.xlane.f32.xlu0 %v3760
        %v3762 = vpop.xlane.xlu0 %3761
        %v3763 = vsub.f32 %v3722, %v3744
        %v3764 = vsub.f32 %v3725, %v3747
        %v3765 = vsub.f32 %v3728, %v3750
        %v3766 = vsub.f32 %v3731, %v3753
        %v3767 = vsub.f32 %v3734, %v3756
        %v3768 = vsub.f32 %v3737, %v3759
        %v3769 = vsub.f32 %v3740, %v3762
        %v3770 = vmul.f32 %v3763, 1.442695
        %v3771 = vpow.pop %v3770
        %v3772 = vmul.f32 %v3764, 1.442695
        %v3773 = vpow.pop %v3772
        %v3774 = vmul.f32 %v3765, 1.442695
        %v3775 = vpow.pop %v3774
        %v3776 = vmul.f32 %v3766, 1.442695
        %v3777 = vpow.pop %v3776
        %v3778 = vmul.f32 %v3767, 1.442695
        %v3779 = vpow.pop %v3778
        %v3780 = vmul.f32 %v3768, 1.442695
        %v3781 = vpow.pop %v3780
        %v3782 = vmul.f32 %v3769, 1.442695
        %v3783 = vpow.pop %v3782
        %v3784 = vsel %vm1415, %v3771, 0.0
        %3785 = vadd.xlane.f32.xlu0 %v3784
        %v3786 = vpop.xlane.xlu0 %3785
        %v3787 = vsel %vm1415, %v3773, 0.0
        %3788 = vadd.xlane.f32.xlu0 %v3787
        %v3789 = vpop.xlane.xlu0 %3788
        %v3790 = vsel %vm1415, %v3775, 0.0
        %3791 = vadd.xlane.f32.xlu0 %v3790
        %v3792 = vpop.xlane.xlu0 %3791
        %v3793 = vsel %vm1415, %v3777, 0.0
        %3794 = vadd.xlane.f32.xlu0 %v3793
        %v3795 = vpop.xlane.xlu0 %3794
        %v3796 = vsel %vm1415, %v3779, 0.0
        %3797 = vadd.xlane.f32.xlu0 %v3796
        %v3798 = vpop.xlane.xlu0 %3797
        %v3799 = vsel %vm1415, %v3781, 0.0
        %3800 = vadd.xlane.f32.xlu0 %v3799
        %v3801 = vpop.xlane.xlu0 %3800
        %v3802 = vsel %vm1434, %v3783, 0.0
        %3803 = vadd.xlane.f32.xlu0 %v3802
        %v3804 = vpop.xlane.xlu0 %3803
        %v3805 = vrcp.pop %v3786
        %v3806 = vrcp.pop %v3789
        %v3807 = vrcp.pop %v3792
        %v3808 = vrcp.pop %v3795
        %v3809 = vrcp.pop %v3798
        %v3810 = vrcp.pop %v3801
        %v3811 = vrcp.pop %v3804
        %v3812 = vmul.f32 %v3771, %v3805
        %v3813 = vmul.f32 %v3773, %v3806
        %v3814 = vmul.f32 %v3775, %v3807
        %v3815 = vmul.f32 %v3777, %v3808
        %v3816 = vmul.f32 %v3779, %v3809
        %v3817 = vmul.f32 %v3781, %v3810
        %v3818 = vmul.f32 %v3783, %v3811
        %3819 = vrot.lane.b32.xlu0 %v3151, 112
        %v3820 = vpop.permute.xlu0 %3819
        %3821 = vrot.lane.b32.xlu0 %v3154, 112
        %v3822 = vpop.permute.xlu0 %3821
        %3823 = vrot.lane.b32.xlu0 %v3157, 112
        %v3824 = vpop.permute.xlu0 %3823
        %3825 = vrot.lane.b32.xlu0 %v3160, 112
        %v3826 = vpop.permute.xlu0 %3825
        %3827 = vrot.lane.b32.xlu0 %v3163, 112
        %v3828 = vpop.permute.xlu0 %3827
        %3829 = vrot.lane.b32.xlu0 %v3166, 112
        %v3830 = vpop.permute.xlu0 %3829
        %3831 = vrot.lane.b32.xlu0 %v3169, 112
        %v3832 = vpop.permute.xlu0 %3831
        %v3840 = vsel %vm1415, %v3812, 0
        %v3843 = vsel %vm1415, %v3813, 0
        %v3846 = vsel %vm1415, %v3814, 0
        %v3849 = vsel %vm1415, %v3815, 0
        %v3852 = vsel %vm1415, %v3816, 0
        %v3855 = vsel %vm1415, %v3817, 0
        %v3858 = vsel %vm1415, %v3818, 0
        %v3860 = vsel %vm1515, %v3832, 0
        %3862 = vmatpush.msra.mxu0 0.0
        %3863 = vmatpush.msra.mxu0 0.0
        %3864 = vmatpush.msra.mxu0 0.0
        %3865 = vmatpush.msra.mxu0 0.0
        %3866 = vmatpush.msra.mxu0 0.0
        %3867 = vmatpush.msra.mxu0 0.0
        %3868 = vmatpush.msra.mxu0 0.0
        %3869 = vmatpush.msra.mxu0 0.0
        %3870 = vmatpush.msra.mxu0 0.0
        %3871 = vmatpush.msra.mxu0 %v3860
        %3872 = vmatpush.msra.mxu0 %v3830
        %3873 = vmatpush.msra.mxu0 %v3828
        %3874 = vmatpush.msra.mxu0 %v3826
        %3875 = vmatpush.msra.mxu0 %v3824
        %3876 = vmatpush.msra.mxu0 %v3822
        %3877 = vmatpush.msra.mxu0 %v3820
        %3878 = vmatmul.f32.gmra.mxu0 %v3840
        %v3879 = vpop.f32.mrf.mxu0
        %v3880 = vadd.f32 0.0, %v3879
        %3881 = vmatmul.f32.gmra.mxu0 %v3843
        %v3882 = vpop.f32.mrf.mxu0
        %v3883 = vadd.f32 0.0, %v3882
        %3884 = vmatmul.f32.gmra.mxu0 %v3846
        %v3885 = vpop.f32.mrf.mxu0
        %v3886 = vadd.f32 0.0, %v3885
        %3887 = vmatmul.f32.gmra.mxu0 %v3849
        %v3888 = vpop.f32.mrf.mxu0
        %v3889 = vadd.f32 0.0, %v3888
        %3890 = vmatmul.f32.gmra.mxu0 %v3852
        %v3891 = vpop.f32.mrf.mxu0
        %v3892 = vadd.f32 0.0, %v3891
        %3893 = vmatmul.f32.gmra.mxu0 %v3855
        %v3894 = vpop.f32.mrf.mxu0
        %v3895 = vadd.f32 0.0, %v3894
        %3896 = vmatmul.f32.gmra.mxu0 %v3858
        %v3897 = vpop.f32.mrf.mxu0
        %v3898 = vadd.f32 0.0, %v3897
        %3899 = vdwg.mxu0
        %3900 = vrot.lane.b32.xlu0 %v3068, 104
        %v3901 = vpop.permute.xlu0 %3900
        %3902 = vrot.lane.b32.xlu0 %v3069, 104
        %v3903 = vpop.permute.xlu0 %3902
        %3904 = vrot.lane.b32.xlu0 %v3070, 104
        %v3905 = vpop.permute.xlu0 %3904
        %3906 = vrot.lane.b32.xlu0 %v3071, 104
        %v3907 = vpop.permute.xlu0 %3906
        %3908 = vrot.lane.b32.xlu0 %v3072, 104
        %v3909 = vpop.permute.xlu0 %3908
        %3910 = vrot.lane.b32.xlu0 %v3073, 104
        %v3911 = vpop.permute.xlu0 %3910
        %3912 = vrot.lane.b32.xlu0 %v3074, 104
        %v3913 = vpop.permute.xlu0 %3912
        %3914 = vrot.lane.b32.xlu0 %v3103, 104
        %v3915 = vpop.permute.xlu0 %3914
        %3916 = vrot.lane.b32.xlu0 %v3106, 104
        %v3917 = vpop.permute.xlu0 %3916
        %3918 = vrot.lane.b32.xlu0 %v3109, 104
        %v3919 = vpop.permute.xlu0 %3918
        %3920 = vrot.lane.b32.xlu0 %v3112, 104
        %v3921 = vpop.permute.xlu0 %3920
        %3922 = vrot.lane.b32.xlu0 %v3115, 104
        %v3923 = vpop.permute.xlu0 %3922
        %3924 = vrot.lane.b32.xlu0 %v3118, 104
        %v3925 = vpop.permute.xlu0 %3924
        %3926 = vrot.lane.b32.xlu0 %v3121, 104
        %v3927 = vpop.permute.xlu0 %3926
        %v3928 = vsel %vm1334, %v3901, 0
        %v3930 = vsel %vm1334, %v3903, 0
        %v3932 = vsel %vm1334, %v3905, 0
        %v3934 = vsel %vm1334, %v3907, 0
        %v3936 = vsel %vm1334, %v3909, 0
        %v3938 = vsel %vm1334, %v3911, 0
        %v3940 = vsel %vm1334, %v3913, 0
        %v3942 = vsel %vm1334, %v3915, 0
        %v3944 = vsel %vm1334, %v3917, 0
        %v3946 = vsel %vm1334, %v3919, 0
        %v3948 = vsel %vm1334, %v3921, 0
        %v3950 = vsel %vm1334, %v3923, 0
        %v3952 = vsel %vm1334, %v3925, 0
        %v3954 = vsel %vm1334, %v3927, 0
        %3956 = vmatpush.xpose.msra.mxu0 0.0
        %3957 = vmatpush.xpose.msra.mxu0 0.0
        %3958 = vmatpush.xpose.msra.mxu0 0.0
        %3959 = vmatpush.xpose.msra.mxu0 0.0
        %3960 = vmatpush.xpose.msra.mxu0 0.0
        %3961 = vmatpush.xpose.msra.mxu0 0.0
        %3962 = vmatpush.xpose.msra.mxu0 0.0
        %3963 = vmatpush.xpose.msra.mxu0 0.0
        %3964 = vmatpush.xpose.msra.mxu0 0.0
        %3965 = vmatpush.xpose.msra.mxu0 %v3954
        %3966 = vmatpush.xpose.msra.mxu0 %v3952
        %3967 = vmatpush.xpose.msra.mxu0 %v3950
        %3968 = vmatpush.xpose.msra.mxu0 %v3948
        %3969 = vmatpush.xpose.msra.mxu0 %v3946
        %3970 = vmatpush.xpose.msra.mxu0 %v3944
        %3971 = vmatpush.xpose.msra.mxu0 %v3942
        %3972 = vmatmul.f32.gmra.mxu0 %v3928
        %v3973 = vpop.f32.mrf.mxu0
        %v3974 = vadd.f32 0.0, %v3973
        %3975 = vmatmul.f32.gmra.mxu0 %v3930
        %v3976 = vpop.f32.mrf.mxu0
        %v3977 = vadd.f32 0.0, %v3976
        %3978 = vmatmul.f32.gmra.mxu0 %v3932
        %v3979 = vpop.f32.mrf.mxu0
        %v3980 = vadd.f32 0.0, %v3979
        %3981 = vmatmul.f32.gmra.mxu0 %v3934
        %v3982 = vpop.f32.mrf.mxu0
        %v3983 = vadd.f32 0.0, %v3982
        %3984 = vmatmul.f32.gmra.mxu0 %v3936
        %v3985 = vpop.f32.mrf.mxu0
        %v3986 = vadd.f32 0.0, %v3985
        %3987 = vmatmul.f32.gmra.mxu0 %v3938
        %v3988 = vpop.f32.mrf.mxu0
        %v3989 = vadd.f32 0.0, %v3988
        %3990 = vmatmul.f32.gmra.mxu0 %v3940
        %v3991 = vpop.f32.mrf.mxu0
        %v3992 = vadd.f32 0.0, %v3991
        %3993 = vdwg.mxu0
        %v3994 = vsel %vm1415, %v3974, -inf
        %3995 = vmax.xlane.f32.xlu0 %v3994
        %v3996 = vpop.xlane.xlu0 %3995
        %v3997 = vsel %vm1415, %v3977, -inf
        %3998 = vmax.xlane.f32.xlu0 %v3997
        %v3999 = vpop.xlane.xlu0 %3998
        %v4000 = vsel %vm1415, %v3980, -inf
        %4001 = vmax.xlane.f32.xlu0 %v4000
        %v4002 = vpop.xlane.xlu0 %4001
        %v4003 = vsel %vm1415, %v3983, -inf
        %4004 = vmax.xlane.f32.xlu0 %v4003
        %v4005 = vpop.xlane.xlu0 %4004
        %v4006 = vsel %vm1415, %v3986, -inf
        %4007 = vmax.xlane.f32.xlu0 %v4006
        %v4008 = vpop.xlane.xlu0 %4007
        %v4009 = vsel %vm1415, %v3989, -inf
        %4010 = vmax.xlane.f32.xlu0 %v4009
        %v4011 = vpop.xlane.xlu0 %4010
        %v4012 = vsel %vm1434, %v3992, -inf
        %4013 = vmax.xlane.f32.xlu0 %v4012
        %v4014 = vpop.xlane.xlu0 %4013
        %v4015 = vsub.f32 %v3974, %v3996
        %v4016 = vsub.f32 %v3977, %v3999
        %v4017 = vsub.f32 %v3980, %v4002
        %v4018 = vsub.f32 %v3983, %v4005
        %v4019 = vsub.f32 %v3986, %v4008
        %v4020 = vsub.f32 %v3989, %v4011
        %v4021 = vsub.f32 %v3992, %v4014
        %v4022 = vmul.f32 %v4015, 1.442695
        %v4023 = vpow.pop %v4022
        %v4024 = vmul.f32 %v4016, 1.442695
        %v4025 = vpow.pop %v4024
        %v4026 = vmul.f32 %v4017, 1.442695
        %v4027 = vpow.pop %v4026
        %v4028 = vmul.f32 %v4018, 1.442695
        %v4029 = vpow.pop %v4028
        %v4030 = vmul.f32 %v4019, 1.442695
        %v4031 = vpow.pop %v4030
        %v4032 = vmul.f32 %v4020, 1.442695
        %v4033 = vpow.pop %v4032
        %v4034 = vmul.f32 %v4021, 1.442695
        %v4035 = vpow.pop %v4034
        %v4036 = vsel %vm1415, %v4023, 0.0
        %4037 = vadd.xlane.f32.xlu0 %v4036
        %v4038 = vpop.xlane.xlu0 %4037
        %v4039 = vsel %vm1415, %v4025, 0.0
        %4040 = vadd.xlane.f32.xlu0 %v4039
        %v4041 = vpop.xlane.xlu0 %4040
        %v4042 = vsel %vm1415, %v4027, 0.0
        %4043 = vadd.xlane.f32.xlu0 %v4042
        %v4044 = vpop.xlane.xlu0 %4043
        %v4045 = vsel %vm1415, %v4029, 0.0
        %4046 = vadd.xlane.f32.xlu0 %v4045
        %v4047 = vpop.xlane.xlu0 %4046
        %v4048 = vsel %vm1415, %v4031, 0.0
        %4049 = vadd.xlane.f32.xlu0 %v4048
        %v4050 = vpop.xlane.xlu0 %4049
        %v4051 = vsel %vm1415, %v4033, 0.0
        %4052 = vadd.xlane.f32.xlu0 %v4051
        %v4053 = vpop.xlane.xlu0 %4052
        %v4054 = vsel %vm1434, %v4035, 0.0
        %4055 = vadd.xlane.f32.xlu0 %v4054
        %v4056 = vpop.xlane.xlu0 %4055
        %v4057 = vrcp.pop %v4038
        %v4058 = vrcp.pop %v4041
        %v4059 = vrcp.pop %v4044
        %v4060 = vrcp.pop %v4047
        %v4061 = vrcp.pop %v4050
        %v4062 = vrcp.pop %v4053
        %v4063 = vrcp.pop %v4056
        %v4064 = vmul.f32 %v4023, %v4057
        %v4065 = vmul.f32 %v4025, %v4058
        %v4066 = vmul.f32 %v4027, %v4059
        %v4067 = vmul.f32 %v4029, %v4060
        %v4068 = vmul.f32 %v4031, %v4061
        %v4069 = vmul.f32 %v4033, %v4062
        %v4070 = vmul.f32 %v4035, %v4063
        %4071 = vrot.lane.b32.xlu0 %v3151, 104
        %v4072 = vpop.permute.xlu0 %4071
        %4073 = vrot.lane.b32.xlu0 %v3154, 104
        %v4074 = vpop.permute.xlu0 %4073
        %4075 = vrot.lane.b32.xlu0 %v3157, 104
        %v4076 = vpop.permute.xlu0 %4075
        %4077 = vrot.lane.b32.xlu0 %v3160, 104
        %v4078 = vpop.permute.xlu0 %4077
        %4079 = vrot.lane.b32.xlu0 %v3163, 104
        %v4080 = vpop.permute.xlu0 %4079
        %4081 = vrot.lane.b32.xlu0 %v3166, 104
        %v4082 = vpop.permute.xlu0 %4081
        %4083 = vrot.lane.b32.xlu0 %v3169, 104
        %v4084 = vpop.permute.xlu0 %4083
        %v4092 = vsel %vm1415, %v4064, 0
        %v4095 = vsel %vm1415, %v4065, 0
        %v4098 = vsel %vm1415, %v4066, 0
        %v4101 = vsel %vm1415, %v4067, 0
        %v4104 = vsel %vm1415, %v4068, 0
        %v4107 = vsel %vm1415, %v4069, 0
        %v4110 = vsel %vm1415, %v4070, 0
        %v4112 = vsel %vm1515, %v4084, 0
        %4114 = vmatpush.msra.mxu0 0.0
        %4115 = vmatpush.msra.mxu0 0.0
        %4116 = vmatpush.msra.mxu0 0.0
        %4117 = vmatpush.msra.mxu0 0.0
        %4118 = vmatpush.msra.mxu0 0.0
        %4119 = vmatpush.msra.mxu0 0.0
        %4120 = vmatpush.msra.mxu0 0.0
        %4121 = vmatpush.msra.mxu0 0.0
        %4122 = vmatpush.msra.mxu0 0.0
        %4123 = vmatpush.msra.mxu0 %v4112
        %4124 = vmatpush.msra.mxu0 %v4082
        %4125 = vmatpush.msra.mxu0 %v4080
        %4126 = vmatpush.msra.mxu0 %v4078
        %4127 = vmatpush.msra.mxu0 %v4076
        %4128 = vmatpush.msra.mxu0 %v4074
        %4129 = vmatpush.msra.mxu0 %v4072
        %4130 = vmatmul.f32.gmra.mxu0 %v4092
        %v4131 = vpop.f32.mrf.mxu0
        %v4132 = vadd.f32 0.0, %v4131
        %4133 = vmatmul.f32.gmra.mxu0 %v4095
        %v4134 = vpop.f32.mrf.mxu0
        %v4135 = vadd.f32 0.0, %v4134
        %4136 = vmatmul.f32.gmra.mxu0 %v4098
        %v4137 = vpop.f32.mrf.mxu0
        %v4138 = vadd.f32 0.0, %v4137
        %4139 = vmatmul.f32.gmra.mxu0 %v4101
        %v4140 = vpop.f32.mrf.mxu0
        %v4141 = vadd.f32 0.0, %v4140
        %4142 = vmatmul.f32.gmra.mxu0 %v4104
        %v4143 = vpop.f32.mrf.mxu0
        %v4144 = vadd.f32 0.0, %v4143
        %4145 = vmatmul.f32.gmra.mxu0 %v4107
        %v4146 = vpop.f32.mrf.mxu0
        %v4147 = vadd.f32 0.0, %v4146
        %4148 = vmatmul.f32.gmra.mxu0 %v4110
        %v4149 = vpop.f32.mrf.mxu0
        %v4150 = vadd.f32 0.0, %v4149
        %4151 = vdwg.mxu0
        %4159 = vrot.lane.b32.xlu0 %v3628, 8
        %v4160 = vpop.permute.xlu0 %4159
        %4161 = vrot.lane.b32.xlu0 %v3631, 8
        %v4162 = vpop.permute.xlu0 %4161
        %4163 = vrot.lane.b32.xlu0 %v3634, 8
        %v4164 = vpop.permute.xlu0 %4163
        %4165 = vrot.lane.b32.xlu0 %v3637, 8
        %v4166 = vpop.permute.xlu0 %4165
        %4167 = vrot.lane.b32.xlu0 %v3640, 8
        %v4168 = vpop.permute.xlu0 %4167
        %4169 = vrot.lane.b32.xlu0 %v3643, 8
        %v4170 = vpop.permute.xlu0 %4169
        %4171 = vrot.lane.b32.xlu0 %v3646, 8
        %v4172 = vpop.permute.xlu0 %4171
        %4187 = vrot.lane.b32.xlu0 %v3880, 16
        %v4188 = vpop.permute.xlu0 %4187
        %4189 = vrot.lane.b32.xlu0 %v3883, 16
        %v4190 = vpop.permute.xlu0 %4189
        %4191 = vrot.lane.b32.xlu0 %v3886, 16
        %v4192 = vpop.permute.xlu0 %4191
        %4193 = vrot.lane.b32.xlu0 %v3889, 16
        %v4194 = vpop.permute.xlu0 %4193
        %4195 = vrot.lane.b32.xlu0 %v3892, 16
        %v4196 = vpop.permute.xlu0 %4195
        %4197 = vrot.lane.b32.xlu0 %v3895, 16
        %v4198 = vpop.permute.xlu0 %4197
        %4199 = vrot.lane.b32.xlu0 %v3898, 16
        %v4200 = vpop.permute.xlu0 %4199
        %4215 = vrot.lane.b32.xlu0 %v4132, 24
        %v4216 = vpop.permute.xlu0 %4215
        %4217 = vrot.lane.b32.xlu0 %v4135, 24
        %v4218 = vpop.permute.xlu0 %4217
        %4219 = vrot.lane.b32.xlu0 %v4138, 24
        %v4220 = vpop.permute.xlu0 %4219
        %4221 = vrot.lane.b32.xlu0 %v4141, 24
        %v4222 = vpop.permute.xlu0 %4221
        %4223 = vrot.lane.b32.xlu0 %v4144, 24
        %v4224 = vpop.permute.xlu0 %4223
        %4225 = vrot.lane.b32.xlu0 %v4147, 24
        %v4226 = vpop.permute.xlu0 %4225
        %4227 = vrot.lane.b32.xlu0 %v4150, 24
        %v4228 = vpop.permute.xlu0 %4227
        %v4236 = vsel %vm1334, %v3370, %v4160
        %v4237 = vsel %vm1334, %v3373, %v4162
        %v4238 = vsel %vm1334, %v3376, %v4164
        %v4239 = vsel %vm1334, %v3379, %v4166
        %v4240 = vsel %vm1334, %v3382, %v4168
        %v4241 = vsel %vm1334, %v3385, %v4170
        %v4242 = vsel %vm1334, %v3388, %v4172
        %v4243 = vsel %vm2410, %v4236, %v4188
        %v4244 = vsel %vm2410, %v4237, %v4190
        %v4245 = vsel %vm2410, %v4238, %v4192
        %v4246 = vsel %vm2410, %v4239, %v4194
        %v4247 = vsel %vm2410, %v4240, %v4196
        %v4248 = vsel %vm2410, %v4241, %v4198
        %v4249 = vsel %vm2410, %v4242, %v4200
        %v4250 = vsel %vm835, %v4243, %v4216
        %v4251 = vsel %vm835, %v4244, %v4218
        %v4252 = vsel %vm835, %v4245, %v4220
        %v4253 = vsel %vm835, %v4246, %v4222
        %v4254 = vsel %vm835, %v4247, %v4224
        %v4255 = vsel %vm835, %v4248, %v4226
        %v4256 = vsel %vm835, %v4249, %v4228
        %s4257 = scalar_lea.vmem [#allocation4], 32
        %v4258 = vld [vmem:[%s4257] sm:$0xff]
        %v4259 = vld [vmem:[%s4257 + $0x8] sm:$0xff]
        %v4260 = vld [vmem:[%s4257 + $0x10] sm:$0xff]
        %v4261 = vld [vmem:[%s4257 + $0x18] sm:$0xff]
        %s4262 = scalar_lea.vmem %s15, 1
        %v4263 = vld [vmem:[%s4262] sm:$0x1]
        %v4265 = vperm.slane %v4263, 0
        %v4268 = vsel %vm897, %v4250, 0
        %v4271 = vsel %vm897, %v4251, 0
        %v4274 = vsel %vm897, %v4252, 0
        %v4277 = vsel %vm897, %v4253, 0
        %v4280 = vsel %vm897, %v4254, 0
        %v4283 = vsel %vm897, %v4255, 0
        %v4286 = vsel %vm897, %v4256, 0
        %4288 = vmatpush.msra.mxu0 0.0
        %4289 = vmatpush.msra.mxu0 0.0
        %4290 = vmatpush.msra.mxu0 0.0
        %4291 = vmatpush.msra.mxu0 0.0
        %4292 = vmatpush.msra.mxu0 0.0
        %4293 = vmatpush.msra.mxu0 0.0
        %4294 = vmatpush.msra.mxu0 0.0
        %4295 = vmatpush.msra.mxu0 0.0
        %4296 = vmatpush.msra.mxu0 0.0
        %4297 = vmatpush.msra.mxu0 0.0
        %4298 = vmatpush.msra.mxu0 0.0
        %4299 = vmatpush.msra.mxu0 0.0
        %4300 = vmatpush.msra.mxu0 %v4261
        %4301 = vmatpush.msra.mxu0 %v4260
        %4302 = vmatpush.msra.mxu0 %v4259
        %4303 = vmatpush.msra.mxu0 %v4258
        %4304 = vmatmul.f32.gmra.mxu0 %v4268
        %v4305 = vpop.f32.mrf.mxu0
        %v4306 = vadd.f32 %v4265, %v4305
        %4307 = vmatmul.f32.gmra.mxu0 %v4271
        %v4308 = vpop.f32.mrf.mxu0
        %v4309 = vadd.f32 %v4265, %v4308
        %4310 = vmatmul.f32.gmra.mxu0 %v4274
        %v4311 = vpop.f32.mrf.mxu0
        %v4312 = vadd.f32 %v4265, %v4311
        %4313 = vmatmul.f32.gmra.mxu0 %v4277
        %v4314 = vpop.f32.mrf.mxu0
        %v4315 = vadd.f32 %v4265, %v4314
        %4316 = vmatmul.f32.gmra.mxu0 %v4280
        %v4317 = vpop.f32.mrf.mxu0
        %v4318 = vadd.f32 %v4265, %v4317
        %4319 = vmatmul.f32.gmra.mxu0 %v4283
        %v4320 = vpop.f32.mrf.mxu0
        %v4321 = vadd.f32 %v4265, %v4320
        %4322 = vmatmul.f32.gmra.mxu0 %v4286
        %v4323 = vpop.f32.mrf.mxu0
        %v4324 = vadd.f32 %v4265, %v4323
        %4325 = vdwg.mxu0
        %v4326 = vadd.f32 %v2992, %v4306
        %v4327 = vadd.f32 %v2993, %v4309
        %v4328 = vadd.f32 %v2994, %v4312
        %v4329 = vadd.f32 %v2995, %v4315
        %v4330 = vadd.f32 %v2996, %v4318
        %v4331 = vadd.f32 %v2997, %v4321
        %v4332 = vadd.f32 %v2998, %v4324
        %s4333 = scalar_lea.vmem %s16, 1
        %v4334 = vld [vmem:[%s4333] sm:$0x1]
        %s4335 = scalar_lea.vmem %s17, 1
        %v4336 = vld [vmem:[%s4335] sm:$0x1]
        %v4337 = vsel %vm897, %v4326, 0.0
        %4338 = vadd.xlane.f32.xlu0 %v4337
        %v4339 = vpop.xlane.xlu0 %4338
        %v4340 = vsel %vm897, %v4327, 0.0
        %4341 = vadd.xlane.f32.xlu0 %v4340
        %v4342 = vpop.xlane.xlu0 %4341
        %v4343 = vsel %vm897, %v4328, 0.0
        %4344 = vadd.xlane.f32.xlu0 %v4343
        %v4345 = vpop.xlane.xlu0 %4344
        %v4346 = vsel %vm897, %v4329, 0.0
        %4347 = vadd.xlane.f32.xlu0 %v4346
        %v4348 = vpop.xlane.xlu0 %4347
        %v4349 = vsel %vm897, %v4330, 0.0
        %4350 = vadd.xlane.f32.xlu0 %v4349
        %v4351 = vpop.xlane.xlu0 %4350
        %v4352 = vsel %vm897, %v4331, 0.0
        %4353 = vadd.xlane.f32.xlu0 %v4352
        %v4354 = vpop.xlane.xlu0 %4353
        %v4355 = vsel %vm916, %v4332, 0.0
        %4356 = vadd.xlane.f32.xlu0 %v4355
        %v4357 = vpop.xlane.xlu0 %4356
        %v4358 = vmul.f32 %v4339, %v926
        %v4359 = vmul.f32 %v4342, %v926
        %v4360 = vmul.f32 %v4345, %v926
        %v4361 = vmul.f32 %v4348, %v926
        %v4362 = vmul.f32 %v4351, %v926
        %v4363 = vmul.f32 %v4354, %v926
        %v4364 = vmul.f32 %v4357, %v926
        %v4365 = vsub.f32 %v4326, %v4358
        %v4366 = vsub.f32 %v4327, %v4359
        %v4367 = vsub.f32 %v4328, %v4360
        %v4368 = vsub.f32 %v4329, %v4361
        %v4369 = vsub.f32 %v4330, %v4362
        %v4370 = vsub.f32 %v4331, %v4363
        %v4371 = vsub.f32 %v4332, %v4364
        %v4372 = vmul.f32 %v4365, %v4365
        %v4373 = vmul.f32 %v4366, %v4366
        %v4374 = vmul.f32 %v4367, %v4367
        %v4375 = vmul.f32 %v4368, %v4368
        %v4376 = vmul.f32 %v4369, %v4369
        %v4377 = vmul.f32 %v4370, %v4370
        %v4378 = vmul.f32 %v4371, %v4371
        %v4379 = vsel %vm897, %v4372, 0.0
        %4380 = vadd.xlane.f32.xlu0 %v4379
        %v4381 = vpop.xlane.xlu0 %4380
        %v4382 = vsel %vm897, %v4373, 0.0
        %4383 = vadd.xlane.f32.xlu0 %v4382
        %v4384 = vpop.xlane.xlu0 %4383
        %v4385 = vsel %vm897, %v4374, 0.0
        %4386 = vadd.xlane.f32.xlu0 %v4385
        %v4387 = vpop.xlane.xlu0 %4386
        %v4388 = vsel %vm897, %v4375, 0.0
        %4389 = vadd.xlane.f32.xlu0 %v4388
        %v4390 = vpop.xlane.xlu0 %4389
        %v4391 = vsel %vm897, %v4376, 0.0
        %4392 = vadd.xlane.f32.xlu0 %v4391
        %v4393 = vpop.xlane.xlu0 %4392
        %v4394 = vsel %vm897, %v4377, 0.0
        %4395 = vadd.xlane.f32.xlu0 %v4394
        %v4396 = vpop.xlane.xlu0 %4395
        %v4397 = vsel %vm916, %v4378, 0.0
        %4398 = vadd.xlane.f32.xlu0 %v4397
        %v4399 = vpop.xlane.xlu0 %4398
        %v4400 = vmul.f32 %v4381, %v926
        %v4401 = vmul.f32 %v4384, %v926
        %v4402 = vmul.f32 %v4387, %v926
        %v4403 = vmul.f32 %v4390, %v926
        %v4404 = vmul.f32 %v4393, %v926
        %v4405 = vmul.f32 %v4396, %v926
        %v4406 = vmul.f32 %v4399, %v926
        %v4407 = vadd.f32 %v4400, 1e-05
        %v4408 = vadd.f32 %v4401, 1e-05
        %v4409 = vadd.f32 %v4402, 1e-05
        %v4410 = vadd.f32 %v4403, 1e-05
        %v4411 = vadd.f32 %v4404, 1e-05
        %v4412 = vadd.f32 %v4405, 1e-05
        %v4413 = vadd.f32 %v4406, 1e-05
        %v4414 = vrsqrt.pop %v4407
        %v4415 = vmul.f32 %v4414, %v4407
        %v4416 = vmul.f32 %v4415, %v4414
        %v4417 = vmul.f32 0.5, %v4416
        %v4418 = vsub.f32 1.5, %v4417
        %v4419 = vmul.f32 %v4414, %v4418
        %vm4420 = vweird.f32 %v4407
        %vm4421 = vweird.f32 %v4414
        %vm4422 = vmor %vm4420, %vm4421
        %v4423 = vsel %vm4422, %v4414, %v4419
        %v4424 = vrsqrt.pop %v4408
        %v4425 = vmul.f32 %v4424, %v4408
        %v4426 = vmul.f32 %v4425, %v4424
        %v4427 = vmul.f32 0.5, %v4426
        %v4428 = vsub.f32 1.5, %v4427
        %v4429 = vmul.f32 %v4424, %v4428
        %vm4430 = vweird.f32 %v4408
        %vm4431 = vweird.f32 %v4424
        %vm4432 = vmor %vm4430, %vm4431
        %v4433 = vsel %vm4432, %v4424, %v4429
        %v4434 = vrsqrt.pop %v4409
        %v4435 = vmul.f32 %v4434, %v4409
        %v4436 = vmul.f32 %v4435, %v4434
        %v4437 = vmul.f32 0.5, %v4436
        %v4438 = vsub.f32 1.5, %v4437
        %v4439 = vmul.f32 %v4434, %v4438
        %vm4440 = vweird.f32 %v4409
        %vm4441 = vweird.f32 %v4434
        %vm4442 = vmor %vm4440, %vm4441
        %v4443 = vsel %vm4442, %v4434, %v4439
        %v4444 = vrsqrt.pop %v4410
        %v4445 = vmul.f32 %v4444, %v4410
        %v4446 = vmul.f32 %v4445, %v4444
        %v4447 = vmul.f32 0.5, %v4446
        %v4448 = vsub.f32 1.5, %v4447
        %v4449 = vmul.f32 %v4444, %v4448
        %vm4450 = vweird.f32 %v4410
        %vm4451 = vweird.f32 %v4444
        %vm4452 = vmor %vm4450, %vm4451
        %v4453 = vsel %vm4452, %v4444, %v4449
        %v4454 = vrsqrt.pop %v4411
        %v4455 = vmul.f32 %v4454, %v4411
        %v4456 = vmul.f32 %v4455, %v4454
        %v4457 = vmul.f32 0.5, %v4456
        %v4458 = vsub.f32 1.5, %v4457
        %v4459 = vmul.f32 %v4454, %v4458
        %vm4460 = vweird.f32 %v4411
        %vm4461 = vweird.f32 %v4454
        %vm4462 = vmor %vm4460, %vm4461
        %v4463 = vsel %vm4462, %v4454, %v4459
        %v4464 = vrsqrt.pop %v4412
        %v4465 = vmul.f32 %v4464, %v4412
        %v4466 = vmul.f32 %v4465, %v4464
        %v4467 = vmul.f32 0.5, %v4466
        %v4468 = vsub.f32 1.5, %v4467
        %v4469 = vmul.f32 %v4464, %v4468
        %vm4470 = vweird.f32 %v4412
        %vm4471 = vweird.f32 %v4464
        %vm4472 = vmor %vm4470, %vm4471
        %v4473 = vsel %vm4472, %v4464, %v4469
        %v4474 = vrsqrt.pop %v4413
        %v4475 = vmul.f32 %v4474, %v4413
        %v4476 = vmul.f32 %v4475, %v4474
        %v4477 = vmul.f32 0.5, %v4476
        %v4478 = vsub.f32 1.5, %v4477
        %v4479 = vmul.f32 %v4474, %v4478
        %vm4480 = vweird.f32 %v4413
        %vm4481 = vweird.f32 %v4474
        %vm4482 = vmor %vm4480, %vm4481
        %v4483 = vsel %vm4482, %v4474, %v4479
        %v4484 = vmul.f32 %v4365, %v4423
        %v4485 = vmul.f32 %v4366, %v4433
        %v4486 = vmul.f32 %v4367, %v4443
        %v4487 = vmul.f32 %v4368, %v4453
        %v4488 = vmul.f32 %v4369, %v4463
        %v4489 = vmul.f32 %v4370, %v4473
        %v4490 = vmul.f32 %v4371, %v4483
        %v4492 = vperm.slane %v4334, 0
        %v4494 = vmul.f32 %v4484, %v4492
        %v4495 = vmul.f32 %v4485, %v4492
        %v4496 = vmul.f32 %v4486, %v4492
        %v4497 = vmul.f32 %v4487, %v4492
        %v4498 = vmul.f32 %v4488, %v4492
        %v4499 = vmul.f32 %v4489, %v4492
        %v4500 = vmul.f32 %v4490, %v4492
        %v4502 = vperm.slane %v4336, 0
        %v4504 = vadd.f32 %v4494, %v4502
        %v4505 = vadd.f32 %v4495, %v4502
        %v4506 = vadd.f32 %v4496, %v4502
        %v4507 = vadd.f32 %v4497, %v4502
        %v4508 = vadd.f32 %v4498, %v4502
        %v4509 = vadd.f32 %v4499, %v4502
        %v4510 = vadd.f32 %v4500, %v4502
        %s4511 = scalar_lea.vmem [#allocation6], 32
        %v4512 = vld [vmem:[%s4511] sm:$0xff]
        %v4513 = vld [vmem:[%s4511 + $0x8] sm:$0xff]
        %v4514 = vld [vmem:[%s4511 + $0x10] sm:$0xff]
        %v4515 = vld [vmem:[%s4511 + $0x18] sm:$0xff]
        %s4516 = scalar_lea.vmem %s19, 1
        %v4517 = vld [vmem:[%s4516] sm:$0x1]
        %v4519 = vperm.slane %v4517, 0
        %v4522 = vsel %vm897, %v4504, 0
        %v4525 = vsel %vm897, %v4505, 0
        %v4528 = vsel %vm897, %v4506, 0
        %v4531 = vsel %vm897, %v4507, 0
        %v4534 = vsel %vm897, %v4508, 0
        %v4537 = vsel %vm897, %v4509, 0
        %v4540 = vsel %vm897, %v4510, 0
        %4542 = vmatpush.msra.mxu0 0.0
        %4543 = vmatpush.msra.mxu0 0.0
        %4544 = vmatpush.msra.mxu0 0.0
        %4545 = vmatpush.msra.mxu0 0.0
        %4546 = vmatpush.msra.mxu0 0.0
        %4547 = vmatpush.msra.mxu0 0.0
        %4548 = vmatpush.msra.mxu0 0.0
        %4549 = vmatpush.msra.mxu0 0.0
        %4550 = vmatpush.msra.mxu0 0.0
        %4551 = vmatpush.msra.mxu0 0.0
        %4552 = vmatpush.msra.mxu0 0.0
        %4553 = vmatpush.msra.mxu0 0.0
        %4554 = vmatpush.msra.mxu0 %v4515
        %4555 = vmatpush.msra.mxu0 %v4514
        %4556 = vmatpush.msra.mxu0 %v4513
        %4557 = vmatpush.msra.mxu0 %v4512
        %4558 = vmatmul.f32.gmra.mxu0 %v4522
        %v4559 = vpop.f32.mrf.mxu0
        %v4560 = vadd.f32 %v4519, %v4559
        %4561 = vmatmul.f32.gmra.mxu0 %v4525
        %v4562 = vpop.f32.mrf.mxu0
        %v4563 = vadd.f32 %v4519, %v4562
        %4564 = vmatmul.f32.gmra.mxu0 %v4528
        %v4565 = vpop.f32.mrf.mxu0
        %v4566 = vadd.f32 %v4519, %v4565
        %4567 = vmatmul.f32.gmra.mxu0 %v4531
        %v4568 = vpop.f32.mrf.mxu0
        %v4569 = vadd.f32 %v4519, %v4568
        %4570 = vmatmul.f32.gmra.mxu0 %v4534
        %v4571 = vpop.f32.mrf.mxu0
        %v4572 = vadd.f32 %v4519, %v4571
        %4573 = vmatmul.f32.gmra.mxu0 %v4537
        %v4574 = vpop.f32.mrf.mxu0
        %v4575 = vadd.f32 %v4519, %v4574
        %4576 = vmatmul.f32.gmra.mxu0 %v4540
        %v4577 = vpop.f32.mrf.mxu0
        %v4578 = vadd.f32 %v4519, %v4577
        %4579 = vdwg.mxu0
        %v4580 = vmax.f32 %v4560, 0.0
        %v4581 = vmax.f32 %v4563, 0.0
        %v4582 = vmax.f32 %v4566, 0.0
        %v4583 = vmax.f32 %v4569, 0.0
        %v4584 = vmax.f32 %v4572, 0.0
        %v4585 = vmax.f32 %v4575, 0.0
        %v4586 = vmax.f32 %v4578, 0.0
        %s4587 = scalar_lea.vmem [#allocation7], 32
        %v4588 = vld [vmem:[%s4587] sm:$0xff]
        %v4589 = vld [vmem:[%s4587 + $0x8] sm:$0xff]
        %v4590 = vld [vmem:[%s4587 + $0x10] sm:$0xff]
        %v4591 = vld [vmem:[%s4587 + $0x18] sm:$0xff]
        %s4592 = scalar_lea.vmem %s21, 1
        %v4593 = vld [vmem:[%s4592] sm:$0x1]
        %v4595 = vperm.slane %v4593, 0
        %v4598 = vsel %vm897, %v4580, 0
        %v4601 = vsel %vm897, %v4581, 0
        %v4604 = vsel %vm897, %v4582, 0
        %v4607 = vsel %vm897, %v4583, 0
        %v4610 = vsel %vm897, %v4584, 0
        %v4613 = vsel %vm897, %v4585, 0
        %v4616 = vsel %vm897, %v4586, 0
        %4618 = vmatpush.msra.mxu0 0.0
        %4619 = vmatpush.msra.mxu0 0.0
        %4620 = vmatpush.msra.mxu0 0.0
        %4621 = vmatpush.msra.mxu0 0.0
        %4622 = vmatpush.msra.mxu0 0.0
        %4623 = vmatpush.msra.mxu0 0.0
        %4624 = vmatpush.msra.mxu0 0.0
        %4625 = vmatpush.msra.mxu0 0.0
        %4626 = vmatpush.msra.mxu0 0.0
        %4627 = vmatpush.msra.mxu0 0.0
        %4628 = vmatpush.msra.mxu0 0.0
        %4629 = vmatpush.msra.mxu0 0.0
        %4630 = vmatpush.msra.mxu0 %v4591
        %4631 = vmatpush.msra.mxu0 %v4590
        %4632 = vmatpush.msra.mxu0 %v4589
        %4633 = vmatpush.msra.mxu0 %v4588
        %4634 = vmatmul.f32.gmra.mxu0 %v4598
        %v4635 = vpop.f32.mrf.mxu0
        %v4636 = vadd.f32 %v4595, %v4635
        %4637 = vmatmul.f32.gmra.mxu0 %v4601
        %v4638 = vpop.f32.mrf.mxu0
        %v4639 = vadd.f32 %v4595, %v4638
        %4640 = vmatmul.f32.gmra.mxu0 %v4604
        %v4641 = vpop.f32.mrf.mxu0
        %v4642 = vadd.f32 %v4595, %v4641
        %4643 = vmatmul.f32.gmra.mxu0 %v4607
        %v4644 = vpop.f32.mrf.mxu0
        %v4645 = vadd.f32 %v4595, %v4644
        %4646 = vmatmul.f32.gmra.mxu0 %v4610
        %v4647 = vpop.f32.mrf.mxu0
        %v4648 = vadd.f32 %v4595, %v4647
        %4649 = vmatmul.f32.gmra.mxu0 %v4613
        %v4650 = vpop.f32.mrf.mxu0
        %v4651 = vadd.f32 %v4595, %v4650
        %4652 = vmatmul.f32.gmra.mxu0 %v4616
        %v4653 = vpop.f32.mrf.mxu0
        %v4654 = vadd.f32 %v4595, %v4653
        %4655 = vdwg.mxu0
        %v4656 = vadd.f32 %v4504, %v4636
        %v4657 = vadd.f32 %v4505, %v4639
        %v4658 = vadd.f32 %v4506, %v4642
        %v4659 = vadd.f32 %v4507, %v4645
        %v4660 = vadd.f32 %v4508, %v4648
        %v4661 = vadd.f32 %v4509, %v4651
        %v4662 = vadd.f32 %v4510, %v4654
        %s4663 = scalar_lea.vmem [#allocation9], 1
        %v4664 = vld [vmem:[%s4663] sm:$0x1]
        %s4665 = scalar_lea.vmem %s23, 1
        %v4666 = vld [vmem:[%s4665] sm:$0x1]
        %v4667 = vsel %vm897, %v4656, 0.0
        %4668 = vadd.xlane.f32.xlu0 %v4667
        %v4669 = vpop.xlane.xlu0 %4668
        %v4670 = vsel %vm897, %v4657, 0.0
        %4671 = vadd.xlane.f32.xlu0 %v4670
        %v4672 = vpop.xlane.xlu0 %4671
        %v4673 = vsel %vm897, %v4658, 0.0
        %4674 = vadd.xlane.f32.xlu0 %v4673
        %v4675 = vpop.xlane.xlu0 %4674
        %v4676 = vsel %vm897, %v4659, 0.0
        %4677 = vadd.xlane.f32.xlu0 %v4676
        %v4678 = vpop.xlane.xlu0 %4677
        %v4679 = vsel %vm897, %v4660, 0.0
        %4680 = vadd.xlane.f32.xlu0 %v4679
        %v4681 = vpop.xlane.xlu0 %4680
        %v4682 = vsel %vm897, %v4661, 0.0
        %4683 = vadd.xlane.f32.xlu0 %v4682
        %v4684 = vpop.xlane.xlu0 %4683
        %v4685 = vsel %vm916, %v4662, 0.0
        %4686 = vadd.xlane.f32.xlu0 %v4685
        %v4687 = vpop.xlane.xlu0 %4686
        %v4688 = vmul.f32 %v4669, %v926
        %v4689 = vmul.f32 %v4672, %v926
        %v4690 = vmul.f32 %v4675, %v926
        %v4691 = vmul.f32 %v4678, %v926
        %v4692 = vmul.f32 %v4681, %v926
        %v4693 = vmul.f32 %v4684, %v926
        %v4694 = vmul.f32 %v4687, %v926
        %v4695 = vsub.f32 %v4656, %v4688
        %v4696 = vsub.f32 %v4657, %v4689
        %v4697 = vsub.f32 %v4658, %v4690
        %v4698 = vsub.f32 %v4659, %v4691
        %v4699 = vsub.f32 %v4660, %v4692
        %v4700 = vsub.f32 %v4661, %v4693
        %v4701 = vsub.f32 %v4662, %v4694
        %v4702 = vmul.f32 %v4695, %v4695
        %v4703 = vmul.f32 %v4696, %v4696
        %v4704 = vmul.f32 %v4697, %v4697
        %v4705 = vmul.f32 %v4698, %v4698
        %v4706 = vmul.f32 %v4699, %v4699
        %v4707 = vmul.f32 %v4700, %v4700
        %v4708 = vmul.f32 %v4701, %v4701
        %v4709 = vsel %vm897, %v4702, 0.0
        %4710 = vadd.xlane.f32.xlu0 %v4709
        %v4711 = vpop.xlane.xlu0 %4710
        %v4712 = vsel %vm897, %v4703, 0.0
        %4713 = vadd.xlane.f32.xlu0 %v4712
        %v4714 = vpop.xlane.xlu0 %4713
        %v4715 = vsel %vm897, %v4704, 0.0
        %4716 = vadd.xlane.f32.xlu0 %v4715
        %v4717 = vpop.xlane.xlu0 %4716
        %v4718 = vsel %vm897, %v4705, 0.0
        %4719 = vadd.xlane.f32.xlu0 %v4718
        %v4720 = vpop.xlane.xlu0 %4719
        %v4721 = vsel %vm897, %v4706, 0.0
        %4722 = vadd.xlane.f32.xlu0 %v4721
        %v4723 = vpop.xlane.xlu0 %4722
        %v4724 = vsel %vm897, %v4707, 0.0
        %4725 = vadd.xlane.f32.xlu0 %v4724
        %v4726 = vpop.xlane.xlu0 %4725
        %v4727 = vsel %vm916, %v4708, 0.0
        %4728 = vadd.xlane.f32.xlu0 %v4727
        %v4729 = vpop.xlane.xlu0 %4728
        %v4730 = vmul.f32 %v4711, %v926
        %v4731 = vmul.f32 %v4714, %v926
        %v4732 = vmul.f32 %v4717, %v926
        %v4733 = vmul.f32 %v4720, %v926
        %v4734 = vmul.f32 %v4723, %v926
        %v4735 = vmul.f32 %v4726, %v926
        %v4736 = vmul.f32 %v4729, %v926
        %v4737 = vadd.f32 %v4730, 1e-05
        %v4738 = vadd.f32 %v4731, 1e-05
        %v4739 = vadd.f32 %v4732, 1e-05
        %v4740 = vadd.f32 %v4733, 1e-05
        %v4741 = vadd.f32 %v4734, 1e-05
        %v4742 = vadd.f32 %v4735, 1e-05
        %v4743 = vadd.f32 %v4736, 1e-05
        %v4744 = vrsqrt.pop %v4737
        %v4745 = vmul.f32 %v4744, %v4737
        %v4746 = vmul.f32 %v4745, %v4744
        %v4747 = vmul.f32 0.5, %v4746
        %v4748 = vsub.f32 1.5, %v4747
        %v4749 = vmul.f32 %v4744, %v4748
        %vm4750 = vweird.f32 %v4737
        %vm4751 = vweird.f32 %v4744
        %vm4752 = vmor %vm4750, %vm4751
        %v4753 = vsel %vm4752, %v4744, %v4749
        %v4754 = vrsqrt.pop %v4738
        %v4755 = vmul.f32 %v4754, %v4738
        %v4756 = vmul.f32 %v4755, %v4754
        %v4757 = vmul.f32 0.5, %v4756
        %v4758 = vsub.f32 1.5, %v4757
        %v4759 = vmul.f32 %v4754, %v4758
        %vm4760 = vweird.f32 %v4738
        %vm4761 = vweird.f32 %v4754
        %vm4762 = vmor %vm4760, %vm4761
        %v4763 = vsel %vm4762, %v4754, %v4759
        %v4764 = vrsqrt.pop %v4739
        %v4765 = vmul.f32 %v4764, %v4739
        %v4766 = vmul.f32 %v4765, %v4764
        %v4767 = vmul.f32 0.5, %v4766
        %v4768 = vsub.f32 1.5, %v4767
        %v4769 = vmul.f32 %v4764, %v4768
        %vm4770 = vweird.f32 %v4739
        %vm4771 = vweird.f32 %v4764
        %vm4772 = vmor %vm4770, %vm4771
        %v4773 = vsel %vm4772, %v4764, %v4769
        %v4774 = vrsqrt.pop %v4740
        %v4775 = vmul.f32 %v4774, %v4740
        %v4776 = vmul.f32 %v4775, %v4774
        %v4777 = vmul.f32 0.5, %v4776
        %v4778 = vsub.f32 1.5, %v4777
        %v4779 = vmul.f32 %v4774, %v4778
        %vm4780 = vweird.f32 %v4740
        %vm4781 = vweird.f32 %v4774
        %vm4782 = vmor %vm4780, %vm4781
        %v4783 = vsel %vm4782, %v4774, %v4779
        %v4784 = vrsqrt.pop %v4741
        %v4785 = vmul.f32 %v4784, %v4741
        %v4786 = vmul.f32 %v4785, %v4784
        %v4787 = vmul.f32 0.5, %v4786
        %v4788 = vsub.f32 1.5, %v4787
        %v4789 = vmul.f32 %v4784, %v4788
        %vm4790 = vweird.f32 %v4741
        %vm4791 = vweird.f32 %v4784
        %vm4792 = vmor %vm4790, %vm4791
        %v4793 = vsel %vm4792, %v4784, %v4789
        %v4794 = vrsqrt.pop %v4742
        %v4795 = vmul.f32 %v4794, %v4742
        %v4796 = vmul.f32 %v4795, %v4794
        %v4797 = vmul.f32 0.5, %v4796
        %v4798 = vsub.f32 1.5, %v4797
        %v4799 = vmul.f32 %v4794, %v4798
        %vm4800 = vweird.f32 %v4742
        %vm4801 = vweird.f32 %v4794
        %vm4802 = vmor %vm4800, %vm4801
        %v4803 = vsel %vm4802, %v4794, %v4799
        %v4804 = vrsqrt.pop %v4743
        %v4805 = vmul.f32 %v4804, %v4743
        %v4806 = vmul.f32 %v4805, %v4804
        %v4807 = vmul.f32 0.5, %v4806
        %v4808 = vsub.f32 1.5, %v4807
        %v4809 = vmul.f32 %v4804, %v4808
        %vm4810 = vweird.f32 %v4743
        %vm4811 = vweird.f32 %v4804
        %vm4812 = vmor %vm4810, %vm4811
        %v4813 = vsel %vm4812, %v4804, %v4809
        %v4814 = vmul.f32 %v4695, %v4753
        %v4815 = vmul.f32 %v4696, %v4763
        %v4816 = vmul.f32 %v4697, %v4773
        %v4817 = vmul.f32 %v4698, %v4783
        %v4818 = vmul.f32 %v4699, %v4793
        %v4819 = vmul.f32 %v4700, %v4803
        %v4820 = vmul.f32 %v4701, %v4813
        %v4822 = vperm.slane %v4664, 0
        %v4824 = vmul.f32 %v4814, %v4822
        %v4825 = vmul.f32 %v4815, %v4822
        %v4826 = vmul.f32 %v4816, %v4822
        %v4827 = vmul.f32 %v4817, %v4822
        %v4828 = vmul.f32 %v4818, %v4822
        %v4829 = vmul.f32 %v4819, %v4822
        %v4830 = vmul.f32 %v4820, %v4822
        %v4832 = vperm.slane %v4666, 0
        %v4834 = vadd.f32 %v4824, %v4832
        %v4835 = vadd.f32 %v4825, %v4832
        %v4836 = vadd.f32 %v4826, %v4832
        %v4837 = vadd.f32 %v4827, %v4832
        %v4838 = vadd.f32 %v4828, %v4832
        %v4839 = vadd.f32 %v4829, %v4832
        %v4840 = vadd.f32 %v4830, %v4832
        %4841 = vst.msk [vmem:[%s820] sm:$0xff] %vm897, %v4834
        %4842 = vst.msk [vmem:[%s820 + $0x8] sm:$0xff] %vm897, %v4835
        %4843 = vst.msk [vmem:[%s820 + $0x10] sm:$0xff] %vm897, %v4836
        %4844 = vst.msk [vmem:[%s820 + $0x18] sm:$0xff] %vm897, %v4837
        %4845 = vst.msk [vmem:[%s820 + $0x20] sm:$0xff] %vm897, %v4838
        %4846 = vst.msk [vmem:[%s820 + $0x28] sm:$0xff] %vm897, %v4839
        %4847 = vst.msk [vmem:[%s820 + $0x30] sm:$0x3] %vm916, %v4840
        %p4848 = scmp.lt.s32.totalorder %s38, 1
        %s4849 = scalar_select %p4848, %s38, 1
        %s4850 = smul.addr %s4849, 7
        %s4851 = smul.addr %s4850, 8
        %s4852 = scalar_lea.vmem %s24, %s4851
        // Predicated region
        $region137: #{sttr_forward.3} parent=115 // pred_check
          %p4853 = pneg %p565
        $region138: #{sttr_forward.3} parent=115 // pred_check_branch
          %4855 = sbr.rel (%p4853) target = $region140
        $region139: #{sttr_forward.3} parent=115 // pred_region
          _
        $region140: #{sttr_forward.3} parent=115 // pred_fallthru
          _
      $region116: #{sttr_forward.3} parent=5 // pred_fallthru
        _
      %p4856 = scmp.le.s32.totalorder 2, %s33
      // Predicated region
      $region141: #{sttr_forward.3} parent=5 // pred_check
        %p4857 = pneg %p4856
      $region142: #{sttr_forward.3} parent=5 // pred_check_branch
        %4859 = sbr.rel (%p4857) target = $region144
      $region143: #{sttr_forward.3} parent=5 // pred_region
        %s4860 = ssub.s32 %s33, 2
        // Predicated region
        $region145: #{sttr_forward.3} parent=143 // pred_check
          %p4861 = pneg %p571
        $region146: #{sttr_forward.3} parent=143 // pred_check_branch
          %4863 = sbr.rel (%p4861) target = $region148
        $region147: #{sttr_forward.3} parent=143 // pred_region
          %p4864 = scmp.lt.s32.totalorder %s39, 1
          %s4865 = scalar_select %p4864, %s39, 1
          %s4866 = smul.addr %s4865, 7
          %s4867 = smul.addr %s4866, 8
          %s4868 = scalar_lea.vmem %s24, %s4867
        $region148: #{sttr_forward.3} parent=143 // pred_fallthru
          _
      $region144: #{sttr_forward.3} parent=5 // pred_fallthru
        _
    $region6: #{sttr_forward.3} parent=1 // loop_footer
      %s37 = sadd.s32 1, %s33
    $region7: #{sttr_forward.3} parent=1 // loop_footer_branch
      %32 = sbr.rel target = $region3
    $region8: #{sttr_forward.3} parent=1 // loop_exit
      _
    %4869 = vsyncpa [#allocation3], 1
    %s4870 = scalar_lea.sflag [#allocation3], 1
    %4871 = vsyncpa %s4870, 1
    %4872 = vsyncpa [#allocation5], 1
    %4873 = vsyncpa [#allocation8], 1

</llo_original>
